<compile_context>
chip_gen: v7x
topology: tpu7x:2x2x1
jax: 0.10.0
libtpu: 0.0.40
codegen_flags: <defaults>
</compile_context>

<pallas_src>
import functools

import jax
import jax.numpy as jnp
from jax.experimental import pallas as pl
from jax.experimental.pallas import tpu as pltpu


def _layernorm(x, gamma, beta, eps=1e-5):
    mu = jnp.mean(x, axis=-1, keepdims=True)
    var = jnp.mean(jnp.square(x - mu), axis=-1, keepdims=True)
    return (x - mu) * jax.lax.rsqrt(var + eps) * gamma + beta


def _gelu_exact(x):
    return 0.5 * x * (1.0 + jax.lax.erf(x / jnp.sqrt(jnp.float32(2.0))))


def transformer_block_kernel(
    x_ref,       # (TB, D, S) f32   channel-major activations
    wqkv_ref,    # (D, 3D)   bf16   packed q|k|v projection (q columns pre-scaled)
    bqkv_ref,    # (1, 3D)   f32
    wo_ref,      # (D, D)    bf16   out projection
    bo_ref,      # (1, D)    f32
    g1_ref,      # (1, D)    norm1 gamma
    be1_ref,     # (1, D)    norm1 beta
    w1_ref,      # (D, M)    bf16   mlp linear 1
    bb1_ref,     # (1, M)    f32
    w2_ref,      # (M, D)    bf16   mlp linear 2
    bb2_ref,     # (1, D)    f32
    g2_ref,      # (1, D)    norm2 gamma
    be2_ref,     # (1, D)    norm2 beta
    o_ref,       # (TB, D, S) f32
    *,
    num_heads: int,
):
    TB, D, S = x_ref.shape
    H = num_heads
    hd = D // H
    R = TB * S

    # channel-major (D, S) -> row-major (S, D) per batch: one small XLU transpose each.
    x_f32 = jnp.concatenate([x_ref[b].T for b in range(TB)], axis=0)      # (R, D) f32
    x_bf = x_f32.astype(jnp.bfloat16)

    # ---- fused QKV projection: ONE (R, D) @ (D, 3D) matmul, bf16 operands, f32 acc ----
    qkv = jnp.dot(x_bf, wqkv_ref[...],
                  preferred_element_type=jnp.float32) + bqkv_ref[...]     # (R, 3D)
    qkv = qkv.reshape(TB, S, 3 * D)   # leading split only (layout-free)

    # ---- per-head attention.  Only lane slices of the fused qkv + the two
    #      inherently-narrow (K=hd / N=hd) matmuls per head happen here. ----
    ctx_heads = []
    for h in range(H):
        q_h = qkv[:, :, h * hd:(h + 1) * hd].astype(jnp.bfloat16)          # scale folded in
        k_h = qkv[:, :, D + h * hd:D + (h + 1) * hd].astype(jnp.bfloat16)
        v_h = qkv[:, :, 2 * D + h * hd:2 * D + (h + 1) * hd].astype(jnp.bfloat16)

        s = jnp.einsum("bqd,bkd->bqk", q_h, k_h,
                       preferred_element_type=jnp.float32)                 # (TB, S, S)
        s = s - jnp.max(s, axis=-1, keepdims=True)
        p = jnp.exp(s)
        p = p * pl.reciprocal(jnp.sum(p, axis=-1, keepdims=True), approx=True)

        ctx_heads.append(jnp.einsum("bqk,bkd->bqd", p.astype(jnp.bfloat16), v_h,
                                    preferred_element_type=jnp.float32))   # (TB, S, hd)

    # head concat (lane axis) + ONE out-projection matmul over all rows.
    ctx = jnp.concatenate(ctx_heads, axis=-1).reshape(R, D)                # (R, D)
    attn = jnp.dot(ctx.astype(jnp.bfloat16), wo_ref[...],
                   preferred_element_type=jnp.float32) + bo_ref[...]

    # ---- residual + LayerNorm 1 (rows folded: (R, D)) ----
    y1 = _layernorm(x_f32 + attn, g1_ref[...], be1_ref[...])

    # ---- MLP: Linear -> GELU -> Linear (bf16 operands, f32 accumulate) ----
    h1 = jnp.dot(y1.astype(jnp.bfloat16), w1_ref[...],
                 preferred_element_type=jnp.float32) + bb1_ref[...]
    h1 = _gelu_exact(h1)
    h2 = jnp.dot(h1.astype(jnp.bfloat16), w2_ref[...],
                 preferred_element_type=jnp.float32) + bb2_ref[...]

    # ---- residual + LayerNorm 2; store back channel-major (lane-dense along S) ----
    y2 = _layernorm(y1 + h2, g2_ref[...], be2_ref[...])
    for b in range(TB):
        o_ref[b] = y2[b * S:(b + 1) * S, :].T.astype(o_ref.dtype)          # (D, S)


def _pick_tb(B, S, target_rows=256):
    """Batches folded per grid step.  Prefer >= 2 grid steps (keeps both v7x
    TensorCores busy on the 'parallel' axis) while still folding ~target_rows
    rows (TB*S) into the matmul M dimension per step."""
    divisors = [d for d in range(1, B + 1) if B % d == 0]
    cands = [d for d in divisors if B // d >= 2] or divisors
    good = [d for d in cands if d * S <= max(target_rows, S)]
    return max(good) if good else min(cands)


def transformer_block(x_nchw, kparams, num_heads):
    B, C, Hs, Ws = x_nchw.shape
    D = C
    S = Hs * Ws
    assert D % num_heads == 0
    # NCHW -> (B, C, S): channel-major, reshape only (no transpose needed).
    x = x_nchw.reshape(B, D, S)

    TB = _pick_tb(B, S)
    weights = (
        kparams["wqkv"], kparams["bqkv"], kparams["wo"], kparams["bo"],
        kparams["g1"], kparams["be1"], kparams["w1"], kparams["bb1"],
        kparams["w2"], kparams["bb2"], kparams["g2"], kparams["be2"],
    )

    def full_spec(a):
        nd = a.ndim
        return pl.BlockSpec(a.shape, lambda b, _nd=nd: (0,) * _nd)

    out = pl.pallas_call(
        functools.partial(transformer_block_kernel, num_heads=num_heads),
        out_shape=jax.ShapeDtypeStruct((B, D, S), x.dtype),
        grid_spec=pltpu.PrefetchScalarGridSpec(
            num_scalar_prefetch=0,
            grid=(B // TB,),
            in_specs=[pl.BlockSpec((TB, D, S), lambda b: (b, 0, 0))]
                     + [full_spec(w) for w in weights],
            out_specs=pl.BlockSpec((TB, D, S), lambda b: (b, 0, 0)),
        ),
        compiler_params=pltpu.CompilerParams(
            dimension_semantics=("parallel",),
            vmem_limit_bytes=48 * 1024 * 1024,
        ),
    )(x, *weights)

    # (B, C, S) -> NCHW (reshape only).
    return out.reshape(B, C, Hs, Ws)


def make_params(key, dim, num_heads, mlp_dim):
    """PyTorch-layout f32 parameters (in_proj (3D,D), Linear weights (out,in), etc.)."""
    ks = jax.random.split(key, 12)
    s = 0.02
    return {
        "in_proj_w": s * jax.random.normal(ks[0], (3 * dim, dim), jnp.float32),
        "in_proj_b": 0.01 * jax.random.normal(ks[1], (3 * dim,), jnp.float32),
        "out_w": s * jax.random.normal(ks[2], (dim, dim), jnp.float32),
        "out_b": 0.01 * jax.random.normal(ks[3], (dim,), jnp.float32),
        "ln1_g": 1.0 + 0.1 * jax.random.normal(ks[4], (dim,), jnp.float32),
        "ln1_b": 0.05 * jax.random.normal(ks[5], (dim,), jnp.float32),
        "ln2_g": 1.0 + 0.1 * jax.random.normal(ks[6], (dim,), jnp.float32),
        "ln2_b": 0.05 * jax.random.normal(ks[7], (dim,), jnp.float32),
        "w1": s * jax.random.normal(ks[8], (mlp_dim, dim), jnp.float32),
        "b1": 0.01 * jax.random.normal(ks[9], (mlp_dim,), jnp.float32),
        "w2": s * jax.random.normal(ks[10], (dim, mlp_dim), jnp.float32),
        "b2": 0.01 * jax.random.normal(ks[11], (dim,), jnp.float32),
    }


def prepare_kernel_params(p, num_heads):
    """Re-layout PyTorch params for the kernel: packed (D, 3D) QKV weight with the
    1/sqrt(hd) q-scale folded in, bf16 matmul operands, f32 biases / LN params."""
    D = p["out_w"].shape[0]
    hd = D // num_heads
    scale = 1.0 / jnp.sqrt(jnp.float32(hd))

    # qkv = x @ in_proj_w.T + in_proj_b  -> columns [0:D)=q (head-major), [D:2D)=k, [2D:3D)=v
    col_scale = jnp.concatenate(
        [jnp.full((D,), scale, jnp.float32), jnp.ones((2 * D,), jnp.float32)])
    wqkv = (p["in_proj_w"].T * col_scale[None, :]).astype(jnp.bfloat16)   # (D, 3D)
    bqkv = (p["in_proj_b"].reshape(1, 3 * D) * col_scale[None, :]).astype(jnp.float32)

    return {
        "wqkv": wqkv,
        "bqkv": bqkv,
        "wo":   p["out_w"].T.astype(jnp.bfloat16),                         # (D, D)
        "bo":   p["out_b"].reshape(1, D).astype(jnp.float32),
        "g1":   p["ln1_g"].reshape(1, D), "be1": p["ln1_b"].reshape(1, D),
        "w1":   p["w1"].T.astype(jnp.bfloat16),                            # (D, M)
        "bb1":  p["b1"].reshape(1, -1).astype(jnp.float32),
        "w2":   p["w2"].T.astype(jnp.bfloat16),                            # (M, D)
        "bb2":  p["b2"].reshape(1, D).astype(jnp.float32),
        "g2":   p["ln2_g"].reshape(1, D), "be2": p["ln2_b"].reshape(1, D),
    }


def reference_jax(x_nchw, p, num_heads):
    """Pure-JAX f32 reference reproducing the PyTorch forward (eval mode)."""
    B, C, H, W = x_nchw.shape
    D = C
    hd = D // num_heads
    x = x_nchw.reshape(B, C, H * W).transpose(0, 2, 1)                    # (B, S, D)
    qkv = x @ p["in_proj_w"].T + p["in_proj_b"]
    q, k, v = jnp.split(qkv, 3, axis=-1)

    def split_heads(t):  # (B, S, D) -> (B, nH, S, hd)
        Bq, S, _ = t.shape
        return t.reshape(Bq, S, num_heads, hd).transpose(0, 2, 1, 3)

    q = split_heads(q) / jnp.sqrt(jnp.float32(hd))
    k = split_heads(k)
    v = split_heads(v)
    s = jnp.einsum("bhqd,bhkd->bhqk", q, k)
    a = jax.nn.softmax(s, axis=-1)
    o = jnp.einsum("bhqk,bhkd->bhqd", a, v)
    o = o.transpose(0, 2, 1, 3).reshape(B, -1, D)
    o = o @ p["out_w"].T + p["out_b"]
    x = _layernorm(x + o, p["ln1_g"], p["ln1_b"])
    h1 = _gelu_exact(x @ p["w1"].T + p["b1"])
    h2 = h1 @ p["w2"].T + p["b2"]
    x = _layernorm(x + h2, p["ln2_g"], p["ln2_b"])
    return x.transpose(0, 2, 1).reshape(B, C, H, W)


if __name__ == "__main__":
    # B=2, dim=32, 4 heads, mlp_dim=64, spatial 16x16 (S=256 -> lane-dense blocks).
    B, dim, num_heads, mlp_dim, Hs, Ws = 2, 32, 4, 64, 16, 16

    key = jax.random.PRNGKey(0)
    kx, kp = jax.random.split(key)
    x = jax.random.normal(kx, (B, dim, Hs, Ws), jnp.float32)
    torch_params = make_params(kp, dim, num_heads, mlp_dim)
    kparams = prepare_kernel_params(torch_params, num_heads)

    out = transformer_block(x, kparams, num_heads)
    out = jax.block_until_ready(out)

    ref = reference_jax(x, torch_params, num_heads)
    assert out.shape == x.shape
    err = float(jnp.max(jnp.abs(out - ref)))
    assert err < 2e-2, err  # bf16 MXU operands + approx softmax reciprocal vs f32 reference

    print("KERNEL_OK")
</pallas_src>

<mosaic_0001>
module attributes {stable_mosaic.version = 11 : i64} {
  func.func @transformer_block_kernel(%arg0: i32, %arg1: memref<1x32x256xf32, #tpu.memory_space<vmem>>, %arg2: memref<32x96xbf16, #tpu.memory_space<vmem>>, %arg3: memref<1x96xf32, #tpu.memory_space<vmem>>, %arg4: memref<32x32xbf16, #tpu.memory_space<vmem>>, %arg5: memref<1x32xf32, #tpu.memory_space<vmem>>, %arg6: memref<1x32xf32, #tpu.memory_space<vmem>>, %arg7: memref<1x32xf32, #tpu.memory_space<vmem>>, %arg8: memref<32x64xbf16, #tpu.memory_space<vmem>>, %arg9: memref<1x64xf32, #tpu.memory_space<vmem>>, %arg10: memref<64x32xbf16, #tpu.memory_space<vmem>>, %arg11: memref<1x32xf32, #tpu.memory_space<vmem>>, %arg12: memref<1x32xf32, #tpu.memory_space<vmem>>, %arg13: memref<1x32xf32, #tpu.memory_space<vmem>>, %arg14: memref<1x32x256xf32, #tpu.memory_space<vmem>>) attributes {dimension_semantics = [#tpu.dimension_semantics<parallel>], iteration_bounds = array<i64: 2>, scalar_prefetch = 0 : i64, scratch_operands = 0 : i64, tpu.core_type = #tpu.core_type<tc>, window_params = [{transform_indices = @transform_0, window_bounds = array<i64: 1, 32, 256>}, {pipeline_mode = #tpu.pipeline_mode<synchronous>, transform_indices = @transform_1, window_bounds = array<i64: 32, 96>}, {pipeline_mode = #tpu.pipeline_mode<synchronous>, transform_indices = @transform_2, window_bounds = array<i64: 1, 96>}, {pipeline_mode = #tpu.pipeline_mode<synchronous>, transform_indices = @transform_3, window_bounds = array<i64: 32, 32>}, {pipeline_mode = #tpu.pipeline_mode<synchronous>, transform_indices = @transform_4, window_bounds = array<i64: 1, 32>}, {pipeline_mode = #tpu.pipeline_mode<synchronous>, transform_indices = @transform_5, window_bounds = array<i64: 1, 32>}, {pipeline_mode = #tpu.pipeline_mode<synchronous>, transform_indices = @transform_6, window_bounds = array<i64: 1, 32>}, {pipeline_mode = #tpu.pipeline_mode<synchronous>, transform_indices = @transform_7, window_bounds = array<i64: 32, 64>}, {pipeline_mode = #tpu.pipeline_mode<synchronous>, transform_indices = @transform_8, window_bounds = array<i64: 1, 64>}, {pipeline_mode = #tpu.pipeline_mode<synchronous>, transform_indices = @transform_9, window_bounds = array<i64: 64, 32>}, {pipeline_mode = #tpu.pipeline_mode<synchronous>, transform_indices = @transform_10, window_bounds = array<i64: 1, 32>}, {pipeline_mode = #tpu.pipeline_mode<synchronous>, transform_indices = @transform_11, window_bounds = array<i64: 1, 32>}, {pipeline_mode = #tpu.pipeline_mode<synchronous>, transform_indices = @transform_12, window_bounds = array<i64: 1, 32>}, {transform_indices = @transform_13, window_bounds = array<i64: 1, 32, 256>}]} {
    %c0 = arith.constant 0 : index
    %c0_0 = arith.constant 0 : index
    %c0_1 = arith.constant 0 : index
    %0 = vector.load %arg1[%c0, %c0_0, %c0_1] : memref<1x32x256xf32, #tpu.memory_space<vmem>>, vector<1x32x256xf32>
    %1 = vector.shape_cast %0 : vector<1x32x256xf32> to vector<32x256xf32>
    %2 = tpu.transpose %1, [1, 0] : vector<32x256xf32> -> vector<256x32xf32>
    %3 = arith.truncf %2 : vector<256x32xf32> to vector<256x32xbf16>
    %c0_2 = arith.constant 0 : index
    %c0_3 = arith.constant 0 : index
    %4 = vector.load %arg2[%c0_2, %c0_3] : memref<32x96xbf16, #tpu.memory_space<vmem>>, vector<32x96xbf16>
    %cst = arith.constant dense<0.000000e+00> : vector<256x96xf32>
    %5 = tpu.matmul %3, %4, %cst {dimension_numbers = #tpu.dot_dimension_numbers<[1], [0], [0], [1], [0, 0, 1, 1], [], []>} : vector<256x32xbf16>, vector<32x96xbf16>, vector<256x96xf32> -> vector<256x96xf32>
    %c0_4 = arith.constant 0 : index
    %c0_5 = arith.constant 0 : index
    %6 = vector.load %arg3[%c0_4, %c0_5] : memref<1x96xf32, #tpu.memory_space<vmem>>, vector<1x96xf32>
    %7 = vector.broadcast %6 : vector<1x96xf32> to vector<256x96xf32>
    %8 = arith.addf %5, %7 : vector<256x96xf32>
    %9 = vector.shape_cast %8 : vector<256x96xf32> to vector<1x256x96xf32>
    %10 = vector.extract_strided_slice %9 {offsets = [0, 0, 0], sizes = [1, 256, 8], strides = [1, 1, 1]} : vector<1x256x96xf32> to vector<1x256x8xf32>
    %11 = arith.truncf %10 : vector<1x256x8xf32> to vector<1x256x8xbf16>
    %12 = vector.extract_strided_slice %9 {offsets = [0, 0, 32], sizes = [1, 256, 8], strides = [1, 1, 1]} : vector<1x256x96xf32> to vector<1x256x8xf32>
    %13 = arith.truncf %12 : vector<1x256x8xf32> to vector<1x256x8xbf16>
    %14 = vector.extract_strided_slice %9 {offsets = [0, 0, 64], sizes = [1, 256, 8], strides = [1, 1, 1]} : vector<1x256x96xf32> to vector<1x256x8xf32>
    %15 = arith.truncf %14 : vector<1x256x8xf32> to vector<1x256x8xbf16>
    "tpu.trace_start"() <{level = 10 : i32, message = "bqd,bkd->bqk"}> : () -> ()
    %cst_6 = arith.constant dense<0.000000e+00> : vector<1x256x256xf32>
    %16 = tpu.matmul %11, %13, %cst_6 {dimension_numbers = #tpu.dot_dimension_numbers<[2], [2], [1], [1], [0, 0, 0, 1, 1, 1], [0], [0]>} : vector<1x256x8xbf16>, vector<1x256x8xbf16>, vector<1x256x256xf32> -> vector<1x256x256xf32>
    "tpu.trace_stop"() : () -> ()
    %cst_7 = arith.constant dense<0xFF800000> : vector<1x256xf32>
    %17 = vector.multi_reduction <maximumf>, %16, %cst_7 [2] : vector<1x256x256xf32> to vector<1x256xf32>
    %18 = vector.shape_cast %17 : vector<1x256xf32> to vector<1x256x1xf32>
    %19 = vector.broadcast %18 : vector<1x256x1xf32> to vector<1x256x256xf32>
    %20 = arith.subf %16, %19 : vector<1x256x256xf32>
    %21 = math.exp %20 : vector<1x256x256xf32>
    %cst_8 = arith.constant dense<0.000000e+00> : vector<1x256xf32>
    %22 = vector.multi_reduction <add>, %21, %cst_8 [2] : vector<1x256x256xf32> to vector<1x256xf32>
    %23 = vector.shape_cast %22 : vector<1x256xf32> to vector<1x256x1xf32>
    %24 = tpu.reciprocal %23 {approx = true} : vector<1x256x1xf32> -> vector<1x256x1xf32>
    %25 = vector.broadcast %24 : vector<1x256x1xf32> to vector<1x256x256xf32>
    %26 = arith.mulf %21, %25 : vector<1x256x256xf32>
    %27 = arith.truncf %26 : vector<1x256x256xf32> to vector<1x256x256xbf16>
    "tpu.trace_start"() <{level = 10 : i32, message = "bqk,bkd->bqd"}> : () -> ()
    %cst_9 = arith.constant dense<0.000000e+00> : vector<1x256x8xf32>
    %28 = tpu.matmul %27, %15, %cst_9 {dimension_numbers = #tpu.dot_dimension_numbers<[2], [1], [1], [2], [0, 0, 0, 1, 1, 2], [0], [0]>} : vector<1x256x256xbf16>, vector<1x256x8xbf16>, vector<1x256x8xf32> -> vector<1x256x8xf32>
    "tpu.trace_stop"() : () -> ()
    %29 = vector.extract_strided_slice %9 {offsets = [0, 0, 8], sizes = [1, 256, 8], strides = [1, 1, 1]} : vector<1x256x96xf32> to vector<1x256x8xf32>
    %30 = arith.truncf %29 : vector<1x256x8xf32> to vector<1x256x8xbf16>
    %31 = vector.extract_strided_slice %9 {offsets = [0, 0, 40], sizes = [1, 256, 8], strides = [1, 1, 1]} : vector<1x256x96xf32> to vector<1x256x8xf32>
    %32 = arith.truncf %31 : vector<1x256x8xf32> to vector<1x256x8xbf16>
    %33 = vector.extract_strided_slice %9 {offsets = [0, 0, 72], sizes = [1, 256, 8], strides = [1, 1, 1]} : vector<1x256x96xf32> to vector<1x256x8xf32>
    %34 = arith.truncf %33 : vector<1x256x8xf32> to vector<1x256x8xbf16>
    "tpu.trace_start"() <{level = 10 : i32, message = "bqd,bkd->bqk"}> : () -> ()
    %cst_10 = arith.constant dense<0.000000e+00> : vector<1x256x256xf32>
    %35 = tpu.matmul %30, %32, %cst_10 {dimension_numbers = #tpu.dot_dimension_numbers<[2], [2], [1], [1], [0, 0, 0, 1, 1, 1], [0], [0]>} : vector<1x256x8xbf16>, vector<1x256x8xbf16>, vector<1x256x256xf32> -> vector<1x256x256xf32>
    "tpu.trace_stop"() : () -> ()
    %cst_11 = arith.constant dense<0xFF800000> : vector<1x256xf32>
    %36 = vector.multi_reduction <maximumf>, %35, %cst_11 [2] : vector<1x256x256xf32> to vector<1x256xf32>
    %37 = vector.shape_cast %36 : vector<1x256xf32> to vector<1x256x1xf32>
    %38 = vector.broadcast %37 : vector<1x256x1xf32> to vector<1x256x256xf32>
    %39 = arith.subf %35, %38 : vector<1x256x256xf32>
    %40 = math.exp %39 : vector<1x256x256xf32>
    %cst_12 = arith.constant dense<0.000000e+00> : vector<1x256xf32>
    %41 = vector.multi_reduction <add>, %40, %cst_12 [2] : vector<1x256x256xf32> to vector<1x256xf32>
    %42 = vector.shape_cast %41 : vector<1x256xf32> to vector<1x256x1xf32>
    %43 = tpu.reciprocal %42 {approx = true} : vector<1x256x1xf32> -> vector<1x256x1xf32>
    %44 = vector.broadcast %43 : vector<1x256x1xf32> to vector<1x256x256xf32>
    %45 = arith.mulf %40, %44 : vector<1x256x256xf32>
    %46 = arith.truncf %45 : vector<1x256x256xf32> to vector<1x256x256xbf16>
    "tpu.trace_start"() <{level = 10 : i32, message = "bqk,bkd->bqd"}> : () -> ()
    %cst_13 = arith.constant dense<0.000000e+00> : vector<1x256x8xf32>
    %47 = tpu.matmul %46, %34, %cst_13 {dimension_numbers = #tpu.dot_dimension_numbers<[2], [1], [1], [2], [0, 0, 0, 1, 1, 2], [0], [0]>} : vector<1x256x256xbf16>, vector<1x256x8xbf16>, vector<1x256x8xf32> -> vector<1x256x8xf32>
    "tpu.trace_stop"() : () -> ()
    %48 = vector.extract_strided_slice %9 {offsets = [0, 0, 16], sizes = [1, 256, 8], strides = [1, 1, 1]} : vector<1x256x96xf32> to vector<1x256x8xf32>
    %49 = arith.truncf %48 : vector<1x256x8xf32> to vector<1x256x8xbf16>
    %50 = vector.extract_strided_slice %9 {offsets = [0, 0, 48], sizes = [1, 256, 8], strides = [1, 1, 1]} : vector<1x256x96xf32> to vector<1x256x8xf32>
    %51 = arith.truncf %50 : vector<1x256x8xf32> to vector<1x256x8xbf16>
    %52 = vector.extract_strided_slice %9 {offsets = [0, 0, 80], sizes = [1, 256, 8], strides = [1, 1, 1]} : vector<1x256x96xf32> to vector<1x256x8xf32>
    %53 = arith.truncf %52 : vector<1x256x8xf32> to vector<1x256x8xbf16>
    "tpu.trace_start"() <{level = 10 : i32, message = "bqd,bkd->bqk"}> : () -> ()
    %cst_14 = arith.constant dense<0.000000e+00> : vector<1x256x256xf32>
    %54 = tpu.matmul %49, %51, %cst_14 {dimension_numbers = #tpu.dot_dimension_numbers<[2], [2], [1], [1], [0, 0, 0, 1, 1, 1], [0], [0]>} : vector<1x256x8xbf16>, vector<1x256x8xbf16>, vector<1x256x256xf32> -> vector<1x256x256xf32>
    "tpu.trace_stop"() : () -> ()
    %cst_15 = arith.constant dense<0xFF800000> : vector<1x256xf32>
    %55 = vector.multi_reduction <maximumf>, %54, %cst_15 [2] : vector<1x256x256xf32> to vector<1x256xf32>
    %56 = vector.shape_cast %55 : vector<1x256xf32> to vector<1x256x1xf32>
    %57 = vector.broadcast %56 : vector<1x256x1xf32> to vector<1x256x256xf32>
    %58 = arith.subf %54, %57 : vector<1x256x256xf32>
    %59 = math.exp %58 : vector<1x256x256xf32>
    %cst_16 = arith.constant dense<0.000000e+00> : vector<1x256xf32>
    %60 = vector.multi_reduction <add>, %59, %cst_16 [2] : vector<1x256x256xf32> to vector<1x256xf32>
    %61 = vector.shape_cast %60 : vector<1x256xf32> to vector<1x256x1xf32>
    %62 = tpu.reciprocal %61 {approx = true} : vector<1x256x1xf32> -> vector<1x256x1xf32>
    %63 = vector.broadcast %62 : vector<1x256x1xf32> to vector<1x256x256xf32>
    %64 = arith.mulf %59, %63 : vector<1x256x256xf32>
    %65 = arith.truncf %64 : vector<1x256x256xf32> to vector<1x256x256xbf16>
    "tpu.trace_start"() <{level = 10 : i32, message = "bqk,bkd->bqd"}> : () -> ()
    %cst_17 = arith.constant dense<0.000000e+00> : vector<1x256x8xf32>
    %66 = tpu.matmul %65, %53, %cst_17 {dimension_numbers = #tpu.dot_dimension_numbers<[2], [1], [1], [2], [0, 0, 0, 1, 1, 2], [0], [0]>} : vector<1x256x256xbf16>, vector<1x256x8xbf16>, vector<1x256x8xf32> -> vector<1x256x8xf32>
    "tpu.trace_stop"() : () -> ()
    %67 = vector.extract_strided_slice %9 {offsets = [0, 0, 24], sizes = [1, 256, 8], strides = [1, 1, 1]} : vector<1x256x96xf32> to vector<1x256x8xf32>
    %68 = arith.truncf %67 : vector<1x256x8xf32> to vector<1x256x8xbf16>
    %69 = vector.extract_strided_slice %9 {offsets = [0, 0, 56], sizes = [1, 256, 8], strides = [1, 1, 1]} : vector<1x256x96xf32> to vector<1x256x8xf32>
    %70 = arith.truncf %69 : vector<1x256x8xf32> to vector<1x256x8xbf16>
    %71 = vector.extract_strided_slice %9 {offsets = [0, 0, 88], sizes = [1, 256, 8], strides = [1, 1, 1]} : vector<1x256x96xf32> to vector<1x256x8xf32>
    %72 = arith.truncf %71 : vector<1x256x8xf32> to vector<1x256x8xbf16>
    "tpu.trace_start"() <{level = 10 : i32, message = "bqd,bkd->bqk"}> : () -> ()
    %cst_18 = arith.constant dense<0.000000e+00> : vector<1x256x256xf32>
    %73 = tpu.matmul %68, %70, %cst_18 {dimension_numbers = #tpu.dot_dimension_numbers<[2], [2], [1], [1], [0, 0, 0, 1, 1, 1], [0], [0]>} : vector<1x256x8xbf16>, vector<1x256x8xbf16>, vector<1x256x256xf32> -> vector<1x256x256xf32>
    "tpu.trace_stop"() : () -> ()
    %cst_19 = arith.constant dense<0xFF800000> : vector<1x256xf32>
    %74 = vector.multi_reduction <maximumf>, %73, %cst_19 [2] : vector<1x256x256xf32> to vector<1x256xf32>
    %75 = vector.shape_cast %74 : vector<1x256xf32> to vector<1x256x1xf32>
    %76 = vector.broadcast %75 : vector<1x256x1xf32> to vector<1x256x256xf32>
    %77 = arith.subf %73, %76 : vector<1x256x256xf32>
    %78 = math.exp %77 : vector<1x256x256xf32>
    %cst_20 = arith.constant dense<0.000000e+00> : vector<1x256xf32>
    %79 = vector.multi_reduction <add>, %78, %cst_20 [2] : vector<1x256x256xf32> to vector<1x256xf32>
    %80 = vector.shape_cast %79 : vector<1x256xf32> to vector<1x256x1xf32>
    %81 = tpu.reciprocal %80 {approx = true} : vector<1x256x1xf32> -> vector<1x256x1xf32>
    %82 = vector.broadcast %81 : vector<1x256x1xf32> to vector<1x256x256xf32>
    %83 = arith.mulf %78, %82 : vector<1x256x256xf32>
    %84 = arith.truncf %83 : vector<1x256x256xf32> to vector<1x256x256xbf16>
    "tpu.trace_start"() <{level = 10 : i32, message = "bqk,bkd->bqd"}> : () -> ()
    %cst_21 = arith.constant dense<0.000000e+00> : vector<1x256x8xf32>
    %85 = tpu.matmul %84, %72, %cst_21 {dimension_numbers = #tpu.dot_dimension_numbers<[2], [1], [1], [2], [0, 0, 0, 1, 1, 2], [0], [0]>} : vector<1x256x256xbf16>, vector<1x256x8xbf16>, vector<1x256x8xf32> -> vector<1x256x8xf32>
    "tpu.trace_stop"() : () -> ()
    %86 = tpu.concatenate %28, %47, %66, %85 in 2 : vector<1x256x8xf32>, vector<1x256x8xf32>, vector<1x256x8xf32>, vector<1x256x8xf32> -> vector<1x256x32xf32>
    %87 = vector.shape_cast %86 : vector<1x256x32xf32> to vector<256x32xf32>
    %88 = arith.truncf %87 : vector<256x32xf32> to vector<256x32xbf16>
    %c0_22 = arith.constant 0 : index
    %c0_23 = arith.constant 0 : index
    %89 = vector.load %arg4[%c0_22, %c0_23] : memref<32x32xbf16, #tpu.memory_space<vmem>>, vector<32x32xbf16>
    %cst_24 = arith.constant dense<0.000000e+00> : vector<256x32xf32>
    %90 = tpu.matmul %88, %89, %cst_24 {dimension_numbers = #tpu.dot_dimension_numbers<[1], [0], [0], [1], [0, 0, 1, 1], [], []>} : vector<256x32xbf16>, vector<32x32xbf16>, vector<256x32xf32> -> vector<256x32xf32>
    %c0_25 = arith.constant 0 : index
    %c0_26 = arith.constant 0 : index
    %91 = vector.load %arg5[%c0_25, %c0_26] : memref<1x32xf32, #tpu.memory_space<vmem>>, vector<1x32xf32>
    %92 = vector.broadcast %91 : vector<1x32xf32> to vector<256x32xf32>
    %93 = arith.addf %90, %92 : vector<256x32xf32>
    %94 = arith.addf %2, %93 : vector<256x32xf32>
    %c0_27 = arith.constant 0 : index
    %c0_28 = arith.constant 0 : index
    %95 = vector.load %arg6[%c0_27, %c0_28] : memref<1x32xf32, #tpu.memory_space<vmem>>, vector<1x32xf32>
    %c0_29 = arith.constant 0 : index
    %c0_30 = arith.constant 0 : index
    %96 = vector.load %arg7[%c0_29, %c0_30] : memref<1x32xf32, #tpu.memory_space<vmem>>, vector<1x32xf32>
    %cst_31 = arith.constant dense<0.000000e+00> : vector<256xf32>
    %97 = vector.multi_reduction <add>, %94, %cst_31 [1] : vector<256x32xf32> to vector<256xf32>
    %98 = vector.shape_cast %97 : vector<256xf32> to vector<256x1xf32>
    %cst_32 = arith.constant 3.200000e+01 : f32
    %99 = vector.broadcast %cst_32 : f32 to vector<256x1xf32>
    %100 = arith.divf %98, %99 : vector<256x1xf32>
    %101 = vector.broadcast %100 : vector<256x1xf32> to vector<256x32xf32>
    %102 = arith.subf %94, %101 : vector<256x32xf32>
    %103 = arith.mulf %102, %102 : vector<256x32xf32>
    %cst_33 = arith.constant dense<0.000000e+00> : vector<256xf32>
    %104 = vector.multi_reduction <add>, %103, %cst_33 [1] : vector<256x32xf32> to vector<256xf32>
    %105 = vector.shape_cast %104 : vector<256xf32> to vector<256x1xf32>
    %cst_34 = arith.constant 3.200000e+01 : f32
    %106 = vector.broadcast %cst_34 : f32 to vector<256x1xf32>
    %107 = arith.divf %105, %106 : vector<256x1xf32>
    %108 = vector.broadcast %100 : vector<256x1xf32> to vector<256x32xf32>
    %109 = arith.subf %94, %108 : vector<256x32xf32>
    %cst_35 = arith.constant 9.99999974E-6 : f32
    %110 = vector.broadcast %cst_35 : f32 to vector<256x1xf32>
    %111 = arith.addf %107, %110 : vector<256x1xf32>
    %112 = math.rsqrt %111 : vector<256x1xf32>
    %113 = vector.broadcast %112 : vector<256x1xf32> to vector<256x32xf32>
    %114 = arith.mulf %109, %113 : vector<256x32xf32>
    %115 = vector.broadcast %95 : vector<1x32xf32> to vector<256x32xf32>
    %116 = arith.mulf %114, %115 : vector<256x32xf32>
    %117 = vector.broadcast %96 : vector<1x32xf32> to vector<256x32xf32>
    %118 = arith.addf %116, %117 : vector<256x32xf32>
    %119 = arith.truncf %118 : vector<256x32xf32> to vector<256x32xbf16>
    %c0_36 = arith.constant 0 : index
    %c0_37 = arith.constant 0 : index
    %120 = vector.load %arg8[%c0_36, %c0_37] : memref<32x64xbf16, #tpu.memory_space<vmem>>, vector<32x64xbf16>
    %cst_38 = arith.constant dense<0.000000e+00> : vector<256x64xf32>
    %121 = tpu.matmul %119, %120, %cst_38 {dimension_numbers = #tpu.dot_dimension_numbers<[1], [0], [0], [1], [0, 0, 1, 1], [], []>} : vector<256x32xbf16>, vector<32x64xbf16>, vector<256x64xf32> -> vector<256x64xf32>
    %c0_39 = arith.constant 0 : index
    %c0_40 = arith.constant 0 : index
    %122 = vector.load %arg9[%c0_39, %c0_40] : memref<1x64xf32, #tpu.memory_space<vmem>>, vector<1x64xf32>
    %123 = vector.broadcast %122 : vector<1x64xf32> to vector<256x64xf32>
    %124 = arith.addf %121, %123 : vector<256x64xf32>
    %cst_41 = arith.constant 5.000000e-01 : f32
    %125 = vector.broadcast %cst_41 : f32 to vector<256x64xf32>
    %126 = arith.mulf %125, %124 : vector<256x64xf32>
    %cst_42 = arith.constant 2.000000e+00 : f32
    %127 = math.sqrt %cst_42 : f32
    %128 = vector.broadcast %127 : f32 to vector<256x64xf32>
    %129 = arith.divf %124, %128 : vector<256x64xf32>
    %130 = math.erf %129 : vector<256x64xf32>
    %cst_43 = arith.constant 1.000000e+00 : f32
    %131 = vector.broadcast %cst_43 : f32 to vector<256x64xf32>
    %132 = arith.addf %131, %130 : vector<256x64xf32>
    %133 = arith.mulf %126, %132 : vector<256x64xf32>
    %134 = arith.truncf %133 : vector<256x64xf32> to vector<256x64xbf16>
    %c0_44 = arith.constant 0 : index
    %c0_45 = arith.constant 0 : index
    %135 = vector.load %arg10[%c0_44, %c0_45] : memref<64x32xbf16, #tpu.memory_space<vmem>>, vector<64x32xbf16>
    %cst_46 = arith.constant dense<0.000000e+00> : vector<256x32xf32>
    %136 = tpu.matmul %134, %135, %cst_46 {dimension_numbers = #tpu.dot_dimension_numbers<[1], [0], [0], [1], [0, 0, 1, 1], [], []>} : vector<256x64xbf16>, vector<64x32xbf16>, vector<256x32xf32> -> vector<256x32xf32>
    %c0_47 = arith.constant 0 : index
    %c0_48 = arith.constant 0 : index
    %137 = vector.load %arg11[%c0_47, %c0_48] : memref<1x32xf32, #tpu.memory_space<vmem>>, vector<1x32xf32>
    %138 = vector.broadcast %137 : vector<1x32xf32> to vector<256x32xf32>
    %139 = arith.addf %136, %138 : vector<256x32xf32>
    %140 = arith.addf %118, %139 : vector<256x32xf32>
    %c0_49 = arith.constant 0 : index
    %c0_50 = arith.constant 0 : index
    %141 = vector.load %arg12[%c0_49, %c0_50] : memref<1x32xf32, #tpu.memory_space<vmem>>, vector<1x32xf32>
    %c0_51 = arith.constant 0 : index
    %c0_52 = arith.constant 0 : index
    %142 = vector.load %arg13[%c0_51, %c0_52] : memref<1x32xf32, #tpu.memory_space<vmem>>, vector<1x32xf32>
    %cst_53 = arith.constant dense<0.000000e+00> : vector<256xf32>
    %143 = vector.multi_reduction <add>, %140, %cst_53 [1] : vector<256x32xf32> to vector<256xf32>
    %144 = vector.shape_cast %143 : vector<256xf32> to vector<256x1xf32>
    %cst_54 = arith.constant 3.200000e+01 : f32
    %145 = vector.broadcast %cst_54 : f32 to vector<256x1xf32>
    %146 = arith.divf %144, %145 : vector<256x1xf32>
    %147 = vector.broadcast %146 : vector<256x1xf32> to vector<256x32xf32>
    %148 = arith.subf %140, %147 : vector<256x32xf32>
    %149 = arith.mulf %148, %148 : vector<256x32xf32>
    %cst_55 = arith.constant dense<0.000000e+00> : vector<256xf32>
    %150 = vector.multi_reduction <add>, %149, %cst_55 [1] : vector<256x32xf32> to vector<256xf32>
    %151 = vector.shape_cast %150 : vector<256xf32> to vector<256x1xf32>
    %cst_56 = arith.constant 3.200000e+01 : f32
    %152 = vector.broadcast %cst_56 : f32 to vector<256x1xf32>
    %153 = arith.divf %151, %152 : vector<256x1xf32>
    %154 = vector.broadcast %146 : vector<256x1xf32> to vector<256x32xf32>
    %155 = arith.subf %140, %154 : vector<256x32xf32>
    %cst_57 = arith.constant 9.99999974E-6 : f32
    %156 = vector.broadcast %cst_57 : f32 to vector<256x1xf32>
    %157 = arith.addf %153, %156 : vector<256x1xf32>
    %158 = math.rsqrt %157 : vector<256x1xf32>
    %159 = vector.broadcast %158 : vector<256x1xf32> to vector<256x32xf32>
    %160 = arith.mulf %155, %159 : vector<256x32xf32>
    %161 = vector.broadcast %141 : vector<1x32xf32> to vector<256x32xf32>
    %162 = arith.mulf %160, %161 : vector<256x32xf32>
    %163 = vector.broadcast %142 : vector<1x32xf32> to vector<256x32xf32>
    %164 = arith.addf %162, %163 : vector<256x32xf32>
    %165 = tpu.transpose %164, [1, 0] : vector<256x32xf32> -> vector<32x256xf32>
    %c0_58 = arith.constant 0 : index
    %c0_59 = arith.constant 0 : index
    %c0_60 = arith.constant 0 : index
    %166 = vector.load %arg14[%c0_58, %c0_59, %c0_60] : memref<1x32x256xf32, #tpu.memory_space<vmem>>, vector<1x32x256xf32>
    %167 = vector.shape_cast %166 : vector<1x32x256xf32> to vector<32x256xf32>
    %168 = vector.shape_cast %165 : vector<32x256xf32> to vector<1x32x256xf32>
    tpu.vector_store %arg14[%c0_58, %c0_59, %c0_60], %168 {strides = array<i32>} : memref<1x32x256xf32, #tpu.memory_space<vmem>>, vector<1x32x256xf32>,
    return
  }
  func.func @transform_0(%arg0: i32) -> (i32, i32, i32) {
    %c0_i32 = arith.constant 0 : i32
    %c0_i32_0 = arith.constant 0 : i32
    %c0_i32_1 = arith.constant 0 : i32
    return %arg0, %c0_i32, %c0_i32_0 : i32, i32, i32
  }
  func.func @transform_1(%arg0: i32) -> (i32, i32) {
    %c0_i32 = arith.constant 0 : i32
    %c0_i32_0 = arith.constant 0 : i32
    %c0_i32_1 = arith.constant 0 : i32
    return %c0_i32, %c0_i32_0 : i32, i32
  }
  func.func @transform_2(%arg0: i32) -> (i32, i32) {
    %c0_i32 = arith.constant 0 : i32
    %c0_i32_0 = arith.constant 0 : i32
    %c0_i32_1 = arith.constant 0 : i32
    return %c0_i32, %c0_i32_0 : i32, i32
  }
  func.func @transform_3(%arg0: i32) -> (i32, i32) {
    %c0_i32 = arith.constant 0 : i32
    %c0_i32_0 = arith.constant 0 : i32
    %c0_i32_1 = arith.constant 0 : i32
    return %c0_i32, %c0_i32_0 : i32, i32
  }
  func.func @transform_4(%arg0: i32) -> (i32, i32) {
    %c0_i32 = arith.constant 0 : i32
    %c0_i32_0 = arith.constant 0 : i32
    %c0_i32_1 = arith.constant 0 : i32
    return %c0_i32, %c0_i32_0 : i32, i32
  }
  func.func @transform_5(%arg0: i32) -> (i32, i32) {
    %c0_i32 = arith.constant 0 : i32
    %c0_i32_0 = arith.constant 0 : i32
    %c0_i32_1 = arith.constant 0 : i32
    return %c0_i32, %c0_i32_0 : i32, i32
  }
  func.func @transform_6(%arg0: i32) -> (i32, i32) {
    %c0_i32 = arith.constant 0 : i32
    %c0_i32_0 = arith.constant 0 : i32
    %c0_i32_1 = arith.constant 0 : i32
    return %c0_i32, %c0_i32_0 : i32, i32
  }
  func.func @transform_7(%arg0: i32) -> (i32, i32) {
    %c0_i32 = arith.constant 0 : i32
    %c0_i32_0 = arith.constant 0 : i32
    %c0_i32_1 = arith.constant 0 : i32
    return %c0_i32, %c0_i32_0 : i32, i32
  }
  func.func @transform_8(%arg0: i32) -> (i32, i32) {
    %c0_i32 = arith.constant 0 : i32
    %c0_i32_0 = arith.constant 0 : i32
    %c0_i32_1 = arith.constant 0 : i32
    return %c0_i32, %c0_i32_0 : i32, i32
  }
  func.func @transform_9(%arg0: i32) -> (i32, i32) {
    %c0_i32 = arith.constant 0 : i32
    %c0_i32_0 = arith.constant 0 : i32
    %c0_i32_1 = arith.constant 0 : i32
    return %c0_i32, %c0_i32_0 : i32, i32
  }
  func.func @transform_10(%arg0: i32) -> (i32, i32) {
    %c0_i32 = arith.constant 0 : i32
    %c0_i32_0 = arith.constant 0 : i32
    %c0_i32_1 = arith.constant 0 : i32
    return %c0_i32, %c0_i32_0 : i32, i32
  }
  func.func @transform_11(%arg0: i32) -> (i32, i32) {
    %c0_i32 = arith.constant 0 : i32
    %c0_i32_0 = arith.constant 0 : i32
    %c0_i32_1 = arith.constant 0 : i32
    return %c0_i32, %c0_i32_0 : i32, i32
  }
  func.func @transform_12(%arg0: i32) -> (i32, i32) {
    %c0_i32 = arith.constant 0 : i32
    %c0_i32_0 = arith.constant 0 : i32
    %c0_i32_1 = arith.constant 0 : i32
    return %c0_i32, %c0_i32_0 : i32, i32
  }
  func.func @transform_13(%arg0: i32) -> (i32, i32, i32) {
    %c0_i32 = arith.constant 0 : i32
    %c0_i32_0 = arith.constant 0 : i32
    %c0_i32_1 = arith.constant 0 : i32
    return %arg0, %c0_i32, %c0_i32_0 : i32, i32, i32
  }
}

</mosaic_0001>

<llo_original>
// kernel: tpu_custom_call.1
$region0: #{tpu_custom_call.1}
  #allocation0 [shape = 'u32[]', space=smem, size = 0x4, offset = 0x4, fixed_abs, tag = 'smem constant byte address 0x4 - core index']
  #allocation1 [shape = 'u32[144,128]{1,0:T(1,128)}', space=vmem, size = 0x12000, scoped, tag = 'internal scratch']
  %s0 = inlined_call_operand.hbm [shape: f32[2,32,256], index: 0, kind: input, shape index: {}]
  %s1 = inlined_call_operand.vmem [shape: bf16[32,96], index: 1, kind: input, shape index: {}]
  %s2 = inlined_call_operand.vmem [shape: f32[1,96], index: 2, kind: input, shape index: {}]
  %s3 = inlined_call_operand.vmem [shape: bf16[32,32], index: 3, kind: input, shape index: {}]
  %s4 = inlined_call_operand.vmem [shape: f32[1,32], index: 4, kind: input, shape index: {}]
  %s5 = inlined_call_operand.vmem [shape: f32[1,32], index: 5, kind: input, shape index: {}]
  %s6 = inlined_call_operand.vmem [shape: f32[1,32], index: 6, kind: input, shape index: {}]
  %s7 = inlined_call_operand.vmem [shape: bf16[32,64], index: 7, kind: input, shape index: {}]
  %s8 = inlined_call_operand.vmem [shape: f32[1,64], index: 8, kind: input, shape index: {}]
  %s9 = inlined_call_operand.vmem [shape: bf16[64,32], index: 9, kind: input, shape index: {}]
  %s10 = inlined_call_operand.vmem [shape: f32[1,32], index: 10, kind: input, shape index: {}]
  %s11 = inlined_call_operand.vmem [shape: f32[1,32], index: 11, kind: input, shape index: {}]
  %s12 = inlined_call_operand.vmem [shape: f32[1,32], index: 12, kind: input, shape index: {}]
  %s13 = inlined_call_operand.hbm [shape: f32[2,32,256], index: 13, kind: output, shape index: {}]
  %s14 = sld [smem:[#allocation0]]
  $region89: #{tpu_custom_call.1} parent=0
    _
  %s16 = ssub.s32 1, %s14
  %s17 = scalar_select 0, %s16, %s14
  $region1: #{tpu_custom_call.1} parent=0
    #allocation2 [shape = 'u8[65536]{0}', space=vmem, size = 0x10000, scoped, tag = 'input window, operand 0']
    #allocation3 [shape = 's32[2]{0}', space=sflag, size = 0x8, scoped, tag = 'scoped memory for tpu_custom_call.1']
    #allocation4 [shape = 's32[2]{0}', space=sflag, size = 0x8, scoped, tag = 'scoped memory for tpu_custom_call.1']
    #allocation5 [shape = 'u8[65536]{0}', space=vmem, size = 0x10000, scoped, tag = 'output window, operand 0']
    %18 = vsyncpa [#allocation3], 0
    %s19 = scalar_lea.sflag [#allocation3], 1
    %20 = vsyncpa %s19, 0
    %21 = vsyncpa [#allocation4], 0
    %s22 = scalar_lea.sflag [#allocation4], 1
    %23 = vsyncpa %s22, 0
    loop: start=0, step=1, limit=4
    $region2: #{tpu_custom_call.1} parent=1 // loop_pre_header
      _
    $region3: #{tpu_custom_call.1} parent=1 // loop_header
      %s25 = sphi 0, %s29
      %p26 = scmp.ge.s32.totalorder %s25, 4
      %s35 = sphi 0, %s37
      %s38 = sphi 0, %s35
      %s39 = sphi 0, %s38
      %s55 = sphi 0, %s39
      %s59 = sphi 0, %s59
      %s61 = sphi 0, %s59
      %s62 = sphi 0, %s61
      %s76 = sphi 0, %s62
      %s80 = sphi 0, %s80
      %s82 = sphi 0, %s80
      %s83 = sphi 0, %s82
      %s97 = sphi 0, %s83
      %s101 = sphi 0, %s101
      %s103 = sphi 0, %s101
      %s104 = sphi 0, %s103
      %s118 = sphi 0, %s104
      %s122 = sphi 0, %s122
      %s124 = sphi 0, %s122
      %s125 = sphi 0, %s124
      %s139 = sphi 0, %s125
      %s143 = sphi 0, %s143
      %s145 = sphi 0, %s143
      %s146 = sphi 0, %s145
      %s160 = sphi 0, %s146
      %s164 = sphi 0, %s164
      %s166 = sphi 0, %s164
      %s167 = sphi 0, %s166
      %s181 = sphi 0, %s167
      %s185 = sphi 0, %s185
      %s187 = sphi 0, %s185
      %s188 = sphi 0, %s187
      %s202 = sphi 0, %s188
      %s206 = sphi 0, %s206
      %s208 = sphi 0, %s206
      %s209 = sphi 0, %s208
      %s223 = sphi 0, %s209
      %s227 = sphi 0, %s227
      %s229 = sphi 0, %s227
      %s230 = sphi 0, %s229
      %s244 = sphi 0, %s230
      %s248 = sphi 0, %s248
      %s250 = sphi 0, %s248
      %s251 = sphi 0, %s250
      %s265 = sphi 0, %s251
      %s269 = sphi 0, %s269
      %s271 = sphi 0, %s269
      %s272 = sphi 0, %s271
      %s286 = sphi 0, %s272
      %s290 = sphi 0, %s290
      %s292 = sphi 0, %s290
      %s293 = sphi 0, %s292
      %s307 = sphi 0, %s293
      %s313 = sphi 0, %s315
      %s316 = sphi 0, %s313
      %s317 = sphi 0, %s316
      %s333 = sphi 0, %s317
    $region4: #{tpu_custom_call.1} parent=1 // loop_header_branch
      %28 = sbr.rel (%p26) target = $region8
    $region5: #{tpu_custom_call.1} parent=1 // loop_body
      %s30 = ssub.s32 %s25, 1
      %s31 = ssub.s32 %s25, 2
      %s32 = sadd.s32 %s25, 1
      %s33 = ssub.s32 %s25, %s32
      %p34 = scmp.eq.s32.totalorder %s33, 0
      %s36 = sadd.s32 %s35, 1
      %s37 = scalar_select %p34, %s35, %s36
      %p40 = pneg %p34
      %p41 = scmp.eq.s32.totalorder %s25, 1
      %p42 = por %p40, %p41
      %p43 = scmp.ne.s32.totalorder %s35, %s38
      %p44 = scmp.eq.s32.totalorder %s25, 0
      %p45 = por %p43, %p44
      %p46 = scmp.ne.s32.totalorder %s35, %s38
      %p47 = scmp.eq.s32.totalorder %s30, 1
      %p48 = por %p46, %p47
      %p49 = scmp.ne.s32.totalorder %s38, %s39
      %p50 = scmp.eq.s32.totalorder %s30, 0
      %p51 = por %p49, %p50
      %p52 = scmp.ne.s32.totalorder %s38, %s39
      %p53 = scmp.eq.s32.totalorder %s31, 1
      %p54 = por %p52, %p53
      %p56 = scmp.ne.s32.totalorder %s39, %s55
      %p57 = scmp.eq.s32.totalorder %s31, 0
      %p58 = por %p56, %p57
      %s60 = sadd.s32 %s59, 1
      %p63 = scmp.eq.s32.totalorder %s25, 1
      %p64 = scmp.ne.s32.totalorder %s59, %s61
      %p65 = scmp.eq.s32.totalorder %s25, 0
      %p66 = por %p64, %p65
      %p67 = scmp.ne.s32.totalorder %s59, %s61
      %p68 = scmp.eq.s32.totalorder %s30, 1
      %p69 = por %p67, %p68
      %p70 = scmp.ne.s32.totalorder %s61, %s62
      %p71 = scmp.eq.s32.totalorder %s30, 0
      %p72 = por %p70, %p71
      %p73 = scmp.ne.s32.totalorder %s61, %s62
      %p74 = scmp.eq.s32.totalorder %s31, 1
      %p75 = por %p73, %p74
      %p77 = scmp.ne.s32.totalorder %s62, %s76
      %p78 = scmp.eq.s32.totalorder %s31, 0
      %p79 = por %p77, %p78
      %s81 = sadd.s32 %s80, 1
      %p84 = scmp.eq.s32.totalorder %s25, 1
      %p85 = scmp.ne.s32.totalorder %s80, %s82
      %p86 = scmp.eq.s32.totalorder %s25, 0
      %p87 = por %p85, %p86
      %p88 = scmp.ne.s32.totalorder %s80, %s82
      %p89 = scmp.eq.s32.totalorder %s30, 1
      %p90 = por %p88, %p89
      %p91 = scmp.ne.s32.totalorder %s82, %s83
      %p92 = scmp.eq.s32.totalorder %s30, 0
      %p93 = por %p91, %p92
      %p94 = scmp.ne.s32.totalorder %s82, %s83
      %p95 = scmp.eq.s32.totalorder %s31, 1
      %p96 = por %p94, %p95
      %p98 = scmp.ne.s32.totalorder %s83, %s97
      %p99 = scmp.eq.s32.totalorder %s31, 0
      %p100 = por %p98, %p99
      %s102 = sadd.s32 %s101, 1
      %p105 = scmp.eq.s32.totalorder %s25, 1
      %p106 = scmp.ne.s32.totalorder %s101, %s103
      %p107 = scmp.eq.s32.totalorder %s25, 0
      %p108 = por %p106, %p107
      %p109 = scmp.ne.s32.totalorder %s101, %s103
      %p110 = scmp.eq.s32.totalorder %s30, 1
      %p111 = por %p109, %p110
      %p112 = scmp.ne.s32.totalorder %s103, %s104
      %p113 = scmp.eq.s32.totalorder %s30, 0
      %p114 = por %p112, %p113
      %p115 = scmp.ne.s32.totalorder %s103, %s104
      %p116 = scmp.eq.s32.totalorder %s31, 1
      %p117 = por %p115, %p116
      %p119 = scmp.ne.s32.totalorder %s104, %s118
      %p120 = scmp.eq.s32.totalorder %s31, 0
      %p121 = por %p119, %p120
      %s123 = sadd.s32 %s122, 1
      %p126 = scmp.eq.s32.totalorder %s25, 1
      %p127 = scmp.ne.s32.totalorder %s122, %s124
      %p128 = scmp.eq.s32.totalorder %s25, 0
      %p129 = por %p127, %p128
      %p130 = scmp.ne.s32.totalorder %s122, %s124
      %p131 = scmp.eq.s32.totalorder %s30, 1
      %p132 = por %p130, %p131
      %p133 = scmp.ne.s32.totalorder %s124, %s125
      %p134 = scmp.eq.s32.totalorder %s30, 0
      %p135 = por %p133, %p134
      %p136 = scmp.ne.s32.totalorder %s124, %s125
      %p137 = scmp.eq.s32.totalorder %s31, 1
      %p138 = por %p136, %p137
      %p140 = scmp.ne.s32.totalorder %s125, %s139
      %p141 = scmp.eq.s32.totalorder %s31, 0
      %p142 = por %p140, %p141
      %s144 = sadd.s32 %s143, 1
      %p147 = scmp.eq.s32.totalorder %s25, 1
      %p148 = scmp.ne.s32.totalorder %s143, %s145
      %p149 = scmp.eq.s32.totalorder %s25, 0
      %p150 = por %p148, %p149
      %p151 = scmp.ne.s32.totalorder %s143, %s145
      %p152 = scmp.eq.s32.totalorder %s30, 1
      %p153 = por %p151, %p152
      %p154 = scmp.ne.s32.totalorder %s145, %s146
      %p155 = scmp.eq.s32.totalorder %s30, 0
      %p156 = por %p154, %p155
      %p157 = scmp.ne.s32.totalorder %s145, %s146
      %p158 = scmp.eq.s32.totalorder %s31, 1
      %p159 = por %p157, %p158
      %p161 = scmp.ne.s32.totalorder %s146, %s160
      %p162 = scmp.eq.s32.totalorder %s31, 0
      %p163 = por %p161, %p162
      %s165 = sadd.s32 %s164, 1
      %p168 = scmp.eq.s32.totalorder %s25, 1
      %p169 = scmp.ne.s32.totalorder %s164, %s166
      %p170 = scmp.eq.s32.totalorder %s25, 0
      %p171 = por %p169, %p170
      %p172 = scmp.ne.s32.totalorder %s164, %s166
      %p173 = scmp.eq.s32.totalorder %s30, 1
      %p174 = por %p172, %p173
      %p175 = scmp.ne.s32.totalorder %s166, %s167
      %p176 = scmp.eq.s32.totalorder %s30, 0
      %p177 = por %p175, %p176
      %p178 = scmp.ne.s32.totalorder %s166, %s167
      %p179 = scmp.eq.s32.totalorder %s31, 1
      %p180 = por %p178, %p179
      %p182 = scmp.ne.s32.totalorder %s167, %s181
      %p183 = scmp.eq.s32.totalorder %s31, 0
      %p184 = por %p182, %p183
      %s186 = sadd.s32 %s185, 1
      %p189 = scmp.eq.s32.totalorder %s25, 1
      %p190 = scmp.ne.s32.totalorder %s185, %s187
      %p191 = scmp.eq.s32.totalorder %s25, 0
      %p192 = por %p190, %p191
      %p193 = scmp.ne.s32.totalorder %s185, %s187
      %p194 = scmp.eq.s32.totalorder %s30, 1
      %p195 = por %p193, %p194
      %p196 = scmp.ne.s32.totalorder %s187, %s188
      %p197 = scmp.eq.s32.totalorder %s30, 0
      %p198 = por %p196, %p197
      %p199 = scmp.ne.s32.totalorder %s187, %s188
      %p200 = scmp.eq.s32.totalorder %s31, 1
      %p201 = por %p199, %p200
      %p203 = scmp.ne.s32.totalorder %s188, %s202
      %p204 = scmp.eq.s32.totalorder %s31, 0
      %p205 = por %p203, %p204
      %s207 = sadd.s32 %s206, 1
      %p210 = scmp.eq.s32.totalorder %s25, 1
      %p211 = scmp.ne.s32.totalorder %s206, %s208
      %p212 = scmp.eq.s32.totalorder %s25, 0
      %p213 = por %p211, %p212
      %p214 = scmp.ne.s32.totalorder %s206, %s208
      %p215 = scmp.eq.s32.totalorder %s30, 1
      %p216 = por %p214, %p215
      %p217 = scmp.ne.s32.totalorder %s208, %s209
      %p218 = scmp.eq.s32.totalorder %s30, 0
      %p219 = por %p217, %p218
      %p220 = scmp.ne.s32.totalorder %s208, %s209
      %p221 = scmp.eq.s32.totalorder %s31, 1
      %p222 = por %p220, %p221
      %p224 = scmp.ne.s32.totalorder %s209, %s223
      %p225 = scmp.eq.s32.totalorder %s31, 0
      %p226 = por %p224, %p225
      %s228 = sadd.s32 %s227, 1
      %p231 = scmp.eq.s32.totalorder %s25, 1
      %p232 = scmp.ne.s32.totalorder %s227, %s229
      %p233 = scmp.eq.s32.totalorder %s25, 0
      %p234 = por %p232, %p233
      %p235 = scmp.ne.s32.totalorder %s227, %s229
      %p236 = scmp.eq.s32.totalorder %s30, 1
      %p237 = por %p235, %p236
      %p238 = scmp.ne.s32.totalorder %s229, %s230
      %p239 = scmp.eq.s32.totalorder %s30, 0
      %p240 = por %p238, %p239
      %p241 = scmp.ne.s32.totalorder %s229, %s230
      %p242 = scmp.eq.s32.totalorder %s31, 1
      %p243 = por %p241, %p242
      %p245 = scmp.ne.s32.totalorder %s230, %s244
      %p246 = scmp.eq.s32.totalorder %s31, 0
      %p247 = por %p245, %p246
      %s249 = sadd.s32 %s248, 1
      %p252 = scmp.eq.s32.totalorder %s25, 1
      %p253 = scmp.ne.s32.totalorder %s248, %s250
      %p254 = scmp.eq.s32.totalorder %s25, 0
      %p255 = por %p253, %p254
      %p256 = scmp.ne.s32.totalorder %s248, %s250
      %p257 = scmp.eq.s32.totalorder %s30, 1
      %p258 = por %p256, %p257
      %p259 = scmp.ne.s32.totalorder %s250, %s251
      %p260 = scmp.eq.s32.totalorder %s30, 0
      %p261 = por %p259, %p260
      %p262 = scmp.ne.s32.totalorder %s250, %s251
      %p263 = scmp.eq.s32.totalorder %s31, 1
      %p264 = por %p262, %p263
      %p266 = scmp.ne.s32.totalorder %s251, %s265
      %p267 = scmp.eq.s32.totalorder %s31, 0
      %p268 = por %p266, %p267
      %s270 = sadd.s32 %s269, 1
      %p273 = scmp.eq.s32.totalorder %s25, 1
      %p274 = scmp.ne.s32.totalorder %s269, %s271
      %p275 = scmp.eq.s32.totalorder %s25, 0
      %p276 = por %p274, %p275
      %p277 = scmp.ne.s32.totalorder %s269, %s271
      %p278 = scmp.eq.s32.totalorder %s30, 1
      %p279 = por %p277, %p278
      %p280 = scmp.ne.s32.totalorder %s271, %s272
      %p281 = scmp.eq.s32.totalorder %s30, 0
      %p282 = por %p280, %p281
      %p283 = scmp.ne.s32.totalorder %s271, %s272
      %p284 = scmp.eq.s32.totalorder %s31, 1
      %p285 = por %p283, %p284
      %p287 = scmp.ne.s32.totalorder %s272, %s286
      %p288 = scmp.eq.s32.totalorder %s31, 0
      %p289 = por %p287, %p288
      %s291 = sadd.s32 %s290, 1
      %p294 = scmp.eq.s32.totalorder %s25, 1
      %p295 = scmp.ne.s32.totalorder %s290, %s292
      %p296 = scmp.eq.s32.totalorder %s25, 0
      %p297 = por %p295, %p296
      %p298 = scmp.ne.s32.totalorder %s290, %s292
      %p299 = scmp.eq.s32.totalorder %s30, 1
      %p300 = por %p298, %p299
      %p301 = scmp.ne.s32.totalorder %s292, %s293
      %p302 = scmp.eq.s32.totalorder %s30, 0
      %p303 = por %p301, %p302
      %p304 = scmp.ne.s32.totalorder %s292, %s293
      %p305 = scmp.eq.s32.totalorder %s31, 1
      %p306 = por %p304, %p305
      %p308 = scmp.ne.s32.totalorder %s293, %s307
      %p309 = scmp.eq.s32.totalorder %s31, 0
      %p310 = por %p308, %p309
      %s311 = ssub.s32 %s25, %s32
      %p312 = scmp.eq.s32.totalorder %s311, 0
      %s314 = sadd.s32 %s313, 1
      %s315 = scalar_select %p312, %s313, %s314
      %p318 = pneg %p312
      %p319 = scmp.eq.s32.totalorder %s25, 1
      %p320 = por %p318, %p319
      %p321 = scmp.ne.s32.totalorder %s313, %s316
      %p322 = scmp.eq.s32.totalorder %s25, 0
      %p323 = por %p321, %p322
      %p324 = scmp.ne.s32.totalorder %s313, %s316
      %p325 = scmp.eq.s32.totalorder %s30, 1
      %p326 = por %p324, %p325
      %p327 = scmp.ne.s32.totalorder %s316, %s317
      %p328 = scmp.eq.s32.totalorder %s30, 0
      %p329 = por %p327, %p328
      %p330 = scmp.ne.s32.totalorder %s316, %s317
      %p331 = scmp.eq.s32.totalorder %s31, 1
      %p332 = por %p330, %p331
      %p334 = scmp.ne.s32.totalorder %s317, %s333
      %p335 = scmp.eq.s32.totalorder %s31, 0
      %p336 = por %p334, %p335
      %p337 = scmp.le.s32.totalorder 1, %s25
      %p338 = scmp.lt.s32.totalorder %s25, 3
      %p339 = pnand %p337, %p338
      %p340 = pneg %p339
      // Predicated region
      $region9: #{tpu_custom_call.1} parent=5 // pred_check
        _
      $region10: #{tpu_custom_call.1} parent=5 // pred_check_branch
        %342 = sbr.rel (%p339) target = $region12
      $region11: #{tpu_custom_call.1} parent=5 // pred_region
        %s343 = ssub.s32 %s25, 1
        // Predicated region
        $region13: #{tpu_custom_call.1} parent=11 // pred_check
          %p344 = pneg %p72
        $region14: #{tpu_custom_call.1} parent=11 // pred_check_branch
          %346 = sbr.rel (%p344) target = $region16
        $region15: #{tpu_custom_call.1} parent=11 // pred_region
          _
        $region16: #{tpu_custom_call.1} parent=11 // pred_fallthru
          _
        // Predicated region
        $region17: #{tpu_custom_call.1} parent=11 // pred_check
          %p347 = pneg %p93
        $region18: #{tpu_custom_call.1} parent=11 // pred_check_branch
          %349 = sbr.rel (%p347) target = $region20
        $region19: #{tpu_custom_call.1} parent=11 // pred_region
          _
        $region20: #{tpu_custom_call.1} parent=11 // pred_fallthru
          _
        // Predicated region
        $region21: #{tpu_custom_call.1} parent=11 // pred_check
          %p350 = pneg %p114
        $region22: #{tpu_custom_call.1} parent=11 // pred_check_branch
          %352 = sbr.rel (%p350) target = $region24
        $region23: #{tpu_custom_call.1} parent=11 // pred_region
          _
        $region24: #{tpu_custom_call.1} parent=11 // pred_fallthru
          _
        // Predicated region
        $region25: #{tpu_custom_call.1} parent=11 // pred_check
          %p353 = pneg %p135
        $region26: #{tpu_custom_call.1} parent=11 // pred_check_branch
          %355 = sbr.rel (%p353) target = $region28
        $region27: #{tpu_custom_call.1} parent=11 // pred_region
          _
        $region28: #{tpu_custom_call.1} parent=11 // pred_fallthru
          _
        // Predicated region
        $region29: #{tpu_custom_call.1} parent=11 // pred_check
          %p356 = pneg %p156
        $region30: #{tpu_custom_call.1} parent=11 // pred_check_branch
          %358 = sbr.rel (%p356) target = $region32
        $region31: #{tpu_custom_call.1} parent=11 // pred_region
          _
        $region32: #{tpu_custom_call.1} parent=11 // pred_fallthru
          _
        // Predicated region
        $region33: #{tpu_custom_call.1} parent=11 // pred_check
          %p359 = pneg %p177
        $region34: #{tpu_custom_call.1} parent=11 // pred_check_branch
          %361 = sbr.rel (%p359) target = $region36
        $region35: #{tpu_custom_call.1} parent=11 // pred_region
          _
        $region36: #{tpu_custom_call.1} parent=11 // pred_fallthru
          _
        // Predicated region
        $region37: #{tpu_custom_call.1} parent=11 // pred_check
          %p362 = pneg %p198
        $region38: #{tpu_custom_call.1} parent=11 // pred_check_branch
          %364 = sbr.rel (%p362) target = $region40
        $region39: #{tpu_custom_call.1} parent=11 // pred_region
          _
        $region40: #{tpu_custom_call.1} parent=11 // pred_fallthru
          _
        // Predicated region
        $region41: #{tpu_custom_call.1} parent=11 // pred_check
          %p365 = pneg %p219
        $region42: #{tpu_custom_call.1} parent=11 // pred_check_branch
          %367 = sbr.rel (%p365) target = $region44
        $region43: #{tpu_custom_call.1} parent=11 // pred_region
          _
        $region44: #{tpu_custom_call.1} parent=11 // pred_fallthru
          _
        // Predicated region
        $region45: #{tpu_custom_call.1} parent=11 // pred_check
          %p368 = pneg %p240
        $region46: #{tpu_custom_call.1} parent=11 // pred_check_branch
          %370 = sbr.rel (%p368) target = $region48
        $region47: #{tpu_custom_call.1} parent=11 // pred_region
          _
        $region48: #{tpu_custom_call.1} parent=11 // pred_fallthru
          _
        // Predicated region
        $region49: #{tpu_custom_call.1} parent=11 // pred_check
          %p371 = pneg %p261
        $region50: #{tpu_custom_call.1} parent=11 // pred_check_branch
          %373 = sbr.rel (%p371) target = $region52
        $region51: #{tpu_custom_call.1} parent=11 // pred_region
          _
        $region52: #{tpu_custom_call.1} parent=11 // pred_fallthru
          _
        // Predicated region
        $region53: #{tpu_custom_call.1} parent=11 // pred_check
          %p374 = pneg %p282
        $region54: #{tpu_custom_call.1} parent=11 // pred_check_branch
          %376 = sbr.rel (%p374) target = $region56
        $region55: #{tpu_custom_call.1} parent=11 // pred_region
          _
        $region56: #{tpu_custom_call.1} parent=11 // pred_fallthru
          _
        // Predicated region
        $region57: #{tpu_custom_call.1} parent=11 // pred_check
          %p377 = pneg %p303
        $region58: #{tpu_custom_call.1} parent=11 // pred_check_branch
          %379 = sbr.rel (%p377) target = $region60
        $region59: #{tpu_custom_call.1} parent=11 // pred_region
          _
        $region60: #{tpu_custom_call.1} parent=11 // pred_fallthru
          _
      $region12: #{tpu_custom_call.1} parent=5 // pred_fallthru
        _
      %p380 = scmp.lt.s32.totalorder %s25, 2
      // Predicated region
      $region61: #{tpu_custom_call.1} parent=5 // pred_check
        %p381 = pneg %p380
      $region62: #{tpu_custom_call.1} parent=5 // pred_check_branch
        %383 = sbr.rel (%p381) target = $region64
      $region63: #{tpu_custom_call.1} parent=5 // pred_region
        // Predicated region
        $region65: #{tpu_custom_call.1} parent=63 // pred_check
          %p384 = pneg %p45
        $region66: #{tpu_custom_call.1} parent=63 // pred_check_branch
          %386 = sbr.rel (%p384) target = $region68
        $region67: #{tpu_custom_call.1} parent=63 // pred_region
          %s387 = sand.u32 %s35, 1
          %s388 = scalar_lea.sflag [#allocation3], %s387
          %s389 = sand.u32 %s35, 1
          %s390 = smul.addr %s389, 64
          %s391 = scalar_lea.vmem [#allocation2], %s390
          %s393 = ssub.s32 1024, 1024
          %394 = vsyncadd %s388, %s393
          %s395 = smul.addr %s25, 8
          %s396 = smul.addr %s395, 128
          %s397 = scalar_lea.hbm %s0, %s396
          %s398 = sshll.u32 %s391, 4
          %s399 = int_to_ptr.vmem [resolvable:$true] %s398
          %404 = dma.hbm_to_vmem [thread:$0]  %s397, 1024, %s399, %s388, 256, 256, 16
        $region68: #{tpu_custom_call.1} parent=63 // pred_fallthru
          _
      $region64: #{tpu_custom_call.1} parent=5 // pred_fallthru
        _
      %p405 = scmp.le.s32.totalorder 1, %s25
      %p406 = scmp.lt.s32.totalorder %s25, 3
      %p407 = pnand %p405, %p406
      %p408 = pneg %p407
      // Predicated region
      $region69: #{tpu_custom_call.1} parent=5 // pred_check
        _
      $region70: #{tpu_custom_call.1} parent=5 // pred_check_branch
        %410 = sbr.rel (%p407) target = $region72
      $region71: #{tpu_custom_call.1} parent=5 // pred_region
        %s411 = ssub.s32 %s25, 1
        %s412 = sand.u32 %s38, 1
        %s413 = scalar_lea.sflag [#allocation3], %s412
        %s414 = sand.u32 %s38, 1
        %s415 = smul.addr %s414, 64
        %s416 = scalar_lea.vmem [#allocation2], %s415
        // Predicated region
        $region73: #{tpu_custom_call.1} parent=71 // pred_check
          %p417 = pneg %p51
        $region74: #{tpu_custom_call.1} parent=71 // pred_check_branch
          %419 = sbr.rel (%p417) target = $region76
        $region75: #{tpu_custom_call.1} parent=71 // pred_region
          %420 = dma.done %s413, 1024
        $region76: #{tpu_custom_call.1} parent=71 // pred_fallthru
          _
        %s421 = sand.u32 %s38, 1
        %s422 = scalar_lea.sflag [#allocation3], %s421
        %s423 = sand.u32 %s38, 1
        %s424 = smul.addr %s423, 64
        %s425 = scalar_lea.vmem [#allocation2], %s424
        %p426 = pneg %p51
        %p427 = pneg %p48
        %p428 = pneg %p72
        %p429 = pneg %p69
        %p430 = pneg %p93
        %p431 = pneg %p90
        %p432 = pneg %p114
        %p433 = pneg %p111
        %p434 = pneg %p135
        %p435 = pneg %p132
        %p436 = pneg %p156
        %p437 = pneg %p153
        %p438 = pneg %p177
        %p439 = pneg %p174
        %p440 = pneg %p198
        %p441 = pneg %p195
        %p442 = pneg %p219
        %p443 = pneg %p216
        %p444 = pneg %p240
        %p445 = pneg %p237
        %p446 = pneg %p261
        %p447 = pneg %p258
        %p448 = pneg %p282
        %p449 = pneg %p279
        %p450 = pneg %p303
        %p451 = pneg %p300
        %p452 = pneg %p329
        %p453 = pneg %p326
        %s454 = sand.u32 %s316, 1
        %s455 = scalar_lea.sflag [#allocation4], %s454
        %s456 = sand.u32 %s316, 1
        %s457 = smul.addr %s456, 64
        %s458 = scalar_lea.vmem [#allocation5], %s457
        %v460 = vld [vmem:[%s416] sm:$0xff]
        %v461 = vld [vmem:[%s416 + $0x8] sm:$0xff]
        %v462 = vld [vmem:[%s416 + $0x10] sm:$0xff]
        %v463 = vld [vmem:[%s416 + $0x18] sm:$0xff]
        %v464 = vld [vmem:[%s416 + $0x20] sm:$0xff]
        %v465 = vld [vmem:[%s416 + $0x28] sm:$0xff]
        %v466 = vld [vmem:[%s416 + $0x30] sm:$0xff]
        %v467 = vld [vmem:[%s416 + $0x38] sm:$0xff]
        %468 = vxpose.xlu0.b32.start [1/16] %v460, 128
        %469 = vxpose.xlu0.b32.cont [2/16] %v462, 128
        %470 = vxpose.xlu0.b32.cont [3/16] %v464, 128
        %471 = vxpose.xlu0.b32.cont [4/16] %v466, 128
        %472 = vxpose.xlu0.b32.cont [5/16] 0.0, 128
        %473 = vxpose.xlu0.b32.cont [6/16] 0.0, 128
        %474 = vxpose.xlu0.b32.cont [7/16] 0.0, 128
        %475 = vxpose.xlu0.b32.cont [8/16] 0.0, 128
        %476 = vxpose.xlu0.b32.cont [9/16] 0.0, 128
        %477 = vxpose.xlu0.b32.cont [10/16] 0.0, 128
        %478 = vxpose.xlu0.b32.cont [11/16] 0.0, 128
        %479 = vxpose.xlu0.b32.cont [12/16] 0.0, 128
        %480 = vxpose.xlu0.b32.cont [13/16] 0.0, 128
        %481 = vxpose.xlu0.b32.cont [14/16] 0.0, 128
        %482 = vxpose.xlu0.b32.cont [15/16] 0.0, 128
        %483 = vxpose.xlu0.b32.end [16/16] 0.0, 128
        %v484 = vpop.trf.xlu0
        %v485 = vpop.trf.xlu0
        %v486 = vpop.trf.xlu0
        %v487 = vpop.trf.xlu0
        %v488 = vpop.trf.xlu0
        %v489 = vpop.trf.xlu0
        %v490 = vpop.trf.xlu0
        %v491 = vpop.trf.xlu0
        %v492 = vpop.trf.xlu0
        %v493 = vpop.trf.xlu0
        %v494 = vpop.trf.xlu0
        %v495 = vpop.trf.xlu0
        %v496 = vpop.trf.xlu0
        %v497 = vpop.trf.xlu0
        %v498 = vpop.trf.xlu0
        %v499 = vpop.trf.xlu0
        %500 = vxpose.xlu0.b32.start [1/16] %v461, 128
        %501 = vxpose.xlu0.b32.cont [2/16] %v463, 128
        %502 = vxpose.xlu0.b32.cont [3/16] %v465, 128
        %503 = vxpose.xlu0.b32.cont [4/16] %v467, 128
        %504 = vxpose.xlu0.b32.cont [5/16] 0.0, 128
        %505 = vxpose.xlu0.b32.cont [6/16] 0.0, 128
        %506 = vxpose.xlu0.b32.cont [7/16] 0.0, 128
        %507 = vxpose.xlu0.b32.cont [8/16] 0.0, 128
        %508 = vxpose.xlu0.b32.cont [9/16] 0.0, 128
        %509 = vxpose.xlu0.b32.cont [10/16] 0.0, 128
        %510 = vxpose.xlu0.b32.cont [11/16] 0.0, 128
        %511 = vxpose.xlu0.b32.cont [12/16] 0.0, 128
        %512 = vxpose.xlu0.b32.cont [13/16] 0.0, 128
        %513 = vxpose.xlu0.b32.cont [14/16] 0.0, 128
        %514 = vxpose.xlu0.b32.cont [15/16] 0.0, 128
        %515 = vxpose.xlu0.b32.end [16/16] 0.0, 128
        %v516 = vpop.trf.xlu0
        %v517 = vpop.trf.xlu0
        %v518 = vpop.trf.xlu0
        %v519 = vpop.trf.xlu0
        %v520 = vpop.trf.xlu0
        %v521 = vpop.trf.xlu0
        %v522 = vpop.trf.xlu0
        %v523 = vpop.trf.xlu0
        %v524 = vpop.trf.xlu0
        %v525 = vpop.trf.xlu0
        %v526 = vpop.trf.xlu0
        %v527 = vpop.trf.xlu0
        %v528 = vpop.trf.xlu0
        %v529 = vpop.trf.xlu0
        %v530 = vpop.trf.xlu0
        %v531 = vpop.trf.xlu0
        %v532 = vpack.c.bf16 %v485, %v484
        %v533 = vpack.c.bf16 %v487, %v486
        %v534 = vpack.c.bf16 %v489, %v488
        %v535 = vpack.c.bf16 %v491, %v490
        %v536 = vpack.c.bf16 %v493, %v492
        %v537 = vpack.c.bf16 %v495, %v494
        %v538 = vpack.c.bf16 %v497, %v496
        %v539 = vpack.c.bf16 %v499, %v498
        %v540 = vpack.c.bf16 %v517, %v516
        %v541 = vpack.c.bf16 %v519, %v518
        %v542 = vpack.c.bf16 %v521, %v520
        %v543 = vpack.c.bf16 %v523, %v522
        %v544 = vpack.c.bf16 %v525, %v524
        %v545 = vpack.c.bf16 %v527, %v526
        %v546 = vpack.c.bf16 %v529, %v528
        %v547 = vpack.c.bf16 %v531, %v530
        %v548 = vld [vmem:[%s1] sm:$0xf]
        %v549 = vld [vmem:[%s1 + $0x4] sm:$0xf]
        %v550 = vld [vmem:[%s1 + $0x8] sm:$0xf]
        %v551 = vld [vmem:[%s1 + $0xc] sm:$0xf]
        %v552 = vld [vmem:[%s2] sm:$0x1]
        %v554 = vlaneseq
        %v555 = vshrl.u32 %v554, 7
        %v556 = vsub.s32 0, %v555
        %v557 = vrot.slane %v552, %v556
        %v563 = vunpack.c.l.b16 %v548
        %v564 = vunpack.c.l.b16 %v549
        %v565 = vunpack.c.l.b16 %v550
        %v566 = vunpack.c.l.b16 %v551
        %v567 = vpack.c.b16 %v564, %v563
        %v568 = vpack.c.b16 %v566, %v565
        %vm571 = vcmask 261120
        %v573 = vsel %vm571, %v532, 0
        %v576 = vsel %vm571, %v533, 0
        %v579 = vsel %vm571, %v534, 0
        %v582 = vsel %vm571, %v535, 0
        %v585 = vsel %vm571, %v536, 0
        %v588 = vsel %vm571, %v537, 0
        %v591 = vsel %vm571, %v538, 0
        %v594 = vsel %vm571, %v539, 0
        %v597 = vsel %vm571, %v540, 0
        %v600 = vsel %vm571, %v541, 0
        %v603 = vsel %vm571, %v542, 0
        %v606 = vsel %vm571, %v543, 0
        %v609 = vsel %vm571, %v544, 0
        %v612 = vsel %vm571, %v545, 0
        %v615 = vsel %vm571, %v546, 0
        %v618 = vsel %vm571, %v547, 0
        %620 = vmatprep.subr.bf16.mxu0 0
        %621 = vmatpush1.bf16.msra.mxu0 %v567
        %622 = vmatprep.subr.bf16.mxu0 0
        %623 = vmatpush1.bf16.msra.mxu0 %v568
        %624 = vmatprep.subr.bf16.mxu0 0
        %625 = vmatpush1.bf16.msra.mxu0 0
        %626 = vmatprep.subr.bf16.mxu0 0
        %627 = vmatpush1.bf16.msra.mxu0 0
        %628 = vmatprep.subr.bf16.mxu0 0
        %629 = vmatpush1.bf16.msra.mxu0 0
        %630 = vmatprep.subr.bf16.mxu0 0
        %631 = vmatpush1.bf16.msra.mxu0 0
        %632 = vmatprep.subr.bf16.mxu0 0
        %633 = vmatpush1.bf16.msra.mxu0 0
        %634 = vmatprep.subr.bf16.mxu0 0
        %635 = vmatpush1.bf16.msra.mxu0 0
        %636 = vmatprep.subr.bf16.mxu0 0
        %637 = vmatpush1.bf16.msra.mxu0 0
        %638 = vmatprep.subr.bf16.mxu0 0
        %639 = vmatpush1.bf16.msra.mxu0 0
        %640 = vmatprep.subr.bf16.mxu0 0
        %641 = vmatpush1.bf16.msra.mxu0 0
        %642 = vmatprep.subr.bf16.mxu0 0
        %643 = vmatpush1.bf16.msra.mxu0 0
        %644 = vmatprep.subr.bf16.mxu0 0
        %645 = vmatpush1.bf16.msra.mxu0 0
        %646 = vmatprep.subr.bf16.mxu0 0
        %647 = vmatpush1.bf16.msra.mxu0 0
        %648 = vmatprep.subr.bf16.mxu0 0
        %649 = vmatpush1.bf16.msra.mxu0 0
        %650 = vmatprep.subr.bf16.mxu0 0
        %651 = vmatpush1.bf16.msra.mxu0 0
        %652 = vmatprep.mubr.bf16.mxu0 0
        %653 = vmatmul.mubr.bf16.gmra.mrb[0].mxu0 %v573
        %v654 = vpop.f32.mrb[0].mxu0
        %v655 = vadd.f32 %v557, %v654
        %v656 = vpop.f32.mrb[0].mxu0
        %v657 = vpop.f32.mrb[0].mxu0
        %v658 = vadd.f32 %v557, %v657
        %v659 = vpop.f32.mrb[0].mxu0
        %660 = vmatprep.mubr.bf16.mxu0 0
        %661 = vmatmul.mubr.bf16.gmra.mrb[0].mxu0 %v576
        %v662 = vpop.f32.mrb[0].mxu0
        %v663 = vadd.f32 %v557, %v662
        %v664 = vpop.f32.mrb[0].mxu0
        %v665 = vpop.f32.mrb[0].mxu0
        %v666 = vadd.f32 %v557, %v665
        %v667 = vpop.f32.mrb[0].mxu0
        %668 = vmatprep.mubr.bf16.mxu0 0
        %669 = vmatmul.mubr.bf16.gmra.mrb[0].mxu0 %v579
        %v670 = vpop.f32.mrb[0].mxu0
        %v671 = vadd.f32 %v557, %v670
        %v672 = vpop.f32.mrb[0].mxu0
        %v673 = vpop.f32.mrb[0].mxu0
        %v674 = vadd.f32 %v557, %v673
        %v675 = vpop.f32.mrb[0].mxu0
        %676 = vmatprep.mubr.bf16.mxu0 0
        %677 = vmatmul.mubr.bf16.gmra.mrb[0].mxu0 %v582
        %v678 = vpop.f32.mrb[0].mxu0
        %v679 = vadd.f32 %v557, %v678
        %v680 = vpop.f32.mrb[0].mxu0
        %v681 = vpop.f32.mrb[0].mxu0
        %v682 = vadd.f32 %v557, %v681
        %v683 = vpop.f32.mrb[0].mxu0
        %684 = vmatprep.mubr.bf16.mxu0 0
        %685 = vmatmul.mubr.bf16.gmra.mrb[0].mxu0 %v585
        %v686 = vpop.f32.mrb[0].mxu0
        %v687 = vadd.f32 %v557, %v686
        %v688 = vpop.f32.mrb[0].mxu0
        %v689 = vpop.f32.mrb[0].mxu0
        %v690 = vadd.f32 %v557, %v689
        %v691 = vpop.f32.mrb[0].mxu0
        %692 = vmatprep.mubr.bf16.mxu0 0
        %693 = vmatmul.mubr.bf16.gmra.mrb[0].mxu0 %v588
        %v694 = vpop.f32.mrb[0].mxu0
        %v695 = vadd.f32 %v557, %v694
        %v696 = vpop.f32.mrb[0].mxu0
        %v697 = vpop.f32.mrb[0].mxu0
        %v698 = vadd.f32 %v557, %v697
        %v699 = vpop.f32.mrb[0].mxu0
        %700 = vmatprep.mubr.bf16.mxu0 0
        %701 = vmatmul.mubr.bf16.gmra.mrb[0].mxu0 %v591
        %v702 = vpop.f32.mrb[0].mxu0
        %v703 = vadd.f32 %v557, %v702
        %v704 = vpop.f32.mrb[0].mxu0
        %v705 = vpop.f32.mrb[0].mxu0
        %v706 = vadd.f32 %v557, %v705
        %v707 = vpop.f32.mrb[0].mxu0
        %708 = vmatprep.mubr.bf16.mxu0 0
        %709 = vmatmul.mubr.bf16.gmra.mrb[0].mxu0 %v594
        %v710 = vpop.f32.mrb[0].mxu0
        %v711 = vadd.f32 %v557, %v710
        %v712 = vpop.f32.mrb[0].mxu0
        %v713 = vpop.f32.mrb[0].mxu0
        %v714 = vadd.f32 %v557, %v713
        %v715 = vpop.f32.mrb[0].mxu0
        %716 = vmatprep.mubr.bf16.mxu0 0
        %717 = vmatmul.mubr.bf16.gmra.mrb[0].mxu0 %v597
        %v718 = vpop.f32.mrb[0].mxu0
        %v719 = vadd.f32 %v557, %v718
        %v720 = vpop.f32.mrb[0].mxu0
        %v721 = vpop.f32.mrb[0].mxu0
        %v722 = vadd.f32 %v557, %v721
        %v723 = vpop.f32.mrb[0].mxu0
        %724 = vmatprep.mubr.bf16.mxu0 0
        %725 = vmatmul.mubr.bf16.gmra.mrb[0].mxu0 %v600
        %v726 = vpop.f32.mrb[0].mxu0
        %v727 = vadd.f32 %v557, %v726
        %v728 = vpop.f32.mrb[0].mxu0
        %v729 = vpop.f32.mrb[0].mxu0
        %v730 = vadd.f32 %v557, %v729
        %v731 = vpop.f32.mrb[0].mxu0
        %732 = vmatprep.mubr.bf16.mxu0 0
        %733 = vmatmul.mubr.bf16.gmra.mrb[0].mxu0 %v603
        %v734 = vpop.f32.mrb[0].mxu0
        %v735 = vadd.f32 %v557, %v734
        %v736 = vpop.f32.mrb[0].mxu0
        %v737 = vpop.f32.mrb[0].mxu0
        %v738 = vadd.f32 %v557, %v737
        %v739 = vpop.f32.mrb[0].mxu0
        %740 = vmatprep.mubr.bf16.mxu0 0
        %741 = vmatmul.mubr.bf16.gmra.mrb[0].mxu0 %v606
        %v742 = vpop.f32.mrb[0].mxu0
        %v743 = vadd.f32 %v557, %v742
        %v744 = vpop.f32.mrb[0].mxu0
        %v745 = vpop.f32.mrb[0].mxu0
        %v746 = vadd.f32 %v557, %v745
        %v747 = vpop.f32.mrb[0].mxu0
        %748 = vmatprep.mubr.bf16.mxu0 0
        %749 = vmatmul.mubr.bf16.gmra.mrb[0].mxu0 %v609
        %v750 = vpop.f32.mrb[0].mxu0
        %v751 = vadd.f32 %v557, %v750
        %v752 = vpop.f32.mrb[0].mxu0
        %v753 = vpop.f32.mrb[0].mxu0
        %v754 = vadd.f32 %v557, %v753
        %v755 = vpop.f32.mrb[0].mxu0
        %756 = vmatprep.mubr.bf16.mxu0 0
        %757 = vmatmul.mubr.bf16.gmra.mrb[0].mxu0 %v612
        %v758 = vpop.f32.mrb[0].mxu0
        %v759 = vadd.f32 %v557, %v758
        %v760 = vpop.f32.mrb[0].mxu0
        %v761 = vpop.f32.mrb[0].mxu0
        %v762 = vadd.f32 %v557, %v761
        %v763 = vpop.f32.mrb[0].mxu0
        %764 = vmatprep.mubr.bf16.mxu0 0
        %765 = vmatmul.mubr.bf16.gmra.mrb[0].mxu0 %v615
        %v766 = vpop.f32.mrb[0].mxu0
        %v767 = vadd.f32 %v557, %v766
        %v768 = vpop.f32.mrb[0].mxu0
        %v769 = vpop.f32.mrb[0].mxu0
        %v770 = vadd.f32 %v557, %v769
        %v771 = vpop.f32.mrb[0].mxu0
        %772 = vmatprep.mubr.bf16.mxu0 0
        %773 = vmatmul.mubr.bf16.gmra.mrb[0].mxu0 %v618
        %v774 = vpop.f32.mrb[0].mxu0
        %v775 = vadd.f32 %v557, %v774
        %v776 = vpop.f32.mrb[0].mxu0
        %v777 = vpop.f32.mrb[0].mxu0
        %v778 = vadd.f32 %v557, %v777
        %v779 = vpop.f32.mrb[0].mxu0
        %780 = vdwg.mxu0
        %v781 = vpack.c.bf16 %v658, %v655
        %v782 = vpack.c.bf16 %v666, %v663
        %v783 = vpack.c.bf16 %v674, %v671
        %v784 = vpack.c.bf16 %v682, %v679
        %v785 = vpack.c.bf16 %v690, %v687
        %v786 = vpack.c.bf16 %v698, %v695
        %v787 = vpack.c.bf16 %v706, %v703
        %v788 = vpack.c.bf16 %v714, %v711
        %v789 = vpack.c.bf16 %v722, %v719
        %v790 = vpack.c.bf16 %v730, %v727
        %v791 = vpack.c.bf16 %v738, %v735
        %v792 = vpack.c.bf16 %v746, %v743
        %v793 = vpack.c.bf16 %v754, %v751
        %v794 = vpack.c.bf16 %v762, %v759
        %v795 = vpack.c.bf16 %v770, %v767
        %v796 = vpack.c.bf16 %v778, %v775
        %813 = vrot.lane.b32.xlu0 %v781, 96
        %v814 = vpop.permute.xlu0 %813
        %815 = vrot.lane.b32.xlu0 %v782, 96
        %v816 = vpop.permute.xlu0 %815
        %817 = vrot.lane.b32.xlu0 %v783, 96
        %v818 = vpop.permute.xlu0 %817
        %819 = vrot.lane.b32.xlu0 %v784, 96
        %v820 = vpop.permute.xlu0 %819
        %821 = vrot.lane.b32.xlu0 %v785, 96
        %v822 = vpop.permute.xlu0 %821
        %823 = vrot.lane.b32.xlu0 %v786, 96
        %v824 = vpop.permute.xlu0 %823
        %825 = vrot.lane.b32.xlu0 %v787, 96
        %v826 = vpop.permute.xlu0 %825
        %827 = vrot.lane.b32.xlu0 %v788, 96
        %v828 = vpop.permute.xlu0 %827
        %829 = vrot.lane.b32.xlu0 %v789, 96
        %v830 = vpop.permute.xlu0 %829
        %831 = vrot.lane.b32.xlu0 %v790, 96
        %v832 = vpop.permute.xlu0 %831
        %833 = vrot.lane.b32.xlu0 %v791, 96
        %v834 = vpop.permute.xlu0 %833
        %835 = vrot.lane.b32.xlu0 %v792, 96
        %v836 = vpop.permute.xlu0 %835
        %837 = vrot.lane.b32.xlu0 %v793, 96
        %v838 = vpop.permute.xlu0 %837
        %839 = vrot.lane.b32.xlu0 %v794, 96
        %v840 = vpop.permute.xlu0 %839
        %841 = vrot.lane.b32.xlu0 %v795, 96
        %v842 = vpop.permute.xlu0 %841
        %843 = vrot.lane.b32.xlu0 %v796, 96
        %v844 = vpop.permute.xlu0 %843
        %vm845 = vcmask 64512
        %v847 = vsel %vm845, %v781, 0
        %v850 = vsel %vm845, %v782, 0
        %v853 = vsel %vm845, %v783, 0
        %v856 = vsel %vm845, %v784, 0
        %v859 = vsel %vm845, %v785, 0
        %v862 = vsel %vm845, %v786, 0
        %v865 = vsel %vm845, %v787, 0
        %v868 = vsel %vm845, %v788, 0
        %v871 = vsel %vm845, %v789, 0
        %v874 = vsel %vm845, %v790, 0
        %v877 = vsel %vm845, %v791, 0
        %v880 = vsel %vm845, %v792, 0
        %v883 = vsel %vm845, %v793, 0
        %v886 = vsel %vm845, %v794, 0
        %v889 = vsel %vm845, %v795, 0
        %v892 = vsel %vm845, %v796, 0
        %v895 = vsel %vm845, %v814, 0
        %v898 = vsel %vm845, %v816, 0
        %v901 = vsel %vm845, %v818, 0
        %v904 = vsel %vm845, %v820, 0
        %v907 = vsel %vm845, %v822, 0
        %v910 = vsel %vm845, %v824, 0
        %v913 = vsel %vm845, %v826, 0
        %v916 = vsel %vm845, %v828, 0
        %v919 = vsel %vm845, %v830, 0
        %v922 = vsel %vm845, %v832, 0
        %v925 = vsel %vm845, %v834, 0
        %v928 = vsel %vm845, %v836, 0
        %v931 = vsel %vm845, %v838, 0
        %v934 = vsel %vm845, %v840, 0
        %v937 = vsel %vm845, %v842, 0
        %v940 = vsel %vm845, %v844, 0
        %942 = vmatprep.subr.bf16.mxu0 0
        %943 = vmatpush1.bf16.xpose.msra.mxu0 %v895
        %944 = vmatprep.subr.bf16.mxu0 0
        %945 = vmatpush1.bf16.xpose.msra.mxu0 %v898
        %946 = vmatprep.subr.bf16.mxu0 0
        %947 = vmatpush1.bf16.xpose.msra.mxu0 %v901
        %948 = vmatprep.subr.bf16.mxu0 0
        %949 = vmatpush1.bf16.xpose.msra.mxu0 %v904
        %950 = vmatprep.subr.bf16.mxu0 0
        %951 = vmatpush1.bf16.xpose.msra.mxu0 %v907
        %952 = vmatprep.subr.bf16.mxu0 0
        %953 = vmatpush1.bf16.xpose.msra.mxu0 %v910
        %954 = vmatprep.subr.bf16.mxu0 0
        %955 = vmatpush1.bf16.xpose.msra.mxu0 %v913
        %956 = vmatprep.subr.bf16.mxu0 0
        %957 = vmatpush1.bf16.xpose.msra.mxu0 %v916
        %958 = vmatprep.subr.bf16.mxu0 0
        %959 = vmatpush1.bf16.xpose.msra.mxu0 %v919
        %960 = vmatprep.subr.bf16.mxu0 0
        %961 = vmatpush1.bf16.xpose.msra.mxu0 %v922
        %962 = vmatprep.subr.bf16.mxu0 0
        %963 = vmatpush1.bf16.xpose.msra.mxu0 %v925
        %964 = vmatprep.subr.bf16.mxu0 0
        %965 = vmatpush1.bf16.xpose.msra.mxu0 %v928
        %966 = vmatprep.subr.bf16.mxu0 0
        %967 = vmatpush1.bf16.xpose.msra.mxu0 %v931
        %968 = vmatprep.subr.bf16.mxu0 0
        %969 = vmatpush1.bf16.xpose.msra.mxu0 %v934
        %970 = vmatprep.subr.bf16.mxu0 0
        %971 = vmatpush1.bf16.xpose.msra.mxu0 %v937
        %972 = vmatprep.subr.bf16.mxu0 0
        %973 = vmatpush1.bf16.xpose.msra.mxu0 %v940
        %974 = vmatprep.mubr.bf16.mxu0 0
        %975 = vmatmul.mubr.bf16.gmra.mrb[0].mxu0 %v847
        %v976 = vpop.f32.mrb[0].mxu0
        %v977 = vadd.f32 0.0, %v976
        %v978 = vpop.f32.mrb[0].mxu0
        %v979 = vadd.f32 0.0, %v978
        %v980 = vpop.f32.mrb[0].mxu0
        %v981 = vadd.f32 0.0, %v980
        %v982 = vpop.f32.mrb[0].mxu0
        %v983 = vadd.f32 0.0, %v982
        %984 = vmatprep.mubr.bf16.mxu0 0
        %985 = vmatmul.mubr.bf16.gmra.mrb[0].mxu0 %v850
        %v986 = vpop.f32.mrb[0].mxu0
        %v987 = vadd.f32 0.0, %v986
        %v988 = vpop.f32.mrb[0].mxu0
        %v989 = vadd.f32 0.0, %v988
        %v990 = vpop.f32.mrb[0].mxu0
        %v991 = vadd.f32 0.0, %v990
        %v992 = vpop.f32.mrb[0].mxu0
        %v993 = vadd.f32 0.0, %v992
        %994 = vmatprep.mubr.bf16.mxu0 0
        %995 = vmatmul.mubr.bf16.gmra.mrb[0].mxu0 %v853
        %v996 = vpop.f32.mrb[0].mxu0
        %v997 = vadd.f32 0.0, %v996
        %v998 = vpop.f32.mrb[0].mxu0
        %v999 = vadd.f32 0.0, %v998
        %v1000 = vpop.f32.mrb[0].mxu0
        %v1001 = vadd.f32 0.0, %v1000
        %v1002 = vpop.f32.mrb[0].mxu0
        %v1003 = vadd.f32 0.0, %v1002
        %1004 = vmatprep.mubr.bf16.mxu0 0
        %1005 = vmatmul.mubr.bf16.gmra.mrb[0].mxu0 %v856
        %v1006 = vpop.f32.mrb[0].mxu0
        %v1007 = vadd.f32 0.0, %v1006
        %v1008 = vpop.f32.mrb[0].mxu0
        %v1009 = vadd.f32 0.0, %v1008
        %v1010 = vpop.f32.mrb[0].mxu0
        %v1011 = vadd.f32 0.0, %v1010
        %v1012 = vpop.f32.mrb[0].mxu0
        %v1013 = vadd.f32 0.0, %v1012
        %1014 = vmatprep.mubr.bf16.mxu0 0
        %1015 = vmatmul.mubr.bf16.gmra.mrb[0].mxu0 %v859
        %v1016 = vpop.f32.mrb[0].mxu0
        %v1017 = vadd.f32 0.0, %v1016
        %v1018 = vpop.f32.mrb[0].mxu0
        %v1019 = vadd.f32 0.0, %v1018
        %v1020 = vpop.f32.mrb[0].mxu0
        %v1021 = vadd.f32 0.0, %v1020
        %v1022 = vpop.f32.mrb[0].mxu0
        %v1023 = vadd.f32 0.0, %v1022
        %1024 = vmatprep.mubr.bf16.mxu0 0
        %1025 = vmatmul.mubr.bf16.gmra.mrb[0].mxu0 %v862
        %v1026 = vpop.f32.mrb[0].mxu0
        %v1027 = vadd.f32 0.0, %v1026
        %v1028 = vpop.f32.mrb[0].mxu0
        %v1029 = vadd.f32 0.0, %v1028
        %v1030 = vpop.f32.mrb[0].mxu0
        %v1031 = vadd.f32 0.0, %v1030
        %v1032 = vpop.f32.mrb[0].mxu0
        %v1033 = vadd.f32 0.0, %v1032
        %1034 = vmatprep.mubr.bf16.mxu0 0
        %1035 = vmatmul.mubr.bf16.gmra.mrb[0].mxu0 %v865
        %v1036 = vpop.f32.mrb[0].mxu0
        %v1037 = vadd.f32 0.0, %v1036
        %v1038 = vpop.f32.mrb[0].mxu0
        %v1039 = vadd.f32 0.0, %v1038
        %v1040 = vpop.f32.mrb[0].mxu0
        %v1041 = vadd.f32 0.0, %v1040
        %v1042 = vpop.f32.mrb[0].mxu0
        %v1043 = vadd.f32 0.0, %v1042
        %1044 = vmatprep.mubr.bf16.mxu0 0
        %1045 = vmatmul.mubr.bf16.gmra.mrb[0].mxu0 %v868
        %v1046 = vpop.f32.mrb[0].mxu0
        %v1047 = vadd.f32 0.0, %v1046
        %v1048 = vpop.f32.mrb[0].mxu0
        %v1049 = vadd.f32 0.0, %v1048
        %v1050 = vpop.f32.mrb[0].mxu0
        %v1051 = vadd.f32 0.0, %v1050
        %v1052 = vpop.f32.mrb[0].mxu0
        %v1053 = vadd.f32 0.0, %v1052
        %1054 = vmatprep.mubr.bf16.mxu0 0
        %1055 = vmatmul.mubr.bf16.gmra.mrb[0].mxu0 %v871
        %v1056 = vpop.f32.mrb[0].mxu0
        %v1057 = vadd.f32 0.0, %v1056
        %v1058 = vpop.f32.mrb[0].mxu0
        %v1059 = vadd.f32 0.0, %v1058
        %v1060 = vpop.f32.mrb[0].mxu0
        %v1061 = vadd.f32 0.0, %v1060
        %v1062 = vpop.f32.mrb[0].mxu0
        %v1063 = vadd.f32 0.0, %v1062
        %1064 = vmatprep.mubr.bf16.mxu0 0
        %1065 = vmatmul.mubr.bf16.gmra.mrb[0].mxu0 %v874
        %v1066 = vpop.f32.mrb[0].mxu0
        %v1067 = vadd.f32 0.0, %v1066
        %v1068 = vpop.f32.mrb[0].mxu0
        %v1069 = vadd.f32 0.0, %v1068
        %v1070 = vpop.f32.mrb[0].mxu0
        %v1071 = vadd.f32 0.0, %v1070
        %v1072 = vpop.f32.mrb[0].mxu0
        %v1073 = vadd.f32 0.0, %v1072
        %1074 = vmatprep.mubr.bf16.mxu0 0
        %1075 = vmatmul.mubr.bf16.gmra.mrb[0].mxu0 %v877
        %v1076 = vpop.f32.mrb[0].mxu0
        %v1077 = vadd.f32 0.0, %v1076
        %v1078 = vpop.f32.mrb[0].mxu0
        %v1079 = vadd.f32 0.0, %v1078
        %v1080 = vpop.f32.mrb[0].mxu0
        %v1081 = vadd.f32 0.0, %v1080
        %v1082 = vpop.f32.mrb[0].mxu0
        %v1083 = vadd.f32 0.0, %v1082
        %1084 = vmatprep.mubr.bf16.mxu0 0
        %1085 = vmatmul.mubr.bf16.gmra.mrb[0].mxu0 %v880
        %v1086 = vpop.f32.mrb[0].mxu0
        %v1087 = vadd.f32 0.0, %v1086
        %v1088 = vpop.f32.mrb[0].mxu0
        %v1089 = vadd.f32 0.0, %v1088
        %v1090 = vpop.f32.mrb[0].mxu0
        %v1091 = vadd.f32 0.0, %v1090
        %v1092 = vpop.f32.mrb[0].mxu0
        %v1093 = vadd.f32 0.0, %v1092
        %1094 = vmatprep.mubr.bf16.mxu0 0
        %1095 = vmatmul.mubr.bf16.gmra.mrb[0].mxu0 %v883
        %v1096 = vpop.f32.mrb[0].mxu0
        %v1097 = vadd.f32 0.0, %v1096
        %v1098 = vpop.f32.mrb[0].mxu0
        %v1099 = vadd.f32 0.0, %v1098
        %v1100 = vpop.f32.mrb[0].mxu0
        %v1101 = vadd.f32 0.0, %v1100
        %v1102 = vpop.f32.mrb[0].mxu0
        %v1103 = vadd.f32 0.0, %v1102
        %1104 = vmatprep.mubr.bf16.mxu0 0
        %1105 = vmatmul.mubr.bf16.gmra.mrb[0].mxu0 %v886
        %v1106 = vpop.f32.mrb[0].mxu0
        %v1107 = vadd.f32 0.0, %v1106
        %v1108 = vpop.f32.mrb[0].mxu0
        %v1109 = vadd.f32 0.0, %v1108
        %v1110 = vpop.f32.mrb[0].mxu0
        %v1111 = vadd.f32 0.0, %v1110
        %v1112 = vpop.f32.mrb[0].mxu0
        %v1113 = vadd.f32 0.0, %v1112
        %1114 = vmatprep.mubr.bf16.mxu0 0
        %1115 = vmatmul.mubr.bf16.gmra.mrb[0].mxu0 %v889
        %v1116 = vpop.f32.mrb[0].mxu0
        %v1117 = vadd.f32 0.0, %v1116
        %v1118 = vpop.f32.mrb[0].mxu0
        %v1119 = vadd.f32 0.0, %v1118
        %v1120 = vpop.f32.mrb[0].mxu0
        %v1121 = vadd.f32 0.0, %v1120
        %v1122 = vpop.f32.mrb[0].mxu0
        %v1123 = vadd.f32 0.0, %v1122
        %1124 = vmatprep.mubr.bf16.mxu0 0
        %1125 = vmatmul.mubr.bf16.gmra.mrb[0].mxu0 %v892
        %v1126 = vpop.f32.mrb[0].mxu0
        %v1127 = vadd.f32 0.0, %v1126
        %v1128 = vpop.f32.mrb[0].mxu0
        %v1129 = vadd.f32 0.0, %v1128
        %v1130 = vpop.f32.mrb[0].mxu0
        %v1131 = vadd.f32 0.0, %v1130
        %v1132 = vpop.f32.mrb[0].mxu0
        %v1133 = vadd.f32 0.0, %v1132
        %1134 = vdwg.mxu0
        %v1135 = vmax.f32 %v977, %v979
        %1136 = vmax.xlane.f32.xlu0 %v1135
        %v1137 = vpop.xlane.xlu0 %1136
        %v1138 = vmax.f32 %v981, %v983
        %1139 = vmax.xlane.f32.xlu0 %v1138
        %v1140 = vpop.xlane.xlu0 %1139
        %v1141 = vmax.f32 %v987, %v989
        %1142 = vmax.xlane.f32.xlu0 %v1141
        %v1143 = vpop.xlane.xlu0 %1142
        %v1144 = vmax.f32 %v991, %v993
        %1145 = vmax.xlane.f32.xlu0 %v1144
        %v1146 = vpop.xlane.xlu0 %1145
        %v1147 = vmax.f32 %v997, %v999
        %1148 = vmax.xlane.f32.xlu0 %v1147
        %v1149 = vpop.xlane.xlu0 %1148
        %v1150 = vmax.f32 %v1001, %v1003
        %1151 = vmax.xlane.f32.xlu0 %v1150
        %v1152 = vpop.xlane.xlu0 %1151
        %v1153 = vmax.f32 %v1007, %v1009
        %1154 = vmax.xlane.f32.xlu0 %v1153
        %v1155 = vpop.xlane.xlu0 %1154
        %v1156 = vmax.f32 %v1011, %v1013
        %1157 = vmax.xlane.f32.xlu0 %v1156
        %v1158 = vpop.xlane.xlu0 %1157
        %v1159 = vmax.f32 %v1017, %v1019
        %1160 = vmax.xlane.f32.xlu0 %v1159
        %v1161 = vpop.xlane.xlu0 %1160
        %v1162 = vmax.f32 %v1021, %v1023
        %1163 = vmax.xlane.f32.xlu0 %v1162
        %v1164 = vpop.xlane.xlu0 %1163
        %v1165 = vmax.f32 %v1027, %v1029
        %1166 = vmax.xlane.f32.xlu0 %v1165
        %v1167 = vpop.xlane.xlu0 %1166
        %v1168 = vmax.f32 %v1031, %v1033
        %1169 = vmax.xlane.f32.xlu0 %v1168
        %v1170 = vpop.xlane.xlu0 %1169
        %v1171 = vmax.f32 %v1037, %v1039
        %1172 = vmax.xlane.f32.xlu0 %v1171
        %v1173 = vpop.xlane.xlu0 %1172
        %v1174 = vmax.f32 %v1041, %v1043
        %1175 = vmax.xlane.f32.xlu0 %v1174
        %v1176 = vpop.xlane.xlu0 %1175
        %v1177 = vmax.f32 %v1047, %v1049
        %1178 = vmax.xlane.f32.xlu0 %v1177
        %v1179 = vpop.xlane.xlu0 %1178
        %v1180 = vmax.f32 %v1051, %v1053
        %1181 = vmax.xlane.f32.xlu0 %v1180
        %v1182 = vpop.xlane.xlu0 %1181
        %v1183 = vmax.f32 %v1057, %v1059
        %1184 = vmax.xlane.f32.xlu0 %v1183
        %v1185 = vpop.xlane.xlu0 %1184
        %v1186 = vmax.f32 %v1061, %v1063
        %1187 = vmax.xlane.f32.xlu0 %v1186
        %v1188 = vpop.xlane.xlu0 %1187
        %v1189 = vmax.f32 %v1067, %v1069
        %1190 = vmax.xlane.f32.xlu0 %v1189
        %v1191 = vpop.xlane.xlu0 %1190
        %v1192 = vmax.f32 %v1071, %v1073
        %1193 = vmax.xlane.f32.xlu0 %v1192
        %v1194 = vpop.xlane.xlu0 %1193
        %v1195 = vmax.f32 %v1077, %v1079
        %1196 = vmax.xlane.f32.xlu0 %v1195
        %v1197 = vpop.xlane.xlu0 %1196
        %v1198 = vmax.f32 %v1081, %v1083
        %1199 = vmax.xlane.f32.xlu0 %v1198
        %v1200 = vpop.xlane.xlu0 %1199
        %v1201 = vmax.f32 %v1087, %v1089
        %1202 = vmax.xlane.f32.xlu0 %v1201
        %v1203 = vpop.xlane.xlu0 %1202
        %v1204 = vmax.f32 %v1091, %v1093
        %1205 = vmax.xlane.f32.xlu0 %v1204
        %v1206 = vpop.xlane.xlu0 %1205
        %v1207 = vmax.f32 %v1097, %v1099
        %1208 = vmax.xlane.f32.xlu0 %v1207
        %v1209 = vpop.xlane.xlu0 %1208
        %v1210 = vmax.f32 %v1101, %v1103
        %1211 = vmax.xlane.f32.xlu0 %v1210
        %v1212 = vpop.xlane.xlu0 %1211
        %v1213 = vmax.f32 %v1107, %v1109
        %1214 = vmax.xlane.f32.xlu0 %v1213
        %v1215 = vpop.xlane.xlu0 %1214
        %v1216 = vmax.f32 %v1111, %v1113
        %1217 = vmax.xlane.f32.xlu0 %v1216
        %v1218 = vpop.xlane.xlu0 %1217
        %v1219 = vmax.f32 %v1117, %v1119
        %1220 = vmax.xlane.f32.xlu0 %v1219
        %v1221 = vpop.xlane.xlu0 %1220
        %v1222 = vmax.f32 %v1121, %v1123
        %1223 = vmax.xlane.f32.xlu0 %v1222
        %v1224 = vpop.xlane.xlu0 %1223
        %v1225 = vmax.f32 %v1127, %v1129
        %1226 = vmax.xlane.f32.xlu0 %v1225
        %v1227 = vpop.xlane.xlu0 %1226
        %v1228 = vmax.f32 %v1131, %v1133
        %1229 = vmax.xlane.f32.xlu0 %v1228
        %v1230 = vpop.xlane.xlu0 %1229
        %v1231 = vsub.f32 %v977, %v1137
        %v1232 = vsub.f32 %v979, %v1137
        %v1233 = vsub.f32 %v981, %v1140
        %v1234 = vsub.f32 %v983, %v1140
        %v1235 = vsub.f32 %v987, %v1143
        %v1236 = vsub.f32 %v989, %v1143
        %v1237 = vsub.f32 %v991, %v1146
        %v1238 = vsub.f32 %v993, %v1146
        %v1239 = vsub.f32 %v997, %v1149
        %v1240 = vsub.f32 %v999, %v1149
        %v1241 = vsub.f32 %v1001, %v1152
        %v1242 = vsub.f32 %v1003, %v1152
        %v1243 = vsub.f32 %v1007, %v1155
        %v1244 = vsub.f32 %v1009, %v1155
        %v1245 = vsub.f32 %v1011, %v1158
        %v1246 = vsub.f32 %v1013, %v1158
        %v1247 = vsub.f32 %v1017, %v1161
        %v1248 = vsub.f32 %v1019, %v1161
        %v1249 = vsub.f32 %v1021, %v1164
        %v1250 = vsub.f32 %v1023, %v1164
        %v1251 = vsub.f32 %v1027, %v1167
        %v1252 = vsub.f32 %v1029, %v1167
        %v1253 = vsub.f32 %v1031, %v1170
        %v1254 = vsub.f32 %v1033, %v1170
        %v1255 = vsub.f32 %v1037, %v1173
        %v1256 = vsub.f32 %v1039, %v1173
        %v1257 = vsub.f32 %v1041, %v1176
        %v1258 = vsub.f32 %v1043, %v1176
        %v1259 = vsub.f32 %v1047, %v1179
        %v1260 = vsub.f32 %v1049, %v1179
        %v1261 = vsub.f32 %v1051, %v1182
        %v1262 = vsub.f32 %v1053, %v1182
        %v1263 = vsub.f32 %v1057, %v1185
        %v1264 = vsub.f32 %v1059, %v1185
        %v1265 = vsub.f32 %v1061, %v1188
        %v1266 = vsub.f32 %v1063, %v1188
        %v1267 = vsub.f32 %v1067, %v1191
        %v1268 = vsub.f32 %v1069, %v1191
        %v1269 = vsub.f32 %v1071, %v1194
        %v1270 = vsub.f32 %v1073, %v1194
        %v1271 = vsub.f32 %v1077, %v1197
        %v1272 = vsub.f32 %v1079, %v1197
        %v1273 = vsub.f32 %v1081, %v1200
        %v1274 = vsub.f32 %v1083, %v1200
        %v1275 = vsub.f32 %v1087, %v1203
        %v1276 = vsub.f32 %v1089, %v1203
        %v1277 = vsub.f32 %v1091, %v1206
        %v1278 = vsub.f32 %v1093, %v1206
        %v1279 = vsub.f32 %v1097, %v1209
        %v1280 = vsub.f32 %v1099, %v1209
        %v1281 = vsub.f32 %v1101, %v1212
        %v1282 = vsub.f32 %v1103, %v1212
        %v1283 = vsub.f32 %v1107, %v1215
        %v1284 = vsub.f32 %v1109, %v1215
        %v1285 = vsub.f32 %v1111, %v1218
        %v1286 = vsub.f32 %v1113, %v1218
        %v1287 = vsub.f32 %v1117, %v1221
        %v1288 = vsub.f32 %v1119, %v1221
        %v1289 = vsub.f32 %v1121, %v1224
        %v1290 = vsub.f32 %v1123, %v1224
        %v1291 = vsub.f32 %v1127, %v1227
        %v1292 = vsub.f32 %v1129, %v1227
        %v1293 = vsub.f32 %v1131, %v1230
        %v1294 = vsub.f32 %v1133, %v1230
        %v1295 = vmul.f32 %v1231, 1.442695
        %v1296 = vpow.pop %v1295
        %v1297 = vmul.f32 %v1232, 1.442695
        %v1298 = vpow.pop %v1297
        %v1299 = vmul.f32 %v1233, 1.442695
        %v1300 = vpow.pop %v1299
        %v1301 = vmul.f32 %v1234, 1.442695
        %v1302 = vpow.pop %v1301
        %v1303 = vmul.f32 %v1235, 1.442695
        %v1304 = vpow.pop %v1303
        %v1305 = vmul.f32 %v1236, 1.442695
        %v1306 = vpow.pop %v1305
        %v1307 = vmul.f32 %v1237, 1.442695
        %v1308 = vpow.pop %v1307
        %v1309 = vmul.f32 %v1238, 1.442695
        %v1310 = vpow.pop %v1309
        %v1311 = vmul.f32 %v1239, 1.442695
        %v1312 = vpow.pop %v1311
        %v1313 = vmul.f32 %v1240, 1.442695
        %v1314 = vpow.pop %v1313
        %v1315 = vmul.f32 %v1241, 1.442695
        %v1316 = vpow.pop %v1315
        %v1317 = vmul.f32 %v1242, 1.442695
        %v1318 = vpow.pop %v1317
        %v1319 = vmul.f32 %v1243, 1.442695
        %v1320 = vpow.pop %v1319
        %v1321 = vmul.f32 %v1244, 1.442695
        %v1322 = vpow.pop %v1321
        %v1323 = vmul.f32 %v1245, 1.442695
        %v1324 = vpow.pop %v1323
        %v1325 = vmul.f32 %v1246, 1.442695
        %v1326 = vpow.pop %v1325
        %v1327 = vmul.f32 %v1247, 1.442695
        %v1328 = vpow.pop %v1327
        %v1329 = vmul.f32 %v1248, 1.442695
        %v1330 = vpow.pop %v1329
        %v1331 = vmul.f32 %v1249, 1.442695
        %v1332 = vpow.pop %v1331
        %v1333 = vmul.f32 %v1250, 1.442695
        %v1334 = vpow.pop %v1333
        %v1335 = vmul.f32 %v1251, 1.442695
        %v1336 = vpow.pop %v1335
        %v1337 = vmul.f32 %v1252, 1.442695
        %v1338 = vpow.pop %v1337
        %v1339 = vmul.f32 %v1253, 1.442695
        %v1340 = vpow.pop %v1339
        %v1341 = vmul.f32 %v1254, 1.442695
        %v1342 = vpow.pop %v1341
        %v1343 = vmul.f32 %v1255, 1.442695
        %v1344 = vpow.pop %v1343
        %v1345 = vmul.f32 %v1256, 1.442695
        %v1346 = vpow.pop %v1345
        %v1347 = vmul.f32 %v1257, 1.442695
        %v1348 = vpow.pop %v1347
        %v1349 = vmul.f32 %v1258, 1.442695
        %v1350 = vpow.pop %v1349
        %v1351 = vmul.f32 %v1259, 1.442695
        %v1352 = vpow.pop %v1351
        %v1353 = vmul.f32 %v1260, 1.442695
        %v1354 = vpow.pop %v1353
        %v1355 = vmul.f32 %v1261, 1.442695
        %v1356 = vpow.pop %v1355
        %v1357 = vmul.f32 %v1262, 1.442695
        %v1358 = vpow.pop %v1357
        %v1359 = vmul.f32 %v1263, 1.442695
        %v1360 = vpow.pop %v1359
        %v1361 = vmul.f32 %v1264, 1.442695
        %v1362 = vpow.pop %v1361
        %v1363 = vmul.f32 %v1265, 1.442695
        %v1364 = vpow.pop %v1363
        %v1365 = vmul.f32 %v1266, 1.442695
        %v1366 = vpow.pop %v1365
        %v1367 = vmul.f32 %v1267, 1.442695
        %v1368 = vpow.pop %v1367
        %v1369 = vmul.f32 %v1268, 1.442695
        %v1370 = vpow.pop %v1369
        %v1371 = vmul.f32 %v1269, 1.442695
        %v1372 = vpow.pop %v1371
        %v1373 = vmul.f32 %v1270, 1.442695
        %v1374 = vpow.pop %v1373
        %v1375 = vmul.f32 %v1271, 1.442695
        %v1376 = vpow.pop %v1375
        %v1377 = vmul.f32 %v1272, 1.442695
        %v1378 = vpow.pop %v1377
        %v1379 = vmul.f32 %v1273, 1.442695
        %v1380 = vpow.pop %v1379
        %v1381 = vmul.f32 %v1274, 1.442695
        %v1382 = vpow.pop %v1381
        %v1383 = vmul.f32 %v1275, 1.442695
        %v1384 = vpow.pop %v1383
        %v1385 = vmul.f32 %v1276, 1.442695
        %v1386 = vpow.pop %v1385
        %v1387 = vmul.f32 %v1277, 1.442695
        %v1388 = vpow.pop %v1387
        %v1389 = vmul.f32 %v1278, 1.442695
        %v1390 = vpow.pop %v1389
        %v1391 = vmul.f32 %v1279, 1.442695
        %v1392 = vpow.pop %v1391
        %v1393 = vmul.f32 %v1280, 1.442695
        %v1394 = vpow.pop %v1393
        %v1395 = vmul.f32 %v1281, 1.442695
        %v1396 = vpow.pop %v1395
        %v1397 = vmul.f32 %v1282, 1.442695
        %v1398 = vpow.pop %v1397
        %v1399 = vmul.f32 %v1283, 1.442695
        %v1400 = vpow.pop %v1399
        %v1401 = vmul.f32 %v1284, 1.442695
        %v1402 = vpow.pop %v1401
        %v1403 = vmul.f32 %v1285, 1.442695
        %v1404 = vpow.pop %v1403
        %v1405 = vmul.f32 %v1286, 1.442695
        %v1406 = vpow.pop %v1405
        %v1407 = vmul.f32 %v1287, 1.442695
        %v1408 = vpow.pop %v1407
        %v1409 = vmul.f32 %v1288, 1.442695
        %v1410 = vpow.pop %v1409
        %v1411 = vmul.f32 %v1289, 1.442695
        %v1412 = vpow.pop %v1411
        %v1413 = vmul.f32 %v1290, 1.442695
        %v1414 = vpow.pop %v1413
        %v1415 = vmul.f32 %v1291, 1.442695
        %v1416 = vpow.pop %v1415
        %v1417 = vmul.f32 %v1292, 1.442695
        %v1418 = vpow.pop %v1417
        %v1419 = vmul.f32 %v1293, 1.442695
        %v1420 = vpow.pop %v1419
        %v1421 = vmul.f32 %v1294, 1.442695
        %v1422 = vpow.pop %v1421
        %v1423 = vadd.f32 %v1296, %v1298
        %1424 = vadd.xlane.f32.xlu0 %v1423
        %v1425 = vpop.xlane.xlu0 %1424
        %v1426 = vadd.f32 %v1300, %v1302
        %1427 = vadd.xlane.f32.xlu0 %v1426
        %v1428 = vpop.xlane.xlu0 %1427
        %v1429 = vadd.f32 %v1304, %v1306
        %1430 = vadd.xlane.f32.xlu0 %v1429
        %v1431 = vpop.xlane.xlu0 %1430
        %v1432 = vadd.f32 %v1308, %v1310
        %1433 = vadd.xlane.f32.xlu0 %v1432
        %v1434 = vpop.xlane.xlu0 %1433
        %v1435 = vadd.f32 %v1312, %v1314
        %1436 = vadd.xlane.f32.xlu0 %v1435
        %v1437 = vpop.xlane.xlu0 %1436
        %v1438 = vadd.f32 %v1316, %v1318
        %1439 = vadd.xlane.f32.xlu0 %v1438
        %v1440 = vpop.xlane.xlu0 %1439
        %v1441 = vadd.f32 %v1320, %v1322
        %1442 = vadd.xlane.f32.xlu0 %v1441
        %v1443 = vpop.xlane.xlu0 %1442
        %v1444 = vadd.f32 %v1324, %v1326
        %1445 = vadd.xlane.f32.xlu0 %v1444
        %v1446 = vpop.xlane.xlu0 %1445
        %v1447 = vadd.f32 %v1328, %v1330
        %1448 = vadd.xlane.f32.xlu0 %v1447
        %v1449 = vpop.xlane.xlu0 %1448
        %v1450 = vadd.f32 %v1332, %v1334
        %1451 = vadd.xlane.f32.xlu0 %v1450
        %v1452 = vpop.xlane.xlu0 %1451
        %v1453 = vadd.f32 %v1336, %v1338
        %1454 = vadd.xlane.f32.xlu0 %v1453
        %v1455 = vpop.xlane.xlu0 %1454
        %v1456 = vadd.f32 %v1340, %v1342
        %1457 = vadd.xlane.f32.xlu0 %v1456
        %v1458 = vpop.xlane.xlu0 %1457
        %v1459 = vadd.f32 %v1344, %v1346
        %1460 = vadd.xlane.f32.xlu0 %v1459
        %v1461 = vpop.xlane.xlu0 %1460
        %v1462 = vadd.f32 %v1348, %v1350
        %1463 = vadd.xlane.f32.xlu0 %v1462
        %v1464 = vpop.xlane.xlu0 %1463
        %v1465 = vadd.f32 %v1352, %v1354
        %1466 = vadd.xlane.f32.xlu0 %v1465
        %v1467 = vpop.xlane.xlu0 %1466
        %v1468 = vadd.f32 %v1356, %v1358
        %1469 = vadd.xlane.f32.xlu0 %v1468
        %v1470 = vpop.xlane.xlu0 %1469
        %v1471 = vadd.f32 %v1360, %v1362
        %1472 = vadd.xlane.f32.xlu0 %v1471
        %v1473 = vpop.xlane.xlu0 %1472
        %v1474 = vadd.f32 %v1364, %v1366
        %1475 = vadd.xlane.f32.xlu0 %v1474
        %v1476 = vpop.xlane.xlu0 %1475
        %v1477 = vadd.f32 %v1368, %v1370
        %1478 = vadd.xlane.f32.xlu0 %v1477
        %v1479 = vpop.xlane.xlu0 %1478
        %v1480 = vadd.f32 %v1372, %v1374
        %1481 = vadd.xlane.f32.xlu0 %v1480
        %v1482 = vpop.xlane.xlu0 %1481
        %v1483 = vadd.f32 %v1376, %v1378
        %1484 = vadd.xlane.f32.xlu0 %v1483
        %v1485 = vpop.xlane.xlu0 %1484
        %v1486 = vadd.f32 %v1380, %v1382
        %1487 = vadd.xlane.f32.xlu0 %v1486
        %v1488 = vpop.xlane.xlu0 %1487
        %v1489 = vadd.f32 %v1384, %v1386
        %1490 = vadd.xlane.f32.xlu0 %v1489
        %v1491 = vpop.xlane.xlu0 %1490
        %v1492 = vadd.f32 %v1388, %v1390
        %1493 = vadd.xlane.f32.xlu0 %v1492
        %v1494 = vpop.xlane.xlu0 %1493
        %v1495 = vadd.f32 %v1392, %v1394
        %1496 = vadd.xlane.f32.xlu0 %v1495
        %v1497 = vpop.xlane.xlu0 %1496
        %v1498 = vadd.f32 %v1396, %v1398
        %1499 = vadd.xlane.f32.xlu0 %v1498
        %v1500 = vpop.xlane.xlu0 %1499
        %v1501 = vadd.f32 %v1400, %v1402
        %1502 = vadd.xlane.f32.xlu0 %v1501
        %v1503 = vpop.xlane.xlu0 %1502
        %v1504 = vadd.f32 %v1404, %v1406
        %1505 = vadd.xlane.f32.xlu0 %v1504
        %v1506 = vpop.xlane.xlu0 %1505
        %v1507 = vadd.f32 %v1408, %v1410
        %1508 = vadd.xlane.f32.xlu0 %v1507
        %v1509 = vpop.xlane.xlu0 %1508
        %v1510 = vadd.f32 %v1412, %v1414
        %1511 = vadd.xlane.f32.xlu0 %v1510
        %v1512 = vpop.xlane.xlu0 %1511
        %v1513 = vadd.f32 %v1416, %v1418
        %1514 = vadd.xlane.f32.xlu0 %v1513
        %v1515 = vpop.xlane.xlu0 %1514
        %v1516 = vadd.f32 %v1420, %v1422
        %1517 = vadd.xlane.f32.xlu0 %v1516
        %v1518 = vpop.xlane.xlu0 %1517
        %v1519 = vrcp.pop %v1425
        %v1520 = vrcp.pop %v1428
        %v1521 = vrcp.pop %v1431
        %v1522 = vrcp.pop %v1434
        %v1523 = vrcp.pop %v1437
        %v1524 = vrcp.pop %v1440
        %v1525 = vrcp.pop %v1443
        %v1526 = vrcp.pop %v1446
        %v1527 = vrcp.pop %v1449
        %v1528 = vrcp.pop %v1452
        %v1529 = vrcp.pop %v1455
        %v1530 = vrcp.pop %v1458
        %v1531 = vrcp.pop %v1461
        %v1532 = vrcp.pop %v1464
        %v1533 = vrcp.pop %v1467
        %v1534 = vrcp.pop %v1470
        %v1535 = vrcp.pop %v1473
        %v1536 = vrcp.pop %v1476
        %v1537 = vrcp.pop %v1479
        %v1538 = vrcp.pop %v1482
        %v1539 = vrcp.pop %v1485
        %v1540 = vrcp.pop %v1488
        %v1541 = vrcp.pop %v1491
        %v1542 = vrcp.pop %v1494
        %v1543 = vrcp.pop %v1497
        %v1544 = vrcp.pop %v1500
        %v1545 = vrcp.pop %v1503
        %v1546 = vrcp.pop %v1506
        %v1547 = vrcp.pop %v1509
        %v1548 = vrcp.pop %v1512
        %v1549 = vrcp.pop %v1515
        %v1550 = vrcp.pop %v1518
        %v1551 = vmul.f32 %v1296, %v1519
        %v1552 = vmul.f32 %v1298, %v1519
        %v1553 = vmul.f32 %v1300, %v1520
        %v1554 = vmul.f32 %v1302, %v1520
        %v1555 = vmul.f32 %v1304, %v1521
        %v1556 = vmul.f32 %v1306, %v1521
        %v1557 = vmul.f32 %v1308, %v1522
        %v1558 = vmul.f32 %v1310, %v1522
        %v1559 = vmul.f32 %v1312, %v1523
        %v1560 = vmul.f32 %v1314, %v1523
        %v1561 = vmul.f32 %v1316, %v1524
        %v1562 = vmul.f32 %v1318, %v1524
        %v1563 = vmul.f32 %v1320, %v1525
        %v1564 = vmul.f32 %v1322, %v1525
        %v1565 = vmul.f32 %v1324, %v1526
        %v1566 = vmul.f32 %v1326, %v1526
        %v1567 = vmul.f32 %v1328, %v1527
        %v1568 = vmul.f32 %v1330, %v1527
        %v1569 = vmul.f32 %v1332, %v1528
        %v1570 = vmul.f32 %v1334, %v1528
        %v1571 = vmul.f32 %v1336, %v1529
        %v1572 = vmul.f32 %v1338, %v1529
        %v1573 = vmul.f32 %v1340, %v1530
        %v1574 = vmul.f32 %v1342, %v1530
        %v1575 = vmul.f32 %v1344, %v1531
        %v1576 = vmul.f32 %v1346, %v1531
        %v1577 = vmul.f32 %v1348, %v1532
        %v1578 = vmul.f32 %v1350, %v1532
        %v1579 = vmul.f32 %v1352, %v1533
        %v1580 = vmul.f32 %v1354, %v1533
        %v1581 = vmul.f32 %v1356, %v1534
        %v1582 = vmul.f32 %v1358, %v1534
        %v1583 = vmul.f32 %v1360, %v1535
        %v1584 = vmul.f32 %v1362, %v1535
        %v1585 = vmul.f32 %v1364, %v1536
        %v1586 = vmul.f32 %v1366, %v1536
        %v1587 = vmul.f32 %v1368, %v1537
        %v1588 = vmul.f32 %v1370, %v1537
        %v1589 = vmul.f32 %v1372, %v1538
        %v1590 = vmul.f32 %v1374, %v1538
        %v1591 = vmul.f32 %v1376, %v1539
        %v1592 = vmul.f32 %v1378, %v1539
        %v1593 = vmul.f32 %v1380, %v1540
        %v1594 = vmul.f32 %v1382, %v1540
        %v1595 = vmul.f32 %v1384, %v1541
        %v1596 = vmul.f32 %v1386, %v1541
        %v1597 = vmul.f32 %v1388, %v1542
        %v1598 = vmul.f32 %v1390, %v1542
        %v1599 = vmul.f32 %v1392, %v1543
        %v1600 = vmul.f32 %v1394, %v1543
        %v1601 = vmul.f32 %v1396, %v1544
        %v1602 = vmul.f32 %v1398, %v1544
        %v1603 = vmul.f32 %v1400, %v1545
        %v1604 = vmul.f32 %v1402, %v1545
        %v1605 = vmul.f32 %v1404, %v1546
        %v1606 = vmul.f32 %v1406, %v1546
        %v1607 = vmul.f32 %v1408, %v1547
        %v1608 = vmul.f32 %v1410, %v1547
        %v1609 = vmul.f32 %v1412, %v1548
        %v1610 = vmul.f32 %v1414, %v1548
        %v1611 = vmul.f32 %v1416, %v1549
        %v1612 = vmul.f32 %v1418, %v1549
        %v1613 = vmul.f32 %v1420, %v1550
        %v1614 = vmul.f32 %v1422, %v1550
        %v1615 = vpack.c.bf16 %v1553, %v1551
        %v1616 = vpack.c.bf16 %v1554, %v1552
        %v1617 = vpack.c.bf16 %v1557, %v1555
        %v1618 = vpack.c.bf16 %v1558, %v1556
        %v1619 = vpack.c.bf16 %v1561, %v1559
        %v1620 = vpack.c.bf16 %v1562, %v1560
        %v1621 = vpack.c.bf16 %v1565, %v1563
        %v1622 = vpack.c.bf16 %v1566, %v1564
        %v1623 = vpack.c.bf16 %v1569, %v1567
        %v1624 = vpack.c.bf16 %v1570, %v1568
        %v1625 = vpack.c.bf16 %v1573, %v1571
        %v1626 = vpack.c.bf16 %v1574, %v1572
        %v1627 = vpack.c.bf16 %v1577, %v1575
        %v1628 = vpack.c.bf16 %v1578, %v1576
        %v1629 = vpack.c.bf16 %v1581, %v1579
        %v1630 = vpack.c.bf16 %v1582, %v1580
        %v1631 = vpack.c.bf16 %v1585, %v1583
        %v1632 = vpack.c.bf16 %v1586, %v1584
        %v1633 = vpack.c.bf16 %v1589, %v1587
        %v1634 = vpack.c.bf16 %v1590, %v1588
        %v1635 = vpack.c.bf16 %v1593, %v1591
        %v1636 = vpack.c.bf16 %v1594, %v1592
        %v1637 = vpack.c.bf16 %v1597, %v1595
        %v1638 = vpack.c.bf16 %v1598, %v1596
        %v1639 = vpack.c.bf16 %v1601, %v1599
        %v1640 = vpack.c.bf16 %v1602, %v1600
        %v1641 = vpack.c.bf16 %v1605, %v1603
        %v1642 = vpack.c.bf16 %v1606, %v1604
        %v1643 = vpack.c.bf16 %v1609, %v1607
        %v1644 = vpack.c.bf16 %v1610, %v1608
        %v1645 = vpack.c.bf16 %v1613, %v1611
        %v1646 = vpack.c.bf16 %v1614, %v1612
        %1647 = vrot.lane.b32.xlu0 %v781, 64
        %v1648 = vpop.permute.xlu0 %1647
        %1649 = vrot.lane.b32.xlu0 %v782, 64
        %v1650 = vpop.permute.xlu0 %1649
        %1651 = vrot.lane.b32.xlu0 %v783, 64
        %v1652 = vpop.permute.xlu0 %1651
        %1653 = vrot.lane.b32.xlu0 %v784, 64
        %v1654 = vpop.permute.xlu0 %1653
        %1655 = vrot.lane.b32.xlu0 %v785, 64
        %v1656 = vpop.permute.xlu0 %1655
        %1657 = vrot.lane.b32.xlu0 %v786, 64
        %v1658 = vpop.permute.xlu0 %1657
        %1659 = vrot.lane.b32.xlu0 %v787, 64
        %v1660 = vpop.permute.xlu0 %1659
        %1661 = vrot.lane.b32.xlu0 %v788, 64
        %v1662 = vpop.permute.xlu0 %1661
        %1663 = vrot.lane.b32.xlu0 %v789, 64
        %v1664 = vpop.permute.xlu0 %1663
        %1665 = vrot.lane.b32.xlu0 %v790, 64
        %v1666 = vpop.permute.xlu0 %1665
        %1667 = vrot.lane.b32.xlu0 %v791, 64
        %v1668 = vpop.permute.xlu0 %1667
        %1669 = vrot.lane.b32.xlu0 %v792, 64
        %v1670 = vpop.permute.xlu0 %1669
        %1671 = vrot.lane.b32.xlu0 %v793, 64
        %v1672 = vpop.permute.xlu0 %1671
        %1673 = vrot.lane.b32.xlu0 %v794, 64
        %v1674 = vpop.permute.xlu0 %1673
        %1675 = vrot.lane.b32.xlu0 %v795, 64
        %v1676 = vpop.permute.xlu0 %1675
        %1677 = vrot.lane.b32.xlu0 %v796, 64
        %v1678 = vpop.permute.xlu0 %1677
        %1695 = vmatprep.subr.bf16.mxu0 0
        %1696 = vmatpush1.bf16.msra.mxu0 %v1648
        %1697 = vmatprep.subr.bf16.mxu0 0
        %1698 = vmatpush1.bf16.msra.mxu0 %v1650
        %1699 = vmatprep.subr.bf16.mxu0 0
        %1700 = vmatpush1.bf16.msra.mxu0 %v1652
        %1701 = vmatprep.subr.bf16.mxu0 0
        %1702 = vmatpush1.bf16.msra.mxu0 %v1654
        %1703 = vmatprep.subr.bf16.mxu0 0
        %1704 = vmatpush1.bf16.msra.mxu0 %v1656
        %1705 = vmatprep.subr.bf16.mxu0 0
        %1706 = vmatpush1.bf16.msra.mxu0 %v1658
        %1707 = vmatprep.subr.bf16.mxu0 0
        %1708 = vmatpush1.bf16.msra.mxu0 %v1660
        %1709 = vmatprep.subr.bf16.mxu0 0
        %1710 = vmatpush1.bf16.msra.mxu0 %v1662
        %1711 = vmatprep.subr.bf16.mxu0 0
        %1712 = vmatpush1.bf16.msra.mxu0 %v1664
        %1713 = vmatprep.subr.bf16.mxu0 0
        %1714 = vmatpush1.bf16.msra.mxu0 %v1666
        %1715 = vmatprep.subr.bf16.mxu0 0
        %1716 = vmatpush1.bf16.msra.mxu0 %v1668
        %1717 = vmatprep.subr.bf16.mxu0 0
        %1718 = vmatpush1.bf16.msra.mxu0 %v1670
        %1719 = vmatprep.subr.bf16.mxu0 0
        %1720 = vmatpush1.bf16.msra.mxu0 %v1672
        %1721 = vmatprep.subr.bf16.mxu0 0
        %1722 = vmatpush1.bf16.msra.mxu0 %v1674
        %1723 = vmatprep.subr.bf16.mxu0 0
        %1724 = vmatpush1.bf16.msra.mxu0 %v1676
        %1725 = vmatprep.subr.bf16.mxu0 0
        %1726 = vmatpush1.bf16.msra.mxu0 %v1678
        %1727 = vmatprep.mubr.bf16.mxu0 %v1616
        %1728 = vmatmul.mubr.bf16.gmra.mrb[0].mxu0 %v1615
        %v1729 = vpop.f32.mrb[0].mxu0
        %v1730 = vadd.f32 0.0, %v1729
        %v1731 = vpop.f32.mrb[0].mxu0
        %v1732 = vpop.f32.mrb[0].mxu0
        %v1733 = vadd.f32 0.0, %v1732
        %v1734 = vpop.f32.mrb[0].mxu0
        %1735 = vmatprep.mubr.bf16.mxu0 %v1618
        %1736 = vmatmul.mubr.bf16.gmra.mrb[0].mxu0 %v1617
        %v1737 = vpop.f32.mrb[0].mxu0
        %v1738 = vadd.f32 0.0, %v1737
        %v1739 = vpop.f32.mrb[0].mxu0
        %v1740 = vpop.f32.mrb[0].mxu0
        %v1741 = vadd.f32 0.0, %v1740
        %v1742 = vpop.f32.mrb[0].mxu0
        %1743 = vmatprep.mubr.bf16.mxu0 %v1620
        %1744 = vmatmul.mubr.bf16.gmra.mrb[0].mxu0 %v1619
        %v1745 = vpop.f32.mrb[0].mxu0
        %v1746 = vadd.f32 0.0, %v1745
        %v1747 = vpop.f32.mrb[0].mxu0
        %v1748 = vpop.f32.mrb[0].mxu0
        %v1749 = vadd.f32 0.0, %v1748
        %v1750 = vpop.f32.mrb[0].mxu0
        %1751 = vmatprep.mubr.bf16.mxu0 %v1622
        %1752 = vmatmul.mubr.bf16.gmra.mrb[0].mxu0 %v1621
        %v1753 = vpop.f32.mrb[0].mxu0
        %v1754 = vadd.f32 0.0, %v1753
        %v1755 = vpop.f32.mrb[0].mxu0
        %v1756 = vpop.f32.mrb[0].mxu0
        %v1757 = vadd.f32 0.0, %v1756
        %v1758 = vpop.f32.mrb[0].mxu0
        %1759 = vmatprep.mubr.bf16.mxu0 %v1624
        %1760 = vmatmul.mubr.bf16.gmra.mrb[0].mxu0 %v1623
        %v1761 = vpop.f32.mrb[0].mxu0
        %v1762 = vadd.f32 0.0, %v1761
        %v1763 = vpop.f32.mrb[0].mxu0
        %v1764 = vpop.f32.mrb[0].mxu0
        %v1765 = vadd.f32 0.0, %v1764
        %v1766 = vpop.f32.mrb[0].mxu0
        %1767 = vmatprep.mubr.bf16.mxu0 %v1626
        %1768 = vmatmul.mubr.bf16.gmra.mrb[0].mxu0 %v1625
        %v1769 = vpop.f32.mrb[0].mxu0
        %v1770 = vadd.f32 0.0, %v1769
        %v1771 = vpop.f32.mrb[0].mxu0
        %v1772 = vpop.f32.mrb[0].mxu0
        %v1773 = vadd.f32 0.0, %v1772
        %v1774 = vpop.f32.mrb[0].mxu0
        %1775 = vmatprep.mubr.bf16.mxu0 %v1628
        %1776 = vmatmul.mubr.bf16.gmra.mrb[0].mxu0 %v1627
        %v1777 = vpop.f32.mrb[0].mxu0
        %v1778 = vadd.f32 0.0, %v1777
        %v1779 = vpop.f32.mrb[0].mxu0
        %v1780 = vpop.f32.mrb[0].mxu0
        %v1781 = vadd.f32 0.0, %v1780
        %v1782 = vpop.f32.mrb[0].mxu0
        %1783 = vmatprep.mubr.bf16.mxu0 %v1630
        %1784 = vmatmul.mubr.bf16.gmra.mrb[0].mxu0 %v1629
        %v1785 = vpop.f32.mrb[0].mxu0
        %v1786 = vadd.f32 0.0, %v1785
        %v1787 = vpop.f32.mrb[0].mxu0
        %v1788 = vpop.f32.mrb[0].mxu0
        %v1789 = vadd.f32 0.0, %v1788
        %v1790 = vpop.f32.mrb[0].mxu0
        %1791 = vmatprep.mubr.bf16.mxu0 %v1632
        %1792 = vmatmul.mubr.bf16.gmra.mrb[0].mxu0 %v1631
        %v1793 = vpop.f32.mrb[0].mxu0
        %v1794 = vadd.f32 0.0, %v1793
        %v1795 = vpop.f32.mrb[0].mxu0
        %v1796 = vpop.f32.mrb[0].mxu0
        %v1797 = vadd.f32 0.0, %v1796
        %v1798 = vpop.f32.mrb[0].mxu0
        %1799 = vmatprep.mubr.bf16.mxu0 %v1634
        %1800 = vmatmul.mubr.bf16.gmra.mrb[0].mxu0 %v1633
        %v1801 = vpop.f32.mrb[0].mxu0
        %v1802 = vadd.f32 0.0, %v1801
        %v1803 = vpop.f32.mrb[0].mxu0
        %v1804 = vpop.f32.mrb[0].mxu0
        %v1805 = vadd.f32 0.0, %v1804
        %v1806 = vpop.f32.mrb[0].mxu0
        %1807 = vmatprep.mubr.bf16.mxu0 %v1636
        %1808 = vmatmul.mubr.bf16.gmra.mrb[0].mxu0 %v1635
        %v1809 = vpop.f32.mrb[0].mxu0
        %v1810 = vadd.f32 0.0, %v1809
        %v1811 = vpop.f32.mrb[0].mxu0
        %v1812 = vpop.f32.mrb[0].mxu0
        %v1813 = vadd.f32 0.0, %v1812
        %v1814 = vpop.f32.mrb[0].mxu0
        %1815 = vmatprep.mubr.bf16.mxu0 %v1638
        %1816 = vmatmul.mubr.bf16.gmra.mrb[0].mxu0 %v1637
        %v1817 = vpop.f32.mrb[0].mxu0
        %v1818 = vadd.f32 0.0, %v1817
        %v1819 = vpop.f32.mrb[0].mxu0
        %v1820 = vpop.f32.mrb[0].mxu0
        %v1821 = vadd.f32 0.0, %v1820
        %v1822 = vpop.f32.mrb[0].mxu0
        %1823 = vmatprep.mubr.bf16.mxu0 %v1640
        %1824 = vmatmul.mubr.bf16.gmra.mrb[0].mxu0 %v1639
        %v1825 = vpop.f32.mrb[0].mxu0
        %v1826 = vadd.f32 0.0, %v1825
        %v1827 = vpop.f32.mrb[0].mxu0
        %v1828 = vpop.f32.mrb[0].mxu0
        %v1829 = vadd.f32 0.0, %v1828
        %v1830 = vpop.f32.mrb[0].mxu0
        %1831 = vmatprep.mubr.bf16.mxu0 %v1642
        %1832 = vmatmul.mubr.bf16.gmra.mrb[0].mxu0 %v1641
        %v1833 = vpop.f32.mrb[0].mxu0
        %v1834 = vadd.f32 0.0, %v1833
        %v1835 = vpop.f32.mrb[0].mxu0
        %v1836 = vpop.f32.mrb[0].mxu0
        %v1837 = vadd.f32 0.0, %v1836
        %v1838 = vpop.f32.mrb[0].mxu0
        %1839 = vmatprep.mubr.bf16.mxu0 %v1644
        %1840 = vmatmul.mubr.bf16.gmra.mrb[0].mxu0 %v1643
        %v1841 = vpop.f32.mrb[0].mxu0
        %v1842 = vadd.f32 0.0, %v1841
        %v1843 = vpop.f32.mrb[0].mxu0
        %v1844 = vpop.f32.mrb[0].mxu0
        %v1845 = vadd.f32 0.0, %v1844
        %v1846 = vpop.f32.mrb[0].mxu0
        %1847 = vmatprep.mubr.bf16.mxu0 %v1646
        %1848 = vmatmul.mubr.bf16.gmra.mrb[0].mxu0 %v1645
        %v1849 = vpop.f32.mrb[0].mxu0
        %v1850 = vadd.f32 0.0, %v1849
        %v1851 = vpop.f32.mrb[0].mxu0
        %v1852 = vpop.f32.mrb[0].mxu0
        %v1853 = vadd.f32 0.0, %v1852
        %v1854 = vpop.f32.mrb[0].mxu0
        %1855 = vdwg.mxu0
        %1856 = vrot.lane.b32.xlu0 %v781, 120
        %v1857 = vpop.permute.xlu0 %1856
        %1858 = vrot.lane.b32.xlu0 %v782, 120
        %v1859 = vpop.permute.xlu0 %1858
        %1860 = vrot.lane.b32.xlu0 %v783, 120
        %v1861 = vpop.permute.xlu0 %1860
        %1862 = vrot.lane.b32.xlu0 %v784, 120
        %v1863 = vpop.permute.xlu0 %1862
        %1864 = vrot.lane.b32.xlu0 %v785, 120
        %v1865 = vpop.permute.xlu0 %1864
        %1866 = vrot.lane.b32.xlu0 %v786, 120
        %v1867 = vpop.permute.xlu0 %1866
        %1868 = vrot.lane.b32.xlu0 %v787, 120
        %v1869 = vpop.permute.xlu0 %1868
        %1870 = vrot.lane.b32.xlu0 %v788, 120
        %v1871 = vpop.permute.xlu0 %1870
        %1872 = vrot.lane.b32.xlu0 %v789, 120
        %v1873 = vpop.permute.xlu0 %1872
        %1874 = vrot.lane.b32.xlu0 %v790, 120
        %v1875 = vpop.permute.xlu0 %1874
        %1876 = vrot.lane.b32.xlu0 %v791, 120
        %v1877 = vpop.permute.xlu0 %1876
        %1878 = vrot.lane.b32.xlu0 %v792, 120
        %v1879 = vpop.permute.xlu0 %1878
        %1880 = vrot.lane.b32.xlu0 %v793, 120
        %v1881 = vpop.permute.xlu0 %1880
        %1882 = vrot.lane.b32.xlu0 %v794, 120
        %v1883 = vpop.permute.xlu0 %1882
        %1884 = vrot.lane.b32.xlu0 %v795, 120
        %v1885 = vpop.permute.xlu0 %1884
        %1886 = vrot.lane.b32.xlu0 %v796, 120
        %v1887 = vpop.permute.xlu0 %1886
        %1888 = vrot.lane.b32.xlu0 %v781, 88
        %v1889 = vpop.permute.xlu0 %1888
        %1890 = vrot.lane.b32.xlu0 %v782, 88
        %v1891 = vpop.permute.xlu0 %1890
        %1892 = vrot.lane.b32.xlu0 %v783, 88
        %v1893 = vpop.permute.xlu0 %1892
        %1894 = vrot.lane.b32.xlu0 %v784, 88
        %v1895 = vpop.permute.xlu0 %1894
        %1896 = vrot.lane.b32.xlu0 %v785, 88
        %v1897 = vpop.permute.xlu0 %1896
        %1898 = vrot.lane.b32.xlu0 %v786, 88
        %v1899 = vpop.permute.xlu0 %1898
        %1900 = vrot.lane.b32.xlu0 %v787, 88
        %v1901 = vpop.permute.xlu0 %1900
        %1902 = vrot.lane.b32.xlu0 %v788, 88
        %v1903 = vpop.permute.xlu0 %1902
        %1904 = vrot.lane.b32.xlu0 %v789, 88
        %v1905 = vpop.permute.xlu0 %1904
        %1906 = vrot.lane.b32.xlu0 %v790, 88
        %v1907 = vpop.permute.xlu0 %1906
        %1908 = vrot.lane.b32.xlu0 %v791, 88
        %v1909 = vpop.permute.xlu0 %1908
        %1910 = vrot.lane.b32.xlu0 %v792, 88
        %v1911 = vpop.permute.xlu0 %1910
        %1912 = vrot.lane.b32.xlu0 %v793, 88
        %v1913 = vpop.permute.xlu0 %1912
        %1914 = vrot.lane.b32.xlu0 %v794, 88
        %v1915 = vpop.permute.xlu0 %1914
        %1916 = vrot.lane.b32.xlu0 %v795, 88
        %v1917 = vpop.permute.xlu0 %1916
        %1918 = vrot.lane.b32.xlu0 %v796, 88
        %v1919 = vpop.permute.xlu0 %1918
        %v1921 = vsel %vm845, %v1857, 0
        %v1924 = vsel %vm845, %v1859, 0
        %v1927 = vsel %vm845, %v1861, 0
        %v1930 = vsel %vm845, %v1863, 0
        %v1933 = vsel %vm845, %v1865, 0
        %v1936 = vsel %vm845, %v1867, 0
        %v1939 = vsel %vm845, %v1869, 0
        %v1942 = vsel %vm845, %v1871, 0
        %v1945 = vsel %vm845, %v1873, 0
        %v1948 = vsel %vm845, %v1875, 0
        %v1951 = vsel %vm845, %v1877, 0
        %v1954 = vsel %vm845, %v1879, 0
        %v1957 = vsel %vm845, %v1881, 0
        %v1960 = vsel %vm845, %v1883, 0
        %v1963 = vsel %vm845, %v1885, 0
        %v1966 = vsel %vm845, %v1887, 0
        %v1969 = vsel %vm845, %v1889, 0
        %v1972 = vsel %vm845, %v1891, 0
        %v1975 = vsel %vm845, %v1893, 0
        %v1978 = vsel %vm845, %v1895, 0
        %v1981 = vsel %vm845, %v1897, 0
        %v1984 = vsel %vm845, %v1899, 0
        %v1987 = vsel %vm845, %v1901, 0
        %v1990 = vsel %vm845, %v1903, 0
        %v1993 = vsel %vm845, %v1905, 0
        %v1996 = vsel %vm845, %v1907, 0
        %v1999 = vsel %vm845, %v1909, 0
        %v2002 = vsel %vm845, %v1911, 0
        %v2005 = vsel %vm845, %v1913, 0
        %v2008 = vsel %vm845, %v1915, 0
        %v2011 = vsel %vm845, %v1917, 0
        %v2014 = vsel %vm845, %v1919, 0
        %2016 = vmatprep.subr.bf16.mxu0 0
        %2017 = vmatpush1.bf16.xpose.msra.mxu0 %v1969
        %2018 = vmatprep.subr.bf16.mxu0 0
        %2019 = vmatpush1.bf16.xpose.msra.mxu0 %v1972
        %2020 = vmatprep.subr.bf16.mxu0 0
        %2021 = vmatpush1.bf16.xpose.msra.mxu0 %v1975
        %2022 = vmatprep.subr.bf16.mxu0 0
        %2023 = vmatpush1.bf16.xpose.msra.mxu0 %v1978
        %2024 = vmatprep.subr.bf16.mxu0 0
        %2025 = vmatpush1.bf16.xpose.msra.mxu0 %v1981
        %2026 = vmatprep.subr.bf16.mxu0 0
        %2027 = vmatpush1.bf16.xpose.msra.mxu0 %v1984
        %2028 = vmatprep.subr.bf16.mxu0 0
        %2029 = vmatpush1.bf16.xpose.msra.mxu0 %v1987
        %2030 = vmatprep.subr.bf16.mxu0 0
        %2031 = vmatpush1.bf16.xpose.msra.mxu0 %v1990
        %2032 = vmatprep.subr.bf16.mxu0 0
        %2033 = vmatpush1.bf16.xpose.msra.mxu0 %v1993
        %2034 = vmatprep.subr.bf16.mxu0 0
        %2035 = vmatpush1.bf16.xpose.msra.mxu0 %v1996
        %2036 = vmatprep.subr.bf16.mxu0 0
        %2037 = vmatpush1.bf16.xpose.msra.mxu0 %v1999
        %2038 = vmatprep.subr.bf16.mxu0 0
        %2039 = vmatpush1.bf16.xpose.msra.mxu0 %v2002
        %2040 = vmatprep.subr.bf16.mxu0 0
        %2041 = vmatpush1.bf16.xpose.msra.mxu0 %v2005
        %2042 = vmatprep.subr.bf16.mxu0 0
        %2043 = vmatpush1.bf16.xpose.msra.mxu0 %v2008
        %2044 = vmatprep.subr.bf16.mxu0 0
        %2045 = vmatpush1.bf16.xpose.msra.mxu0 %v2011
        %2046 = vmatprep.subr.bf16.mxu0 0
        %2047 = vmatpush1.bf16.xpose.msra.mxu0 %v2014
        %2048 = vmatprep.mubr.bf16.mxu0 0
        %2049 = vmatmul.mubr.bf16.gmra.mrb[0].mxu0 %v1921
        %v2050 = vpop.f32.mrb[0].mxu0
        %v2051 = vadd.f32 0.0, %v2050
        %v2052 = vpop.f32.mrb[0].mxu0
        %v2053 = vadd.f32 0.0, %v2052
        %v2054 = vpop.f32.mrb[0].mxu0
        %v2055 = vadd.f32 0.0, %v2054
        %v2056 = vpop.f32.mrb[0].mxu0
        %v2057 = vadd.f32 0.0, %v2056
        %2058 = vmatprep.mubr.bf16.mxu0 0
        %2059 = vmatmul.mubr.bf16.gmra.mrb[0].mxu0 %v1924
        %v2060 = vpop.f32.mrb[0].mxu0
        %v2061 = vadd.f32 0.0, %v2060
        %v2062 = vpop.f32.mrb[0].mxu0
        %v2063 = vadd.f32 0.0, %v2062
        %v2064 = vpop.f32.mrb[0].mxu0
        %v2065 = vadd.f32 0.0, %v2064
        %v2066 = vpop.f32.mrb[0].mxu0
        %v2067 = vadd.f32 0.0, %v2066
        %2068 = vmatprep.mubr.bf16.mxu0 0
        %2069 = vmatmul.mubr.bf16.gmra.mrb[0].mxu0 %v1927
        %v2070 = vpop.f32.mrb[0].mxu0
        %v2071 = vadd.f32 0.0, %v2070
        %v2072 = vpop.f32.mrb[0].mxu0
        %v2073 = vadd.f32 0.0, %v2072
        %v2074 = vpop.f32.mrb[0].mxu0
        %v2075 = vadd.f32 0.0, %v2074
        %v2076 = vpop.f32.mrb[0].mxu0
        %v2077 = vadd.f32 0.0, %v2076
        %2078 = vmatprep.mubr.bf16.mxu0 0
        %2079 = vmatmul.mubr.bf16.gmra.mrb[0].mxu0 %v1930
        %v2080 = vpop.f32.mrb[0].mxu0
        %v2081 = vadd.f32 0.0, %v2080
        %v2082 = vpop.f32.mrb[0].mxu0
        %v2083 = vadd.f32 0.0, %v2082
        %v2084 = vpop.f32.mrb[0].mxu0
        %v2085 = vadd.f32 0.0, %v2084
        %v2086 = vpop.f32.mrb[0].mxu0
        %v2087 = vadd.f32 0.0, %v2086
        %2088 = vmatprep.mubr.bf16.mxu0 0
        %2089 = vmatmul.mubr.bf16.gmra.mrb[0].mxu0 %v1933
        %v2090 = vpop.f32.mrb[0].mxu0
        %v2091 = vadd.f32 0.0, %v2090
        %v2092 = vpop.f32.mrb[0].mxu0
        %v2093 = vadd.f32 0.0, %v2092
        %v2094 = vpop.f32.mrb[0].mxu0
        %v2095 = vadd.f32 0.0, %v2094
        %v2096 = vpop.f32.mrb[0].mxu0
        %v2097 = vadd.f32 0.0, %v2096
        %2098 = vmatprep.mubr.bf16.mxu0 0
        %2099 = vmatmul.mubr.bf16.gmra.mrb[0].mxu0 %v1936
        %v2100 = vpop.f32.mrb[0].mxu0
        %v2101 = vadd.f32 0.0, %v2100
        %v2102 = vpop.f32.mrb[0].mxu0
        %v2103 = vadd.f32 0.0, %v2102
        %v2104 = vpop.f32.mrb[0].mxu0
        %v2105 = vadd.f32 0.0, %v2104
        %v2106 = vpop.f32.mrb[0].mxu0
        %v2107 = vadd.f32 0.0, %v2106
        %2108 = vmatprep.mubr.bf16.mxu0 0
        %2109 = vmatmul.mubr.bf16.gmra.mrb[0].mxu0 %v1939
        %v2110 = vpop.f32.mrb[0].mxu0
        %v2111 = vadd.f32 0.0, %v2110
        %v2112 = vpop.f32.mrb[0].mxu0
        %v2113 = vadd.f32 0.0, %v2112
        %v2114 = vpop.f32.mrb[0].mxu0
        %v2115 = vadd.f32 0.0, %v2114
        %v2116 = vpop.f32.mrb[0].mxu0
        %v2117 = vadd.f32 0.0, %v2116
        %2118 = vmatprep.mubr.bf16.mxu0 0
        %2119 = vmatmul.mubr.bf16.gmra.mrb[0].mxu0 %v1942
        %v2120 = vpop.f32.mrb[0].mxu0
        %v2121 = vadd.f32 0.0, %v2120
        %v2122 = vpop.f32.mrb[0].mxu0
        %v2123 = vadd.f32 0.0, %v2122
        %v2124 = vpop.f32.mrb[0].mxu0
        %v2125 = vadd.f32 0.0, %v2124
        %v2126 = vpop.f32.mrb[0].mxu0
        %v2127 = vadd.f32 0.0, %v2126
        %2128 = vmatprep.mubr.bf16.mxu0 0
        %2129 = vmatmul.mubr.bf16.gmra.mrb[0].mxu0 %v1945
        %v2130 = vpop.f32.mrb[0].mxu0
        %v2131 = vadd.f32 0.0, %v2130
        %v2132 = vpop.f32.mrb[0].mxu0
        %v2133 = vadd.f32 0.0, %v2132
        %v2134 = vpop.f32.mrb[0].mxu0
        %v2135 = vadd.f32 0.0, %v2134
        %v2136 = vpop.f32.mrb[0].mxu0
        %v2137 = vadd.f32 0.0, %v2136
        %2138 = vmatprep.mubr.bf16.mxu0 0
        %2139 = vmatmul.mubr.bf16.gmra.mrb[0].mxu0 %v1948
        %v2140 = vpop.f32.mrb[0].mxu0
        %v2141 = vadd.f32 0.0, %v2140
        %v2142 = vpop.f32.mrb[0].mxu0
        %v2143 = vadd.f32 0.0, %v2142
        %v2144 = vpop.f32.mrb[0].mxu0
        %v2145 = vadd.f32 0.0, %v2144
        %v2146 = vpop.f32.mrb[0].mxu0
        %v2147 = vadd.f32 0.0, %v2146
        %2148 = vmatprep.mubr.bf16.mxu0 0
        %2149 = vmatmul.mubr.bf16.gmra.mrb[0].mxu0 %v1951
        %v2150 = vpop.f32.mrb[0].mxu0
        %v2151 = vadd.f32 0.0, %v2150
        %v2152 = vpop.f32.mrb[0].mxu0
        %v2153 = vadd.f32 0.0, %v2152
        %v2154 = vpop.f32.mrb[0].mxu0
        %v2155 = vadd.f32 0.0, %v2154
        %v2156 = vpop.f32.mrb[0].mxu0
        %v2157 = vadd.f32 0.0, %v2156
        %2158 = vmatprep.mubr.bf16.mxu0 0
        %2159 = vmatmul.mubr.bf16.gmra.mrb[0].mxu0 %v1954
        %v2160 = vpop.f32.mrb[0].mxu0
        %v2161 = vadd.f32 0.0, %v2160
        %v2162 = vpop.f32.mrb[0].mxu0
        %v2163 = vadd.f32 0.0, %v2162
        %v2164 = vpop.f32.mrb[0].mxu0
        %v2165 = vadd.f32 0.0, %v2164
        %v2166 = vpop.f32.mrb[0].mxu0
        %v2167 = vadd.f32 0.0, %v2166
        %2168 = vmatprep.mubr.bf16.mxu0 0
        %2169 = vmatmul.mubr.bf16.gmra.mrb[0].mxu0 %v1957
        %v2170 = vpop.f32.mrb[0].mxu0
        %v2171 = vadd.f32 0.0, %v2170
        %v2172 = vpop.f32.mrb[0].mxu0
        %v2173 = vadd.f32 0.0, %v2172
        %v2174 = vpop.f32.mrb[0].mxu0
        %v2175 = vadd.f32 0.0, %v2174
        %v2176 = vpop.f32.mrb[0].mxu0
        %v2177 = vadd.f32 0.0, %v2176
        %2178 = vmatprep.mubr.bf16.mxu0 0
        %2179 = vmatmul.mubr.bf16.gmra.mrb[0].mxu0 %v1960
        %v2180 = vpop.f32.mrb[0].mxu0
        %v2181 = vadd.f32 0.0, %v2180
        %v2182 = vpop.f32.mrb[0].mxu0
        %v2183 = vadd.f32 0.0, %v2182
        %v2184 = vpop.f32.mrb[0].mxu0
        %v2185 = vadd.f32 0.0, %v2184
        %v2186 = vpop.f32.mrb[0].mxu0
        %v2187 = vadd.f32 0.0, %v2186
        %2188 = vmatprep.mubr.bf16.mxu0 0
        %2189 = vmatmul.mubr.bf16.gmra.mrb[0].mxu0 %v1963
        %v2190 = vpop.f32.mrb[0].mxu0
        %v2191 = vadd.f32 0.0, %v2190
        %v2192 = vpop.f32.mrb[0].mxu0
        %v2193 = vadd.f32 0.0, %v2192
        %v2194 = vpop.f32.mrb[0].mxu0
        %v2195 = vadd.f32 0.0, %v2194
        %v2196 = vpop.f32.mrb[0].mxu0
        %v2197 = vadd.f32 0.0, %v2196
        %2198 = vmatprep.mubr.bf16.mxu0 0
        %2199 = vmatmul.mubr.bf16.gmra.mrb[0].mxu0 %v1966
        %v2200 = vpop.f32.mrb[0].mxu0
        %v2201 = vadd.f32 0.0, %v2200
        %v2202 = vpop.f32.mrb[0].mxu0
        %v2203 = vadd.f32 0.0, %v2202
        %v2204 = vpop.f32.mrb[0].mxu0
        %v2205 = vadd.f32 0.0, %v2204
        %v2206 = vpop.f32.mrb[0].mxu0
        %v2207 = vadd.f32 0.0, %v2206
        %2208 = vdwg.mxu0
        %v2209 = vmax.f32 %v2051, %v2053
        %2210 = vmax.xlane.f32.xlu0 %v2209
        %v2211 = vpop.xlane.xlu0 %2210
        %v2212 = vmax.f32 %v2055, %v2057
        %2213 = vmax.xlane.f32.xlu0 %v2212
        %v2214 = vpop.xlane.xlu0 %2213
        %v2215 = vmax.f32 %v2061, %v2063
        %2216 = vmax.xlane.f32.xlu0 %v2215
        %v2217 = vpop.xlane.xlu0 %2216
        %v2218 = vmax.f32 %v2065, %v2067
        %2219 = vmax.xlane.f32.xlu0 %v2218
        %v2220 = vpop.xlane.xlu0 %2219
        %v2221 = vmax.f32 %v2071, %v2073
        %2222 = vmax.xlane.f32.xlu0 %v2221
        %v2223 = vpop.xlane.xlu0 %2222
        %v2224 = vmax.f32 %v2075, %v2077
        %2225 = vmax.xlane.f32.xlu0 %v2224
        %v2226 = vpop.xlane.xlu0 %2225
        %v2227 = vmax.f32 %v2081, %v2083
        %2228 = vmax.xlane.f32.xlu0 %v2227
        %v2229 = vpop.xlane.xlu0 %2228
        %v2230 = vmax.f32 %v2085, %v2087
        %2231 = vmax.xlane.f32.xlu0 %v2230
        %v2232 = vpop.xlane.xlu0 %2231
        %v2233 = vmax.f32 %v2091, %v2093
        %2234 = vmax.xlane.f32.xlu0 %v2233
        %v2235 = vpop.xlane.xlu0 %2234
        %v2236 = vmax.f32 %v2095, %v2097
        %2237 = vmax.xlane.f32.xlu0 %v2236
        %v2238 = vpop.xlane.xlu0 %2237
        %v2239 = vmax.f32 %v2101, %v2103
        %2240 = vmax.xlane.f32.xlu0 %v2239
        %v2241 = vpop.xlane.xlu0 %2240
        %v2242 = vmax.f32 %v2105, %v2107
        %2243 = vmax.xlane.f32.xlu0 %v2242
        %v2244 = vpop.xlane.xlu0 %2243
        %v2245 = vmax.f32 %v2111, %v2113
        %2246 = vmax.xlane.f32.xlu0 %v2245
        %v2247 = vpop.xlane.xlu0 %2246
        %v2248 = vmax.f32 %v2115, %v2117
        %2249 = vmax.xlane.f32.xlu0 %v2248
        %v2250 = vpop.xlane.xlu0 %2249
        %v2251 = vmax.f32 %v2121, %v2123
        %2252 = vmax.xlane.f32.xlu0 %v2251
        %v2253 = vpop.xlane.xlu0 %2252
        %v2254 = vmax.f32 %v2125, %v2127
        %2255 = vmax.xlane.f32.xlu0 %v2254
        %v2256 = vpop.xlane.xlu0 %2255
        %v2257 = vmax.f32 %v2131, %v2133
        %2258 = vmax.xlane.f32.xlu0 %v2257
        %v2259 = vpop.xlane.xlu0 %2258
        %v2260 = vmax.f32 %v2135, %v2137
        %2261 = vmax.xlane.f32.xlu0 %v2260
        %v2262 = vpop.xlane.xlu0 %2261
        %v2263 = vmax.f32 %v2141, %v2143
        %2264 = vmax.xlane.f32.xlu0 %v2263
        %v2265 = vpop.xlane.xlu0 %2264
        %v2266 = vmax.f32 %v2145, %v2147
        %2267 = vmax.xlane.f32.xlu0 %v2266
        %v2268 = vpop.xlane.xlu0 %2267
        %v2269 = vmax.f32 %v2151, %v2153
        %2270 = vmax.xlane.f32.xlu0 %v2269
        %v2271 = vpop.xlane.xlu0 %2270
        %v2272 = vmax.f32 %v2155, %v2157
        %2273 = vmax.xlane.f32.xlu0 %v2272
        %v2274 = vpop.xlane.xlu0 %2273
        %v2275 = vmax.f32 %v2161, %v2163
        %2276 = vmax.xlane.f32.xlu0 %v2275
        %v2277 = vpop.xlane.xlu0 %2276
        %v2278 = vmax.f32 %v2165, %v2167
        %2279 = vmax.xlane.f32.xlu0 %v2278
        %v2280 = vpop.xlane.xlu0 %2279
        %v2281 = vmax.f32 %v2171, %v2173
        %2282 = vmax.xlane.f32.xlu0 %v2281
        %v2283 = vpop.xlane.xlu0 %2282
        %v2284 = vmax.f32 %v2175, %v2177
        %2285 = vmax.xlane.f32.xlu0 %v2284
        %v2286 = vpop.xlane.xlu0 %2285
        %v2287 = vmax.f32 %v2181, %v2183
        %2288 = vmax.xlane.f32.xlu0 %v2287
        %v2289 = vpop.xlane.xlu0 %2288
        %v2290 = vmax.f32 %v2185, %v2187
        %2291 = vmax.xlane.f32.xlu0 %v2290
        %v2292 = vpop.xlane.xlu0 %2291
        %v2293 = vmax.f32 %v2191, %v2193
        %2294 = vmax.xlane.f32.xlu0 %v2293
        %v2295 = vpop.xlane.xlu0 %2294
        %v2296 = vmax.f32 %v2195, %v2197
        %2297 = vmax.xlane.f32.xlu0 %v2296
        %v2298 = vpop.xlane.xlu0 %2297
        %v2299 = vmax.f32 %v2201, %v2203
        %2300 = vmax.xlane.f32.xlu0 %v2299
        %v2301 = vpop.xlane.xlu0 %2300
        %v2302 = vmax.f32 %v2205, %v2207
        %2303 = vmax.xlane.f32.xlu0 %v2302
        %v2304 = vpop.xlane.xlu0 %2303
        %v2305 = vsub.f32 %v2051, %v2211
        %v2306 = vsub.f32 %v2053, %v2211
        %v2307 = vsub.f32 %v2055, %v2214
        %v2308 = vsub.f32 %v2057, %v2214
        %v2309 = vsub.f32 %v2061, %v2217
        %v2310 = vsub.f32 %v2063, %v2217
        %v2311 = vsub.f32 %v2065, %v2220
        %v2312 = vsub.f32 %v2067, %v2220
        %v2313 = vsub.f32 %v2071, %v2223
        %v2314 = vsub.f32 %v2073, %v2223
        %v2315 = vsub.f32 %v2075, %v2226
        %v2316 = vsub.f32 %v2077, %v2226
        %v2317 = vsub.f32 %v2081, %v2229
        %v2318 = vsub.f32 %v2083, %v2229
        %v2319 = vsub.f32 %v2085, %v2232
        %v2320 = vsub.f32 %v2087, %v2232
        %v2321 = vsub.f32 %v2091, %v2235
        %v2322 = vsub.f32 %v2093, %v2235
        %v2323 = vsub.f32 %v2095, %v2238
        %v2324 = vsub.f32 %v2097, %v2238
        %v2325 = vsub.f32 %v2101, %v2241
        %v2326 = vsub.f32 %v2103, %v2241
        %v2327 = vsub.f32 %v2105, %v2244
        %v2328 = vsub.f32 %v2107, %v2244
        %v2329 = vsub.f32 %v2111, %v2247
        %v2330 = vsub.f32 %v2113, %v2247
        %v2331 = vsub.f32 %v2115, %v2250
        %v2332 = vsub.f32 %v2117, %v2250
        %v2333 = vsub.f32 %v2121, %v2253
        %v2334 = vsub.f32 %v2123, %v2253
        %v2335 = vsub.f32 %v2125, %v2256
        %v2336 = vsub.f32 %v2127, %v2256
        %v2337 = vsub.f32 %v2131, %v2259
        %v2338 = vsub.f32 %v2133, %v2259
        %v2339 = vsub.f32 %v2135, %v2262
        %v2340 = vsub.f32 %v2137, %v2262
        %v2341 = vsub.f32 %v2141, %v2265
        %v2342 = vsub.f32 %v2143, %v2265
        %v2343 = vsub.f32 %v2145, %v2268
        %v2344 = vsub.f32 %v2147, %v2268
        %v2345 = vsub.f32 %v2151, %v2271
        %v2346 = vsub.f32 %v2153, %v2271
        %v2347 = vsub.f32 %v2155, %v2274
        %v2348 = vsub.f32 %v2157, %v2274
        %v2349 = vsub.f32 %v2161, %v2277
        %v2350 = vsub.f32 %v2163, %v2277
        %v2351 = vsub.f32 %v2165, %v2280
        %v2352 = vsub.f32 %v2167, %v2280
        %v2353 = vsub.f32 %v2171, %v2283
        %v2354 = vsub.f32 %v2173, %v2283
        %v2355 = vsub.f32 %v2175, %v2286
        %v2356 = vsub.f32 %v2177, %v2286
        %v2357 = vsub.f32 %v2181, %v2289
        %v2358 = vsub.f32 %v2183, %v2289
        %v2359 = vsub.f32 %v2185, %v2292
        %v2360 = vsub.f32 %v2187, %v2292
        %v2361 = vsub.f32 %v2191, %v2295
        %v2362 = vsub.f32 %v2193, %v2295
        %v2363 = vsub.f32 %v2195, %v2298
        %v2364 = vsub.f32 %v2197, %v2298
        %v2365 = vsub.f32 %v2201, %v2301
        %v2366 = vsub.f32 %v2203, %v2301
        %v2367 = vsub.f32 %v2205, %v2304
        %v2368 = vsub.f32 %v2207, %v2304
        %v2369 = vmul.f32 %v2305, 1.442695
        %v2370 = vpow.pop %v2369
        %v2371 = vmul.f32 %v2306, 1.442695
        %v2372 = vpow.pop %v2371
        %v2373 = vmul.f32 %v2307, 1.442695
        %v2374 = vpow.pop %v2373
        %v2375 = vmul.f32 %v2308, 1.442695
        %v2376 = vpow.pop %v2375
        %v2377 = vmul.f32 %v2309, 1.442695
        %v2378 = vpow.pop %v2377
        %v2379 = vmul.f32 %v2310, 1.442695
        %v2380 = vpow.pop %v2379
        %v2381 = vmul.f32 %v2311, 1.442695
        %v2382 = vpow.pop %v2381
        %v2383 = vmul.f32 %v2312, 1.442695
        %v2384 = vpow.pop %v2383
        %v2385 = vmul.f32 %v2313, 1.442695
        %v2386 = vpow.pop %v2385
        %v2387 = vmul.f32 %v2314, 1.442695
        %v2388 = vpow.pop %v2387
        %v2389 = vmul.f32 %v2315, 1.442695
        %v2390 = vpow.pop %v2389
        %v2391 = vmul.f32 %v2316, 1.442695
        %v2392 = vpow.pop %v2391
        %v2393 = vmul.f32 %v2317, 1.442695
        %v2394 = vpow.pop %v2393
        %v2395 = vmul.f32 %v2318, 1.442695
        %v2396 = vpow.pop %v2395
        %v2397 = vmul.f32 %v2319, 1.442695
        %v2398 = vpow.pop %v2397
        %v2399 = vmul.f32 %v2320, 1.442695
        %v2400 = vpow.pop %v2399
        %v2401 = vmul.f32 %v2321, 1.442695
        %v2402 = vpow.pop %v2401
        %v2403 = vmul.f32 %v2322, 1.442695
        %v2404 = vpow.pop %v2403
        %v2405 = vmul.f32 %v2323, 1.442695
        %v2406 = vpow.pop %v2405
        %v2407 = vmul.f32 %v2324, 1.442695
        %v2408 = vpow.pop %v2407
        %v2409 = vmul.f32 %v2325, 1.442695
        %v2410 = vpow.pop %v2409
        %v2411 = vmul.f32 %v2326, 1.442695
        %v2412 = vpow.pop %v2411
        %v2413 = vmul.f32 %v2327, 1.442695
        %v2414 = vpow.pop %v2413
        %v2415 = vmul.f32 %v2328, 1.442695
        %v2416 = vpow.pop %v2415
        %v2417 = vmul.f32 %v2329, 1.442695
        %v2418 = vpow.pop %v2417
        %v2419 = vmul.f32 %v2330, 1.442695
        %v2420 = vpow.pop %v2419
        %v2421 = vmul.f32 %v2331, 1.442695
        %v2422 = vpow.pop %v2421
        %v2423 = vmul.f32 %v2332, 1.442695
        %v2424 = vpow.pop %v2423
        %v2425 = vmul.f32 %v2333, 1.442695
        %v2426 = vpow.pop %v2425
        %v2427 = vmul.f32 %v2334, 1.442695
        %v2428 = vpow.pop %v2427
        %v2429 = vmul.f32 %v2335, 1.442695
        %v2430 = vpow.pop %v2429
        %v2431 = vmul.f32 %v2336, 1.442695
        %v2432 = vpow.pop %v2431
        %v2433 = vmul.f32 %v2337, 1.442695
        %v2434 = vpow.pop %v2433
        %v2435 = vmul.f32 %v2338, 1.442695
        %v2436 = vpow.pop %v2435
        %v2437 = vmul.f32 %v2339, 1.442695
        %v2438 = vpow.pop %v2437
        %v2439 = vmul.f32 %v2340, 1.442695
        %v2440 = vpow.pop %v2439
        %v2441 = vmul.f32 %v2341, 1.442695
        %v2442 = vpow.pop %v2441
        %v2443 = vmul.f32 %v2342, 1.442695
        %v2444 = vpow.pop %v2443
        %v2445 = vmul.f32 %v2343, 1.442695
        %v2446 = vpow.pop %v2445
        %v2447 = vmul.f32 %v2344, 1.442695
        %v2448 = vpow.pop %v2447
        %v2449 = vmul.f32 %v2345, 1.442695
        %v2450 = vpow.pop %v2449
        %v2451 = vmul.f32 %v2346, 1.442695
        %v2452 = vpow.pop %v2451
        %v2453 = vmul.f32 %v2347, 1.442695
        %v2454 = vpow.pop %v2453
        %v2455 = vmul.f32 %v2348, 1.442695
        %v2456 = vpow.pop %v2455
        %v2457 = vmul.f32 %v2349, 1.442695
        %v2458 = vpow.pop %v2457
        %v2459 = vmul.f32 %v2350, 1.442695
        %v2460 = vpow.pop %v2459
        %v2461 = vmul.f32 %v2351, 1.442695
        %v2462 = vpow.pop %v2461
        %v2463 = vmul.f32 %v2352, 1.442695
        %v2464 = vpow.pop %v2463
        %v2465 = vmul.f32 %v2353, 1.442695
        %v2466 = vpow.pop %v2465
        %v2467 = vmul.f32 %v2354, 1.442695
        %v2468 = vpow.pop %v2467
        %v2469 = vmul.f32 %v2355, 1.442695
        %v2470 = vpow.pop %v2469
        %v2471 = vmul.f32 %v2356, 1.442695
        %v2472 = vpow.pop %v2471
        %v2473 = vmul.f32 %v2357, 1.442695
        %v2474 = vpow.pop %v2473
        %v2475 = vmul.f32 %v2358, 1.442695
        %v2476 = vpow.pop %v2475
        %v2477 = vmul.f32 %v2359, 1.442695
        %v2478 = vpow.pop %v2477
        %v2479 = vmul.f32 %v2360, 1.442695
        %v2480 = vpow.pop %v2479
        %v2481 = vmul.f32 %v2361, 1.442695
        %v2482 = vpow.pop %v2481
        %v2483 = vmul.f32 %v2362, 1.442695
        %v2484 = vpow.pop %v2483
        %v2485 = vmul.f32 %v2363, 1.442695
        %v2486 = vpow.pop %v2485
        %v2487 = vmul.f32 %v2364, 1.442695
        %v2488 = vpow.pop %v2487
        %v2489 = vmul.f32 %v2365, 1.442695
        %v2490 = vpow.pop %v2489
        %v2491 = vmul.f32 %v2366, 1.442695
        %v2492 = vpow.pop %v2491
        %v2493 = vmul.f32 %v2367, 1.442695
        %v2494 = vpow.pop %v2493
        %v2495 = vmul.f32 %v2368, 1.442695
        %v2496 = vpow.pop %v2495
        %v2497 = vadd.f32 %v2370, %v2372
        %2498 = vadd.xlane.f32.xlu0 %v2497
        %v2499 = vpop.xlane.xlu0 %2498
        %v2500 = vadd.f32 %v2374, %v2376
        %2501 = vadd.xlane.f32.xlu0 %v2500
        %v2502 = vpop.xlane.xlu0 %2501
        %v2503 = vadd.f32 %v2378, %v2380
        %2504 = vadd.xlane.f32.xlu0 %v2503
        %v2505 = vpop.xlane.xlu0 %2504
        %v2506 = vadd.f32 %v2382, %v2384
        %2507 = vadd.xlane.f32.xlu0 %v2506
        %v2508 = vpop.xlane.xlu0 %2507
        %v2509 = vadd.f32 %v2386, %v2388
        %2510 = vadd.xlane.f32.xlu0 %v2509
        %v2511 = vpop.xlane.xlu0 %2510
        %v2512 = vadd.f32 %v2390, %v2392
        %2513 = vadd.xlane.f32.xlu0 %v2512
        %v2514 = vpop.xlane.xlu0 %2513
        %v2515 = vadd.f32 %v2394, %v2396
        %2516 = vadd.xlane.f32.xlu0 %v2515
        %v2517 = vpop.xlane.xlu0 %2516
        %v2518 = vadd.f32 %v2398, %v2400
        %2519 = vadd.xlane.f32.xlu0 %v2518
        %v2520 = vpop.xlane.xlu0 %2519
        %v2521 = vadd.f32 %v2402, %v2404
        %2522 = vadd.xlane.f32.xlu0 %v2521
        %v2523 = vpop.xlane.xlu0 %2522
        %v2524 = vadd.f32 %v2406, %v2408
        %2525 = vadd.xlane.f32.xlu0 %v2524
        %v2526 = vpop.xlane.xlu0 %2525
        %v2527 = vadd.f32 %v2410, %v2412
        %2528 = vadd.xlane.f32.xlu0 %v2527
        %v2529 = vpop.xlane.xlu0 %2528
        %v2530 = vadd.f32 %v2414, %v2416
        %2531 = vadd.xlane.f32.xlu0 %v2530
        %v2532 = vpop.xlane.xlu0 %2531
        %v2533 = vadd.f32 %v2418, %v2420
        %2534 = vadd.xlane.f32.xlu0 %v2533
        %v2535 = vpop.xlane.xlu0 %2534
        %v2536 = vadd.f32 %v2422, %v2424
        %2537 = vadd.xlane.f32.xlu0 %v2536
        %v2538 = vpop.xlane.xlu0 %2537
        %v2539 = vadd.f32 %v2426, %v2428
        %2540 = vadd.xlane.f32.xlu0 %v2539
        %v2541 = vpop.xlane.xlu0 %2540
        %v2542 = vadd.f32 %v2430, %v2432
        %2543 = vadd.xlane.f32.xlu0 %v2542
        %v2544 = vpop.xlane.xlu0 %2543
        %v2545 = vadd.f32 %v2434, %v2436
        %2546 = vadd.xlane.f32.xlu0 %v2545
        %v2547 = vpop.xlane.xlu0 %2546
        %v2548 = vadd.f32 %v2438, %v2440
        %2549 = vadd.xlane.f32.xlu0 %v2548
        %v2550 = vpop.xlane.xlu0 %2549
        %v2551 = vadd.f32 %v2442, %v2444
        %2552 = vadd.xlane.f32.xlu0 %v2551
        %v2553 = vpop.xlane.xlu0 %2552
        %v2554 = vadd.f32 %v2446, %v2448
        %2555 = vadd.xlane.f32.xlu0 %v2554
        %v2556 = vpop.xlane.xlu0 %2555
        %v2557 = vadd.f32 %v2450, %v2452
        %2558 = vadd.xlane.f32.xlu0 %v2557
        %v2559 = vpop.xlane.xlu0 %2558
        %v2560 = vadd.f32 %v2454, %v2456
        %2561 = vadd.xlane.f32.xlu0 %v2560
        %v2562 = vpop.xlane.xlu0 %2561
        %v2563 = vadd.f32 %v2458, %v2460
        %2564 = vadd.xlane.f32.xlu0 %v2563
        %v2565 = vpop.xlane.xlu0 %2564
        %v2566 = vadd.f32 %v2462, %v2464
        %2567 = vadd.xlane.f32.xlu0 %v2566
        %v2568 = vpop.xlane.xlu0 %2567
        %v2569 = vadd.f32 %v2466, %v2468
        %2570 = vadd.xlane.f32.xlu0 %v2569
        %v2571 = vpop.xlane.xlu0 %2570
        %v2572 = vadd.f32 %v2470, %v2472
        %2573 = vadd.xlane.f32.xlu0 %v2572
        %v2574 = vpop.xlane.xlu0 %2573
        %v2575 = vadd.f32 %v2474, %v2476
        %2576 = vadd.xlane.f32.xlu0 %v2575
        %v2577 = vpop.xlane.xlu0 %2576
        %v2578 = vadd.f32 %v2478, %v2480
        %2579 = vadd.xlane.f32.xlu0 %v2578
        %v2580 = vpop.xlane.xlu0 %2579
        %v2581 = vadd.f32 %v2482, %v2484
        %2582 = vadd.xlane.f32.xlu0 %v2581
        %v2583 = vpop.xlane.xlu0 %2582
        %v2584 = vadd.f32 %v2486, %v2488
        %2585 = vadd.xlane.f32.xlu0 %v2584
        %v2586 = vpop.xlane.xlu0 %2585
        %v2587 = vadd.f32 %v2490, %v2492
        %2588 = vadd.xlane.f32.xlu0 %v2587
        %v2589 = vpop.xlane.xlu0 %2588
        %v2590 = vadd.f32 %v2494, %v2496
        %2591 = vadd.xlane.f32.xlu0 %v2590
        %v2592 = vpop.xlane.xlu0 %2591
        %v2593 = vrcp.pop %v2499
        %v2594 = vrcp.pop %v2502
        %v2595 = vrcp.pop %v2505
        %v2596 = vrcp.pop %v2508
        %v2597 = vrcp.pop %v2511
        %v2598 = vrcp.pop %v2514
        %v2599 = vrcp.pop %v2517
        %v2600 = vrcp.pop %v2520
        %v2601 = vrcp.pop %v2523
        %v2602 = vrcp.pop %v2526
        %v2603 = vrcp.pop %v2529
        %v2604 = vrcp.pop %v2532
        %v2605 = vrcp.pop %v2535
        %v2606 = vrcp.pop %v2538
        %v2607 = vrcp.pop %v2541
        %v2608 = vrcp.pop %v2544
        %v2609 = vrcp.pop %v2547
        %v2610 = vrcp.pop %v2550
        %v2611 = vrcp.pop %v2553
        %v2612 = vrcp.pop %v2556
        %v2613 = vrcp.pop %v2559
        %v2614 = vrcp.pop %v2562
        %v2615 = vrcp.pop %v2565
        %v2616 = vrcp.pop %v2568
        %v2617 = vrcp.pop %v2571
        %v2618 = vrcp.pop %v2574
        %v2619 = vrcp.pop %v2577
        %v2620 = vrcp.pop %v2580
        %v2621 = vrcp.pop %v2583
        %v2622 = vrcp.pop %v2586
        %v2623 = vrcp.pop %v2589
        %v2624 = vrcp.pop %v2592
        %v2625 = vmul.f32 %v2370, %v2593
        %v2626 = vmul.f32 %v2372, %v2593
        %v2627 = vmul.f32 %v2374, %v2594
        %v2628 = vmul.f32 %v2376, %v2594
        %v2629 = vmul.f32 %v2378, %v2595
        %v2630 = vmul.f32 %v2380, %v2595
        %v2631 = vmul.f32 %v2382, %v2596
        %v2632 = vmul.f32 %v2384, %v2596
        %v2633 = vmul.f32 %v2386, %v2597
        %v2634 = vmul.f32 %v2388, %v2597
        %v2635 = vmul.f32 %v2390, %v2598
        %v2636 = vmul.f32 %v2392, %v2598
        %v2637 = vmul.f32 %v2394, %v2599
        %v2638 = vmul.f32 %v2396, %v2599
        %v2639 = vmul.f32 %v2398, %v2600
        %v2640 = vmul.f32 %v2400, %v2600
        %v2641 = vmul.f32 %v2402, %v2601
        %v2642 = vmul.f32 %v2404, %v2601
        %v2643 = vmul.f32 %v2406, %v2602
        %v2644 = vmul.f32 %v2408, %v2602
        %v2645 = vmul.f32 %v2410, %v2603
        %v2646 = vmul.f32 %v2412, %v2603
        %v2647 = vmul.f32 %v2414, %v2604
        %v2648 = vmul.f32 %v2416, %v2604
        %v2649 = vmul.f32 %v2418, %v2605
        %v2650 = vmul.f32 %v2420, %v2605
        %v2651 = vmul.f32 %v2422, %v2606
        %v2652 = vmul.f32 %v2424, %v2606
        %v2653 = vmul.f32 %v2426, %v2607
        %v2654 = vmul.f32 %v2428, %v2607
        %v2655 = vmul.f32 %v2430, %v2608
        %v2656 = vmul.f32 %v2432, %v2608
        %v2657 = vmul.f32 %v2434, %v2609
        %v2658 = vmul.f32 %v2436, %v2609
        %v2659 = vmul.f32 %v2438, %v2610
        %v2660 = vmul.f32 %v2440, %v2610
        %v2661 = vmul.f32 %v2442, %v2611
        %v2662 = vmul.f32 %v2444, %v2611
        %v2663 = vmul.f32 %v2446, %v2612
        %v2664 = vmul.f32 %v2448, %v2612
        %v2665 = vmul.f32 %v2450, %v2613
        %v2666 = vmul.f32 %v2452, %v2613
        %v2667 = vmul.f32 %v2454, %v2614
        %v2668 = vmul.f32 %v2456, %v2614
        %v2669 = vmul.f32 %v2458, %v2615
        %v2670 = vmul.f32 %v2460, %v2615
        %v2671 = vmul.f32 %v2462, %v2616
        %v2672 = vmul.f32 %v2464, %v2616
        %v2673 = vmul.f32 %v2466, %v2617
        %v2674 = vmul.f32 %v2468, %v2617
        %v2675 = vmul.f32 %v2470, %v2618
        %v2676 = vmul.f32 %v2472, %v2618
        %v2677 = vmul.f32 %v2474, %v2619
        %v2678 = vmul.f32 %v2476, %v2619
        %v2679 = vmul.f32 %v2478, %v2620
        %v2680 = vmul.f32 %v2480, %v2620
        %v2681 = vmul.f32 %v2482, %v2621
        %v2682 = vmul.f32 %v2484, %v2621
        %v2683 = vmul.f32 %v2486, %v2622
        %v2684 = vmul.f32 %v2488, %v2622
        %v2685 = vmul.f32 %v2490, %v2623
        %v2686 = vmul.f32 %v2492, %v2623
        %v2687 = vmul.f32 %v2494, %v2624
        %v2688 = vmul.f32 %v2496, %v2624
        %v2689 = vpack.c.bf16 %v2627, %v2625
        %v2690 = vpack.c.bf16 %v2628, %v2626
        %v2691 = vpack.c.bf16 %v2631, %v2629
        %v2692 = vpack.c.bf16 %v2632, %v2630
        %v2693 = vpack.c.bf16 %v2635, %v2633
        %v2694 = vpack.c.bf16 %v2636, %v2634
        %v2695 = vpack.c.bf16 %v2639, %v2637
        %v2696 = vpack.c.bf16 %v2640, %v2638
        %v2697 = vpack.c.bf16 %v2643, %v2641
        %v2698 = vpack.c.bf16 %v2644, %v2642
        %v2699 = vpack.c.bf16 %v2647, %v2645
        %v2700 = vpack.c.bf16 %v2648, %v2646
        %v2701 = vpack.c.bf16 %v2651, %v2649
        %v2702 = vpack.c.bf16 %v2652, %v2650
        %v2703 = vpack.c.bf16 %v2655, %v2653
        %v2704 = vpack.c.bf16 %v2656, %v2654
        %v2705 = vpack.c.bf16 %v2659, %v2657
        %v2706 = vpack.c.bf16 %v2660, %v2658
        %v2707 = vpack.c.bf16 %v2663, %v2661
        %v2708 = vpack.c.bf16 %v2664, %v2662
        %v2709 = vpack.c.bf16 %v2667, %v2665
        %v2710 = vpack.c.bf16 %v2668, %v2666
        %v2711 = vpack.c.bf16 %v2671, %v2669
        %v2712 = vpack.c.bf16 %v2672, %v2670
        %v2713 = vpack.c.bf16 %v2675, %v2673
        %v2714 = vpack.c.bf16 %v2676, %v2674
        %v2715 = vpack.c.bf16 %v2679, %v2677
        %v2716 = vpack.c.bf16 %v2680, %v2678
        %v2717 = vpack.c.bf16 %v2683, %v2681
        %v2718 = vpack.c.bf16 %v2684, %v2682
        %v2719 = vpack.c.bf16 %v2687, %v2685
        %v2720 = vpack.c.bf16 %v2688, %v2686
        %2721 = vrot.lane.b32.xlu0 %v781, 56
        %v2722 = vpop.permute.xlu0 %2721
        %2723 = vrot.lane.b32.xlu0 %v782, 56
        %v2724 = vpop.permute.xlu0 %2723
        %2725 = vrot.lane.b32.xlu0 %v783, 56
        %v2726 = vpop.permute.xlu0 %2725
        %2727 = vrot.lane.b32.xlu0 %v784, 56
        %v2728 = vpop.permute.xlu0 %2727
        %2729 = vrot.lane.b32.xlu0 %v785, 56
        %v2730 = vpop.permute.xlu0 %2729
        %2731 = vrot.lane.b32.xlu0 %v786, 56
        %v2732 = vpop.permute.xlu0 %2731
        %2733 = vrot.lane.b32.xlu0 %v787, 56
        %v2734 = vpop.permute.xlu0 %2733
        %2735 = vrot.lane.b32.xlu0 %v788, 56
        %v2736 = vpop.permute.xlu0 %2735
        %2737 = vrot.lane.b32.xlu0 %v789, 56
        %v2738 = vpop.permute.xlu0 %2737
        %2739 = vrot.lane.b32.xlu0 %v790, 56
        %v2740 = vpop.permute.xlu0 %2739
        %2741 = vrot.lane.b32.xlu0 %v791, 56
        %v2742 = vpop.permute.xlu0 %2741
        %2743 = vrot.lane.b32.xlu0 %v792, 56
        %v2744 = vpop.permute.xlu0 %2743
        %2745 = vrot.lane.b32.xlu0 %v793, 56
        %v2746 = vpop.permute.xlu0 %2745
        %2747 = vrot.lane.b32.xlu0 %v794, 56
        %v2748 = vpop.permute.xlu0 %2747
        %2749 = vrot.lane.b32.xlu0 %v795, 56
        %v2750 = vpop.permute.xlu0 %2749
        %2751 = vrot.lane.b32.xlu0 %v796, 56
        %v2752 = vpop.permute.xlu0 %2751
        %2769 = vmatprep.subr.bf16.mxu0 0
        %2770 = vmatpush1.bf16.msra.mxu0 %v2722
        %2771 = vmatprep.subr.bf16.mxu0 0
        %2772 = vmatpush1.bf16.msra.mxu0 %v2724
        %2773 = vmatprep.subr.bf16.mxu0 0
        %2774 = vmatpush1.bf16.msra.mxu0 %v2726
        %2775 = vmatprep.subr.bf16.mxu0 0
        %2776 = vmatpush1.bf16.msra.mxu0 %v2728
        %2777 = vmatprep.subr.bf16.mxu0 0
        %2778 = vmatpush1.bf16.msra.mxu0 %v2730
        %2779 = vmatprep.subr.bf16.mxu0 0
        %2780 = vmatpush1.bf16.msra.mxu0 %v2732
        %2781 = vmatprep.subr.bf16.mxu0 0
        %2782 = vmatpush1.bf16.msra.mxu0 %v2734
        %2783 = vmatprep.subr.bf16.mxu0 0
        %2784 = vmatpush1.bf16.msra.mxu0 %v2736
        %2785 = vmatprep.subr.bf16.mxu0 0
        %2786 = vmatpush1.bf16.msra.mxu0 %v2738
        %2787 = vmatprep.subr.bf16.mxu0 0
        %2788 = vmatpush1.bf16.msra.mxu0 %v2740
        %2789 = vmatprep.subr.bf16.mxu0 0
        %2790 = vmatpush1.bf16.msra.mxu0 %v2742
        %2791 = vmatprep.subr.bf16.mxu0 0
        %2792 = vmatpush1.bf16.msra.mxu0 %v2744
        %2793 = vmatprep.subr.bf16.mxu0 0
        %2794 = vmatpush1.bf16.msra.mxu0 %v2746
        %2795 = vmatprep.subr.bf16.mxu0 0
        %2796 = vmatpush1.bf16.msra.mxu0 %v2748
        %2797 = vmatprep.subr.bf16.mxu0 0
        %2798 = vmatpush1.bf16.msra.mxu0 %v2750
        %2799 = vmatprep.subr.bf16.mxu0 0
        %2800 = vmatpush1.bf16.msra.mxu0 %v2752
        %2801 = vmatprep.mubr.bf16.mxu0 %v2690
        %2802 = vmatmul.mubr.bf16.gmra.mrb[0].mxu0 %v2689
        %v2803 = vpop.f32.mrb[0].mxu0
        %v2804 = vadd.f32 0.0, %v2803
        %v2805 = vpop.f32.mrb[0].mxu0
        %v2806 = vpop.f32.mrb[0].mxu0
        %v2807 = vadd.f32 0.0, %v2806
        %v2808 = vpop.f32.mrb[0].mxu0
        %2809 = vmatprep.mubr.bf16.mxu0 %v2692
        %2810 = vmatmul.mubr.bf16.gmra.mrb[0].mxu0 %v2691
        %v2811 = vpop.f32.mrb[0].mxu0
        %v2812 = vadd.f32 0.0, %v2811
        %v2813 = vpop.f32.mrb[0].mxu0
        %v2814 = vpop.f32.mrb[0].mxu0
        %v2815 = vadd.f32 0.0, %v2814
        %v2816 = vpop.f32.mrb[0].mxu0
        %2817 = vmatprep.mubr.bf16.mxu0 %v2694
        %2818 = vmatmul.mubr.bf16.gmra.mrb[0].mxu0 %v2693
        %v2819 = vpop.f32.mrb[0].mxu0
        %v2820 = vadd.f32 0.0, %v2819
        %v2821 = vpop.f32.mrb[0].mxu0
        %v2822 = vpop.f32.mrb[0].mxu0
        %v2823 = vadd.f32 0.0, %v2822
        %v2824 = vpop.f32.mrb[0].mxu0
        %2825 = vmatprep.mubr.bf16.mxu0 %v2696
        %2826 = vmatmul.mubr.bf16.gmra.mrb[0].mxu0 %v2695
        %v2827 = vpop.f32.mrb[0].mxu0
        %v2828 = vadd.f32 0.0, %v2827
        %v2829 = vpop.f32.mrb[0].mxu0
        %v2830 = vpop.f32.mrb[0].mxu0
        %v2831 = vadd.f32 0.0, %v2830
        %v2832 = vpop.f32.mrb[0].mxu0
        %2833 = vmatprep.mubr.bf16.mxu0 %v2698
        %2834 = vmatmul.mubr.bf16.gmra.mrb[0].mxu0 %v2697
        %v2835 = vpop.f32.mrb[0].mxu0
        %v2836 = vadd.f32 0.0, %v2835
        %v2837 = vpop.f32.mrb[0].mxu0
        %v2838 = vpop.f32.mrb[0].mxu0
        %v2839 = vadd.f32 0.0, %v2838
        %v2840 = vpop.f32.mrb[0].mxu0
        %2841 = vmatprep.mubr.bf16.mxu0 %v2700
        %2842 = vmatmul.mubr.bf16.gmra.mrb[0].mxu0 %v2699
        %v2843 = vpop.f32.mrb[0].mxu0
        %v2844 = vadd.f32 0.0, %v2843
        %v2845 = vpop.f32.mrb[0].mxu0
        %v2846 = vpop.f32.mrb[0].mxu0
        %v2847 = vadd.f32 0.0, %v2846
        %v2848 = vpop.f32.mrb[0].mxu0
        %2849 = vmatprep.mubr.bf16.mxu0 %v2702
        %2850 = vmatmul.mubr.bf16.gmra.mrb[0].mxu0 %v2701
        %v2851 = vpop.f32.mrb[0].mxu0
        %v2852 = vadd.f32 0.0, %v2851
        %v2853 = vpop.f32.mrb[0].mxu0
        %v2854 = vpop.f32.mrb[0].mxu0
        %v2855 = vadd.f32 0.0, %v2854
        %v2856 = vpop.f32.mrb[0].mxu0
        %2857 = vmatprep.mubr.bf16.mxu0 %v2704
        %2858 = vmatmul.mubr.bf16.gmra.mrb[0].mxu0 %v2703
        %v2859 = vpop.f32.mrb[0].mxu0
        %v2860 = vadd.f32 0.0, %v2859
        %v2861 = vpop.f32.mrb[0].mxu0
        %v2862 = vpop.f32.mrb[0].mxu0
        %v2863 = vadd.f32 0.0, %v2862
        %v2864 = vpop.f32.mrb[0].mxu0
        %2865 = vmatprep.mubr.bf16.mxu0 %v2706
        %2866 = vmatmul.mubr.bf16.gmra.mrb[0].mxu0 %v2705
        %v2867 = vpop.f32.mrb[0].mxu0
        %v2868 = vadd.f32 0.0, %v2867
        %v2869 = vpop.f32.mrb[0].mxu0
        %v2870 = vpop.f32.mrb[0].mxu0
        %v2871 = vadd.f32 0.0, %v2870
        %v2872 = vpop.f32.mrb[0].mxu0
        %2873 = vmatprep.mubr.bf16.mxu0 %v2708
        %2874 = vmatmul.mubr.bf16.gmra.mrb[0].mxu0 %v2707
        %v2875 = vpop.f32.mrb[0].mxu0
        %v2876 = vadd.f32 0.0, %v2875
        %v2877 = vpop.f32.mrb[0].mxu0
        %v2878 = vpop.f32.mrb[0].mxu0
        %v2879 = vadd.f32 0.0, %v2878
        %v2880 = vpop.f32.mrb[0].mxu0
        %2881 = vmatprep.mubr.bf16.mxu0 %v2710
        %2882 = vmatmul.mubr.bf16.gmra.mrb[0].mxu0 %v2709
        %v2883 = vpop.f32.mrb[0].mxu0
        %v2884 = vadd.f32 0.0, %v2883
        %v2885 = vpop.f32.mrb[0].mxu0
        %v2886 = vpop.f32.mrb[0].mxu0
        %v2887 = vadd.f32 0.0, %v2886
        %v2888 = vpop.f32.mrb[0].mxu0
        %2889 = vmatprep.mubr.bf16.mxu0 %v2712
        %2890 = vmatmul.mubr.bf16.gmra.mrb[0].mxu0 %v2711
        %v2891 = vpop.f32.mrb[0].mxu0
        %v2892 = vadd.f32 0.0, %v2891
        %v2893 = vpop.f32.mrb[0].mxu0
        %v2894 = vpop.f32.mrb[0].mxu0
        %v2895 = vadd.f32 0.0, %v2894
        %v2896 = vpop.f32.mrb[0].mxu0
        %2897 = vmatprep.mubr.bf16.mxu0 %v2714
        %2898 = vmatmul.mubr.bf16.gmra.mrb[0].mxu0 %v2713
        %v2899 = vpop.f32.mrb[0].mxu0
        %v2900 = vadd.f32 0.0, %v2899
        %v2901 = vpop.f32.mrb[0].mxu0
        %v2902 = vpop.f32.mrb[0].mxu0
        %v2903 = vadd.f32 0.0, %v2902
        %v2904 = vpop.f32.mrb[0].mxu0
        %2905 = vmatprep.mubr.bf16.mxu0 %v2716
        %2906 = vmatmul.mubr.bf16.gmra.mrb[0].mxu0 %v2715
        %v2907 = vpop.f32.mrb[0].mxu0
        %v2908 = vadd.f32 0.0, %v2907
        %v2909 = vpop.f32.mrb[0].mxu0
        %v2910 = vpop.f32.mrb[0].mxu0
        %v2911 = vadd.f32 0.0, %v2910
        %v2912 = vpop.f32.mrb[0].mxu0
        %2913 = vmatprep.mubr.bf16.mxu0 %v2718
        %2914 = vmatmul.mubr.bf16.gmra.mrb[0].mxu0 %v2717
        %v2915 = vpop.f32.mrb[0].mxu0
        %v2916 = vadd.f32 0.0, %v2915
        %v2917 = vpop.f32.mrb[0].mxu0
        %v2918 = vpop.f32.mrb[0].mxu0
        %v2919 = vadd.f32 0.0, %v2918
        %v2920 = vpop.f32.mrb[0].mxu0
        %2921 = vmatprep.mubr.bf16.mxu0 %v2720
        %2922 = vmatmul.mubr.bf16.gmra.mrb[0].mxu0 %v2719
        %v2923 = vpop.f32.mrb[0].mxu0
        %v2924 = vadd.f32 0.0, %v2923
        %v2925 = vpop.f32.mrb[0].mxu0
        %v2926 = vpop.f32.mrb[0].mxu0
        %v2927 = vadd.f32 0.0, %v2926
        %v2928 = vpop.f32.mrb[0].mxu0
        %2929 = vdwg.mxu0
        %2930 = vrot.lane.b32.xlu0 %v781, 112
        %v2931 = vpop.permute.xlu0 %2930
        %2932 = vrot.lane.b32.xlu0 %v782, 112
        %v2933 = vpop.permute.xlu0 %2932
        %2934 = vrot.lane.b32.xlu0 %v783, 112
        %v2935 = vpop.permute.xlu0 %2934
        %2936 = vrot.lane.b32.xlu0 %v784, 112
        %v2937 = vpop.permute.xlu0 %2936
        %2938 = vrot.lane.b32.xlu0 %v785, 112
        %v2939 = vpop.permute.xlu0 %2938
        %2940 = vrot.lane.b32.xlu0 %v786, 112
        %v2941 = vpop.permute.xlu0 %2940
        %2942 = vrot.lane.b32.xlu0 %v787, 112
        %v2943 = vpop.permute.xlu0 %2942
        %2944 = vrot.lane.b32.xlu0 %v788, 112
        %v2945 = vpop.permute.xlu0 %2944
        %2946 = vrot.lane.b32.xlu0 %v789, 112
        %v2947 = vpop.permute.xlu0 %2946
        %2948 = vrot.lane.b32.xlu0 %v790, 112
        %v2949 = vpop.permute.xlu0 %2948
        %2950 = vrot.lane.b32.xlu0 %v791, 112
        %v2951 = vpop.permute.xlu0 %2950
        %2952 = vrot.lane.b32.xlu0 %v792, 112
        %v2953 = vpop.permute.xlu0 %2952
        %2954 = vrot.lane.b32.xlu0 %v793, 112
        %v2955 = vpop.permute.xlu0 %2954
        %2956 = vrot.lane.b32.xlu0 %v794, 112
        %v2957 = vpop.permute.xlu0 %2956
        %2958 = vrot.lane.b32.xlu0 %v795, 112
        %v2959 = vpop.permute.xlu0 %2958
        %2960 = vrot.lane.b32.xlu0 %v796, 112
        %v2961 = vpop.permute.xlu0 %2960
        %2962 = vrot.lane.b32.xlu0 %v781, 80
        %v2963 = vpop.permute.xlu0 %2962
        %2964 = vrot.lane.b32.xlu0 %v782, 80
        %v2965 = vpop.permute.xlu0 %2964
        %2966 = vrot.lane.b32.xlu0 %v783, 80
        %v2967 = vpop.permute.xlu0 %2966
        %2968 = vrot.lane.b32.xlu0 %v784, 80
        %v2969 = vpop.permute.xlu0 %2968
        %2970 = vrot.lane.b32.xlu0 %v785, 80
        %v2971 = vpop.permute.xlu0 %2970
        %2972 = vrot.lane.b32.xlu0 %v786, 80
        %v2973 = vpop.permute.xlu0 %2972
        %2974 = vrot.lane.b32.xlu0 %v787, 80
        %v2975 = vpop.permute.xlu0 %2974
        %2976 = vrot.lane.b32.xlu0 %v788, 80
        %v2977 = vpop.permute.xlu0 %2976
        %2978 = vrot.lane.b32.xlu0 %v789, 80
        %v2979 = vpop.permute.xlu0 %2978
        %2980 = vrot.lane.b32.xlu0 %v790, 80
        %v2981 = vpop.permute.xlu0 %2980
        %2982 = vrot.lane.b32.xlu0 %v791, 80
        %v2983 = vpop.permute.xlu0 %2982
        %2984 = vrot.lane.b32.xlu0 %v792, 80
        %v2985 = vpop.permute.xlu0 %2984
        %2986 = vrot.lane.b32.xlu0 %v793, 80
        %v2987 = vpop.permute.xlu0 %2986
        %2988 = vrot.lane.b32.xlu0 %v794, 80
        %v2989 = vpop.permute.xlu0 %2988
        %2990 = vrot.lane.b32.xlu0 %v795, 80
        %v2991 = vpop.permute.xlu0 %2990
        %2992 = vrot.lane.b32.xlu0 %v796, 80
        %v2993 = vpop.permute.xlu0 %2992
        %v2995 = vsel %vm845, %v2931, 0
        %v2998 = vsel %vm845, %v2933, 0
        %v3001 = vsel %vm845, %v2935, 0
        %v3004 = vsel %vm845, %v2937, 0
        %v3007 = vsel %vm845, %v2939, 0
        %v3010 = vsel %vm845, %v2941, 0
        %v3013 = vsel %vm845, %v2943, 0
        %v3016 = vsel %vm845, %v2945, 0
        %v3019 = vsel %vm845, %v2947, 0
        %v3022 = vsel %vm845, %v2949, 0
        %v3025 = vsel %vm845, %v2951, 0
        %v3028 = vsel %vm845, %v2953, 0
        %v3031 = vsel %vm845, %v2955, 0
        %v3034 = vsel %vm845, %v2957, 0
        %v3037 = vsel %vm845, %v2959, 0
        %v3040 = vsel %vm845, %v2961, 0
        %v3043 = vsel %vm845, %v2963, 0
        %v3046 = vsel %vm845, %v2965, 0
        %v3049 = vsel %vm845, %v2967, 0
        %v3052 = vsel %vm845, %v2969, 0
        %v3055 = vsel %vm845, %v2971, 0
        %v3058 = vsel %vm845, %v2973, 0
        %v3061 = vsel %vm845, %v2975, 0
        %v3064 = vsel %vm845, %v2977, 0
        %v3067 = vsel %vm845, %v2979, 0
        %v3070 = vsel %vm845, %v2981, 0
        %v3073 = vsel %vm845, %v2983, 0
        %v3076 = vsel %vm845, %v2985, 0
        %v3079 = vsel %vm845, %v2987, 0
        %v3082 = vsel %vm845, %v2989, 0
        %v3085 = vsel %vm845, %v2991, 0
        %v3088 = vsel %vm845, %v2993, 0
        %3090 = vmatprep.subr.bf16.mxu0 0
        %3091 = vmatpush1.bf16.xpose.msra.mxu0 %v3043
        %3092 = vmatprep.subr.bf16.mxu0 0
        %3093 = vmatpush1.bf16.xpose.msra.mxu0 %v3046
        %3094 = vmatprep.subr.bf16.mxu0 0
        %3095 = vmatpush1.bf16.xpose.msra.mxu0 %v3049
        %3096 = vmatprep.subr.bf16.mxu0 0
        %3097 = vmatpush1.bf16.xpose.msra.mxu0 %v3052
        %3098 = vmatprep.subr.bf16.mxu0 0
        %3099 = vmatpush1.bf16.xpose.msra.mxu0 %v3055
        %3100 = vmatprep.subr.bf16.mxu0 0
        %3101 = vmatpush1.bf16.xpose.msra.mxu0 %v3058
        %3102 = vmatprep.subr.bf16.mxu0 0
        %3103 = vmatpush1.bf16.xpose.msra.mxu0 %v3061
        %3104 = vmatprep.subr.bf16.mxu0 0
        %3105 = vmatpush1.bf16.xpose.msra.mxu0 %v3064
        %3106 = vmatprep.subr.bf16.mxu0 0
        %3107 = vmatpush1.bf16.xpose.msra.mxu0 %v3067
        %3108 = vmatprep.subr.bf16.mxu0 0
        %3109 = vmatpush1.bf16.xpose.msra.mxu0 %v3070
        %3110 = vmatprep.subr.bf16.mxu0 0
        %3111 = vmatpush1.bf16.xpose.msra.mxu0 %v3073
        %3112 = vmatprep.subr.bf16.mxu0 0
        %3113 = vmatpush1.bf16.xpose.msra.mxu0 %v3076
        %3114 = vmatprep.subr.bf16.mxu0 0
        %3115 = vmatpush1.bf16.xpose.msra.mxu0 %v3079
        %3116 = vmatprep.subr.bf16.mxu0 0
        %3117 = vmatpush1.bf16.xpose.msra.mxu0 %v3082
        %3118 = vmatprep.subr.bf16.mxu0 0
        %3119 = vmatpush1.bf16.xpose.msra.mxu0 %v3085
        %3120 = vmatprep.subr.bf16.mxu0 0
        %3121 = vmatpush1.bf16.xpose.msra.mxu0 %v3088
        %3122 = vmatprep.mubr.bf16.mxu0 0
        %3123 = vmatmul.mubr.bf16.gmra.mrb[0].mxu0 %v2995
        %v3124 = vpop.f32.mrb[0].mxu0
        %v3125 = vadd.f32 0.0, %v3124
        %v3126 = vpop.f32.mrb[0].mxu0
        %v3127 = vadd.f32 0.0, %v3126
        %v3128 = vpop.f32.mrb[0].mxu0
        %v3129 = vadd.f32 0.0, %v3128
        %v3130 = vpop.f32.mrb[0].mxu0
        %v3131 = vadd.f32 0.0, %v3130
        %3132 = vmatprep.mubr.bf16.mxu0 0
        %3133 = vmatmul.mubr.bf16.gmra.mrb[0].mxu0 %v2998
        %v3134 = vpop.f32.mrb[0].mxu0
        %v3135 = vadd.f32 0.0, %v3134
        %v3136 = vpop.f32.mrb[0].mxu0
        %v3137 = vadd.f32 0.0, %v3136
        %v3138 = vpop.f32.mrb[0].mxu0
        %v3139 = vadd.f32 0.0, %v3138
        %v3140 = vpop.f32.mrb[0].mxu0
        %v3141 = vadd.f32 0.0, %v3140
        %3142 = vmatprep.mubr.bf16.mxu0 0
        %3143 = vmatmul.mubr.bf16.gmra.mrb[0].mxu0 %v3001
        %v3144 = vpop.f32.mrb[0].mxu0
        %v3145 = vadd.f32 0.0, %v3144
        %v3146 = vpop.f32.mrb[0].mxu0
        %v3147 = vadd.f32 0.0, %v3146
        %v3148 = vpop.f32.mrb[0].mxu0
        %v3149 = vadd.f32 0.0, %v3148
        %v3150 = vpop.f32.mrb[0].mxu0
        %v3151 = vadd.f32 0.0, %v3150
        %3152 = vmatprep.mubr.bf16.mxu0 0
        %3153 = vmatmul.mubr.bf16.gmra.mrb[0].mxu0 %v3004
        %v3154 = vpop.f32.mrb[0].mxu0
        %v3155 = vadd.f32 0.0, %v3154
        %v3156 = vpop.f32.mrb[0].mxu0
        %v3157 = vadd.f32 0.0, %v3156
        %v3158 = vpop.f32.mrb[0].mxu0
        %v3159 = vadd.f32 0.0, %v3158
        %v3160 = vpop.f32.mrb[0].mxu0
        %v3161 = vadd.f32 0.0, %v3160
        %3162 = vmatprep.mubr.bf16.mxu0 0
        %3163 = vmatmul.mubr.bf16.gmra.mrb[0].mxu0 %v3007
        %v3164 = vpop.f32.mrb[0].mxu0
        %v3165 = vadd.f32 0.0, %v3164
        %v3166 = vpop.f32.mrb[0].mxu0
        %v3167 = vadd.f32 0.0, %v3166
        %v3168 = vpop.f32.mrb[0].mxu0
        %v3169 = vadd.f32 0.0, %v3168
        %v3170 = vpop.f32.mrb[0].mxu0
        %v3171 = vadd.f32 0.0, %v3170
        %3172 = vmatprep.mubr.bf16.mxu0 0
        %3173 = vmatmul.mubr.bf16.gmra.mrb[0].mxu0 %v3010
        %v3174 = vpop.f32.mrb[0].mxu0
        %v3175 = vadd.f32 0.0, %v3174
        %v3176 = vpop.f32.mrb[0].mxu0
        %v3177 = vadd.f32 0.0, %v3176
        %v3178 = vpop.f32.mrb[0].mxu0
        %v3179 = vadd.f32 0.0, %v3178
        %v3180 = vpop.f32.mrb[0].mxu0
        %v3181 = vadd.f32 0.0, %v3180
        %3182 = vmatprep.mubr.bf16.mxu0 0
        %3183 = vmatmul.mubr.bf16.gmra.mrb[0].mxu0 %v3013
        %v3184 = vpop.f32.mrb[0].mxu0
        %v3185 = vadd.f32 0.0, %v3184
        %v3186 = vpop.f32.mrb[0].mxu0
        %v3187 = vadd.f32 0.0, %v3186
        %v3188 = vpop.f32.mrb[0].mxu0
        %v3189 = vadd.f32 0.0, %v3188
        %v3190 = vpop.f32.mrb[0].mxu0
        %v3191 = vadd.f32 0.0, %v3190
        %3192 = vmatprep.mubr.bf16.mxu0 0
        %3193 = vmatmul.mubr.bf16.gmra.mrb[0].mxu0 %v3016
        %v3194 = vpop.f32.mrb[0].mxu0
        %v3195 = vadd.f32 0.0, %v3194
        %v3196 = vpop.f32.mrb[0].mxu0
        %v3197 = vadd.f32 0.0, %v3196
        %v3198 = vpop.f32.mrb[0].mxu0
        %v3199 = vadd.f32 0.0, %v3198
        %v3200 = vpop.f32.mrb[0].mxu0
        %v3201 = vadd.f32 0.0, %v3200
        %3202 = vmatprep.mubr.bf16.mxu0 0
        %3203 = vmatmul.mubr.bf16.gmra.mrb[0].mxu0 %v3019
        %v3204 = vpop.f32.mrb[0].mxu0
        %v3205 = vadd.f32 0.0, %v3204
        %v3206 = vpop.f32.mrb[0].mxu0
        %v3207 = vadd.f32 0.0, %v3206
        %v3208 = vpop.f32.mrb[0].mxu0
        %v3209 = vadd.f32 0.0, %v3208
        %v3210 = vpop.f32.mrb[0].mxu0
        %v3211 = vadd.f32 0.0, %v3210
        %3212 = vmatprep.mubr.bf16.mxu0 0
        %3213 = vmatmul.mubr.bf16.gmra.mrb[0].mxu0 %v3022
        %v3214 = vpop.f32.mrb[0].mxu0
        %v3215 = vadd.f32 0.0, %v3214
        %v3216 = vpop.f32.mrb[0].mxu0
        %v3217 = vadd.f32 0.0, %v3216
        %v3218 = vpop.f32.mrb[0].mxu0
        %v3219 = vadd.f32 0.0, %v3218
        %v3220 = vpop.f32.mrb[0].mxu0
        %v3221 = vadd.f32 0.0, %v3220
        %3222 = vmatprep.mubr.bf16.mxu0 0
        %3223 = vmatmul.mubr.bf16.gmra.mrb[0].mxu0 %v3025
        %v3224 = vpop.f32.mrb[0].mxu0
        %v3225 = vadd.f32 0.0, %v3224
        %v3226 = vpop.f32.mrb[0].mxu0
        %v3227 = vadd.f32 0.0, %v3226
        %v3228 = vpop.f32.mrb[0].mxu0
        %v3229 = vadd.f32 0.0, %v3228
        %v3230 = vpop.f32.mrb[0].mxu0
        %v3231 = vadd.f32 0.0, %v3230
        %3232 = vmatprep.mubr.bf16.mxu0 0
        %3233 = vmatmul.mubr.bf16.gmra.mrb[0].mxu0 %v3028
        %v3234 = vpop.f32.mrb[0].mxu0
        %v3235 = vadd.f32 0.0, %v3234
        %v3236 = vpop.f32.mrb[0].mxu0
        %v3237 = vadd.f32 0.0, %v3236
        %v3238 = vpop.f32.mrb[0].mxu0
        %v3239 = vadd.f32 0.0, %v3238
        %v3240 = vpop.f32.mrb[0].mxu0
        %v3241 = vadd.f32 0.0, %v3240
        %3242 = vmatprep.mubr.bf16.mxu0 0
        %3243 = vmatmul.mubr.bf16.gmra.mrb[0].mxu0 %v3031
        %v3244 = vpop.f32.mrb[0].mxu0
        %v3245 = vadd.f32 0.0, %v3244
        %v3246 = vpop.f32.mrb[0].mxu0
        %v3247 = vadd.f32 0.0, %v3246
        %v3248 = vpop.f32.mrb[0].mxu0
        %v3249 = vadd.f32 0.0, %v3248
        %v3250 = vpop.f32.mrb[0].mxu0
        %v3251 = vadd.f32 0.0, %v3250
        %3252 = vmatprep.mubr.bf16.mxu0 0
        %3253 = vmatmul.mubr.bf16.gmra.mrb[0].mxu0 %v3034
        %v3254 = vpop.f32.mrb[0].mxu0
        %v3255 = vadd.f32 0.0, %v3254
        %v3256 = vpop.f32.mrb[0].mxu0
        %v3257 = vadd.f32 0.0, %v3256
        %v3258 = vpop.f32.mrb[0].mxu0
        %v3259 = vadd.f32 0.0, %v3258
        %v3260 = vpop.f32.mrb[0].mxu0
        %v3261 = vadd.f32 0.0, %v3260
        %3262 = vmatprep.mubr.bf16.mxu0 0
        %3263 = vmatmul.mubr.bf16.gmra.mrb[0].mxu0 %v3037
        %v3264 = vpop.f32.mrb[0].mxu0
        %v3265 = vadd.f32 0.0, %v3264
        %v3266 = vpop.f32.mrb[0].mxu0
        %v3267 = vadd.f32 0.0, %v3266
        %v3268 = vpop.f32.mrb[0].mxu0
        %v3269 = vadd.f32 0.0, %v3268
        %v3270 = vpop.f32.mrb[0].mxu0
        %v3271 = vadd.f32 0.0, %v3270
        %3272 = vmatprep.mubr.bf16.mxu0 0
        %3273 = vmatmul.mubr.bf16.gmra.mrb[0].mxu0 %v3040
        %v3274 = vpop.f32.mrb[0].mxu0
        %v3275 = vadd.f32 0.0, %v3274
        %v3276 = vpop.f32.mrb[0].mxu0
        %v3277 = vadd.f32 0.0, %v3276
        %v3278 = vpop.f32.mrb[0].mxu0
        %v3279 = vadd.f32 0.0, %v3278
        %v3280 = vpop.f32.mrb[0].mxu0
        %v3281 = vadd.f32 0.0, %v3280
        %3282 = vdwg.mxu0
        %v3283 = vmax.f32 %v3125, %v3127
        %3284 = vmax.xlane.f32.xlu0 %v3283
        %v3285 = vpop.xlane.xlu0 %3284
        %v3286 = vmax.f32 %v3129, %v3131
        %3287 = vmax.xlane.f32.xlu0 %v3286
        %v3288 = vpop.xlane.xlu0 %3287
        %v3289 = vmax.f32 %v3135, %v3137
        %3290 = vmax.xlane.f32.xlu0 %v3289
        %v3291 = vpop.xlane.xlu0 %3290
        %v3292 = vmax.f32 %v3139, %v3141
        %3293 = vmax.xlane.f32.xlu0 %v3292
        %v3294 = vpop.xlane.xlu0 %3293
        %v3295 = vmax.f32 %v3145, %v3147
        %3296 = vmax.xlane.f32.xlu0 %v3295
        %v3297 = vpop.xlane.xlu0 %3296
        %v3298 = vmax.f32 %v3149, %v3151
        %3299 = vmax.xlane.f32.xlu0 %v3298
        %v3300 = vpop.xlane.xlu0 %3299
        %v3301 = vmax.f32 %v3155, %v3157
        %3302 = vmax.xlane.f32.xlu0 %v3301
        %v3303 = vpop.xlane.xlu0 %3302
        %v3304 = vmax.f32 %v3159, %v3161
        %3305 = vmax.xlane.f32.xlu0 %v3304
        %v3306 = vpop.xlane.xlu0 %3305
        %v3307 = vmax.f32 %v3165, %v3167
        %3308 = vmax.xlane.f32.xlu0 %v3307
        %v3309 = vpop.xlane.xlu0 %3308
        %v3310 = vmax.f32 %v3169, %v3171
        %3311 = vmax.xlane.f32.xlu0 %v3310
        %v3312 = vpop.xlane.xlu0 %3311
        %v3313 = vmax.f32 %v3175, %v3177
        %3314 = vmax.xlane.f32.xlu0 %v3313
        %v3315 = vpop.xlane.xlu0 %3314
        %v3316 = vmax.f32 %v3179, %v3181
        %3317 = vmax.xlane.f32.xlu0 %v3316
        %v3318 = vpop.xlane.xlu0 %3317
        %v3319 = vmax.f32 %v3185, %v3187
        %3320 = vmax.xlane.f32.xlu0 %v3319
        %v3321 = vpop.xlane.xlu0 %3320
        %v3322 = vmax.f32 %v3189, %v3191
        %3323 = vmax.xlane.f32.xlu0 %v3322
        %v3324 = vpop.xlane.xlu0 %3323
        %v3325 = vmax.f32 %v3195, %v3197
        %3326 = vmax.xlane.f32.xlu0 %v3325
        %v3327 = vpop.xlane.xlu0 %3326
        %v3328 = vmax.f32 %v3199, %v3201
        %3329 = vmax.xlane.f32.xlu0 %v3328
        %v3330 = vpop.xlane.xlu0 %3329
        %v3331 = vmax.f32 %v3205, %v3207
        %3332 = vmax.xlane.f32.xlu0 %v3331
        %v3333 = vpop.xlane.xlu0 %3332
        %v3334 = vmax.f32 %v3209, %v3211
        %3335 = vmax.xlane.f32.xlu0 %v3334
        %v3336 = vpop.xlane.xlu0 %3335
        %v3337 = vmax.f32 %v3215, %v3217
        %3338 = vmax.xlane.f32.xlu0 %v3337
        %v3339 = vpop.xlane.xlu0 %3338
        %v3340 = vmax.f32 %v3219, %v3221
        %3341 = vmax.xlane.f32.xlu0 %v3340
        %v3342 = vpop.xlane.xlu0 %3341
        %v3343 = vmax.f32 %v3225, %v3227
        %3344 = vmax.xlane.f32.xlu0 %v3343
        %v3345 = vpop.xlane.xlu0 %3344
        %v3346 = vmax.f32 %v3229, %v3231
        %3347 = vmax.xlane.f32.xlu0 %v3346
        %v3348 = vpop.xlane.xlu0 %3347
        %v3349 = vmax.f32 %v3235, %v3237
        %3350 = vmax.xlane.f32.xlu0 %v3349
        %v3351 = vpop.xlane.xlu0 %3350
        %v3352 = vmax.f32 %v3239, %v3241
        %3353 = vmax.xlane.f32.xlu0 %v3352
        %v3354 = vpop.xlane.xlu0 %3353
        %v3355 = vmax.f32 %v3245, %v3247
        %3356 = vmax.xlane.f32.xlu0 %v3355
        %v3357 = vpop.xlane.xlu0 %3356
        %v3358 = vmax.f32 %v3249, %v3251
        %3359 = vmax.xlane.f32.xlu0 %v3358
        %v3360 = vpop.xlane.xlu0 %3359
        %v3361 = vmax.f32 %v3255, %v3257
        %3362 = vmax.xlane.f32.xlu0 %v3361
        %v3363 = vpop.xlane.xlu0 %3362
        %v3364 = vmax.f32 %v3259, %v3261
        %3365 = vmax.xlane.f32.xlu0 %v3364
        %v3366 = vpop.xlane.xlu0 %3365
        %v3367 = vmax.f32 %v3265, %v3267
        %3368 = vmax.xlane.f32.xlu0 %v3367
        %v3369 = vpop.xlane.xlu0 %3368
        %v3370 = vmax.f32 %v3269, %v3271
        %3371 = vmax.xlane.f32.xlu0 %v3370
        %v3372 = vpop.xlane.xlu0 %3371
        %v3373 = vmax.f32 %v3275, %v3277
        %3374 = vmax.xlane.f32.xlu0 %v3373
        %v3375 = vpop.xlane.xlu0 %3374
        %v3376 = vmax.f32 %v3279, %v3281
        %3377 = vmax.xlane.f32.xlu0 %v3376
        %v3378 = vpop.xlane.xlu0 %3377
        %v3379 = vsub.f32 %v3125, %v3285
        %v3380 = vsub.f32 %v3127, %v3285
        %v3381 = vsub.f32 %v3129, %v3288
        %v3382 = vsub.f32 %v3131, %v3288
        %v3383 = vsub.f32 %v3135, %v3291
        %v3384 = vsub.f32 %v3137, %v3291
        %v3385 = vsub.f32 %v3139, %v3294
        %v3386 = vsub.f32 %v3141, %v3294
        %v3387 = vsub.f32 %v3145, %v3297
        %v3388 = vsub.f32 %v3147, %v3297
        %v3389 = vsub.f32 %v3149, %v3300
        %v3390 = vsub.f32 %v3151, %v3300
        %v3391 = vsub.f32 %v3155, %v3303
        %v3392 = vsub.f32 %v3157, %v3303
        %v3393 = vsub.f32 %v3159, %v3306
        %v3394 = vsub.f32 %v3161, %v3306
        %v3395 = vsub.f32 %v3165, %v3309
        %v3396 = vsub.f32 %v3167, %v3309
        %v3397 = vsub.f32 %v3169, %v3312
        %v3398 = vsub.f32 %v3171, %v3312
        %v3399 = vsub.f32 %v3175, %v3315
        %v3400 = vsub.f32 %v3177, %v3315
        %v3401 = vsub.f32 %v3179, %v3318
        %v3402 = vsub.f32 %v3181, %v3318
        %v3403 = vsub.f32 %v3185, %v3321
        %v3404 = vsub.f32 %v3187, %v3321
        %v3405 = vsub.f32 %v3189, %v3324
        %v3406 = vsub.f32 %v3191, %v3324
        %v3407 = vsub.f32 %v3195, %v3327
        %v3408 = vsub.f32 %v3197, %v3327
        %v3409 = vsub.f32 %v3199, %v3330
        %v3410 = vsub.f32 %v3201, %v3330
        %v3411 = vsub.f32 %v3205, %v3333
        %v3412 = vsub.f32 %v3207, %v3333
        %v3413 = vsub.f32 %v3209, %v3336
        %v3414 = vsub.f32 %v3211, %v3336
        %v3415 = vsub.f32 %v3215, %v3339
        %v3416 = vsub.f32 %v3217, %v3339
        %v3417 = vsub.f32 %v3219, %v3342
        %v3418 = vsub.f32 %v3221, %v3342
        %v3419 = vsub.f32 %v3225, %v3345
        %v3420 = vsub.f32 %v3227, %v3345
        %v3421 = vsub.f32 %v3229, %v3348
        %v3422 = vsub.f32 %v3231, %v3348
        %v3423 = vsub.f32 %v3235, %v3351
        %v3424 = vsub.f32 %v3237, %v3351
        %v3425 = vsub.f32 %v3239, %v3354
        %v3426 = vsub.f32 %v3241, %v3354
        %v3427 = vsub.f32 %v3245, %v3357
        %v3428 = vsub.f32 %v3247, %v3357
        %v3429 = vsub.f32 %v3249, %v3360
        %v3430 = vsub.f32 %v3251, %v3360
        %v3431 = vsub.f32 %v3255, %v3363
        %v3432 = vsub.f32 %v3257, %v3363
        %v3433 = vsub.f32 %v3259, %v3366
        %v3434 = vsub.f32 %v3261, %v3366
        %v3435 = vsub.f32 %v3265, %v3369
        %v3436 = vsub.f32 %v3267, %v3369
        %v3437 = vsub.f32 %v3269, %v3372
        %v3438 = vsub.f32 %v3271, %v3372
        %v3439 = vsub.f32 %v3275, %v3375
        %v3440 = vsub.f32 %v3277, %v3375
        %v3441 = vsub.f32 %v3279, %v3378
        %v3442 = vsub.f32 %v3281, %v3378
        %v3443 = vmul.f32 %v3379, 1.442695
        %v3444 = vpow.pop %v3443
        %v3445 = vmul.f32 %v3380, 1.442695
        %v3446 = vpow.pop %v3445
        %v3447 = vmul.f32 %v3381, 1.442695
        %v3448 = vpow.pop %v3447
        %v3449 = vmul.f32 %v3382, 1.442695
        %v3450 = vpow.pop %v3449
        %v3451 = vmul.f32 %v3383, 1.442695
        %v3452 = vpow.pop %v3451
        %v3453 = vmul.f32 %v3384, 1.442695
        %v3454 = vpow.pop %v3453
        %v3455 = vmul.f32 %v3385, 1.442695
        %v3456 = vpow.pop %v3455
        %v3457 = vmul.f32 %v3386, 1.442695
        %v3458 = vpow.pop %v3457
        %v3459 = vmul.f32 %v3387, 1.442695
        %v3460 = vpow.pop %v3459
        %v3461 = vmul.f32 %v3388, 1.442695
        %v3462 = vpow.pop %v3461
        %v3463 = vmul.f32 %v3389, 1.442695
        %v3464 = vpow.pop %v3463
        %v3465 = vmul.f32 %v3390, 1.442695
        %v3466 = vpow.pop %v3465
        %v3467 = vmul.f32 %v3391, 1.442695
        %v3468 = vpow.pop %v3467
        %v3469 = vmul.f32 %v3392, 1.442695
        %v3470 = vpow.pop %v3469
        %v3471 = vmul.f32 %v3393, 1.442695
        %v3472 = vpow.pop %v3471
        %v3473 = vmul.f32 %v3394, 1.442695
        %v3474 = vpow.pop %v3473
        %v3475 = vmul.f32 %v3395, 1.442695
        %v3476 = vpow.pop %v3475
        %v3477 = vmul.f32 %v3396, 1.442695
        %v3478 = vpow.pop %v3477
        %v3479 = vmul.f32 %v3397, 1.442695
        %v3480 = vpow.pop %v3479
        %v3481 = vmul.f32 %v3398, 1.442695
        %v3482 = vpow.pop %v3481
        %v3483 = vmul.f32 %v3399, 1.442695
        %v3484 = vpow.pop %v3483
        %v3485 = vmul.f32 %v3400, 1.442695
        %v3486 = vpow.pop %v3485
        %v3487 = vmul.f32 %v3401, 1.442695
        %v3488 = vpow.pop %v3487
        %v3489 = vmul.f32 %v3402, 1.442695
        %v3490 = vpow.pop %v3489
        %v3491 = vmul.f32 %v3403, 1.442695
        %v3492 = vpow.pop %v3491
        %v3493 = vmul.f32 %v3404, 1.442695
        %v3494 = vpow.pop %v3493
        %v3495 = vmul.f32 %v3405, 1.442695
        %v3496 = vpow.pop %v3495
        %v3497 = vmul.f32 %v3406, 1.442695
        %v3498 = vpow.pop %v3497
        %v3499 = vmul.f32 %v3407, 1.442695
        %v3500 = vpow.pop %v3499
        %v3501 = vmul.f32 %v3408, 1.442695
        %v3502 = vpow.pop %v3501
        %v3503 = vmul.f32 %v3409, 1.442695
        %v3504 = vpow.pop %v3503
        %v3505 = vmul.f32 %v3410, 1.442695
        %v3506 = vpow.pop %v3505
        %v3507 = vmul.f32 %v3411, 1.442695
        %v3508 = vpow.pop %v3507
        %v3509 = vmul.f32 %v3412, 1.442695
        %v3510 = vpow.pop %v3509
        %v3511 = vmul.f32 %v3413, 1.442695
        %v3512 = vpow.pop %v3511
        %v3513 = vmul.f32 %v3414, 1.442695
        %v3514 = vpow.pop %v3513
        %v3515 = vmul.f32 %v3415, 1.442695
        %v3516 = vpow.pop %v3515
        %v3517 = vmul.f32 %v3416, 1.442695
        %v3518 = vpow.pop %v3517
        %v3519 = vmul.f32 %v3417, 1.442695
        %v3520 = vpow.pop %v3519
        %v3521 = vmul.f32 %v3418, 1.442695
        %v3522 = vpow.pop %v3521
        %v3523 = vmul.f32 %v3419, 1.442695
        %v3524 = vpow.pop %v3523
        %v3525 = vmul.f32 %v3420, 1.442695
        %v3526 = vpow.pop %v3525
        %v3527 = vmul.f32 %v3421, 1.442695
        %v3528 = vpow.pop %v3527
        %v3529 = vmul.f32 %v3422, 1.442695
        %v3530 = vpow.pop %v3529
        %v3531 = vmul.f32 %v3423, 1.442695
        %v3532 = vpow.pop %v3531
        %v3533 = vmul.f32 %v3424, 1.442695
        %v3534 = vpow.pop %v3533
        %v3535 = vmul.f32 %v3425, 1.442695
        %v3536 = vpow.pop %v3535
        %v3537 = vmul.f32 %v3426, 1.442695
        %v3538 = vpow.pop %v3537
        %v3539 = vmul.f32 %v3427, 1.442695
        %v3540 = vpow.pop %v3539
        %v3541 = vmul.f32 %v3428, 1.442695
        %v3542 = vpow.pop %v3541
        %v3543 = vmul.f32 %v3429, 1.442695
        %v3544 = vpow.pop %v3543
        %v3545 = vmul.f32 %v3430, 1.442695
        %v3546 = vpow.pop %v3545
        %v3547 = vmul.f32 %v3431, 1.442695
        %v3548 = vpow.pop %v3547
        %v3549 = vmul.f32 %v3432, 1.442695
        %v3550 = vpow.pop %v3549
        %v3551 = vmul.f32 %v3433, 1.442695
        %v3552 = vpow.pop %v3551
        %v3553 = vmul.f32 %v3434, 1.442695
        %v3554 = vpow.pop %v3553
        %v3555 = vmul.f32 %v3435, 1.442695
        %v3556 = vpow.pop %v3555
        %v3557 = vmul.f32 %v3436, 1.442695
        %v3558 = vpow.pop %v3557
        %v3559 = vmul.f32 %v3437, 1.442695
        %v3560 = vpow.pop %v3559
        %v3561 = vmul.f32 %v3438, 1.442695
        %v3562 = vpow.pop %v3561
        %v3563 = vmul.f32 %v3439, 1.442695
        %v3564 = vpow.pop %v3563
        %v3565 = vmul.f32 %v3440, 1.442695
        %v3566 = vpow.pop %v3565
        %v3567 = vmul.f32 %v3441, 1.442695
        %v3568 = vpow.pop %v3567
        %v3569 = vmul.f32 %v3442, 1.442695
        %v3570 = vpow.pop %v3569
        %v3571 = vadd.f32 %v3444, %v3446
        %3572 = vadd.xlane.f32.xlu0 %v3571
        %v3573 = vpop.xlane.xlu0 %3572
        %v3574 = vadd.f32 %v3448, %v3450
        %3575 = vadd.xlane.f32.xlu0 %v3574
        %v3576 = vpop.xlane.xlu0 %3575
        %v3577 = vadd.f32 %v3452, %v3454
        %3578 = vadd.xlane.f32.xlu0 %v3577
        %v3579 = vpop.xlane.xlu0 %3578
        %v3580 = vadd.f32 %v3456, %v3458
        %3581 = vadd.xlane.f32.xlu0 %v3580
        %v3582 = vpop.xlane.xlu0 %3581
        %v3583 = vadd.f32 %v3460, %v3462
        %3584 = vadd.xlane.f32.xlu0 %v3583
        %v3585 = vpop.xlane.xlu0 %3584
        %v3586 = vadd.f32 %v3464, %v3466
        %3587 = vadd.xlane.f32.xlu0 %v3586
        %v3588 = vpop.xlane.xlu0 %3587
        %v3589 = vadd.f32 %v3468, %v3470
        %3590 = vadd.xlane.f32.xlu0 %v3589
        %v3591 = vpop.xlane.xlu0 %3590
        %v3592 = vadd.f32 %v3472, %v3474
        %3593 = vadd.xlane.f32.xlu0 %v3592
        %v3594 = vpop.xlane.xlu0 %3593
        %v3595 = vadd.f32 %v3476, %v3478
        %3596 = vadd.xlane.f32.xlu0 %v3595
        %v3597 = vpop.xlane.xlu0 %3596
        %v3598 = vadd.f32 %v3480, %v3482
        %3599 = vadd.xlane.f32.xlu0 %v3598
        %v3600 = vpop.xlane.xlu0 %3599
        %v3601 = vadd.f32 %v3484, %v3486
        %3602 = vadd.xlane.f32.xlu0 %v3601
        %v3603 = vpop.xlane.xlu0 %3602
        %v3604 = vadd.f32 %v3488, %v3490
        %3605 = vadd.xlane.f32.xlu0 %v3604
        %v3606 = vpop.xlane.xlu0 %3605
        %v3607 = vadd.f32 %v3492, %v3494
        %3608 = vadd.xlane.f32.xlu0 %v3607
        %v3609 = vpop.xlane.xlu0 %3608
        %v3610 = vadd.f32 %v3496, %v3498
        %3611 = vadd.xlane.f32.xlu0 %v3610
        %v3612 = vpop.xlane.xlu0 %3611
        %v3613 = vadd.f32 %v3500, %v3502
        %3614 = vadd.xlane.f32.xlu0 %v3613
        %v3615 = vpop.xlane.xlu0 %3614
        %v3616 = vadd.f32 %v3504, %v3506
        %3617 = vadd.xlane.f32.xlu0 %v3616
        %v3618 = vpop.xlane.xlu0 %3617
        %v3619 = vadd.f32 %v3508, %v3510
        %3620 = vadd.xlane.f32.xlu0 %v3619
        %v3621 = vpop.xlane.xlu0 %3620
        %v3622 = vadd.f32 %v3512, %v3514
        %3623 = vadd.xlane.f32.xlu0 %v3622
        %v3624 = vpop.xlane.xlu0 %3623
        %v3625 = vadd.f32 %v3516, %v3518
        %3626 = vadd.xlane.f32.xlu0 %v3625
        %v3627 = vpop.xlane.xlu0 %3626
        %v3628 = vadd.f32 %v3520, %v3522
        %3629 = vadd.xlane.f32.xlu0 %v3628
        %v3630 = vpop.xlane.xlu0 %3629
        %v3631 = vadd.f32 %v3524, %v3526
        %3632 = vadd.xlane.f32.xlu0 %v3631
        %v3633 = vpop.xlane.xlu0 %3632
        %v3634 = vadd.f32 %v3528, %v3530
        %3635 = vadd.xlane.f32.xlu0 %v3634
        %v3636 = vpop.xlane.xlu0 %3635
        %v3637 = vadd.f32 %v3532, %v3534
        %3638 = vadd.xlane.f32.xlu0 %v3637
        %v3639 = vpop.xlane.xlu0 %3638
        %v3640 = vadd.f32 %v3536, %v3538
        %3641 = vadd.xlane.f32.xlu0 %v3640
        %v3642 = vpop.xlane.xlu0 %3641
        %v3643 = vadd.f32 %v3540, %v3542
        %3644 = vadd.xlane.f32.xlu0 %v3643
        %v3645 = vpop.xlane.xlu0 %3644
        %v3646 = vadd.f32 %v3544, %v3546
        %3647 = vadd.xlane.f32.xlu0 %v3646
        %v3648 = vpop.xlane.xlu0 %3647
        %v3649 = vadd.f32 %v3548, %v3550
        %3650 = vadd.xlane.f32.xlu0 %v3649
        %v3651 = vpop.xlane.xlu0 %3650
        %v3652 = vadd.f32 %v3552, %v3554
        %3653 = vadd.xlane.f32.xlu0 %v3652
        %v3654 = vpop.xlane.xlu0 %3653
        %v3655 = vadd.f32 %v3556, %v3558
        %3656 = vadd.xlane.f32.xlu0 %v3655
        %v3657 = vpop.xlane.xlu0 %3656
        %v3658 = vadd.f32 %v3560, %v3562
        %3659 = vadd.xlane.f32.xlu0 %v3658
        %v3660 = vpop.xlane.xlu0 %3659
        %v3661 = vadd.f32 %v3564, %v3566
        %3662 = vadd.xlane.f32.xlu0 %v3661
        %v3663 = vpop.xlane.xlu0 %3662
        %v3664 = vadd.f32 %v3568, %v3570
        %3665 = vadd.xlane.f32.xlu0 %v3664
        %v3666 = vpop.xlane.xlu0 %3665
        %v3667 = vrcp.pop %v3573
        %v3668 = vrcp.pop %v3576
        %v3669 = vrcp.pop %v3579
        %v3670 = vrcp.pop %v3582
        %v3671 = vrcp.pop %v3585
        %v3672 = vrcp.pop %v3588
        %v3673 = vrcp.pop %v3591
        %v3674 = vrcp.pop %v3594
        %v3675 = vrcp.pop %v3597
        %v3676 = vrcp.pop %v3600
        %v3677 = vrcp.pop %v3603
        %v3678 = vrcp.pop %v3606
        %v3679 = vrcp.pop %v3609
        %v3680 = vrcp.pop %v3612
        %v3681 = vrcp.pop %v3615
        %v3682 = vrcp.pop %v3618
        %v3683 = vrcp.pop %v3621
        %v3684 = vrcp.pop %v3624
        %v3685 = vrcp.pop %v3627
        %v3686 = vrcp.pop %v3630
        %v3687 = vrcp.pop %v3633
        %v3688 = vrcp.pop %v3636
        %v3689 = vrcp.pop %v3639
        %v3690 = vrcp.pop %v3642
        %v3691 = vrcp.pop %v3645
        %v3692 = vrcp.pop %v3648
        %v3693 = vrcp.pop %v3651
        %v3694 = vrcp.pop %v3654
        %v3695 = vrcp.pop %v3657
        %v3696 = vrcp.pop %v3660
        %v3697 = vrcp.pop %v3663
        %v3698 = vrcp.pop %v3666
        %v3699 = vmul.f32 %v3444, %v3667
        %v3700 = vmul.f32 %v3446, %v3667
        %v3701 = vmul.f32 %v3448, %v3668
        %v3702 = vmul.f32 %v3450, %v3668
        %v3703 = vmul.f32 %v3452, %v3669
        %v3704 = vmul.f32 %v3454, %v3669
        %v3705 = vmul.f32 %v3456, %v3670
        %v3706 = vmul.f32 %v3458, %v3670
        %v3707 = vmul.f32 %v3460, %v3671
        %v3708 = vmul.f32 %v3462, %v3671
        %v3709 = vmul.f32 %v3464, %v3672
        %v3710 = vmul.f32 %v3466, %v3672
        %v3711 = vmul.f32 %v3468, %v3673
        %v3712 = vmul.f32 %v3470, %v3673
        %v3713 = vmul.f32 %v3472, %v3674
        %v3714 = vmul.f32 %v3474, %v3674
        %v3715 = vmul.f32 %v3476, %v3675
        %v3716 = vmul.f32 %v3478, %v3675
        %v3717 = vmul.f32 %v3480, %v3676
        %v3718 = vmul.f32 %v3482, %v3676
        %v3719 = vmul.f32 %v3484, %v3677
        %v3720 = vmul.f32 %v3486, %v3677
        %v3721 = vmul.f32 %v3488, %v3678
        %v3722 = vmul.f32 %v3490, %v3678
        %v3723 = vmul.f32 %v3492, %v3679
        %v3724 = vmul.f32 %v3494, %v3679
        %v3725 = vmul.f32 %v3496, %v3680
        %v3726 = vmul.f32 %v3498, %v3680
        %v3727 = vmul.f32 %v3500, %v3681
        %v3728 = vmul.f32 %v3502, %v3681
        %v3729 = vmul.f32 %v3504, %v3682
        %v3730 = vmul.f32 %v3506, %v3682
        %v3731 = vmul.f32 %v3508, %v3683
        %v3732 = vmul.f32 %v3510, %v3683
        %v3733 = vmul.f32 %v3512, %v3684
        %v3734 = vmul.f32 %v3514, %v3684
        %v3735 = vmul.f32 %v3516, %v3685
        %v3736 = vmul.f32 %v3518, %v3685
        %v3737 = vmul.f32 %v3520, %v3686
        %v3738 = vmul.f32 %v3522, %v3686
        %v3739 = vmul.f32 %v3524, %v3687
        %v3740 = vmul.f32 %v3526, %v3687
        %v3741 = vmul.f32 %v3528, %v3688
        %v3742 = vmul.f32 %v3530, %v3688
        %v3743 = vmul.f32 %v3532, %v3689
        %v3744 = vmul.f32 %v3534, %v3689
        %v3745 = vmul.f32 %v3536, %v3690
        %v3746 = vmul.f32 %v3538, %v3690
        %v3747 = vmul.f32 %v3540, %v3691
        %v3748 = vmul.f32 %v3542, %v3691
        %v3749 = vmul.f32 %v3544, %v3692
        %v3750 = vmul.f32 %v3546, %v3692
        %v3751 = vmul.f32 %v3548, %v3693
        %v3752 = vmul.f32 %v3550, %v3693
        %v3753 = vmul.f32 %v3552, %v3694
        %v3754 = vmul.f32 %v3554, %v3694
        %v3755 = vmul.f32 %v3556, %v3695
        %v3756 = vmul.f32 %v3558, %v3695
        %v3757 = vmul.f32 %v3560, %v3696
        %v3758 = vmul.f32 %v3562, %v3696
        %v3759 = vmul.f32 %v3564, %v3697
        %v3760 = vmul.f32 %v3566, %v3697
        %v3761 = vmul.f32 %v3568, %v3698
        %v3762 = vmul.f32 %v3570, %v3698
        %v3763 = vpack.c.bf16 %v3701, %v3699
        %v3764 = vpack.c.bf16 %v3702, %v3700
        %v3765 = vpack.c.bf16 %v3705, %v3703
        %v3766 = vpack.c.bf16 %v3706, %v3704
        %v3767 = vpack.c.bf16 %v3709, %v3707
        %v3768 = vpack.c.bf16 %v3710, %v3708
        %v3769 = vpack.c.bf16 %v3713, %v3711
        %v3770 = vpack.c.bf16 %v3714, %v3712
        %v3771 = vpack.c.bf16 %v3717, %v3715
        %v3772 = vpack.c.bf16 %v3718, %v3716
        %v3773 = vpack.c.bf16 %v3721, %v3719
        %v3774 = vpack.c.bf16 %v3722, %v3720
        %v3775 = vpack.c.bf16 %v3725, %v3723
        %v3776 = vpack.c.bf16 %v3726, %v3724
        %v3777 = vpack.c.bf16 %v3729, %v3727
        %v3778 = vpack.c.bf16 %v3730, %v3728
        %v3779 = vpack.c.bf16 %v3733, %v3731
        %v3780 = vpack.c.bf16 %v3734, %v3732
        %v3781 = vpack.c.bf16 %v3737, %v3735
        %v3782 = vpack.c.bf16 %v3738, %v3736
        %v3783 = vpack.c.bf16 %v3741, %v3739
        %v3784 = vpack.c.bf16 %v3742, %v3740
        %v3785 = vpack.c.bf16 %v3745, %v3743
        %v3786 = vpack.c.bf16 %v3746, %v3744
        %v3787 = vpack.c.bf16 %v3749, %v3747
        %v3788 = vpack.c.bf16 %v3750, %v3748
        %v3789 = vpack.c.bf16 %v3753, %v3751
        %v3790 = vpack.c.bf16 %v3754, %v3752
        %v3791 = vpack.c.bf16 %v3757, %v3755
        %v3792 = vpack.c.bf16 %v3758, %v3756
        %v3793 = vpack.c.bf16 %v3761, %v3759
        %v3794 = vpack.c.bf16 %v3762, %v3760
        %3795 = vrot.lane.b32.xlu0 %v781, 48
        %v3796 = vpop.permute.xlu0 %3795
        %3797 = vrot.lane.b32.xlu0 %v782, 48
        %v3798 = vpop.permute.xlu0 %3797
        %3799 = vrot.lane.b32.xlu0 %v783, 48
        %v3800 = vpop.permute.xlu0 %3799
        %3801 = vrot.lane.b32.xlu0 %v784, 48
        %v3802 = vpop.permute.xlu0 %3801
        %3803 = vrot.lane.b32.xlu0 %v785, 48
        %v3804 = vpop.permute.xlu0 %3803
        %3805 = vrot.lane.b32.xlu0 %v786, 48
        %v3806 = vpop.permute.xlu0 %3805
        %3807 = vrot.lane.b32.xlu0 %v787, 48
        %v3808 = vpop.permute.xlu0 %3807
        %3809 = vrot.lane.b32.xlu0 %v788, 48
        %v3810 = vpop.permute.xlu0 %3809
        %3811 = vrot.lane.b32.xlu0 %v789, 48
        %v3812 = vpop.permute.xlu0 %3811
        %3813 = vrot.lane.b32.xlu0 %v790, 48
        %v3814 = vpop.permute.xlu0 %3813
        %3815 = vrot.lane.b32.xlu0 %v791, 48
        %v3816 = vpop.permute.xlu0 %3815
        %3817 = vrot.lane.b32.xlu0 %v792, 48
        %v3818 = vpop.permute.xlu0 %3817
        %3819 = vrot.lane.b32.xlu0 %v793, 48
        %v3820 = vpop.permute.xlu0 %3819
        %3821 = vrot.lane.b32.xlu0 %v794, 48
        %v3822 = vpop.permute.xlu0 %3821
        %3823 = vrot.lane.b32.xlu0 %v795, 48
        %v3824 = vpop.permute.xlu0 %3823
        %3825 = vrot.lane.b32.xlu0 %v796, 48
        %v3826 = vpop.permute.xlu0 %3825
        %3843 = vmatprep.subr.bf16.mxu0 0
        %3844 = vmatpush1.bf16.msra.mxu0 %v3796
        %3845 = vmatprep.subr.bf16.mxu0 0
        %3846 = vmatpush1.bf16.msra.mxu0 %v3798
        %3847 = vmatprep.subr.bf16.mxu0 0
        %3848 = vmatpush1.bf16.msra.mxu0 %v3800
        %3849 = vmatprep.subr.bf16.mxu0 0
        %3850 = vmatpush1.bf16.msra.mxu0 %v3802
        %3851 = vmatprep.subr.bf16.mxu0 0
        %3852 = vmatpush1.bf16.msra.mxu0 %v3804
        %3853 = vmatprep.subr.bf16.mxu0 0
        %3854 = vmatpush1.bf16.msra.mxu0 %v3806
        %3855 = vmatprep.subr.bf16.mxu0 0
        %3856 = vmatpush1.bf16.msra.mxu0 %v3808
        %3857 = vmatprep.subr.bf16.mxu0 0
        %3858 = vmatpush1.bf16.msra.mxu0 %v3810
        %3859 = vmatprep.subr.bf16.mxu0 0
        %3860 = vmatpush1.bf16.msra.mxu0 %v3812
        %3861 = vmatprep.subr.bf16.mxu0 0
        %3862 = vmatpush1.bf16.msra.mxu0 %v3814
        %3863 = vmatprep.subr.bf16.mxu0 0
        %3864 = vmatpush1.bf16.msra.mxu0 %v3816
        %3865 = vmatprep.subr.bf16.mxu0 0
        %3866 = vmatpush1.bf16.msra.mxu0 %v3818
        %3867 = vmatprep.subr.bf16.mxu0 0
        %3868 = vmatpush1.bf16.msra.mxu0 %v3820
        %3869 = vmatprep.subr.bf16.mxu0 0
        %3870 = vmatpush1.bf16.msra.mxu0 %v3822
        %3871 = vmatprep.subr.bf16.mxu0 0
        %3872 = vmatpush1.bf16.msra.mxu0 %v3824
        %3873 = vmatprep.subr.bf16.mxu0 0
        %3874 = vmatpush1.bf16.msra.mxu0 %v3826
        %3875 = vmatprep.mubr.bf16.mxu0 %v3764
        %3876 = vmatmul.mubr.bf16.gmra.mrb[0].mxu0 %v3763
        %v3877 = vpop.f32.mrb[0].mxu0
        %v3878 = vadd.f32 0.0, %v3877
        %v3879 = vpop.f32.mrb[0].mxu0
        %v3880 = vpop.f32.mrb[0].mxu0
        %v3881 = vadd.f32 0.0, %v3880
        %v3882 = vpop.f32.mrb[0].mxu0
        %3883 = vmatprep.mubr.bf16.mxu0 %v3766
        %3884 = vmatmul.mubr.bf16.gmra.mrb[0].mxu0 %v3765
        %v3885 = vpop.f32.mrb[0].mxu0
        %v3886 = vadd.f32 0.0, %v3885
        %v3887 = vpop.f32.mrb[0].mxu0
        %v3888 = vpop.f32.mrb[0].mxu0
        %v3889 = vadd.f32 0.0, %v3888
        %v3890 = vpop.f32.mrb[0].mxu0
        %3891 = vmatprep.mubr.bf16.mxu0 %v3768
        %3892 = vmatmul.mubr.bf16.gmra.mrb[0].mxu0 %v3767
        %v3893 = vpop.f32.mrb[0].mxu0
        %v3894 = vadd.f32 0.0, %v3893
        %v3895 = vpop.f32.mrb[0].mxu0
        %v3896 = vpop.f32.mrb[0].mxu0
        %v3897 = vadd.f32 0.0, %v3896
        %v3898 = vpop.f32.mrb[0].mxu0
        %3899 = vmatprep.mubr.bf16.mxu0 %v3770
        %3900 = vmatmul.mubr.bf16.gmra.mrb[0].mxu0 %v3769
        %v3901 = vpop.f32.mrb[0].mxu0
        %v3902 = vadd.f32 0.0, %v3901
        %v3903 = vpop.f32.mrb[0].mxu0
        %v3904 = vpop.f32.mrb[0].mxu0
        %v3905 = vadd.f32 0.0, %v3904
        %v3906 = vpop.f32.mrb[0].mxu0
        %3907 = vmatprep.mubr.bf16.mxu0 %v3772
        %3908 = vmatmul.mubr.bf16.gmra.mrb[0].mxu0 %v3771
        %v3909 = vpop.f32.mrb[0].mxu0
        %v3910 = vadd.f32 0.0, %v3909
        %v3911 = vpop.f32.mrb[0].mxu0
        %v3912 = vpop.f32.mrb[0].mxu0
        %v3913 = vadd.f32 0.0, %v3912
        %v3914 = vpop.f32.mrb[0].mxu0
        %3915 = vmatprep.mubr.bf16.mxu0 %v3774
        %3916 = vmatmul.mubr.bf16.gmra.mrb[0].mxu0 %v3773
        %v3917 = vpop.f32.mrb[0].mxu0
        %v3918 = vadd.f32 0.0, %v3917
        %v3919 = vpop.f32.mrb[0].mxu0
        %v3920 = vpop.f32.mrb[0].mxu0
        %v3921 = vadd.f32 0.0, %v3920
        %v3922 = vpop.f32.mrb[0].mxu0
        %3923 = vmatprep.mubr.bf16.mxu0 %v3776
        %3924 = vmatmul.mubr.bf16.gmra.mrb[0].mxu0 %v3775
        %v3925 = vpop.f32.mrb[0].mxu0
        %v3926 = vadd.f32 0.0, %v3925
        %v3927 = vpop.f32.mrb[0].mxu0
        %v3928 = vpop.f32.mrb[0].mxu0
        %v3929 = vadd.f32 0.0, %v3928
        %v3930 = vpop.f32.mrb[0].mxu0
        %3931 = vmatprep.mubr.bf16.mxu0 %v3778
        %3932 = vmatmul.mubr.bf16.gmra.mrb[0].mxu0 %v3777
        %v3933 = vpop.f32.mrb[0].mxu0
        %v3934 = vadd.f32 0.0, %v3933
        %v3935 = vpop.f32.mrb[0].mxu0
        %v3936 = vpop.f32.mrb[0].mxu0
        %v3937 = vadd.f32 0.0, %v3936
        %v3938 = vpop.f32.mrb[0].mxu0
        %3939 = vmatprep.mubr.bf16.mxu0 %v3780
        %3940 = vmatmul.mubr.bf16.gmra.mrb[0].mxu0 %v3779
        %v3941 = vpop.f32.mrb[0].mxu0
        %v3942 = vadd.f32 0.0, %v3941
        %v3943 = vpop.f32.mrb[0].mxu0
        %v3944 = vpop.f32.mrb[0].mxu0
        %v3945 = vadd.f32 0.0, %v3944
        %v3946 = vpop.f32.mrb[0].mxu0
        %3947 = vmatprep.mubr.bf16.mxu0 %v3782
        %3948 = vmatmul.mubr.bf16.gmra.mrb[0].mxu0 %v3781
        %v3949 = vpop.f32.mrb[0].mxu0
        %v3950 = vadd.f32 0.0, %v3949
        %v3951 = vpop.f32.mrb[0].mxu0
        %v3952 = vpop.f32.mrb[0].mxu0
        %v3953 = vadd.f32 0.0, %v3952
        %v3954 = vpop.f32.mrb[0].mxu0
        %3955 = vmatprep.mubr.bf16.mxu0 %v3784
        %3956 = vmatmul.mubr.bf16.gmra.mrb[0].mxu0 %v3783
        %v3957 = vpop.f32.mrb[0].mxu0
        %v3958 = vadd.f32 0.0, %v3957
        %v3959 = vpop.f32.mrb[0].mxu0
        %v3960 = vpop.f32.mrb[0].mxu0
        %v3961 = vadd.f32 0.0, %v3960
        %v3962 = vpop.f32.mrb[0].mxu0
        %3963 = vmatprep.mubr.bf16.mxu0 %v3786
        %3964 = vmatmul.mubr.bf16.gmra.mrb[0].mxu0 %v3785
        %v3965 = vpop.f32.mrb[0].mxu0
        %v3966 = vadd.f32 0.0, %v3965
        %v3967 = vpop.f32.mrb[0].mxu0
        %v3968 = vpop.f32.mrb[0].mxu0
        %v3969 = vadd.f32 0.0, %v3968
        %v3970 = vpop.f32.mrb[0].mxu0
        %3971 = vmatprep.mubr.bf16.mxu0 %v3788
        %3972 = vmatmul.mubr.bf16.gmra.mrb[0].mxu0 %v3787
        %v3973 = vpop.f32.mrb[0].mxu0
        %v3974 = vadd.f32 0.0, %v3973
        %v3975 = vpop.f32.mrb[0].mxu0
        %v3976 = vpop.f32.mrb[0].mxu0
        %v3977 = vadd.f32 0.0, %v3976
        %v3978 = vpop.f32.mrb[0].mxu0
        %3979 = vmatprep.mubr.bf16.mxu0 %v3790
        %3980 = vmatmul.mubr.bf16.gmra.mrb[0].mxu0 %v3789
        %v3981 = vpop.f32.mrb[0].mxu0
        %v3982 = vadd.f32 0.0, %v3981
        %v3983 = vpop.f32.mrb[0].mxu0
        %v3984 = vpop.f32.mrb[0].mxu0
        %v3985 = vadd.f32 0.0, %v3984
        %v3986 = vpop.f32.mrb[0].mxu0
        %3987 = vmatprep.mubr.bf16.mxu0 %v3792
        %3988 = vmatmul.mubr.bf16.gmra.mrb[0].mxu0 %v3791
        %v3989 = vpop.f32.mrb[0].mxu0
        %v3990 = vadd.f32 0.0, %v3989
        %v3991 = vpop.f32.mrb[0].mxu0
        %v3992 = vpop.f32.mrb[0].mxu0
        %v3993 = vadd.f32 0.0, %v3992
        %v3994 = vpop.f32.mrb[0].mxu0
        %3995 = vmatprep.mubr.bf16.mxu0 %v3794
        %3996 = vmatmul.mubr.bf16.gmra.mrb[0].mxu0 %v3793
        %v3997 = vpop.f32.mrb[0].mxu0
        %v3998 = vadd.f32 0.0, %v3997
        %v3999 = vpop.f32.mrb[0].mxu0
        %v4000 = vpop.f32.mrb[0].mxu0
        %v4001 = vadd.f32 0.0, %v4000
        %v4002 = vpop.f32.mrb[0].mxu0
        %4003 = vdwg.mxu0
        %4004 = vrot.lane.b32.xlu0 %v781, 104
        %v4005 = vpop.permute.xlu0 %4004
        %4006 = vrot.lane.b32.xlu0 %v782, 104
        %v4007 = vpop.permute.xlu0 %4006
        %4008 = vrot.lane.b32.xlu0 %v783, 104
        %v4009 = vpop.permute.xlu0 %4008
        %4010 = vrot.lane.b32.xlu0 %v784, 104
        %v4011 = vpop.permute.xlu0 %4010
        %4012 = vrot.lane.b32.xlu0 %v785, 104
        %v4013 = vpop.permute.xlu0 %4012
        %4014 = vrot.lane.b32.xlu0 %v786, 104
        %v4015 = vpop.permute.xlu0 %4014
        %4016 = vrot.lane.b32.xlu0 %v787, 104
        %v4017 = vpop.permute.xlu0 %4016
        %4018 = vrot.lane.b32.xlu0 %v788, 104
        %v4019 = vpop.permute.xlu0 %4018
        %4020 = vrot.lane.b32.xlu0 %v789, 104
        %v4021 = vpop.permute.xlu0 %4020
        %4022 = vrot.lane.b32.xlu0 %v790, 104
        %v4023 = vpop.permute.xlu0 %4022
        %4024 = vrot.lane.b32.xlu0 %v791, 104
        %v4025 = vpop.permute.xlu0 %4024
        %4026 = vrot.lane.b32.xlu0 %v792, 104
        %v4027 = vpop.permute.xlu0 %4026
        %4028 = vrot.lane.b32.xlu0 %v793, 104
        %v4029 = vpop.permute.xlu0 %4028
        %4030 = vrot.lane.b32.xlu0 %v794, 104
        %v4031 = vpop.permute.xlu0 %4030
        %4032 = vrot.lane.b32.xlu0 %v795, 104
        %v4033 = vpop.permute.xlu0 %4032
        %4034 = vrot.lane.b32.xlu0 %v796, 104
        %v4035 = vpop.permute.xlu0 %4034
        %4036 = vrot.lane.b32.xlu0 %v781, 72
        %v4037 = vpop.permute.xlu0 %4036
        %4038 = vrot.lane.b32.xlu0 %v782, 72
        %v4039 = vpop.permute.xlu0 %4038
        %4040 = vrot.lane.b32.xlu0 %v783, 72
        %v4041 = vpop.permute.xlu0 %4040
        %4042 = vrot.lane.b32.xlu0 %v784, 72
        %v4043 = vpop.permute.xlu0 %4042
        %4044 = vrot.lane.b32.xlu0 %v785, 72
        %v4045 = vpop.permute.xlu0 %4044
        %4046 = vrot.lane.b32.xlu0 %v786, 72
        %v4047 = vpop.permute.xlu0 %4046
        %4048 = vrot.lane.b32.xlu0 %v787, 72
        %v4049 = vpop.permute.xlu0 %4048
        %4050 = vrot.lane.b32.xlu0 %v788, 72
        %v4051 = vpop.permute.xlu0 %4050
        %4052 = vrot.lane.b32.xlu0 %v789, 72
        %v4053 = vpop.permute.xlu0 %4052
        %4054 = vrot.lane.b32.xlu0 %v790, 72
        %v4055 = vpop.permute.xlu0 %4054
        %4056 = vrot.lane.b32.xlu0 %v791, 72
        %v4057 = vpop.permute.xlu0 %4056
        %4058 = vrot.lane.b32.xlu0 %v792, 72
        %v4059 = vpop.permute.xlu0 %4058
        %4060 = vrot.lane.b32.xlu0 %v793, 72
        %v4061 = vpop.permute.xlu0 %4060
        %4062 = vrot.lane.b32.xlu0 %v794, 72
        %v4063 = vpop.permute.xlu0 %4062
        %4064 = vrot.lane.b32.xlu0 %v795, 72
        %v4065 = vpop.permute.xlu0 %4064
        %4066 = vrot.lane.b32.xlu0 %v796, 72
        %v4067 = vpop.permute.xlu0 %4066
        %v4069 = vsel %vm845, %v4005, 0
        %v4072 = vsel %vm845, %v4007, 0
        %v4075 = vsel %vm845, %v4009, 0
        %v4078 = vsel %vm845, %v4011, 0
        %v4081 = vsel %vm845, %v4013, 0
        %v4084 = vsel %vm845, %v4015, 0
        %v4087 = vsel %vm845, %v4017, 0
        %v4090 = vsel %vm845, %v4019, 0
        %v4093 = vsel %vm845, %v4021, 0
        %v4096 = vsel %vm845, %v4023, 0
        %v4099 = vsel %vm845, %v4025, 0
        %v4102 = vsel %vm845, %v4027, 0
        %v4105 = vsel %vm845, %v4029, 0
        %v4108 = vsel %vm845, %v4031, 0
        %v4111 = vsel %vm845, %v4033, 0
        %v4114 = vsel %vm845, %v4035, 0
        %v4117 = vsel %vm845, %v4037, 0
        %v4120 = vsel %vm845, %v4039, 0
        %v4123 = vsel %vm845, %v4041, 0
        %v4126 = vsel %vm845, %v4043, 0
        %v4129 = vsel %vm845, %v4045, 0
        %v4132 = vsel %vm845, %v4047, 0
        %v4135 = vsel %vm845, %v4049, 0
        %v4138 = vsel %vm845, %v4051, 0
        %v4141 = vsel %vm845, %v4053, 0
        %v4144 = vsel %vm845, %v4055, 0
        %v4147 = vsel %vm845, %v4057, 0
        %v4150 = vsel %vm845, %v4059, 0
        %v4153 = vsel %vm845, %v4061, 0
        %v4156 = vsel %vm845, %v4063, 0
        %v4159 = vsel %vm845, %v4065, 0
        %v4162 = vsel %vm845, %v4067, 0
        %4164 = vmatprep.subr.bf16.mxu0 0
        %4165 = vmatpush1.bf16.xpose.msra.mxu0 %v4117
        %4166 = vmatprep.subr.bf16.mxu0 0
        %4167 = vmatpush1.bf16.xpose.msra.mxu0 %v4120
        %4168 = vmatprep.subr.bf16.mxu0 0
        %4169 = vmatpush1.bf16.xpose.msra.mxu0 %v4123
        %4170 = vmatprep.subr.bf16.mxu0 0
        %4171 = vmatpush1.bf16.xpose.msra.mxu0 %v4126
        %4172 = vmatprep.subr.bf16.mxu0 0
        %4173 = vmatpush1.bf16.xpose.msra.mxu0 %v4129
        %4174 = vmatprep.subr.bf16.mxu0 0
        %4175 = vmatpush1.bf16.xpose.msra.mxu0 %v4132
        %4176 = vmatprep.subr.bf16.mxu0 0
        %4177 = vmatpush1.bf16.xpose.msra.mxu0 %v4135
        %4178 = vmatprep.subr.bf16.mxu0 0
        %4179 = vmatpush1.bf16.xpose.msra.mxu0 %v4138
        %4180 = vmatprep.subr.bf16.mxu0 0
        %4181 = vmatpush1.bf16.xpose.msra.mxu0 %v4141
        %4182 = vmatprep.subr.bf16.mxu0 0
        %4183 = vmatpush1.bf16.xpose.msra.mxu0 %v4144
        %4184 = vmatprep.subr.bf16.mxu0 0
        %4185 = vmatpush1.bf16.xpose.msra.mxu0 %v4147
        %4186 = vmatprep.subr.bf16.mxu0 0
        %4187 = vmatpush1.bf16.xpose.msra.mxu0 %v4150
        %4188 = vmatprep.subr.bf16.mxu0 0
        %4189 = vmatpush1.bf16.xpose.msra.mxu0 %v4153
        %4190 = vmatprep.subr.bf16.mxu0 0
        %4191 = vmatpush1.bf16.xpose.msra.mxu0 %v4156
        %4192 = vmatprep.subr.bf16.mxu0 0
        %4193 = vmatpush1.bf16.xpose.msra.mxu0 %v4159
        %4194 = vmatprep.subr.bf16.mxu0 0
        %4195 = vmatpush1.bf16.xpose.msra.mxu0 %v4162
        %4196 = vmatprep.mubr.bf16.mxu0 0
        %4197 = vmatmul.mubr.bf16.gmra.mrb[0].mxu0 %v4069
        %v4198 = vpop.f32.mrb[0].mxu0
        %v4199 = vadd.f32 0.0, %v4198
        %v4200 = vpop.f32.mrb[0].mxu0
        %v4201 = vadd.f32 0.0, %v4200
        %v4202 = vpop.f32.mrb[0].mxu0
        %v4203 = vadd.f32 0.0, %v4202
        %v4204 = vpop.f32.mrb[0].mxu0
        %v4205 = vadd.f32 0.0, %v4204
        %4206 = vmatprep.mubr.bf16.mxu0 0
        %4207 = vmatmul.mubr.bf16.gmra.mrb[0].mxu0 %v4072
        %v4208 = vpop.f32.mrb[0].mxu0
        %v4209 = vadd.f32 0.0, %v4208
        %v4210 = vpop.f32.mrb[0].mxu0
        %v4211 = vadd.f32 0.0, %v4210
        %v4212 = vpop.f32.mrb[0].mxu0
        %v4213 = vadd.f32 0.0, %v4212
        %v4214 = vpop.f32.mrb[0].mxu0
        %v4215 = vadd.f32 0.0, %v4214
        %4216 = vmatprep.mubr.bf16.mxu0 0
        %4217 = vmatmul.mubr.bf16.gmra.mrb[0].mxu0 %v4075
        %v4218 = vpop.f32.mrb[0].mxu0
        %v4219 = vadd.f32 0.0, %v4218
        %v4220 = vpop.f32.mrb[0].mxu0
        %v4221 = vadd.f32 0.0, %v4220
        %v4222 = vpop.f32.mrb[0].mxu0
        %v4223 = vadd.f32 0.0, %v4222
        %v4224 = vpop.f32.mrb[0].mxu0
        %v4225 = vadd.f32 0.0, %v4224
        %4226 = vmatprep.mubr.bf16.mxu0 0
        %4227 = vmatmul.mubr.bf16.gmra.mrb[0].mxu0 %v4078
        %v4228 = vpop.f32.mrb[0].mxu0
        %v4229 = vadd.f32 0.0, %v4228
        %v4230 = vpop.f32.mrb[0].mxu0
        %v4231 = vadd.f32 0.0, %v4230
        %v4232 = vpop.f32.mrb[0].mxu0
        %v4233 = vadd.f32 0.0, %v4232
        %v4234 = vpop.f32.mrb[0].mxu0
        %v4235 = vadd.f32 0.0, %v4234
        %4236 = vmatprep.mubr.bf16.mxu0 0
        %4237 = vmatmul.mubr.bf16.gmra.mrb[0].mxu0 %v4081
        %v4238 = vpop.f32.mrb[0].mxu0
        %v4239 = vadd.f32 0.0, %v4238
        %v4240 = vpop.f32.mrb[0].mxu0
        %v4241 = vadd.f32 0.0, %v4240
        %v4242 = vpop.f32.mrb[0].mxu0
        %v4243 = vadd.f32 0.0, %v4242
        %v4244 = vpop.f32.mrb[0].mxu0
        %v4245 = vadd.f32 0.0, %v4244
        %4246 = vmatprep.mubr.bf16.mxu0 0
        %4247 = vmatmul.mubr.bf16.gmra.mrb[0].mxu0 %v4084
        %v4248 = vpop.f32.mrb[0].mxu0
        %v4249 = vadd.f32 0.0, %v4248
        %v4250 = vpop.f32.mrb[0].mxu0
        %v4251 = vadd.f32 0.0, %v4250
        %v4252 = vpop.f32.mrb[0].mxu0
        %v4253 = vadd.f32 0.0, %v4252
        %v4254 = vpop.f32.mrb[0].mxu0
        %v4255 = vadd.f32 0.0, %v4254
        %4256 = vmatprep.mubr.bf16.mxu0 0
        %4257 = vmatmul.mubr.bf16.gmra.mrb[0].mxu0 %v4087
        %v4258 = vpop.f32.mrb[0].mxu0
        %v4259 = vadd.f32 0.0, %v4258
        %v4260 = vpop.f32.mrb[0].mxu0
        %v4261 = vadd.f32 0.0, %v4260
        %v4262 = vpop.f32.mrb[0].mxu0
        %v4263 = vadd.f32 0.0, %v4262
        %v4264 = vpop.f32.mrb[0].mxu0
        %v4265 = vadd.f32 0.0, %v4264
        %4266 = vmatprep.mubr.bf16.mxu0 0
        %4267 = vmatmul.mubr.bf16.gmra.mrb[0].mxu0 %v4090
        %v4268 = vpop.f32.mrb[0].mxu0
        %v4269 = vadd.f32 0.0, %v4268
        %v4270 = vpop.f32.mrb[0].mxu0
        %v4271 = vadd.f32 0.0, %v4270
        %v4272 = vpop.f32.mrb[0].mxu0
        %v4273 = vadd.f32 0.0, %v4272
        %v4274 = vpop.f32.mrb[0].mxu0
        %v4275 = vadd.f32 0.0, %v4274
        %4276 = vmatprep.mubr.bf16.mxu0 0
        %4277 = vmatmul.mubr.bf16.gmra.mrb[0].mxu0 %v4093
        %v4278 = vpop.f32.mrb[0].mxu0
        %v4279 = vadd.f32 0.0, %v4278
        %v4280 = vpop.f32.mrb[0].mxu0
        %v4281 = vadd.f32 0.0, %v4280
        %v4282 = vpop.f32.mrb[0].mxu0
        %v4283 = vadd.f32 0.0, %v4282
        %v4284 = vpop.f32.mrb[0].mxu0
        %v4285 = vadd.f32 0.0, %v4284
        %4286 = vmatprep.mubr.bf16.mxu0 0
        %4287 = vmatmul.mubr.bf16.gmra.mrb[0].mxu0 %v4096
        %v4288 = vpop.f32.mrb[0].mxu0
        %v4289 = vadd.f32 0.0, %v4288
        %v4290 = vpop.f32.mrb[0].mxu0
        %v4291 = vadd.f32 0.0, %v4290
        %v4292 = vpop.f32.mrb[0].mxu0
        %v4293 = vadd.f32 0.0, %v4292
        %v4294 = vpop.f32.mrb[0].mxu0
        %v4295 = vadd.f32 0.0, %v4294
        %4296 = vmatprep.mubr.bf16.mxu0 0
        %4297 = vmatmul.mubr.bf16.gmra.mrb[0].mxu0 %v4099
        %v4298 = vpop.f32.mrb[0].mxu0
        %v4299 = vadd.f32 0.0, %v4298
        %v4300 = vpop.f32.mrb[0].mxu0
        %v4301 = vadd.f32 0.0, %v4300
        %v4302 = vpop.f32.mrb[0].mxu0
        %v4303 = vadd.f32 0.0, %v4302
        %v4304 = vpop.f32.mrb[0].mxu0
        %v4305 = vadd.f32 0.0, %v4304
        %4306 = vmatprep.mubr.bf16.mxu0 0
        %4307 = vmatmul.mubr.bf16.gmra.mrb[0].mxu0 %v4102
        %v4308 = vpop.f32.mrb[0].mxu0
        %v4309 = vadd.f32 0.0, %v4308
        %v4310 = vpop.f32.mrb[0].mxu0
        %v4311 = vadd.f32 0.0, %v4310
        %v4312 = vpop.f32.mrb[0].mxu0
        %v4313 = vadd.f32 0.0, %v4312
        %v4314 = vpop.f32.mrb[0].mxu0
        %v4315 = vadd.f32 0.0, %v4314
        %4316 = vmatprep.mubr.bf16.mxu0 0
        %4317 = vmatmul.mubr.bf16.gmra.mrb[0].mxu0 %v4105
        %v4318 = vpop.f32.mrb[0].mxu0
        %v4319 = vadd.f32 0.0, %v4318
        %v4320 = vpop.f32.mrb[0].mxu0
        %v4321 = vadd.f32 0.0, %v4320
        %v4322 = vpop.f32.mrb[0].mxu0
        %v4323 = vadd.f32 0.0, %v4322
        %v4324 = vpop.f32.mrb[0].mxu0
        %v4325 = vadd.f32 0.0, %v4324
        %4326 = vmatprep.mubr.bf16.mxu0 0
        %4327 = vmatmul.mubr.bf16.gmra.mrb[0].mxu0 %v4108
        %v4328 = vpop.f32.mrb[0].mxu0
        %v4329 = vadd.f32 0.0, %v4328
        %v4330 = vpop.f32.mrb[0].mxu0
        %v4331 = vadd.f32 0.0, %v4330
        %v4332 = vpop.f32.mrb[0].mxu0
        %v4333 = vadd.f32 0.0, %v4332
        %v4334 = vpop.f32.mrb[0].mxu0
        %v4335 = vadd.f32 0.0, %v4334
        %4336 = vmatprep.mubr.bf16.mxu0 0
        %4337 = vmatmul.mubr.bf16.gmra.mrb[0].mxu0 %v4111
        %v4338 = vpop.f32.mrb[0].mxu0
        %v4339 = vadd.f32 0.0, %v4338
        %v4340 = vpop.f32.mrb[0].mxu0
        %v4341 = vadd.f32 0.0, %v4340
        %v4342 = vpop.f32.mrb[0].mxu0
        %v4343 = vadd.f32 0.0, %v4342
        %v4344 = vpop.f32.mrb[0].mxu0
        %v4345 = vadd.f32 0.0, %v4344
        %4346 = vmatprep.mubr.bf16.mxu0 0
        %4347 = vmatmul.mubr.bf16.gmra.mrb[0].mxu0 %v4114
        %v4348 = vpop.f32.mrb[0].mxu0
        %v4349 = vadd.f32 0.0, %v4348
        %v4350 = vpop.f32.mrb[0].mxu0
        %v4351 = vadd.f32 0.0, %v4350
        %v4352 = vpop.f32.mrb[0].mxu0
        %v4353 = vadd.f32 0.0, %v4352
        %v4354 = vpop.f32.mrb[0].mxu0
        %v4355 = vadd.f32 0.0, %v4354
        %4356 = vdwg.mxu0
        %v4357 = vmax.f32 %v4199, %v4201
        %4358 = vmax.xlane.f32.xlu0 %v4357
        %v4359 = vpop.xlane.xlu0 %4358
        %v4360 = vmax.f32 %v4203, %v4205
        %4361 = vmax.xlane.f32.xlu0 %v4360
        %v4362 = vpop.xlane.xlu0 %4361
        %v4363 = vmax.f32 %v4209, %v4211
        %4364 = vmax.xlane.f32.xlu0 %v4363
        %v4365 = vpop.xlane.xlu0 %4364
        %v4366 = vmax.f32 %v4213, %v4215
        %4367 = vmax.xlane.f32.xlu0 %v4366
        %v4368 = vpop.xlane.xlu0 %4367
        %v4369 = vmax.f32 %v4219, %v4221
        %4370 = vmax.xlane.f32.xlu0 %v4369
        %v4371 = vpop.xlane.xlu0 %4370
        %v4372 = vmax.f32 %v4223, %v4225
        %4373 = vmax.xlane.f32.xlu0 %v4372
        %v4374 = vpop.xlane.xlu0 %4373
        %v4375 = vmax.f32 %v4229, %v4231
        %4376 = vmax.xlane.f32.xlu0 %v4375
        %v4377 = vpop.xlane.xlu0 %4376
        %v4378 = vmax.f32 %v4233, %v4235
        %4379 = vmax.xlane.f32.xlu0 %v4378
        %v4380 = vpop.xlane.xlu0 %4379
        %v4381 = vmax.f32 %v4239, %v4241
        %4382 = vmax.xlane.f32.xlu0 %v4381
        %v4383 = vpop.xlane.xlu0 %4382
        %v4384 = vmax.f32 %v4243, %v4245
        %4385 = vmax.xlane.f32.xlu0 %v4384
        %v4386 = vpop.xlane.xlu0 %4385
        %v4387 = vmax.f32 %v4249, %v4251
        %4388 = vmax.xlane.f32.xlu0 %v4387
        %v4389 = vpop.xlane.xlu0 %4388
        %v4390 = vmax.f32 %v4253, %v4255
        %4391 = vmax.xlane.f32.xlu0 %v4390
        %v4392 = vpop.xlane.xlu0 %4391
        %v4393 = vmax.f32 %v4259, %v4261
        %4394 = vmax.xlane.f32.xlu0 %v4393
        %v4395 = vpop.xlane.xlu0 %4394
        %v4396 = vmax.f32 %v4263, %v4265
        %4397 = vmax.xlane.f32.xlu0 %v4396
        %v4398 = vpop.xlane.xlu0 %4397
        %v4399 = vmax.f32 %v4269, %v4271
        %4400 = vmax.xlane.f32.xlu0 %v4399
        %v4401 = vpop.xlane.xlu0 %4400
        %v4402 = vmax.f32 %v4273, %v4275
        %4403 = vmax.xlane.f32.xlu0 %v4402
        %v4404 = vpop.xlane.xlu0 %4403
        %v4405 = vmax.f32 %v4279, %v4281
        %4406 = vmax.xlane.f32.xlu0 %v4405
        %v4407 = vpop.xlane.xlu0 %4406
        %v4408 = vmax.f32 %v4283, %v4285
        %4409 = vmax.xlane.f32.xlu0 %v4408
        %v4410 = vpop.xlane.xlu0 %4409
        %v4411 = vmax.f32 %v4289, %v4291
        %4412 = vmax.xlane.f32.xlu0 %v4411
        %v4413 = vpop.xlane.xlu0 %4412
        %v4414 = vmax.f32 %v4293, %v4295
        %4415 = vmax.xlane.f32.xlu0 %v4414
        %v4416 = vpop.xlane.xlu0 %4415
        %v4417 = vmax.f32 %v4299, %v4301
        %4418 = vmax.xlane.f32.xlu0 %v4417
        %v4419 = vpop.xlane.xlu0 %4418
        %v4420 = vmax.f32 %v4303, %v4305
        %4421 = vmax.xlane.f32.xlu0 %v4420
        %v4422 = vpop.xlane.xlu0 %4421
        %v4423 = vmax.f32 %v4309, %v4311
        %4424 = vmax.xlane.f32.xlu0 %v4423
        %v4425 = vpop.xlane.xlu0 %4424
        %v4426 = vmax.f32 %v4313, %v4315
        %4427 = vmax.xlane.f32.xlu0 %v4426
        %v4428 = vpop.xlane.xlu0 %4427
        %v4429 = vmax.f32 %v4319, %v4321
        %4430 = vmax.xlane.f32.xlu0 %v4429
        %v4431 = vpop.xlane.xlu0 %4430
        %v4432 = vmax.f32 %v4323, %v4325
        %4433 = vmax.xlane.f32.xlu0 %v4432
        %v4434 = vpop.xlane.xlu0 %4433
        %v4435 = vmax.f32 %v4329, %v4331
        %4436 = vmax.xlane.f32.xlu0 %v4435
        %v4437 = vpop.xlane.xlu0 %4436
        %v4438 = vmax.f32 %v4333, %v4335
        %4439 = vmax.xlane.f32.xlu0 %v4438
        %v4440 = vpop.xlane.xlu0 %4439
        %v4441 = vmax.f32 %v4339, %v4341
        %4442 = vmax.xlane.f32.xlu0 %v4441
        %v4443 = vpop.xlane.xlu0 %4442
        %v4444 = vmax.f32 %v4343, %v4345
        %4445 = vmax.xlane.f32.xlu0 %v4444
        %v4446 = vpop.xlane.xlu0 %4445
        %v4447 = vmax.f32 %v4349, %v4351
        %4448 = vmax.xlane.f32.xlu0 %v4447
        %v4449 = vpop.xlane.xlu0 %4448
        %v4450 = vmax.f32 %v4353, %v4355
        %4451 = vmax.xlane.f32.xlu0 %v4450
        %v4452 = vpop.xlane.xlu0 %4451
        %v4453 = vsub.f32 %v4199, %v4359
        %v4454 = vsub.f32 %v4201, %v4359
        %v4455 = vsub.f32 %v4203, %v4362
        %v4456 = vsub.f32 %v4205, %v4362
        %v4457 = vsub.f32 %v4209, %v4365
        %v4458 = vsub.f32 %v4211, %v4365
        %v4459 = vsub.f32 %v4213, %v4368
        %v4460 = vsub.f32 %v4215, %v4368
        %v4461 = vsub.f32 %v4219, %v4371
        %v4462 = vsub.f32 %v4221, %v4371
        %v4463 = vsub.f32 %v4223, %v4374
        %v4464 = vsub.f32 %v4225, %v4374
        %v4465 = vsub.f32 %v4229, %v4377
        %v4466 = vsub.f32 %v4231, %v4377
        %v4467 = vsub.f32 %v4233, %v4380
        %v4468 = vsub.f32 %v4235, %v4380
        %v4469 = vsub.f32 %v4239, %v4383
        %v4470 = vsub.f32 %v4241, %v4383
        %v4471 = vsub.f32 %v4243, %v4386
        %v4472 = vsub.f32 %v4245, %v4386
        %v4473 = vsub.f32 %v4249, %v4389
        %v4474 = vsub.f32 %v4251, %v4389
        %v4475 = vsub.f32 %v4253, %v4392
        %v4476 = vsub.f32 %v4255, %v4392
        %v4477 = vsub.f32 %v4259, %v4395
        %v4478 = vsub.f32 %v4261, %v4395
        %v4479 = vsub.f32 %v4263, %v4398
        %v4480 = vsub.f32 %v4265, %v4398
        %v4481 = vsub.f32 %v4269, %v4401
        %v4482 = vsub.f32 %v4271, %v4401
        %v4483 = vsub.f32 %v4273, %v4404
        %v4484 = vsub.f32 %v4275, %v4404
        %v4485 = vsub.f32 %v4279, %v4407
        %v4486 = vsub.f32 %v4281, %v4407
        %v4487 = vsub.f32 %v4283, %v4410
        %v4488 = vsub.f32 %v4285, %v4410
        %v4489 = vsub.f32 %v4289, %v4413
        %v4490 = vsub.f32 %v4291, %v4413
        %v4491 = vsub.f32 %v4293, %v4416
        %v4492 = vsub.f32 %v4295, %v4416
        %v4493 = vsub.f32 %v4299, %v4419
        %v4494 = vsub.f32 %v4301, %v4419
        %v4495 = vsub.f32 %v4303, %v4422
        %v4496 = vsub.f32 %v4305, %v4422
        %v4497 = vsub.f32 %v4309, %v4425
        %v4498 = vsub.f32 %v4311, %v4425
        %v4499 = vsub.f32 %v4313, %v4428
        %v4500 = vsub.f32 %v4315, %v4428
        %v4501 = vsub.f32 %v4319, %v4431
        %v4502 = vsub.f32 %v4321, %v4431
        %v4503 = vsub.f32 %v4323, %v4434
        %v4504 = vsub.f32 %v4325, %v4434
        %v4505 = vsub.f32 %v4329, %v4437
        %v4506 = vsub.f32 %v4331, %v4437
        %v4507 = vsub.f32 %v4333, %v4440
        %v4508 = vsub.f32 %v4335, %v4440
        %v4509 = vsub.f32 %v4339, %v4443
        %v4510 = vsub.f32 %v4341, %v4443
        %v4511 = vsub.f32 %v4343, %v4446
        %v4512 = vsub.f32 %v4345, %v4446
        %v4513 = vsub.f32 %v4349, %v4449
        %v4514 = vsub.f32 %v4351, %v4449
        %v4515 = vsub.f32 %v4353, %v4452
        %v4516 = vsub.f32 %v4355, %v4452
        %v4517 = vmul.f32 %v4453, 1.442695
        %v4518 = vpow.pop %v4517
        %v4519 = vmul.f32 %v4454, 1.442695
        %v4520 = vpow.pop %v4519
        %v4521 = vmul.f32 %v4455, 1.442695
        %v4522 = vpow.pop %v4521
        %v4523 = vmul.f32 %v4456, 1.442695
        %v4524 = vpow.pop %v4523
        %v4525 = vmul.f32 %v4457, 1.442695
        %v4526 = vpow.pop %v4525
        %v4527 = vmul.f32 %v4458, 1.442695
        %v4528 = vpow.pop %v4527
        %v4529 = vmul.f32 %v4459, 1.442695
        %v4530 = vpow.pop %v4529
        %v4531 = vmul.f32 %v4460, 1.442695
        %v4532 = vpow.pop %v4531
        %v4533 = vmul.f32 %v4461, 1.442695
        %v4534 = vpow.pop %v4533
        %v4535 = vmul.f32 %v4462, 1.442695
        %v4536 = vpow.pop %v4535
        %v4537 = vmul.f32 %v4463, 1.442695
        %v4538 = vpow.pop %v4537
        %v4539 = vmul.f32 %v4464, 1.442695
        %v4540 = vpow.pop %v4539
        %v4541 = vmul.f32 %v4465, 1.442695
        %v4542 = vpow.pop %v4541
        %v4543 = vmul.f32 %v4466, 1.442695
        %v4544 = vpow.pop %v4543
        %v4545 = vmul.f32 %v4467, 1.442695
        %v4546 = vpow.pop %v4545
        %v4547 = vmul.f32 %v4468, 1.442695
        %v4548 = vpow.pop %v4547
        %v4549 = vmul.f32 %v4469, 1.442695
        %v4550 = vpow.pop %v4549
        %v4551 = vmul.f32 %v4470, 1.442695
        %v4552 = vpow.pop %v4551
        %v4553 = vmul.f32 %v4471, 1.442695
        %v4554 = vpow.pop %v4553
        %v4555 = vmul.f32 %v4472, 1.442695
        %v4556 = vpow.pop %v4555
        %v4557 = vmul.f32 %v4473, 1.442695
        %v4558 = vpow.pop %v4557
        %v4559 = vmul.f32 %v4474, 1.442695
        %v4560 = vpow.pop %v4559
        %v4561 = vmul.f32 %v4475, 1.442695
        %v4562 = vpow.pop %v4561
        %v4563 = vmul.f32 %v4476, 1.442695
        %v4564 = vpow.pop %v4563
        %v4565 = vmul.f32 %v4477, 1.442695
        %v4566 = vpow.pop %v4565
        %v4567 = vmul.f32 %v4478, 1.442695
        %v4568 = vpow.pop %v4567
        %v4569 = vmul.f32 %v4479, 1.442695
        %v4570 = vpow.pop %v4569
        %v4571 = vmul.f32 %v4480, 1.442695
        %v4572 = vpow.pop %v4571
        %v4573 = vmul.f32 %v4481, 1.442695
        %v4574 = vpow.pop %v4573
        %v4575 = vmul.f32 %v4482, 1.442695
        %v4576 = vpow.pop %v4575
        %v4577 = vmul.f32 %v4483, 1.442695
        %v4578 = vpow.pop %v4577
        %v4579 = vmul.f32 %v4484, 1.442695
        %v4580 = vpow.pop %v4579
        %v4581 = vmul.f32 %v4485, 1.442695
        %v4582 = vpow.pop %v4581
        %v4583 = vmul.f32 %v4486, 1.442695
        %v4584 = vpow.pop %v4583
        %v4585 = vmul.f32 %v4487, 1.442695
        %v4586 = vpow.pop %v4585
        %v4587 = vmul.f32 %v4488, 1.442695
        %v4588 = vpow.pop %v4587
        %v4589 = vmul.f32 %v4489, 1.442695
        %v4590 = vpow.pop %v4589
        %v4591 = vmul.f32 %v4490, 1.442695
        %v4592 = vpow.pop %v4591
        %v4593 = vmul.f32 %v4491, 1.442695
        %v4594 = vpow.pop %v4593
        %v4595 = vmul.f32 %v4492, 1.442695
        %v4596 = vpow.pop %v4595
        %v4597 = vmul.f32 %v4493, 1.442695
        %v4598 = vpow.pop %v4597
        %v4599 = vmul.f32 %v4494, 1.442695
        %v4600 = vpow.pop %v4599
        %v4601 = vmul.f32 %v4495, 1.442695
        %v4602 = vpow.pop %v4601
        %v4603 = vmul.f32 %v4496, 1.442695
        %v4604 = vpow.pop %v4603
        %v4605 = vmul.f32 %v4497, 1.442695
        %v4606 = vpow.pop %v4605
        %v4607 = vmul.f32 %v4498, 1.442695
        %v4608 = vpow.pop %v4607
        %v4609 = vmul.f32 %v4499, 1.442695
        %v4610 = vpow.pop %v4609
        %v4611 = vmul.f32 %v4500, 1.442695
        %v4612 = vpow.pop %v4611
        %v4613 = vmul.f32 %v4501, 1.442695
        %v4614 = vpow.pop %v4613
        %v4615 = vmul.f32 %v4502, 1.442695
        %v4616 = vpow.pop %v4615
        %v4617 = vmul.f32 %v4503, 1.442695
        %v4618 = vpow.pop %v4617
        %v4619 = vmul.f32 %v4504, 1.442695
        %v4620 = vpow.pop %v4619
        %v4621 = vmul.f32 %v4505, 1.442695
        %v4622 = vpow.pop %v4621
        %v4623 = vmul.f32 %v4506, 1.442695
        %v4624 = vpow.pop %v4623
        %v4625 = vmul.f32 %v4507, 1.442695
        %v4626 = vpow.pop %v4625
        %v4627 = vmul.f32 %v4508, 1.442695
        %v4628 = vpow.pop %v4627
        %v4629 = vmul.f32 %v4509, 1.442695
        %v4630 = vpow.pop %v4629
        %v4631 = vmul.f32 %v4510, 1.442695
        %v4632 = vpow.pop %v4631
        %v4633 = vmul.f32 %v4511, 1.442695
        %v4634 = vpow.pop %v4633
        %v4635 = vmul.f32 %v4512, 1.442695
        %v4636 = vpow.pop %v4635
        %v4637 = vmul.f32 %v4513, 1.442695
        %v4638 = vpow.pop %v4637
        %v4639 = vmul.f32 %v4514, 1.442695
        %v4640 = vpow.pop %v4639
        %v4641 = vmul.f32 %v4515, 1.442695
        %v4642 = vpow.pop %v4641
        %v4643 = vmul.f32 %v4516, 1.442695
        %v4644 = vpow.pop %v4643
        %v4645 = vadd.f32 %v4518, %v4520
        %4646 = vadd.xlane.f32.xlu0 %v4645
        %v4647 = vpop.xlane.xlu0 %4646
        %v4648 = vadd.f32 %v4522, %v4524
        %4649 = vadd.xlane.f32.xlu0 %v4648
        %v4650 = vpop.xlane.xlu0 %4649
        %v4651 = vadd.f32 %v4526, %v4528
        %4652 = vadd.xlane.f32.xlu0 %v4651
        %v4653 = vpop.xlane.xlu0 %4652
        %v4654 = vadd.f32 %v4530, %v4532
        %4655 = vadd.xlane.f32.xlu0 %v4654
        %v4656 = vpop.xlane.xlu0 %4655
        %v4657 = vadd.f32 %v4534, %v4536
        %4658 = vadd.xlane.f32.xlu0 %v4657
        %v4659 = vpop.xlane.xlu0 %4658
        %v4660 = vadd.f32 %v4538, %v4540
        %4661 = vadd.xlane.f32.xlu0 %v4660
        %v4662 = vpop.xlane.xlu0 %4661
        %v4663 = vadd.f32 %v4542, %v4544
        %4664 = vadd.xlane.f32.xlu0 %v4663
        %v4665 = vpop.xlane.xlu0 %4664
        %v4666 = vadd.f32 %v4546, %v4548
        %4667 = vadd.xlane.f32.xlu0 %v4666
        %v4668 = vpop.xlane.xlu0 %4667
        %v4669 = vadd.f32 %v4550, %v4552
        %4670 = vadd.xlane.f32.xlu0 %v4669
        %v4671 = vpop.xlane.xlu0 %4670
        %v4672 = vadd.f32 %v4554, %v4556
        %4673 = vadd.xlane.f32.xlu0 %v4672
        %v4674 = vpop.xlane.xlu0 %4673
        %v4675 = vadd.f32 %v4558, %v4560
        %4676 = vadd.xlane.f32.xlu0 %v4675
        %v4677 = vpop.xlane.xlu0 %4676
        %v4678 = vadd.f32 %v4562, %v4564
        %4679 = vadd.xlane.f32.xlu0 %v4678
        %v4680 = vpop.xlane.xlu0 %4679
        %v4681 = vadd.f32 %v4566, %v4568
        %4682 = vadd.xlane.f32.xlu0 %v4681
        %v4683 = vpop.xlane.xlu0 %4682
        %v4684 = vadd.f32 %v4570, %v4572
        %4685 = vadd.xlane.f32.xlu0 %v4684
        %v4686 = vpop.xlane.xlu0 %4685
        %v4687 = vadd.f32 %v4574, %v4576
        %4688 = vadd.xlane.f32.xlu0 %v4687
        %v4689 = vpop.xlane.xlu0 %4688
        %v4690 = vadd.f32 %v4578, %v4580
        %4691 = vadd.xlane.f32.xlu0 %v4690
        %v4692 = vpop.xlane.xlu0 %4691
        %v4693 = vadd.f32 %v4582, %v4584
        %4694 = vadd.xlane.f32.xlu0 %v4693
        %v4695 = vpop.xlane.xlu0 %4694
        %v4696 = vadd.f32 %v4586, %v4588
        %4697 = vadd.xlane.f32.xlu0 %v4696
        %v4698 = vpop.xlane.xlu0 %4697
        %v4699 = vadd.f32 %v4590, %v4592
        %4700 = vadd.xlane.f32.xlu0 %v4699
        %v4701 = vpop.xlane.xlu0 %4700
        %v4702 = vadd.f32 %v4594, %v4596
        %4703 = vadd.xlane.f32.xlu0 %v4702
        %v4704 = vpop.xlane.xlu0 %4703
        %v4705 = vadd.f32 %v4598, %v4600
        %4706 = vadd.xlane.f32.xlu0 %v4705
        %v4707 = vpop.xlane.xlu0 %4706
        %v4708 = vadd.f32 %v4602, %v4604
        %4709 = vadd.xlane.f32.xlu0 %v4708
        %v4710 = vpop.xlane.xlu0 %4709
        %v4711 = vadd.f32 %v4606, %v4608
        %4712 = vadd.xlane.f32.xlu0 %v4711
        %v4713 = vpop.xlane.xlu0 %4712
        %v4714 = vadd.f32 %v4610, %v4612
        %4715 = vadd.xlane.f32.xlu0 %v4714
        %v4716 = vpop.xlane.xlu0 %4715
        %v4717 = vadd.f32 %v4614, %v4616
        %4718 = vadd.xlane.f32.xlu0 %v4717
        %v4719 = vpop.xlane.xlu0 %4718
        %v4720 = vadd.f32 %v4618, %v4620
        %4721 = vadd.xlane.f32.xlu0 %v4720
        %v4722 = vpop.xlane.xlu0 %4721
        %v4723 = vadd.f32 %v4622, %v4624
        %4724 = vadd.xlane.f32.xlu0 %v4723
        %v4725 = vpop.xlane.xlu0 %4724
        %v4726 = vadd.f32 %v4626, %v4628
        %4727 = vadd.xlane.f32.xlu0 %v4726
        %v4728 = vpop.xlane.xlu0 %4727
        %v4729 = vadd.f32 %v4630, %v4632
        %4730 = vadd.xlane.f32.xlu0 %v4729
        %v4731 = vpop.xlane.xlu0 %4730
        %v4732 = vadd.f32 %v4634, %v4636
        %4733 = vadd.xlane.f32.xlu0 %v4732
        %v4734 = vpop.xlane.xlu0 %4733
        %v4735 = vadd.f32 %v4638, %v4640
        %4736 = vadd.xlane.f32.xlu0 %v4735
        %v4737 = vpop.xlane.xlu0 %4736
        %v4738 = vadd.f32 %v4642, %v4644
        %4739 = vadd.xlane.f32.xlu0 %v4738
        %v4740 = vpop.xlane.xlu0 %4739
        %v4741 = vrcp.pop %v4647
        %v4742 = vrcp.pop %v4650
        %v4743 = vrcp.pop %v4653
        %v4744 = vrcp.pop %v4656
        %v4745 = vrcp.pop %v4659
        %v4746 = vrcp.pop %v4662
        %v4747 = vrcp.pop %v4665
        %v4748 = vrcp.pop %v4668
        %v4749 = vrcp.pop %v4671
        %v4750 = vrcp.pop %v4674
        %v4751 = vrcp.pop %v4677
        %v4752 = vrcp.pop %v4680
        %v4753 = vrcp.pop %v4683
        %v4754 = vrcp.pop %v4686
        %v4755 = vrcp.pop %v4689
        %v4756 = vrcp.pop %v4692
        %v4757 = vrcp.pop %v4695
        %v4758 = vrcp.pop %v4698
        %v4759 = vrcp.pop %v4701
        %v4760 = vrcp.pop %v4704
        %v4761 = vrcp.pop %v4707
        %v4762 = vrcp.pop %v4710
        %v4763 = vrcp.pop %v4713
        %v4764 = vrcp.pop %v4716
        %v4765 = vrcp.pop %v4719
        %v4766 = vrcp.pop %v4722
        %v4767 = vrcp.pop %v4725
        %v4768 = vrcp.pop %v4728
        %v4769 = vrcp.pop %v4731
        %v4770 = vrcp.pop %v4734
        %v4771 = vrcp.pop %v4737
        %v4772 = vrcp.pop %v4740
        %v4773 = vmul.f32 %v4518, %v4741
        %v4774 = vmul.f32 %v4520, %v4741
        %v4775 = vmul.f32 %v4522, %v4742
        %v4776 = vmul.f32 %v4524, %v4742
        %v4777 = vmul.f32 %v4526, %v4743
        %v4778 = vmul.f32 %v4528, %v4743
        %v4779 = vmul.f32 %v4530, %v4744
        %v4780 = vmul.f32 %v4532, %v4744
        %v4781 = vmul.f32 %v4534, %v4745
        %v4782 = vmul.f32 %v4536, %v4745
        %v4783 = vmul.f32 %v4538, %v4746
        %v4784 = vmul.f32 %v4540, %v4746
        %v4785 = vmul.f32 %v4542, %v4747
        %v4786 = vmul.f32 %v4544, %v4747
        %v4787 = vmul.f32 %v4546, %v4748
        %v4788 = vmul.f32 %v4548, %v4748
        %v4789 = vmul.f32 %v4550, %v4749
        %v4790 = vmul.f32 %v4552, %v4749
        %v4791 = vmul.f32 %v4554, %v4750
        %v4792 = vmul.f32 %v4556, %v4750
        %v4793 = vmul.f32 %v4558, %v4751
        %v4794 = vmul.f32 %v4560, %v4751
        %v4795 = vmul.f32 %v4562, %v4752
        %v4796 = vmul.f32 %v4564, %v4752
        %v4797 = vmul.f32 %v4566, %v4753
        %v4798 = vmul.f32 %v4568, %v4753
        %v4799 = vmul.f32 %v4570, %v4754
        %v4800 = vmul.f32 %v4572, %v4754
        %v4801 = vmul.f32 %v4574, %v4755
        %v4802 = vmul.f32 %v4576, %v4755
        %v4803 = vmul.f32 %v4578, %v4756
        %v4804 = vmul.f32 %v4580, %v4756
        %v4805 = vmul.f32 %v4582, %v4757
        %v4806 = vmul.f32 %v4584, %v4757
        %v4807 = vmul.f32 %v4586, %v4758
        %v4808 = vmul.f32 %v4588, %v4758
        %v4809 = vmul.f32 %v4590, %v4759
        %v4810 = vmul.f32 %v4592, %v4759
        %v4811 = vmul.f32 %v4594, %v4760
        %v4812 = vmul.f32 %v4596, %v4760
        %v4813 = vmul.f32 %v4598, %v4761
        %v4814 = vmul.f32 %v4600, %v4761
        %v4815 = vmul.f32 %v4602, %v4762
        %v4816 = vmul.f32 %v4604, %v4762
        %v4817 = vmul.f32 %v4606, %v4763
        %v4818 = vmul.f32 %v4608, %v4763
        %v4819 = vmul.f32 %v4610, %v4764
        %v4820 = vmul.f32 %v4612, %v4764
        %v4821 = vmul.f32 %v4614, %v4765
        %v4822 = vmul.f32 %v4616, %v4765
        %v4823 = vmul.f32 %v4618, %v4766
        %v4824 = vmul.f32 %v4620, %v4766
        %v4825 = vmul.f32 %v4622, %v4767
        %v4826 = vmul.f32 %v4624, %v4767
        %v4827 = vmul.f32 %v4626, %v4768
        %v4828 = vmul.f32 %v4628, %v4768
        %v4829 = vmul.f32 %v4630, %v4769
        %v4830 = vmul.f32 %v4632, %v4769
        %v4831 = vmul.f32 %v4634, %v4770
        %v4832 = vmul.f32 %v4636, %v4770
        %v4833 = vmul.f32 %v4638, %v4771
        %v4834 = vmul.f32 %v4640, %v4771
        %v4835 = vmul.f32 %v4642, %v4772
        %v4836 = vmul.f32 %v4644, %v4772
        %v4837 = vpack.c.bf16 %v4775, %v4773
        %v4838 = vpack.c.bf16 %v4776, %v4774
        %v4839 = vpack.c.bf16 %v4779, %v4777
        %v4840 = vpack.c.bf16 %v4780, %v4778
        %v4841 = vpack.c.bf16 %v4783, %v4781
        %v4842 = vpack.c.bf16 %v4784, %v4782
        %v4843 = vpack.c.bf16 %v4787, %v4785
        %v4844 = vpack.c.bf16 %v4788, %v4786
        %v4845 = vpack.c.bf16 %v4791, %v4789
        %v4846 = vpack.c.bf16 %v4792, %v4790
        %v4847 = vpack.c.bf16 %v4795, %v4793
        %v4848 = vpack.c.bf16 %v4796, %v4794
        %v4849 = vpack.c.bf16 %v4799, %v4797
        %v4850 = vpack.c.bf16 %v4800, %v4798
        %v4851 = vpack.c.bf16 %v4803, %v4801
        %v4852 = vpack.c.bf16 %v4804, %v4802
        %v4853 = vpack.c.bf16 %v4807, %v4805
        %v4854 = vpack.c.bf16 %v4808, %v4806
        %v4855 = vpack.c.bf16 %v4811, %v4809
        %v4856 = vpack.c.bf16 %v4812, %v4810
        %v4857 = vpack.c.bf16 %v4815, %v4813
        %v4858 = vpack.c.bf16 %v4816, %v4814
        %v4859 = vpack.c.bf16 %v4819, %v4817
        %v4860 = vpack.c.bf16 %v4820, %v4818
        %v4861 = vpack.c.bf16 %v4823, %v4821
        %v4862 = vpack.c.bf16 %v4824, %v4822
        %v4863 = vpack.c.bf16 %v4827, %v4825
        %v4864 = vpack.c.bf16 %v4828, %v4826
        %v4865 = vpack.c.bf16 %v4831, %v4829
        %v4866 = vpack.c.bf16 %v4832, %v4830
        %v4867 = vpack.c.bf16 %v4835, %v4833
        %v4868 = vpack.c.bf16 %v4836, %v4834
        %4869 = vrot.lane.b32.xlu0 %v781, 40
        %v4870 = vpop.permute.xlu0 %4869
        %4871 = vrot.lane.b32.xlu0 %v782, 40
        %v4872 = vpop.permute.xlu0 %4871
        %4873 = vrot.lane.b32.xlu0 %v783, 40
        %v4874 = vpop.permute.xlu0 %4873
        %4875 = vrot.lane.b32.xlu0 %v784, 40
        %v4876 = vpop.permute.xlu0 %4875
        %4877 = vrot.lane.b32.xlu0 %v785, 40
        %v4878 = vpop.permute.xlu0 %4877
        %4879 = vrot.lane.b32.xlu0 %v786, 40
        %v4880 = vpop.permute.xlu0 %4879
        %4881 = vrot.lane.b32.xlu0 %v787, 40
        %v4882 = vpop.permute.xlu0 %4881
        %4883 = vrot.lane.b32.xlu0 %v788, 40
        %v4884 = vpop.permute.xlu0 %4883
        %4885 = vrot.lane.b32.xlu0 %v789, 40
        %v4886 = vpop.permute.xlu0 %4885
        %4887 = vrot.lane.b32.xlu0 %v790, 40
        %v4888 = vpop.permute.xlu0 %4887
        %4889 = vrot.lane.b32.xlu0 %v791, 40
        %v4890 = vpop.permute.xlu0 %4889
        %4891 = vrot.lane.b32.xlu0 %v792, 40
        %v4892 = vpop.permute.xlu0 %4891
        %4893 = vrot.lane.b32.xlu0 %v793, 40
        %v4894 = vpop.permute.xlu0 %4893
        %4895 = vrot.lane.b32.xlu0 %v794, 40
        %v4896 = vpop.permute.xlu0 %4895
        %4897 = vrot.lane.b32.xlu0 %v795, 40
        %v4898 = vpop.permute.xlu0 %4897
        %4899 = vrot.lane.b32.xlu0 %v796, 40
        %v4900 = vpop.permute.xlu0 %4899
        %4917 = vmatprep.subr.bf16.mxu0 0
        %4918 = vmatpush1.bf16.msra.mxu0 %v4870
        %4919 = vmatprep.subr.bf16.mxu0 0
        %4920 = vmatpush1.bf16.msra.mxu0 %v4872
        %4921 = vmatprep.subr.bf16.mxu0 0
        %4922 = vmatpush1.bf16.msra.mxu0 %v4874
        %4923 = vmatprep.subr.bf16.mxu0 0
        %4924 = vmatpush1.bf16.msra.mxu0 %v4876
        %4925 = vmatprep.subr.bf16.mxu0 0
        %4926 = vmatpush1.bf16.msra.mxu0 %v4878
        %4927 = vmatprep.subr.bf16.mxu0 0
        %4928 = vmatpush1.bf16.msra.mxu0 %v4880
        %4929 = vmatprep.subr.bf16.mxu0 0
        %4930 = vmatpush1.bf16.msra.mxu0 %v4882
        %4931 = vmatprep.subr.bf16.mxu0 0
        %4932 = vmatpush1.bf16.msra.mxu0 %v4884
        %4933 = vmatprep.subr.bf16.mxu0 0
        %4934 = vmatpush1.bf16.msra.mxu0 %v4886
        %4935 = vmatprep.subr.bf16.mxu0 0
        %4936 = vmatpush1.bf16.msra.mxu0 %v4888
        %4937 = vmatprep.subr.bf16.mxu0 0
        %4938 = vmatpush1.bf16.msra.mxu0 %v4890
        %4939 = vmatprep.subr.bf16.mxu0 0
        %4940 = vmatpush1.bf16.msra.mxu0 %v4892
        %4941 = vmatprep.subr.bf16.mxu0 0
        %4942 = vmatpush1.bf16.msra.mxu0 %v4894
        %4943 = vmatprep.subr.bf16.mxu0 0
        %4944 = vmatpush1.bf16.msra.mxu0 %v4896
        %4945 = vmatprep.subr.bf16.mxu0 0
        %4946 = vmatpush1.bf16.msra.mxu0 %v4898
        %4947 = vmatprep.subr.bf16.mxu0 0
        %4948 = vmatpush1.bf16.msra.mxu0 %v4900
        %4949 = vmatprep.mubr.bf16.mxu0 %v4838
        %4950 = vmatmul.mubr.bf16.gmra.mrb[0].mxu0 %v4837
        %v4951 = vpop.f32.mrb[0].mxu0
        %v4952 = vadd.f32 0.0, %v4951
        %v4953 = vpop.f32.mrb[0].mxu0
        %v4954 = vpop.f32.mrb[0].mxu0
        %v4955 = vadd.f32 0.0, %v4954
        %v4956 = vpop.f32.mrb[0].mxu0
        %4957 = vmatprep.mubr.bf16.mxu0 %v4840
        %4958 = vmatmul.mubr.bf16.gmra.mrb[0].mxu0 %v4839
        %v4959 = vpop.f32.mrb[0].mxu0
        %v4960 = vadd.f32 0.0, %v4959
        %v4961 = vpop.f32.mrb[0].mxu0
        %v4962 = vpop.f32.mrb[0].mxu0
        %v4963 = vadd.f32 0.0, %v4962
        %v4964 = vpop.f32.mrb[0].mxu0
        %4965 = vmatprep.mubr.bf16.mxu0 %v4842
        %4966 = vmatmul.mubr.bf16.gmra.mrb[0].mxu0 %v4841
        %v4967 = vpop.f32.mrb[0].mxu0
        %v4968 = vadd.f32 0.0, %v4967
        %v4969 = vpop.f32.mrb[0].mxu0
        %v4970 = vpop.f32.mrb[0].mxu0
        %v4971 = vadd.f32 0.0, %v4970
        %v4972 = vpop.f32.mrb[0].mxu0
        %4973 = vmatprep.mubr.bf16.mxu0 %v4844
        %4974 = vmatmul.mubr.bf16.gmra.mrb[0].mxu0 %v4843
        %v4975 = vpop.f32.mrb[0].mxu0
        %v4976 = vadd.f32 0.0, %v4975
        %v4977 = vpop.f32.mrb[0].mxu0
        %v4978 = vpop.f32.mrb[0].mxu0
        %v4979 = vadd.f32 0.0, %v4978
        %v4980 = vpop.f32.mrb[0].mxu0
        %4981 = vmatprep.mubr.bf16.mxu0 %v4846
        %4982 = vmatmul.mubr.bf16.gmra.mrb[0].mxu0 %v4845
        %v4983 = vpop.f32.mrb[0].mxu0
        %v4984 = vadd.f32 0.0, %v4983
        %v4985 = vpop.f32.mrb[0].mxu0
        %v4986 = vpop.f32.mrb[0].mxu0
        %v4987 = vadd.f32 0.0, %v4986
        %v4988 = vpop.f32.mrb[0].mxu0
        %4989 = vmatprep.mubr.bf16.mxu0 %v4848
        %4990 = vmatmul.mubr.bf16.gmra.mrb[0].mxu0 %v4847
        %v4991 = vpop.f32.mrb[0].mxu0
        %v4992 = vadd.f32 0.0, %v4991
        %v4993 = vpop.f32.mrb[0].mxu0
        %v4994 = vpop.f32.mrb[0].mxu0
        %v4995 = vadd.f32 0.0, %v4994
        %v4996 = vpop.f32.mrb[0].mxu0
        %4997 = vmatprep.mubr.bf16.mxu0 %v4850
        %4998 = vmatmul.mubr.bf16.gmra.mrb[0].mxu0 %v4849
        %v4999 = vpop.f32.mrb[0].mxu0
        %v5000 = vadd.f32 0.0, %v4999
        %v5001 = vpop.f32.mrb[0].mxu0
        %v5002 = vpop.f32.mrb[0].mxu0
        %v5003 = vadd.f32 0.0, %v5002
        %v5004 = vpop.f32.mrb[0].mxu0
        %5005 = vmatprep.mubr.bf16.mxu0 %v4852
        %5006 = vmatmul.mubr.bf16.gmra.mrb[0].mxu0 %v4851
        %v5007 = vpop.f32.mrb[0].mxu0
        %v5008 = vadd.f32 0.0, %v5007
        %v5009 = vpop.f32.mrb[0].mxu0
        %v5010 = vpop.f32.mrb[0].mxu0
        %v5011 = vadd.f32 0.0, %v5010
        %v5012 = vpop.f32.mrb[0].mxu0
        %5013 = vmatprep.mubr.bf16.mxu0 %v4854
        %5014 = vmatmul.mubr.bf16.gmra.mrb[0].mxu0 %v4853
        %v5015 = vpop.f32.mrb[0].mxu0
        %v5016 = vadd.f32 0.0, %v5015
        %v5017 = vpop.f32.mrb[0].mxu0
        %v5018 = vpop.f32.mrb[0].mxu0
        %v5019 = vadd.f32 0.0, %v5018
        %v5020 = vpop.f32.mrb[0].mxu0
        %5021 = vmatprep.mubr.bf16.mxu0 %v4856
        %5022 = vmatmul.mubr.bf16.gmra.mrb[0].mxu0 %v4855
        %v5023 = vpop.f32.mrb[0].mxu0
        %v5024 = vadd.f32 0.0, %v5023
        %v5025 = vpop.f32.mrb[0].mxu0
        %v5026 = vpop.f32.mrb[0].mxu0
        %v5027 = vadd.f32 0.0, %v5026
        %v5028 = vpop.f32.mrb[0].mxu0
        %5029 = vmatprep.mubr.bf16.mxu0 %v4858
        %5030 = vmatmul.mubr.bf16.gmra.mrb[0].mxu0 %v4857
        %v5031 = vpop.f32.mrb[0].mxu0
        %v5032 = vadd.f32 0.0, %v5031
        %v5033 = vpop.f32.mrb[0].mxu0
        %v5034 = vpop.f32.mrb[0].mxu0
        %v5035 = vadd.f32 0.0, %v5034
        %v5036 = vpop.f32.mrb[0].mxu0
        %5037 = vmatprep.mubr.bf16.mxu0 %v4860
        %5038 = vmatmul.mubr.bf16.gmra.mrb[0].mxu0 %v4859
        %v5039 = vpop.f32.mrb[0].mxu0
        %v5040 = vadd.f32 0.0, %v5039
        %v5041 = vpop.f32.mrb[0].mxu0
        %v5042 = vpop.f32.mrb[0].mxu0
        %v5043 = vadd.f32 0.0, %v5042
        %v5044 = vpop.f32.mrb[0].mxu0
        %5045 = vmatprep.mubr.bf16.mxu0 %v4862
        %5046 = vmatmul.mubr.bf16.gmra.mrb[0].mxu0 %v4861
        %v5047 = vpop.f32.mrb[0].mxu0
        %v5048 = vadd.f32 0.0, %v5047
        %v5049 = vpop.f32.mrb[0].mxu0
        %v5050 = vpop.f32.mrb[0].mxu0
        %v5051 = vadd.f32 0.0, %v5050
        %v5052 = vpop.f32.mrb[0].mxu0
        %5053 = vmatprep.mubr.bf16.mxu0 %v4864
        %5054 = vmatmul.mubr.bf16.gmra.mrb[0].mxu0 %v4863
        %v5055 = vpop.f32.mrb[0].mxu0
        %v5056 = vadd.f32 0.0, %v5055
        %v5057 = vpop.f32.mrb[0].mxu0
        %v5058 = vpop.f32.mrb[0].mxu0
        %v5059 = vadd.f32 0.0, %v5058
        %v5060 = vpop.f32.mrb[0].mxu0
        %5061 = vmatprep.mubr.bf16.mxu0 %v4866
        %5062 = vmatmul.mubr.bf16.gmra.mrb[0].mxu0 %v4865
        %v5063 = vpop.f32.mrb[0].mxu0
        %v5064 = vadd.f32 0.0, %v5063
        %v5065 = vpop.f32.mrb[0].mxu0
        %v5066 = vpop.f32.mrb[0].mxu0
        %v5067 = vadd.f32 0.0, %v5066
        %v5068 = vpop.f32.mrb[0].mxu0
        %5069 = vmatprep.mubr.bf16.mxu0 %v4868
        %5070 = vmatmul.mubr.bf16.gmra.mrb[0].mxu0 %v4867
        %v5071 = vpop.f32.mrb[0].mxu0
        %v5072 = vadd.f32 0.0, %v5071
        %v5073 = vpop.f32.mrb[0].mxu0
        %v5074 = vpop.f32.mrb[0].mxu0
        %v5075 = vadd.f32 0.0, %v5074
        %v5076 = vpop.f32.mrb[0].mxu0
        %5077 = vdwg.mxu0
        %5110 = vrot.lane.b32.xlu0 %v2804, 8
        %v5111 = vpop.permute.xlu0 %5110
        %5112 = vrot.lane.b32.xlu0 %v2807, 8
        %v5113 = vpop.permute.xlu0 %5112
        %5114 = vrot.lane.b32.xlu0 %v2812, 8
        %v5115 = vpop.permute.xlu0 %5114
        %5116 = vrot.lane.b32.xlu0 %v2815, 8
        %v5117 = vpop.permute.xlu0 %5116
        %5118 = vrot.lane.b32.xlu0 %v2820, 8
        %v5119 = vpop.permute.xlu0 %5118
        %5120 = vrot.lane.b32.xlu0 %v2823, 8
        %v5121 = vpop.permute.xlu0 %5120
        %5122 = vrot.lane.b32.xlu0 %v2828, 8
        %v5123 = vpop.permute.xlu0 %5122
        %5124 = vrot.lane.b32.xlu0 %v2831, 8
        %v5125 = vpop.permute.xlu0 %5124
        %5126 = vrot.lane.b32.xlu0 %v2836, 8
        %v5127 = vpop.permute.xlu0 %5126
        %5128 = vrot.lane.b32.xlu0 %v2839, 8
        %v5129 = vpop.permute.xlu0 %5128
        %5130 = vrot.lane.b32.xlu0 %v2844, 8
        %v5131 = vpop.permute.xlu0 %5130
        %5132 = vrot.lane.b32.xlu0 %v2847, 8
        %v5133 = vpop.permute.xlu0 %5132
        %5134 = vrot.lane.b32.xlu0 %v2852, 8
        %v5135 = vpop.permute.xlu0 %5134
        %5136 = vrot.lane.b32.xlu0 %v2855, 8
        %v5137 = vpop.permute.xlu0 %5136
        %5138 = vrot.lane.b32.xlu0 %v2860, 8
        %v5139 = vpop.permute.xlu0 %5138
        %5140 = vrot.lane.b32.xlu0 %v2863, 8
        %v5141 = vpop.permute.xlu0 %5140
        %5142 = vrot.lane.b32.xlu0 %v2868, 8
        %v5143 = vpop.permute.xlu0 %5142
        %5144 = vrot.lane.b32.xlu0 %v2871, 8
        %v5145 = vpop.permute.xlu0 %5144
        %5146 = vrot.lane.b32.xlu0 %v2876, 8
        %v5147 = vpop.permute.xlu0 %5146
        %5148 = vrot.lane.b32.xlu0 %v2879, 8
        %v5149 = vpop.permute.xlu0 %5148
        %5150 = vrot.lane.b32.xlu0 %v2884, 8
        %v5151 = vpop.permute.xlu0 %5150
        %5152 = vrot.lane.b32.xlu0 %v2887, 8
        %v5153 = vpop.permute.xlu0 %5152
        %5154 = vrot.lane.b32.xlu0 %v2892, 8
        %v5155 = vpop.permute.xlu0 %5154
        %5156 = vrot.lane.b32.xlu0 %v2895, 8
        %v5157 = vpop.permute.xlu0 %5156
        %5158 = vrot.lane.b32.xlu0 %v2900, 8
        %v5159 = vpop.permute.xlu0 %5158
        %5160 = vrot.lane.b32.xlu0 %v2903, 8
        %v5161 = vpop.permute.xlu0 %5160
        %5162 = vrot.lane.b32.xlu0 %v2908, 8
        %v5163 = vpop.permute.xlu0 %5162
        %5164 = vrot.lane.b32.xlu0 %v2911, 8
        %v5165 = vpop.permute.xlu0 %5164
        %5166 = vrot.lane.b32.xlu0 %v2916, 8
        %v5167 = vpop.permute.xlu0 %5166
        %5168 = vrot.lane.b32.xlu0 %v2919, 8
        %v5169 = vpop.permute.xlu0 %5168
        %5170 = vrot.lane.b32.xlu0 %v2924, 8
        %v5171 = vpop.permute.xlu0 %5170
        %5172 = vrot.lane.b32.xlu0 %v2927, 8
        %v5173 = vpop.permute.xlu0 %5172
        %5238 = vrot.lane.b32.xlu0 %v3878, 16
        %v5239 = vpop.permute.xlu0 %5238
        %5240 = vrot.lane.b32.xlu0 %v3881, 16
        %v5241 = vpop.permute.xlu0 %5240
        %5242 = vrot.lane.b32.xlu0 %v3886, 16
        %v5243 = vpop.permute.xlu0 %5242
        %5244 = vrot.lane.b32.xlu0 %v3889, 16
        %v5245 = vpop.permute.xlu0 %5244
        %5246 = vrot.lane.b32.xlu0 %v3894, 16
        %v5247 = vpop.permute.xlu0 %5246
        %5248 = vrot.lane.b32.xlu0 %v3897, 16
        %v5249 = vpop.permute.xlu0 %5248
        %5250 = vrot.lane.b32.xlu0 %v3902, 16
        %v5251 = vpop.permute.xlu0 %5250
        %5252 = vrot.lane.b32.xlu0 %v3905, 16
        %v5253 = vpop.permute.xlu0 %5252
        %5254 = vrot.lane.b32.xlu0 %v3910, 16
        %v5255 = vpop.permute.xlu0 %5254
        %5256 = vrot.lane.b32.xlu0 %v3913, 16
        %v5257 = vpop.permute.xlu0 %5256
        %5258 = vrot.lane.b32.xlu0 %v3918, 16
        %v5259 = vpop.permute.xlu0 %5258
        %5260 = vrot.lane.b32.xlu0 %v3921, 16
        %v5261 = vpop.permute.xlu0 %5260
        %5262 = vrot.lane.b32.xlu0 %v3926, 16
        %v5263 = vpop.permute.xlu0 %5262
        %5264 = vrot.lane.b32.xlu0 %v3929, 16
        %v5265 = vpop.permute.xlu0 %5264
        %5266 = vrot.lane.b32.xlu0 %v3934, 16
        %v5267 = vpop.permute.xlu0 %5266
        %5268 = vrot.lane.b32.xlu0 %v3937, 16
        %v5269 = vpop.permute.xlu0 %5268
        %5270 = vrot.lane.b32.xlu0 %v3942, 16
        %v5271 = vpop.permute.xlu0 %5270
        %5272 = vrot.lane.b32.xlu0 %v3945, 16
        %v5273 = vpop.permute.xlu0 %5272
        %5274 = vrot.lane.b32.xlu0 %v3950, 16
        %v5275 = vpop.permute.xlu0 %5274
        %5276 = vrot.lane.b32.xlu0 %v3953, 16
        %v5277 = vpop.permute.xlu0 %5276
        %5278 = vrot.lane.b32.xlu0 %v3958, 16
        %v5279 = vpop.permute.xlu0 %5278
        %5280 = vrot.lane.b32.xlu0 %v3961, 16
        %v5281 = vpop.permute.xlu0 %5280
        %5282 = vrot.lane.b32.xlu0 %v3966, 16
        %v5283 = vpop.permute.xlu0 %5282
        %5284 = vrot.lane.b32.xlu0 %v3969, 16
        %v5285 = vpop.permute.xlu0 %5284
        %5286 = vrot.lane.b32.xlu0 %v3974, 16
        %v5287 = vpop.permute.xlu0 %5286
        %5288 = vrot.lane.b32.xlu0 %v3977, 16
        %v5289 = vpop.permute.xlu0 %5288
        %5290 = vrot.lane.b32.xlu0 %v3982, 16
        %v5291 = vpop.permute.xlu0 %5290
        %5292 = vrot.lane.b32.xlu0 %v3985, 16
        %v5293 = vpop.permute.xlu0 %5292
        %5294 = vrot.lane.b32.xlu0 %v3990, 16
        %v5295 = vpop.permute.xlu0 %5294
        %5296 = vrot.lane.b32.xlu0 %v3993, 16
        %v5297 = vpop.permute.xlu0 %5296
        %5298 = vrot.lane.b32.xlu0 %v3998, 16
        %v5299 = vpop.permute.xlu0 %5298
        %5300 = vrot.lane.b32.xlu0 %v4001, 16
        %v5301 = vpop.permute.xlu0 %5300
        %5366 = vrot.lane.b32.xlu0 %v4952, 24
        %v5367 = vpop.permute.xlu0 %5366
        %5368 = vrot.lane.b32.xlu0 %v4955, 24
        %v5369 = vpop.permute.xlu0 %5368
        %5370 = vrot.lane.b32.xlu0 %v4960, 24
        %v5371 = vpop.permute.xlu0 %5370
        %5372 = vrot.lane.b32.xlu0 %v4963, 24
        %v5373 = vpop.permute.xlu0 %5372
        %5374 = vrot.lane.b32.xlu0 %v4968, 24
        %v5375 = vpop.permute.xlu0 %5374
        %5376 = vrot.lane.b32.xlu0 %v4971, 24
        %v5377 = vpop.permute.xlu0 %5376
        %5378 = vrot.lane.b32.xlu0 %v4976, 24
        %v5379 = vpop.permute.xlu0 %5378
        %5380 = vrot.lane.b32.xlu0 %v4979, 24
        %v5381 = vpop.permute.xlu0 %5380
        %5382 = vrot.lane.b32.xlu0 %v4984, 24
        %v5383 = vpop.permute.xlu0 %5382
        %5384 = vrot.lane.b32.xlu0 %v4987, 24
        %v5385 = vpop.permute.xlu0 %5384
        %5386 = vrot.lane.b32.xlu0 %v4992, 24
        %v5387 = vpop.permute.xlu0 %5386
        %5388 = vrot.lane.b32.xlu0 %v4995, 24
        %v5389 = vpop.permute.xlu0 %5388
        %5390 = vrot.lane.b32.xlu0 %v5000, 24
        %v5391 = vpop.permute.xlu0 %5390
        %5392 = vrot.lane.b32.xlu0 %v5003, 24
        %v5393 = vpop.permute.xlu0 %5392
        %5394 = vrot.lane.b32.xlu0 %v5008, 24
        %v5395 = vpop.permute.xlu0 %5394
        %5396 = vrot.lane.b32.xlu0 %v5011, 24
        %v5397 = vpop.permute.xlu0 %5396
        %5398 = vrot.lane.b32.xlu0 %v5016, 24
        %v5399 = vpop.permute.xlu0 %5398
        %5400 = vrot.lane.b32.xlu0 %v5019, 24
        %v5401 = vpop.permute.xlu0 %5400
        %5402 = vrot.lane.b32.xlu0 %v5024, 24
        %v5403 = vpop.permute.xlu0 %5402
        %5404 = vrot.lane.b32.xlu0 %v5027, 24
        %v5405 = vpop.permute.xlu0 %5404
        %5406 = vrot.lane.b32.xlu0 %v5032, 24
        %v5407 = vpop.permute.xlu0 %5406
        %5408 = vrot.lane.b32.xlu0 %v5035, 24
        %v5409 = vpop.permute.xlu0 %5408
        %5410 = vrot.lane.b32.xlu0 %v5040, 24
        %v5411 = vpop.permute.xlu0 %5410
        %5412 = vrot.lane.b32.xlu0 %v5043, 24
        %v5413 = vpop.permute.xlu0 %5412
        %5414 = vrot.lane.b32.xlu0 %v5048, 24
        %v5415 = vpop.permute.xlu0 %5414
        %5416 = vrot.lane.b32.xlu0 %v5051, 24
        %v5417 = vpop.permute.xlu0 %5416
        %5418 = vrot.lane.b32.xlu0 %v5056, 24
        %v5419 = vpop.permute.xlu0 %5418
        %5420 = vrot.lane.b32.xlu0 %v5059, 24
        %v5421 = vpop.permute.xlu0 %5420
        %5422 = vrot.lane.b32.xlu0 %v5064, 24
        %v5423 = vpop.permute.xlu0 %5422
        %5424 = vrot.lane.b32.xlu0 %v5067, 24
        %v5425 = vpop.permute.xlu0 %5424
        %5426 = vrot.lane.b32.xlu0 %v5072, 24
        %v5427 = vpop.permute.xlu0 %5426
        %5428 = vrot.lane.b32.xlu0 %v5075, 24
        %v5429 = vpop.permute.xlu0 %5428
        %v5462 = vsel %vm845, %v1730, %v5111
        %v5463 = vsel %vm845, %v1733, %v5113
        %v5464 = vsel %vm845, %v1738, %v5115
        %v5465 = vsel %vm845, %v1741, %v5117
        %v5466 = vsel %vm845, %v1746, %v5119
        %v5467 = vsel %vm845, %v1749, %v5121
        %v5468 = vsel %vm845, %v1754, %v5123
        %v5469 = vsel %vm845, %v1757, %v5125
        %v5470 = vsel %vm845, %v1762, %v5127
        %v5471 = vsel %vm845, %v1765, %v5129
        %v5472 = vsel %vm845, %v1770, %v5131
        %v5473 = vsel %vm845, %v1773, %v5133
        %v5474 = vsel %vm845, %v1778, %v5135
        %v5475 = vsel %vm845, %v1781, %v5137
        %v5476 = vsel %vm845, %v1786, %v5139
        %v5477 = vsel %vm845, %v1789, %v5141
        %v5478 = vsel %vm845, %v1794, %v5143
        %v5479 = vsel %vm845, %v1797, %v5145
        %v5480 = vsel %vm845, %v1802, %v5147
        %v5481 = vsel %vm845, %v1805, %v5149
        %v5482 = vsel %vm845, %v1810, %v5151
        %v5483 = vsel %vm845, %v1813, %v5153
        %v5484 = vsel %vm845, %v1818, %v5155
        %v5485 = vsel %vm845, %v1821, %v5157
        %v5486 = vsel %vm845, %v1826, %v5159
        %v5487 = vsel %vm845, %v1829, %v5161
        %v5488 = vsel %vm845, %v1834, %v5163
        %v5489 = vsel %vm845, %v1837, %v5165
        %v5490 = vsel %vm845, %v1842, %v5167
        %v5491 = vsel %vm845, %v1845, %v5169
        %v5492 = vsel %vm845, %v1850, %v5171
        %v5493 = vsel %vm845, %v1853, %v5173
        %vm5494 = vcmask 130048
        %v5495 = vsel %vm5494, %v5462, %v5239
        %v5496 = vsel %vm5494, %v5463, %v5241
        %v5497 = vsel %vm5494, %v5464, %v5243
        %v5498 = vsel %vm5494, %v5465, %v5245
        %v5499 = vsel %vm5494, %v5466, %v5247
        %v5500 = vsel %vm5494, %v5467, %v5249
        %v5501 = vsel %vm5494, %v5468, %v5251
        %v5502 = vsel %vm5494, %v5469, %v5253
        %v5503 = vsel %vm5494, %v5470, %v5255
        %v5504 = vsel %vm5494, %v5471, %v5257
        %v5505 = vsel %vm5494, %v5472, %v5259
        %v5506 = vsel %vm5494, %v5473, %v5261
        %v5507 = vsel %vm5494, %v5474, %v5263
        %v5508 = vsel %vm5494, %v5475, %v5265
        %v5509 = vsel %vm5494, %v5476, %v5267
        %v5510 = vsel %vm5494, %v5477, %v5269
        %v5511 = vsel %vm5494, %v5478, %v5271
        %v5512 = vsel %vm5494, %v5479, %v5273
        %v5513 = vsel %vm5494, %v5480, %v5275
        %v5514 = vsel %vm5494, %v5481, %v5277
        %v5515 = vsel %vm5494, %v5482, %v5279
        %v5516 = vsel %vm5494, %v5483, %v5281
        %v5517 = vsel %vm5494, %v5484, %v5283
        %v5518 = vsel %vm5494, %v5485, %v5285
        %v5519 = vsel %vm5494, %v5486, %v5287
        %v5520 = vsel %vm5494, %v5487, %v5289
        %v5521 = vsel %vm5494, %v5488, %v5291
        %v5522 = vsel %vm5494, %v5489, %v5293
        %v5523 = vsel %vm5494, %v5490, %v5295
        %v5524 = vsel %vm5494, %v5491, %v5297
        %v5525 = vsel %vm5494, %v5492, %v5299
        %v5526 = vsel %vm5494, %v5493, %v5301
        %vm5527 = vcmask 195584
        %v5528 = vsel %vm5527, %v5495, %v5367
        %v5529 = vsel %vm5527, %v5496, %v5369
        %v5530 = vsel %vm5527, %v5497, %v5371
        %v5531 = vsel %vm5527, %v5498, %v5373
        %v5532 = vsel %vm5527, %v5499, %v5375
        %v5533 = vsel %vm5527, %v5500, %v5377
        %v5534 = vsel %vm5527, %v5501, %v5379
        %v5535 = vsel %vm5527, %v5502, %v5381
        %v5536 = vsel %vm5527, %v5503, %v5383
        %v5537 = vsel %vm5527, %v5504, %v5385
        %v5538 = vsel %vm5527, %v5505, %v5387
        %v5539 = vsel %vm5527, %v5506, %v5389
        %v5540 = vsel %vm5527, %v5507, %v5391
        %v5541 = vsel %vm5527, %v5508, %v5393
        %v5542 = vsel %vm5527, %v5509, %v5395
        %v5543 = vsel %vm5527, %v5510, %v5397
        %v5544 = vsel %vm5527, %v5511, %v5399
        %v5545 = vsel %vm5527, %v5512, %v5401
        %v5546 = vsel %vm5527, %v5513, %v5403
        %v5547 = vsel %vm5527, %v5514, %v5405
        %v5548 = vsel %vm5527, %v5515, %v5407
        %v5549 = vsel %vm5527, %v5516, %v5409
        %v5550 = vsel %vm5527, %v5517, %v5411
        %v5551 = vsel %vm5527, %v5518, %v5413
        %v5552 = vsel %vm5527, %v5519, %v5415
        %v5553 = vsel %vm5527, %v5520, %v5417
        %v5554 = vsel %vm5527, %v5521, %v5419
        %v5555 = vsel %vm5527, %v5522, %v5421
        %v5556 = vsel %vm5527, %v5523, %v5423
        %v5557 = vsel %vm5527, %v5524, %v5425
        %v5558 = vsel %vm5527, %v5525, %v5427
        %v5559 = vsel %vm5527, %v5526, %v5429
        %v5560 = vpack.c.bf16 %v5529, %v5528
        %v5561 = vpack.c.bf16 %v5531, %v5530
        %v5562 = vpack.c.bf16 %v5533, %v5532
        %v5563 = vpack.c.bf16 %v5535, %v5534
        %v5564 = vpack.c.bf16 %v5537, %v5536
        %v5565 = vpack.c.bf16 %v5539, %v5538
        %v5566 = vpack.c.bf16 %v5541, %v5540
        %v5567 = vpack.c.bf16 %v5543, %v5542
        %v5568 = vpack.c.bf16 %v5545, %v5544
        %v5569 = vpack.c.bf16 %v5547, %v5546
        %v5570 = vpack.c.bf16 %v5549, %v5548
        %v5571 = vpack.c.bf16 %v5551, %v5550
        %v5572 = vpack.c.bf16 %v5553, %v5552
        %v5573 = vpack.c.bf16 %v5555, %v5554
        %v5574 = vpack.c.bf16 %v5557, %v5556
        %v5575 = vpack.c.bf16 %v5559, %v5558
        %v5576 = vld [vmem:[%s3] sm:$0xf]
        %v5577 = vld [vmem:[%s3 + $0x4] sm:$0xf]
        %v5578 = vld [vmem:[%s3 + $0x8] sm:$0xf]
        %v5579 = vld [vmem:[%s3 + $0xc] sm:$0xf]
        %v5580 = vld [vmem:[%s4] sm:$0x1]
        %v5582 = vlaneseq
        %v5583 = vshrl.u32 %v5582, 7
        %v5584 = vsub.s32 0, %v5583
        %v5585 = vrot.slane %v5580, %v5584
        %v5591 = vunpack.c.l.b16 %v5576
        %v5592 = vunpack.c.l.b16 %v5577
        %v5593 = vunpack.c.l.b16 %v5578
        %v5594 = vunpack.c.l.b16 %v5579
        %v5595 = vpack.c.b16 %v5592, %v5591
        %v5596 = vpack.c.b16 %v5594, %v5593
        %v5600 = vsel %vm571, %v5560, 0
        %v5603 = vsel %vm571, %v5561, 0
        %v5606 = vsel %vm571, %v5562, 0
        %v5609 = vsel %vm571, %v5563, 0
        %v5612 = vsel %vm571, %v5564, 0
        %v5615 = vsel %vm571, %v5565, 0
        %v5618 = vsel %vm571, %v5566, 0
        %v5621 = vsel %vm571, %v5567, 0
        %v5624 = vsel %vm571, %v5568, 0
        %v5627 = vsel %vm571, %v5569, 0
        %v5630 = vsel %vm571, %v5570, 0
        %v5633 = vsel %vm571, %v5571, 0
        %v5636 = vsel %vm571, %v5572, 0
        %v5639 = vsel %vm571, %v5573, 0
        %v5642 = vsel %vm571, %v5574, 0
        %v5645 = vsel %vm571, %v5575, 0
        %5647 = vmatprep.subr.bf16.mxu0 0
        %5648 = vmatpush1.bf16.msra.mxu0 %v5595
        %5649 = vmatprep.subr.bf16.mxu0 0
        %5650 = vmatpush1.bf16.msra.mxu0 %v5596
        %5651 = vmatprep.subr.bf16.mxu0 0
        %5652 = vmatpush1.bf16.msra.mxu0 0
        %5653 = vmatprep.subr.bf16.mxu0 0
        %5654 = vmatpush1.bf16.msra.mxu0 0
        %5655 = vmatprep.subr.bf16.mxu0 0
        %5656 = vmatpush1.bf16.msra.mxu0 0
        %5657 = vmatprep.subr.bf16.mxu0 0
        %5658 = vmatpush1.bf16.msra.mxu0 0
        %5659 = vmatprep.subr.bf16.mxu0 0
        %5660 = vmatpush1.bf16.msra.mxu0 0
        %5661 = vmatprep.subr.bf16.mxu0 0
        %5662 = vmatpush1.bf16.msra.mxu0 0
        %5663 = vmatprep.subr.bf16.mxu0 0
        %5664 = vmatpush1.bf16.msra.mxu0 0
        %5665 = vmatprep.subr.bf16.mxu0 0
        %5666 = vmatpush1.bf16.msra.mxu0 0
        %5667 = vmatprep.subr.bf16.mxu0 0
        %5668 = vmatpush1.bf16.msra.mxu0 0
        %5669 = vmatprep.subr.bf16.mxu0 0
        %5670 = vmatpush1.bf16.msra.mxu0 0
        %5671 = vmatprep.subr.bf16.mxu0 0
        %5672 = vmatpush1.bf16.msra.mxu0 0
        %5673 = vmatprep.subr.bf16.mxu0 0
        %5674 = vmatpush1.bf16.msra.mxu0 0
        %5675 = vmatprep.subr.bf16.mxu0 0
        %5676 = vmatpush1.bf16.msra.mxu0 0
        %5677 = vmatprep.subr.bf16.mxu0 0
        %5678 = vmatpush1.bf16.msra.mxu0 0
        %5679 = vmatprep.mubr.bf16.mxu0 0
        %5680 = vmatmul.mubr.bf16.gmra.mrb[0].mxu0 %v5600
        %v5681 = vpop.f32.mrb[0].mxu0
        %v5682 = vadd.f32 %v5585, %v5681
        %v5683 = vpop.f32.mrb[0].mxu0
        %v5684 = vpop.f32.mrb[0].mxu0
        %v5685 = vadd.f32 %v5585, %v5684
        %v5686 = vpop.f32.mrb[0].mxu0
        %5687 = vmatprep.mubr.bf16.mxu0 0
        %5688 = vmatmul.mubr.bf16.gmra.mrb[0].mxu0 %v5603
        %v5689 = vpop.f32.mrb[0].mxu0
        %v5690 = vadd.f32 %v5585, %v5689
        %v5691 = vpop.f32.mrb[0].mxu0
        %v5692 = vpop.f32.mrb[0].mxu0
        %v5693 = vadd.f32 %v5585, %v5692
        %v5694 = vpop.f32.mrb[0].mxu0
        %5695 = vmatprep.mubr.bf16.mxu0 0
        %5696 = vmatmul.mubr.bf16.gmra.mrb[0].mxu0 %v5606
        %v5697 = vpop.f32.mrb[0].mxu0
        %v5698 = vadd.f32 %v5585, %v5697
        %v5699 = vpop.f32.mrb[0].mxu0
        %v5700 = vpop.f32.mrb[0].mxu0
        %v5701 = vadd.f32 %v5585, %v5700
        %v5702 = vpop.f32.mrb[0].mxu0
        %5703 = vmatprep.mubr.bf16.mxu0 0
        %5704 = vmatmul.mubr.bf16.gmra.mrb[0].mxu0 %v5609
        %v5705 = vpop.f32.mrb[0].mxu0
        %v5706 = vadd.f32 %v5585, %v5705
        %v5707 = vpop.f32.mrb[0].mxu0
        %v5708 = vpop.f32.mrb[0].mxu0
        %v5709 = vadd.f32 %v5585, %v5708
        %v5710 = vpop.f32.mrb[0].mxu0
        %5711 = vmatprep.mubr.bf16.mxu0 0
        %5712 = vmatmul.mubr.bf16.gmra.mrb[0].mxu0 %v5612
        %v5713 = vpop.f32.mrb[0].mxu0
        %v5714 = vadd.f32 %v5585, %v5713
        %v5715 = vpop.f32.mrb[0].mxu0
        %v5716 = vpop.f32.mrb[0].mxu0
        %v5717 = vadd.f32 %v5585, %v5716
        %v5718 = vpop.f32.mrb[0].mxu0
        %5719 = vmatprep.mubr.bf16.mxu0 0
        %5720 = vmatmul.mubr.bf16.gmra.mrb[0].mxu0 %v5615
        %v5721 = vpop.f32.mrb[0].mxu0
        %v5722 = vadd.f32 %v5585, %v5721
        %v5723 = vpop.f32.mrb[0].mxu0
        %v5724 = vpop.f32.mrb[0].mxu0
        %v5725 = vadd.f32 %v5585, %v5724
        %v5726 = vpop.f32.mrb[0].mxu0
        %5727 = vmatprep.mubr.bf16.mxu0 0
        %5728 = vmatmul.mubr.bf16.gmra.mrb[0].mxu0 %v5618
        %v5729 = vpop.f32.mrb[0].mxu0
        %v5730 = vadd.f32 %v5585, %v5729
        %v5731 = vpop.f32.mrb[0].mxu0
        %v5732 = vpop.f32.mrb[0].mxu0
        %v5733 = vadd.f32 %v5585, %v5732
        %v5734 = vpop.f32.mrb[0].mxu0
        %5735 = vmatprep.mubr.bf16.mxu0 0
        %5736 = vmatmul.mubr.bf16.gmra.mrb[0].mxu0 %v5621
        %v5737 = vpop.f32.mrb[0].mxu0
        %v5738 = vadd.f32 %v5585, %v5737
        %v5739 = vpop.f32.mrb[0].mxu0
        %v5740 = vpop.f32.mrb[0].mxu0
        %v5741 = vadd.f32 %v5585, %v5740
        %v5742 = vpop.f32.mrb[0].mxu0
        %5743 = vmatprep.mubr.bf16.mxu0 0
        %5744 = vmatmul.mubr.bf16.gmra.mrb[0].mxu0 %v5624
        %v5745 = vpop.f32.mrb[0].mxu0
        %v5746 = vadd.f32 %v5585, %v5745
        %v5747 = vpop.f32.mrb[0].mxu0
        %v5748 = vpop.f32.mrb[0].mxu0
        %v5749 = vadd.f32 %v5585, %v5748
        %v5750 = vpop.f32.mrb[0].mxu0
        %5751 = vmatprep.mubr.bf16.mxu0 0
        %5752 = vmatmul.mubr.bf16.gmra.mrb[0].mxu0 %v5627
        %v5753 = vpop.f32.mrb[0].mxu0
        %v5754 = vadd.f32 %v5585, %v5753
        %v5755 = vpop.f32.mrb[0].mxu0
        %v5756 = vpop.f32.mrb[0].mxu0
        %v5757 = vadd.f32 %v5585, %v5756
        %v5758 = vpop.f32.mrb[0].mxu0
        %5759 = vmatprep.mubr.bf16.mxu0 0
        %5760 = vmatmul.mubr.bf16.gmra.mrb[0].mxu0 %v5630
        %v5761 = vpop.f32.mrb[0].mxu0
        %v5762 = vadd.f32 %v5585, %v5761
        %v5763 = vpop.f32.mrb[0].mxu0
        %v5764 = vpop.f32.mrb[0].mxu0
        %v5765 = vadd.f32 %v5585, %v5764
        %v5766 = vpop.f32.mrb[0].mxu0
        %5767 = vmatprep.mubr.bf16.mxu0 0
        %5768 = vmatmul.mubr.bf16.gmra.mrb[0].mxu0 %v5633
        %v5769 = vpop.f32.mrb[0].mxu0
        %v5770 = vadd.f32 %v5585, %v5769
        %v5771 = vpop.f32.mrb[0].mxu0
        %v5772 = vpop.f32.mrb[0].mxu0
        %v5773 = vadd.f32 %v5585, %v5772
        %v5774 = vpop.f32.mrb[0].mxu0
        %5775 = vmatprep.mubr.bf16.mxu0 0
        %5776 = vmatmul.mubr.bf16.gmra.mrb[0].mxu0 %v5636
        %v5777 = vpop.f32.mrb[0].mxu0
        %v5778 = vadd.f32 %v5585, %v5777
        %v5779 = vpop.f32.mrb[0].mxu0
        %v5780 = vpop.f32.mrb[0].mxu0
        %v5781 = vadd.f32 %v5585, %v5780
        %v5782 = vpop.f32.mrb[0].mxu0
        %5783 = vmatprep.mubr.bf16.mxu0 0
        %5784 = vmatmul.mubr.bf16.gmra.mrb[0].mxu0 %v5639
        %v5785 = vpop.f32.mrb[0].mxu0
        %v5786 = vadd.f32 %v5585, %v5785
        %v5787 = vpop.f32.mrb[0].mxu0
        %v5788 = vpop.f32.mrb[0].mxu0
        %v5789 = vadd.f32 %v5585, %v5788
        %v5790 = vpop.f32.mrb[0].mxu0
        %5791 = vmatprep.mubr.bf16.mxu0 0
        %5792 = vmatmul.mubr.bf16.gmra.mrb[0].mxu0 %v5642
        %v5793 = vpop.f32.mrb[0].mxu0
        %v5794 = vadd.f32 %v5585, %v5793
        %v5795 = vpop.f32.mrb[0].mxu0
        %v5796 = vpop.f32.mrb[0].mxu0
        %v5797 = vadd.f32 %v5585, %v5796
        %v5798 = vpop.f32.mrb[0].mxu0
        %5799 = vmatprep.mubr.bf16.mxu0 0
        %5800 = vmatmul.mubr.bf16.gmra.mrb[0].mxu0 %v5645
        %v5801 = vpop.f32.mrb[0].mxu0
        %v5802 = vadd.f32 %v5585, %v5801
        %v5803 = vpop.f32.mrb[0].mxu0
        %v5804 = vpop.f32.mrb[0].mxu0
        %v5805 = vadd.f32 %v5585, %v5804
        %v5806 = vpop.f32.mrb[0].mxu0
        %5807 = vdwg.mxu0
        %v5808 = vadd.f32 %v484, %v5682
        %v5809 = vadd.f32 %v485, %v5685
        %v5810 = vadd.f32 %v486, %v5690
        %v5811 = vadd.f32 %v487, %v5693
        %v5812 = vadd.f32 %v488, %v5698
        %v5813 = vadd.f32 %v489, %v5701
        %v5814 = vadd.f32 %v490, %v5706
        %v5815 = vadd.f32 %v491, %v5709
        %v5816 = vadd.f32 %v492, %v5714
        %v5817 = vadd.f32 %v493, %v5717
        %v5818 = vadd.f32 %v494, %v5722
        %v5819 = vadd.f32 %v495, %v5725
        %v5820 = vadd.f32 %v496, %v5730
        %v5821 = vadd.f32 %v497, %v5733
        %v5822 = vadd.f32 %v498, %v5738
        %v5823 = vadd.f32 %v499, %v5741
        %v5824 = vadd.f32 %v516, %v5746
        %v5825 = vadd.f32 %v517, %v5749
        %v5826 = vadd.f32 %v518, %v5754
        %v5827 = vadd.f32 %v519, %v5757
        %v5828 = vadd.f32 %v520, %v5762
        %v5829 = vadd.f32 %v521, %v5765
        %v5830 = vadd.f32 %v522, %v5770
        %v5831 = vadd.f32 %v523, %v5773
        %v5832 = vadd.f32 %v524, %v5778
        %v5833 = vadd.f32 %v525, %v5781
        %v5834 = vadd.f32 %v526, %v5786
        %v5835 = vadd.f32 %v527, %v5789
        %v5836 = vadd.f32 %v528, %v5794
        %v5837 = vadd.f32 %v529, %v5797
        %v5838 = vadd.f32 %v530, %v5802
        %v5839 = vadd.f32 %v531, %v5805
        %v5840 = vld [vmem:[%s5] sm:$0x1]
        %v5841 = vld [vmem:[%s6] sm:$0x1]
        %v5842 = vsel %vm571, %v5808, 0.0
        %5843 = vadd.xlane.f32.xlu0 %v5842
        %v5844 = vpop.xlane.xlu0 %5843
        %v5845 = vsel %vm571, %v5809, 0.0
        %5846 = vadd.xlane.f32.xlu0 %v5845
        %v5847 = vpop.xlane.xlu0 %5846
        %v5848 = vsel %vm571, %v5810, 0.0
        %5849 = vadd.xlane.f32.xlu0 %v5848
        %v5850 = vpop.xlane.xlu0 %5849
        %v5851 = vsel %vm571, %v5811, 0.0
        %5852 = vadd.xlane.f32.xlu0 %v5851
        %v5853 = vpop.xlane.xlu0 %5852
        %v5854 = vsel %vm571, %v5812, 0.0
        %5855 = vadd.xlane.f32.xlu0 %v5854
        %v5856 = vpop.xlane.xlu0 %5855
        %v5857 = vsel %vm571, %v5813, 0.0
        %5858 = vadd.xlane.f32.xlu0 %v5857
        %v5859 = vpop.xlane.xlu0 %5858
        %v5860 = vsel %vm571, %v5814, 0.0
        %5861 = vadd.xlane.f32.xlu0 %v5860
        %v5862 = vpop.xlane.xlu0 %5861
        %v5863 = vsel %vm571, %v5815, 0.0
        %5864 = vadd.xlane.f32.xlu0 %v5863
        %v5865 = vpop.xlane.xlu0 %5864
        %v5866 = vsel %vm571, %v5816, 0.0
        %5867 = vadd.xlane.f32.xlu0 %v5866
        %v5868 = vpop.xlane.xlu0 %5867
        %v5869 = vsel %vm571, %v5817, 0.0
        %5870 = vadd.xlane.f32.xlu0 %v5869
        %v5871 = vpop.xlane.xlu0 %5870
        %v5872 = vsel %vm571, %v5818, 0.0
        %5873 = vadd.xlane.f32.xlu0 %v5872
        %v5874 = vpop.xlane.xlu0 %5873
        %v5875 = vsel %vm571, %v5819, 0.0
        %5876 = vadd.xlane.f32.xlu0 %v5875
        %v5877 = vpop.xlane.xlu0 %5876
        %v5878 = vsel %vm571, %v5820, 0.0
        %5879 = vadd.xlane.f32.xlu0 %v5878
        %v5880 = vpop.xlane.xlu0 %5879
        %v5881 = vsel %vm571, %v5821, 0.0
        %5882 = vadd.xlane.f32.xlu0 %v5881
        %v5883 = vpop.xlane.xlu0 %5882
        %v5884 = vsel %vm571, %v5822, 0.0
        %5885 = vadd.xlane.f32.xlu0 %v5884
        %v5886 = vpop.xlane.xlu0 %5885
        %v5887 = vsel %vm571, %v5823, 0.0
        %5888 = vadd.xlane.f32.xlu0 %v5887
        %v5889 = vpop.xlane.xlu0 %5888
        %v5890 = vsel %vm571, %v5824, 0.0
        %5891 = vadd.xlane.f32.xlu0 %v5890
        %v5892 = vpop.xlane.xlu0 %5891
        %v5893 = vsel %vm571, %v5825, 0.0
        %5894 = vadd.xlane.f32.xlu0 %v5893
        %v5895 = vpop.xlane.xlu0 %5894
        %v5896 = vsel %vm571, %v5826, 0.0
        %5897 = vadd.xlane.f32.xlu0 %v5896
        %v5898 = vpop.xlane.xlu0 %5897
        %v5899 = vsel %vm571, %v5827, 0.0
        %5900 = vadd.xlane.f32.xlu0 %v5899
        %v5901 = vpop.xlane.xlu0 %5900
        %v5902 = vsel %vm571, %v5828, 0.0
        %5903 = vadd.xlane.f32.xlu0 %v5902
        %v5904 = vpop.xlane.xlu0 %5903
        %v5905 = vsel %vm571, %v5829, 0.0
        %5906 = vadd.xlane.f32.xlu0 %v5905
        %v5907 = vpop.xlane.xlu0 %5906
        %v5908 = vsel %vm571, %v5830, 0.0
        %5909 = vadd.xlane.f32.xlu0 %v5908
        %v5910 = vpop.xlane.xlu0 %5909
        %v5911 = vsel %vm571, %v5831, 0.0
        %5912 = vadd.xlane.f32.xlu0 %v5911
        %v5913 = vpop.xlane.xlu0 %5912
        %v5914 = vsel %vm571, %v5832, 0.0
        %5915 = vadd.xlane.f32.xlu0 %v5914
        %v5916 = vpop.xlane.xlu0 %5915
        %v5917 = vsel %vm571, %v5833, 0.0
        %5918 = vadd.xlane.f32.xlu0 %v5917
        %v5919 = vpop.xlane.xlu0 %5918
        %v5920 = vsel %vm571, %v5834, 0.0
        %5921 = vadd.xlane.f32.xlu0 %v5920
        %v5922 = vpop.xlane.xlu0 %5921
        %v5923 = vsel %vm571, %v5835, 0.0
        %5924 = vadd.xlane.f32.xlu0 %v5923
        %v5925 = vpop.xlane.xlu0 %5924
        %v5926 = vsel %vm571, %v5836, 0.0
        %5927 = vadd.xlane.f32.xlu0 %v5926
        %v5928 = vpop.xlane.xlu0 %5927
        %v5929 = vsel %vm571, %v5837, 0.0
        %5930 = vadd.xlane.f32.xlu0 %v5929
        %v5931 = vpop.xlane.xlu0 %5930
        %v5932 = vsel %vm571, %v5838, 0.0
        %5933 = vadd.xlane.f32.xlu0 %v5932
        %v5934 = vpop.xlane.xlu0 %5933
        %v5935 = vsel %vm571, %v5839, 0.0
        %5936 = vadd.xlane.f32.xlu0 %v5935
        %v5937 = vpop.xlane.xlu0 %5936
        %v5938 = vrcp.pop 32.0
        %v5939 = vmul.f32 %v5844, %v5938
        %v5940 = vmul.f32 %v5847, %v5938
        %v5941 = vmul.f32 %v5850, %v5938
        %v5942 = vmul.f32 %v5853, %v5938
        %v5943 = vmul.f32 %v5856, %v5938
        %v5944 = vmul.f32 %v5859, %v5938
        %v5945 = vmul.f32 %v5862, %v5938
        %v5946 = vmul.f32 %v5865, %v5938
        %v5947 = vmul.f32 %v5868, %v5938
        %v5948 = vmul.f32 %v5871, %v5938
        %v5949 = vmul.f32 %v5874, %v5938
        %v5950 = vmul.f32 %v5877, %v5938
        %v5951 = vmul.f32 %v5880, %v5938
        %v5952 = vmul.f32 %v5883, %v5938
        %v5953 = vmul.f32 %v5886, %v5938
        %v5954 = vmul.f32 %v5889, %v5938
        %v5955 = vmul.f32 %v5892, %v5938
        %v5956 = vmul.f32 %v5895, %v5938
        %v5957 = vmul.f32 %v5898, %v5938
        %v5958 = vmul.f32 %v5901, %v5938
        %v5959 = vmul.f32 %v5904, %v5938
        %v5960 = vmul.f32 %v5907, %v5938
        %v5961 = vmul.f32 %v5910, %v5938
        %v5962 = vmul.f32 %v5913, %v5938
        %v5963 = vmul.f32 %v5916, %v5938
        %v5964 = vmul.f32 %v5919, %v5938
        %v5965 = vmul.f32 %v5922, %v5938
        %v5966 = vmul.f32 %v5925, %v5938
        %v5967 = vmul.f32 %v5928, %v5938
        %v5968 = vmul.f32 %v5931, %v5938
        %v5969 = vmul.f32 %v5934, %v5938
        %v5970 = vmul.f32 %v5937, %v5938
        %v5971 = vsub.f32 %v5808, %v5939
        %v5972 = vsub.f32 %v5809, %v5940
        %v5973 = vsub.f32 %v5810, %v5941
        %v5974 = vsub.f32 %v5811, %v5942
        %v5975 = vsub.f32 %v5812, %v5943
        %v5976 = vsub.f32 %v5813, %v5944
        %v5977 = vsub.f32 %v5814, %v5945
        %v5978 = vsub.f32 %v5815, %v5946
        %v5979 = vsub.f32 %v5816, %v5947
        %v5980 = vsub.f32 %v5817, %v5948
        %v5981 = vsub.f32 %v5818, %v5949
        %v5982 = vsub.f32 %v5819, %v5950
        %v5983 = vsub.f32 %v5820, %v5951
        %v5984 = vsub.f32 %v5821, %v5952
        %v5985 = vsub.f32 %v5822, %v5953
        %v5986 = vsub.f32 %v5823, %v5954
        %v5987 = vsub.f32 %v5824, %v5955
        %v5988 = vsub.f32 %v5825, %v5956
        %v5989 = vsub.f32 %v5826, %v5957
        %v5990 = vsub.f32 %v5827, %v5958
        %v5991 = vsub.f32 %v5828, %v5959
        %v5992 = vsub.f32 %v5829, %v5960
        %v5993 = vsub.f32 %v5830, %v5961
        %v5994 = vsub.f32 %v5831, %v5962
        %v5995 = vsub.f32 %v5832, %v5963
        %v5996 = vsub.f32 %v5833, %v5964
        %v5997 = vsub.f32 %v5834, %v5965
        %v5998 = vsub.f32 %v5835, %v5966
        %v5999 = vsub.f32 %v5836, %v5967
        %v6000 = vsub.f32 %v5837, %v5968
        %v6001 = vsub.f32 %v5838, %v5969
        %v6002 = vsub.f32 %v5839, %v5970
        %v6003 = vmul.f32 %v5971, %v5971
        %v6004 = vmul.f32 %v5972, %v5972
        %v6005 = vmul.f32 %v5973, %v5973
        %v6006 = vmul.f32 %v5974, %v5974
        %v6007 = vmul.f32 %v5975, %v5975
        %v6008 = vmul.f32 %v5976, %v5976
        %v6009 = vmul.f32 %v5977, %v5977
        %v6010 = vmul.f32 %v5978, %v5978
        %v6011 = vmul.f32 %v5979, %v5979
        %v6012 = vmul.f32 %v5980, %v5980
        %v6013 = vmul.f32 %v5981, %v5981
        %v6014 = vmul.f32 %v5982, %v5982
        %v6015 = vmul.f32 %v5983, %v5983
        %v6016 = vmul.f32 %v5984, %v5984
        %v6017 = vmul.f32 %v5985, %v5985
        %v6018 = vmul.f32 %v5986, %v5986
        %v6019 = vmul.f32 %v5987, %v5987
        %v6020 = vmul.f32 %v5988, %v5988
        %v6021 = vmul.f32 %v5989, %v5989
        %v6022 = vmul.f32 %v5990, %v5990
        %v6023 = vmul.f32 %v5991, %v5991
        %v6024 = vmul.f32 %v5992, %v5992
        %v6025 = vmul.f32 %v5993, %v5993
        %v6026 = vmul.f32 %v5994, %v5994
        %v6027 = vmul.f32 %v5995, %v5995
        %v6028 = vmul.f32 %v5996, %v5996
        %v6029 = vmul.f32 %v5997, %v5997
        %v6030 = vmul.f32 %v5998, %v5998
        %v6031 = vmul.f32 %v5999, %v5999
        %v6032 = vmul.f32 %v6000, %v6000
        %v6033 = vmul.f32 %v6001, %v6001
        %v6034 = vmul.f32 %v6002, %v6002
        %v6035 = vsel %vm571, %v6003, 0.0
        %6036 = vadd.xlane.f32.xlu0 %v6035
        %v6037 = vpop.xlane.xlu0 %6036
        %v6038 = vsel %vm571, %v6004, 0.0
        %6039 = vadd.xlane.f32.xlu0 %v6038
        %v6040 = vpop.xlane.xlu0 %6039
        %v6041 = vsel %vm571, %v6005, 0.0
        %6042 = vadd.xlane.f32.xlu0 %v6041
        %v6043 = vpop.xlane.xlu0 %6042
        %v6044 = vsel %vm571, %v6006, 0.0
        %6045 = vadd.xlane.f32.xlu0 %v6044
        %v6046 = vpop.xlane.xlu0 %6045
        %v6047 = vsel %vm571, %v6007, 0.0
        %6048 = vadd.xlane.f32.xlu0 %v6047
        %v6049 = vpop.xlane.xlu0 %6048
        %v6050 = vsel %vm571, %v6008, 0.0
        %6051 = vadd.xlane.f32.xlu0 %v6050
        %v6052 = vpop.xlane.xlu0 %6051
        %v6053 = vsel %vm571, %v6009, 0.0
        %6054 = vadd.xlane.f32.xlu0 %v6053
        %v6055 = vpop.xlane.xlu0 %6054
        %v6056 = vsel %vm571, %v6010, 0.0
        %6057 = vadd.xlane.f32.xlu0 %v6056
        %v6058 = vpop.xlane.xlu0 %6057
        %v6059 = vsel %vm571, %v6011, 0.0
        %6060 = vadd.xlane.f32.xlu0 %v6059
        %v6061 = vpop.xlane.xlu0 %6060
        %v6062 = vsel %vm571, %v6012, 0.0
        %6063 = vadd.xlane.f32.xlu0 %v6062
        %v6064 = vpop.xlane.xlu0 %6063
        %v6065 = vsel %vm571, %v6013, 0.0
        %6066 = vadd.xlane.f32.xlu0 %v6065
        %v6067 = vpop.xlane.xlu0 %6066
        %v6068 = vsel %vm571, %v6014, 0.0
        %6069 = vadd.xlane.f32.xlu0 %v6068
        %v6070 = vpop.xlane.xlu0 %6069
        %v6071 = vsel %vm571, %v6015, 0.0
        %6072 = vadd.xlane.f32.xlu0 %v6071
        %v6073 = vpop.xlane.xlu0 %6072
        %v6074 = vsel %vm571, %v6016, 0.0
        %6075 = vadd.xlane.f32.xlu0 %v6074
        %v6076 = vpop.xlane.xlu0 %6075
        %v6077 = vsel %vm571, %v6017, 0.0
        %6078 = vadd.xlane.f32.xlu0 %v6077
        %v6079 = vpop.xlane.xlu0 %6078
        %v6080 = vsel %vm571, %v6018, 0.0
        %6081 = vadd.xlane.f32.xlu0 %v6080
        %v6082 = vpop.xlane.xlu0 %6081
        %v6083 = vsel %vm571, %v6019, 0.0
        %6084 = vadd.xlane.f32.xlu0 %v6083
        %v6085 = vpop.xlane.xlu0 %6084
        %v6086 = vsel %vm571, %v6020, 0.0
        %6087 = vadd.xlane.f32.xlu0 %v6086
        %v6088 = vpop.xlane.xlu0 %6087
        %v6089 = vsel %vm571, %v6021, 0.0
        %6090 = vadd.xlane.f32.xlu0 %v6089
        %v6091 = vpop.xlane.xlu0 %6090
        %v6092 = vsel %vm571, %v6022, 0.0
        %6093 = vadd.xlane.f32.xlu0 %v6092
        %v6094 = vpop.xlane.xlu0 %6093
        %v6095 = vsel %vm571, %v6023, 0.0
        %6096 = vadd.xlane.f32.xlu0 %v6095
        %v6097 = vpop.xlane.xlu0 %6096
        %v6098 = vsel %vm571, %v6024, 0.0
        %6099 = vadd.xlane.f32.xlu0 %v6098
        %v6100 = vpop.xlane.xlu0 %6099
        %v6101 = vsel %vm571, %v6025, 0.0
        %6102 = vadd.xlane.f32.xlu0 %v6101
        %v6103 = vpop.xlane.xlu0 %6102
        %v6104 = vsel %vm571, %v6026, 0.0
        %6105 = vadd.xlane.f32.xlu0 %v6104
        %v6106 = vpop.xlane.xlu0 %6105
        %v6107 = vsel %vm571, %v6027, 0.0
        %6108 = vadd.xlane.f32.xlu0 %v6107
        %v6109 = vpop.xlane.xlu0 %6108
        %v6110 = vsel %vm571, %v6028, 0.0
        %6111 = vadd.xlane.f32.xlu0 %v6110
        %v6112 = vpop.xlane.xlu0 %6111
        %v6113 = vsel %vm571, %v6029, 0.0
        %6114 = vadd.xlane.f32.xlu0 %v6113
        %v6115 = vpop.xlane.xlu0 %6114
        %v6116 = vsel %vm571, %v6030, 0.0
        %6117 = vadd.xlane.f32.xlu0 %v6116
        %v6118 = vpop.xlane.xlu0 %6117
        %v6119 = vsel %vm571, %v6031, 0.0
        %6120 = vadd.xlane.f32.xlu0 %v6119
        %v6121 = vpop.xlane.xlu0 %6120
        %v6122 = vsel %vm571, %v6032, 0.0
        %6123 = vadd.xlane.f32.xlu0 %v6122
        %v6124 = vpop.xlane.xlu0 %6123
        %v6125 = vsel %vm571, %v6033, 0.0
        %6126 = vadd.xlane.f32.xlu0 %v6125
        %v6127 = vpop.xlane.xlu0 %6126
        %v6128 = vsel %vm571, %v6034, 0.0
        %6129 = vadd.xlane.f32.xlu0 %v6128
        %v6130 = vpop.xlane.xlu0 %6129
        %v6131 = vmul.f32 %v6037, %v5938
        %v6132 = vmul.f32 %v6040, %v5938
        %v6133 = vmul.f32 %v6043, %v5938
        %v6134 = vmul.f32 %v6046, %v5938
        %v6135 = vmul.f32 %v6049, %v5938
        %v6136 = vmul.f32 %v6052, %v5938
        %v6137 = vmul.f32 %v6055, %v5938
        %v6138 = vmul.f32 %v6058, %v5938
        %v6139 = vmul.f32 %v6061, %v5938
        %v6140 = vmul.f32 %v6064, %v5938
        %v6141 = vmul.f32 %v6067, %v5938
        %v6142 = vmul.f32 %v6070, %v5938
        %v6143 = vmul.f32 %v6073, %v5938
        %v6144 = vmul.f32 %v6076, %v5938
        %v6145 = vmul.f32 %v6079, %v5938
        %v6146 = vmul.f32 %v6082, %v5938
        %v6147 = vmul.f32 %v6085, %v5938
        %v6148 = vmul.f32 %v6088, %v5938
        %v6149 = vmul.f32 %v6091, %v5938
        %v6150 = vmul.f32 %v6094, %v5938
        %v6151 = vmul.f32 %v6097, %v5938
        %v6152 = vmul.f32 %v6100, %v5938
        %v6153 = vmul.f32 %v6103, %v5938
        %v6154 = vmul.f32 %v6106, %v5938
        %v6155 = vmul.f32 %v6109, %v5938
        %v6156 = vmul.f32 %v6112, %v5938
        %v6157 = vmul.f32 %v6115, %v5938
        %v6158 = vmul.f32 %v6118, %v5938
        %v6159 = vmul.f32 %v6121, %v5938
        %v6160 = vmul.f32 %v6124, %v5938
        %v6161 = vmul.f32 %v6127, %v5938
        %v6162 = vmul.f32 %v6130, %v5938
        %v6163 = vadd.f32 %v6131, 1e-05
        %v6164 = vadd.f32 %v6132, 1e-05
        %v6165 = vadd.f32 %v6133, 1e-05
        %v6166 = vadd.f32 %v6134, 1e-05
        %v6167 = vadd.f32 %v6135, 1e-05
        %v6168 = vadd.f32 %v6136, 1e-05
        %v6169 = vadd.f32 %v6137, 1e-05
        %v6170 = vadd.f32 %v6138, 1e-05
        %v6171 = vadd.f32 %v6139, 1e-05
        %v6172 = vadd.f32 %v6140, 1e-05
        %v6173 = vadd.f32 %v6141, 1e-05
        %v6174 = vadd.f32 %v6142, 1e-05
        %v6175 = vadd.f32 %v6143, 1e-05
        %v6176 = vadd.f32 %v6144, 1e-05
        %v6177 = vadd.f32 %v6145, 1e-05
        %v6178 = vadd.f32 %v6146, 1e-05
        %v6179 = vadd.f32 %v6147, 1e-05
        %v6180 = vadd.f32 %v6148, 1e-05
        %v6181 = vadd.f32 %v6149, 1e-05
        %v6182 = vadd.f32 %v6150, 1e-05
        %v6183 = vadd.f32 %v6151, 1e-05
        %v6184 = vadd.f32 %v6152, 1e-05
        %v6185 = vadd.f32 %v6153, 1e-05
        %v6186 = vadd.f32 %v6154, 1e-05
        %v6187 = vadd.f32 %v6155, 1e-05
        %v6188 = vadd.f32 %v6156, 1e-05
        %v6189 = vadd.f32 %v6157, 1e-05
        %v6190 = vadd.f32 %v6158, 1e-05
        %v6191 = vadd.f32 %v6159, 1e-05
        %v6192 = vadd.f32 %v6160, 1e-05
        %v6193 = vadd.f32 %v6161, 1e-05
        %v6194 = vadd.f32 %v6162, 1e-05
        %v6195 = vrsqrt.pop %v6163
        %v6196 = vrsqrt.pop %v6164
        %v6197 = vrsqrt.pop %v6165
        %v6198 = vrsqrt.pop %v6166
        %v6199 = vrsqrt.pop %v6167
        %v6200 = vrsqrt.pop %v6168
        %v6201 = vrsqrt.pop %v6169
        %v6202 = vrsqrt.pop %v6170
        %v6203 = vrsqrt.pop %v6171
        %v6204 = vrsqrt.pop %v6172
        %v6205 = vrsqrt.pop %v6173
        %v6206 = vrsqrt.pop %v6174
        %v6207 = vrsqrt.pop %v6175
        %v6208 = vrsqrt.pop %v6176
        %v6209 = vrsqrt.pop %v6177
        %v6210 = vrsqrt.pop %v6178
        %v6211 = vrsqrt.pop %v6179
        %v6212 = vrsqrt.pop %v6180
        %v6213 = vrsqrt.pop %v6181
        %v6214 = vrsqrt.pop %v6182
        %v6215 = vrsqrt.pop %v6183
        %v6216 = vrsqrt.pop %v6184
        %v6217 = vrsqrt.pop %v6185
        %v6218 = vrsqrt.pop %v6186
        %v6219 = vrsqrt.pop %v6187
        %v6220 = vrsqrt.pop %v6188
        %v6221 = vrsqrt.pop %v6189
        %v6222 = vrsqrt.pop %v6190
        %v6223 = vrsqrt.pop %v6191
        %v6224 = vrsqrt.pop %v6192
        %v6225 = vrsqrt.pop %v6193
        %v6226 = vrsqrt.pop %v6194
        %v6227 = vmul.f32 %v5971, %v6195
        %v6228 = vmul.f32 %v5972, %v6196
        %v6229 = vmul.f32 %v5973, %v6197
        %v6230 = vmul.f32 %v5974, %v6198
        %v6231 = vmul.f32 %v5975, %v6199
        %v6232 = vmul.f32 %v5976, %v6200
        %v6233 = vmul.f32 %v5977, %v6201
        %v6234 = vmul.f32 %v5978, %v6202
        %v6235 = vmul.f32 %v5979, %v6203
        %v6236 = vmul.f32 %v5980, %v6204
        %v6237 = vmul.f32 %v5981, %v6205
        %v6238 = vmul.f32 %v5982, %v6206
        %v6239 = vmul.f32 %v5983, %v6207
        %v6240 = vmul.f32 %v5984, %v6208
        %v6241 = vmul.f32 %v5985, %v6209
        %v6242 = vmul.f32 %v5986, %v6210
        %v6243 = vmul.f32 %v5987, %v6211
        %v6244 = vmul.f32 %v5988, %v6212
        %v6245 = vmul.f32 %v5989, %v6213
        %v6246 = vmul.f32 %v5990, %v6214
        %v6247 = vmul.f32 %v5991, %v6215
        %v6248 = vmul.f32 %v5992, %v6216
        %v6249 = vmul.f32 %v5993, %v6217
        %v6250 = vmul.f32 %v5994, %v6218
        %v6251 = vmul.f32 %v5995, %v6219
        %v6252 = vmul.f32 %v5996, %v6220
        %v6253 = vmul.f32 %v5997, %v6221
        %v6254 = vmul.f32 %v5998, %v6222
        %v6255 = vmul.f32 %v5999, %v6223
        %v6256 = vmul.f32 %v6000, %v6224
        %v6257 = vmul.f32 %v6001, %v6225
        %v6258 = vmul.f32 %v6002, %v6226
        %v6260 = vlaneseq
        %v6261 = vshrl.u32 %v6260, 7
        %v6262 = vsub.s32 0, %v6261
        %v6263 = vrot.slane %v5840, %v6262
        %v6265 = vmul.f32 %v6227, %v6263
        %v6266 = vmul.f32 %v6228, %v6263
        %v6267 = vmul.f32 %v6229, %v6263
        %v6268 = vmul.f32 %v6230, %v6263
        %v6269 = vmul.f32 %v6231, %v6263
        %v6270 = vmul.f32 %v6232, %v6263
        %v6271 = vmul.f32 %v6233, %v6263
        %v6272 = vmul.f32 %v6234, %v6263
        %v6273 = vmul.f32 %v6235, %v6263
        %v6274 = vmul.f32 %v6236, %v6263
        %v6275 = vmul.f32 %v6237, %v6263
        %v6276 = vmul.f32 %v6238, %v6263
        %v6277 = vmul.f32 %v6239, %v6263
        %v6278 = vmul.f32 %v6240, %v6263
        %v6279 = vmul.f32 %v6241, %v6263
        %v6280 = vmul.f32 %v6242, %v6263
        %v6281 = vmul.f32 %v6243, %v6263
        %v6282 = vmul.f32 %v6244, %v6263
        %v6283 = vmul.f32 %v6245, %v6263
        %v6284 = vmul.f32 %v6246, %v6263
        %v6285 = vmul.f32 %v6247, %v6263
        %v6286 = vmul.f32 %v6248, %v6263
        %v6287 = vmul.f32 %v6249, %v6263
        %v6288 = vmul.f32 %v6250, %v6263
        %v6289 = vmul.f32 %v6251, %v6263
        %v6290 = vmul.f32 %v6252, %v6263
        %v6291 = vmul.f32 %v6253, %v6263
        %v6292 = vmul.f32 %v6254, %v6263
        %v6293 = vmul.f32 %v6255, %v6263
        %v6294 = vmul.f32 %v6256, %v6263
        %v6295 = vmul.f32 %v6257, %v6263
        %v6296 = vmul.f32 %v6258, %v6263
        %v6298 = vlaneseq
        %v6299 = vshrl.u32 %v6298, 7
        %v6300 = vsub.s32 0, %v6299
        %v6301 = vrot.slane %v5841, %v6300
        %v6303 = vadd.f32 %v6265, %v6301
        %v6304 = vadd.f32 %v6266, %v6301
        %v6305 = vadd.f32 %v6267, %v6301
        %v6306 = vadd.f32 %v6268, %v6301
        %v6307 = vadd.f32 %v6269, %v6301
        %v6308 = vadd.f32 %v6270, %v6301
        %v6309 = vadd.f32 %v6271, %v6301
        %v6310 = vadd.f32 %v6272, %v6301
        %v6311 = vadd.f32 %v6273, %v6301
        %v6312 = vadd.f32 %v6274, %v6301
        %v6313 = vadd.f32 %v6275, %v6301
        %v6314 = vadd.f32 %v6276, %v6301
        %v6315 = vadd.f32 %v6277, %v6301
        %v6316 = vadd.f32 %v6278, %v6301
        %v6317 = vadd.f32 %v6279, %v6301
        %v6318 = vadd.f32 %v6280, %v6301
        %v6319 = vadd.f32 %v6281, %v6301
        %v6320 = vadd.f32 %v6282, %v6301
        %v6321 = vadd.f32 %v6283, %v6301
        %v6322 = vadd.f32 %v6284, %v6301
        %v6323 = vadd.f32 %v6285, %v6301
        %v6324 = vadd.f32 %v6286, %v6301
        %v6325 = vadd.f32 %v6287, %v6301
        %v6326 = vadd.f32 %v6288, %v6301
        %v6327 = vadd.f32 %v6289, %v6301
        %v6328 = vadd.f32 %v6290, %v6301
        %v6329 = vadd.f32 %v6291, %v6301
        %v6330 = vadd.f32 %v6292, %v6301
        %v6331 = vadd.f32 %v6293, %v6301
        %v6332 = vadd.f32 %v6294, %v6301
        %v6333 = vadd.f32 %v6295, %v6301
        %v6334 = vadd.f32 %v6296, %v6301
        %v6335 = vpack.c.bf16 %v6304, %v6303
        %v6336 = vpack.c.bf16 %v6306, %v6305
        %v6337 = vpack.c.bf16 %v6308, %v6307
        %v6338 = vpack.c.bf16 %v6310, %v6309
        %v6339 = vpack.c.bf16 %v6312, %v6311
        %v6340 = vpack.c.bf16 %v6314, %v6313
        %v6341 = vpack.c.bf16 %v6316, %v6315
        %v6342 = vpack.c.bf16 %v6318, %v6317
        %v6343 = vpack.c.bf16 %v6320, %v6319
        %v6344 = vpack.c.bf16 %v6322, %v6321
        %v6345 = vpack.c.bf16 %v6324, %v6323
        %v6346 = vpack.c.bf16 %v6326, %v6325
        %v6347 = vpack.c.bf16 %v6328, %v6327
        %v6348 = vpack.c.bf16 %v6330, %v6329
        %v6349 = vpack.c.bf16 %v6332, %v6331
        %v6350 = vpack.c.bf16 %v6334, %v6333
        %v6351 = vld [vmem:[%s7] sm:$0xf]
        %v6352 = vld [vmem:[%s7 + $0x4] sm:$0xf]
        %v6353 = vld [vmem:[%s7 + $0x8] sm:$0xf]
        %v6354 = vld [vmem:[%s7 + $0xc] sm:$0xf]
        %v6355 = vld [vmem:[%s8] sm:$0x1]
        %v6357 = vlaneseq
        %v6358 = vshrl.u32 %v6357, 7
        %v6359 = vsub.s32 0, %v6358
        %v6360 = vrot.slane %v6355, %v6359
        %v6366 = vunpack.c.l.b16 %v6351
        %v6367 = vunpack.c.l.b16 %v6352
        %v6368 = vunpack.c.l.b16 %v6353
        %v6369 = vunpack.c.l.b16 %v6354
        %v6370 = vpack.c.b16 %v6367, %v6366
        %v6371 = vpack.c.b16 %v6369, %v6368
        %v6375 = vsel %vm571, %v6335, 0
        %v6378 = vsel %vm571, %v6336, 0
        %v6381 = vsel %vm571, %v6337, 0
        %v6384 = vsel %vm571, %v6338, 0
        %v6387 = vsel %vm571, %v6339, 0
        %v6390 = vsel %vm571, %v6340, 0
        %v6393 = vsel %vm571, %v6341, 0
        %v6396 = vsel %vm571, %v6342, 0
        %v6399 = vsel %vm571, %v6343, 0
        %v6402 = vsel %vm571, %v6344, 0
        %v6405 = vsel %vm571, %v6345, 0
        %v6408 = vsel %vm571, %v6346, 0
        %v6411 = vsel %vm571, %v6347, 0
        %v6414 = vsel %vm571, %v6348, 0
        %v6417 = vsel %vm571, %v6349, 0
        %v6420 = vsel %vm571, %v6350, 0
        %6422 = vmatprep.subr.bf16.mxu0 0
        %6423 = vmatpush1.bf16.msra.mxu0 %v6370
        %6424 = vmatprep.subr.bf16.mxu0 0
        %6425 = vmatpush1.bf16.msra.mxu0 %v6371
        %6426 = vmatprep.subr.bf16.mxu0 0
        %6427 = vmatpush1.bf16.msra.mxu0 0
        %6428 = vmatprep.subr.bf16.mxu0 0
        %6429 = vmatpush1.bf16.msra.mxu0 0
        %6430 = vmatprep.subr.bf16.mxu0 0
        %6431 = vmatpush1.bf16.msra.mxu0 0
        %6432 = vmatprep.subr.bf16.mxu0 0
        %6433 = vmatpush1.bf16.msra.mxu0 0
        %6434 = vmatprep.subr.bf16.mxu0 0
        %6435 = vmatpush1.bf16.msra.mxu0 0
        %6436 = vmatprep.subr.bf16.mxu0 0
        %6437 = vmatpush1.bf16.msra.mxu0 0
        %6438 = vmatprep.subr.bf16.mxu0 0
        %6439 = vmatpush1.bf16.msra.mxu0 0
        %6440 = vmatprep.subr.bf16.mxu0 0
        %6441 = vmatpush1.bf16.msra.mxu0 0
        %6442 = vmatprep.subr.bf16.mxu0 0
        %6443 = vmatpush1.bf16.msra.mxu0 0
        %6444 = vmatprep.subr.bf16.mxu0 0
        %6445 = vmatpush1.bf16.msra.mxu0 0
        %6446 = vmatprep.subr.bf16.mxu0 0
        %6447 = vmatpush1.bf16.msra.mxu0 0
        %6448 = vmatprep.subr.bf16.mxu0 0
        %6449 = vmatpush1.bf16.msra.mxu0 0
        %6450 = vmatprep.subr.bf16.mxu0 0
        %6451 = vmatpush1.bf16.msra.mxu0 0
        %6452 = vmatprep.subr.bf16.mxu0 0
        %6453 = vmatpush1.bf16.msra.mxu0 0
        %6454 = vmatprep.mubr.bf16.mxu0 0
        %6455 = vmatmul.mubr.bf16.gmra.mrb[0].mxu0 %v6375
        %v6456 = vpop.f32.mrb[0].mxu0
        %v6457 = vadd.f32 %v6360, %v6456
        %v6458 = vpop.f32.mrb[0].mxu0
        %v6459 = vpop.f32.mrb[0].mxu0
        %v6460 = vadd.f32 %v6360, %v6459
        %v6461 = vpop.f32.mrb[0].mxu0
        %6462 = vmatprep.mubr.bf16.mxu0 0
        %6463 = vmatmul.mubr.bf16.gmra.mrb[0].mxu0 %v6378
        %v6464 = vpop.f32.mrb[0].mxu0
        %v6465 = vadd.f32 %v6360, %v6464
        %v6466 = vpop.f32.mrb[0].mxu0
        %v6467 = vpop.f32.mrb[0].mxu0
        %v6468 = vadd.f32 %v6360, %v6467
        %v6469 = vpop.f32.mrb[0].mxu0
        %6470 = vmatprep.mubr.bf16.mxu0 0
        %6471 = vmatmul.mubr.bf16.gmra.mrb[0].mxu0 %v6381
        %v6472 = vpop.f32.mrb[0].mxu0
        %v6473 = vadd.f32 %v6360, %v6472
        %v6474 = vpop.f32.mrb[0].mxu0
        %v6475 = vpop.f32.mrb[0].mxu0
        %v6476 = vadd.f32 %v6360, %v6475
        %v6477 = vpop.f32.mrb[0].mxu0
        %6478 = vmatprep.mubr.bf16.mxu0 0
        %6479 = vmatmul.mubr.bf16.gmra.mrb[0].mxu0 %v6384
        %v6480 = vpop.f32.mrb[0].mxu0
        %v6481 = vadd.f32 %v6360, %v6480
        %v6482 = vpop.f32.mrb[0].mxu0
        %v6483 = vpop.f32.mrb[0].mxu0
        %v6484 = vadd.f32 %v6360, %v6483
        %v6485 = vpop.f32.mrb[0].mxu0
        %6486 = vmatprep.mubr.bf16.mxu0 0
        %6487 = vmatmul.mubr.bf16.gmra.mrb[0].mxu0 %v6387
        %v6488 = vpop.f32.mrb[0].mxu0
        %v6489 = vadd.f32 %v6360, %v6488
        %v6490 = vpop.f32.mrb[0].mxu0
        %v6491 = vpop.f32.mrb[0].mxu0
        %v6492 = vadd.f32 %v6360, %v6491
        %v6493 = vpop.f32.mrb[0].mxu0
        %6494 = vmatprep.mubr.bf16.mxu0 0
        %6495 = vmatmul.mubr.bf16.gmra.mrb[0].mxu0 %v6390
        %v6496 = vpop.f32.mrb[0].mxu0
        %v6497 = vadd.f32 %v6360, %v6496
        %v6498 = vpop.f32.mrb[0].mxu0
        %v6499 = vpop.f32.mrb[0].mxu0
        %v6500 = vadd.f32 %v6360, %v6499
        %v6501 = vpop.f32.mrb[0].mxu0
        %6502 = vmatprep.mubr.bf16.mxu0 0
        %6503 = vmatmul.mubr.bf16.gmra.mrb[0].mxu0 %v6393
        %v6504 = vpop.f32.mrb[0].mxu0
        %v6505 = vadd.f32 %v6360, %v6504
        %v6506 = vpop.f32.mrb[0].mxu0
        %v6507 = vpop.f32.mrb[0].mxu0
        %v6508 = vadd.f32 %v6360, %v6507
        %v6509 = vpop.f32.mrb[0].mxu0
        %6510 = vmatprep.mubr.bf16.mxu0 0
        %6511 = vmatmul.mubr.bf16.gmra.mrb[0].mxu0 %v6396
        %v6512 = vpop.f32.mrb[0].mxu0
        %v6513 = vadd.f32 %v6360, %v6512
        %v6514 = vpop.f32.mrb[0].mxu0
        %v6515 = vpop.f32.mrb[0].mxu0
        %v6516 = vadd.f32 %v6360, %v6515
        %v6517 = vpop.f32.mrb[0].mxu0
        %6518 = vmatprep.mubr.bf16.mxu0 0
        %6519 = vmatmul.mubr.bf16.gmra.mrb[0].mxu0 %v6399
        %v6520 = vpop.f32.mrb[0].mxu0
        %v6521 = vadd.f32 %v6360, %v6520
        %v6522 = vpop.f32.mrb[0].mxu0
        %v6523 = vpop.f32.mrb[0].mxu0
        %v6524 = vadd.f32 %v6360, %v6523
        %v6525 = vpop.f32.mrb[0].mxu0
        %6526 = vmatprep.mubr.bf16.mxu0 0
        %6527 = vmatmul.mubr.bf16.gmra.mrb[0].mxu0 %v6402
        %v6528 = vpop.f32.mrb[0].mxu0
        %v6529 = vadd.f32 %v6360, %v6528
        %v6530 = vpop.f32.mrb[0].mxu0
        %v6531 = vpop.f32.mrb[0].mxu0
        %v6532 = vadd.f32 %v6360, %v6531
        %v6533 = vpop.f32.mrb[0].mxu0
        %6534 = vmatprep.mubr.bf16.mxu0 0
        %6535 = vmatmul.mubr.bf16.gmra.mrb[0].mxu0 %v6405
        %v6536 = vpop.f32.mrb[0].mxu0
        %v6537 = vadd.f32 %v6360, %v6536
        %v6538 = vpop.f32.mrb[0].mxu0
        %v6539 = vpop.f32.mrb[0].mxu0
        %v6540 = vadd.f32 %v6360, %v6539
        %v6541 = vpop.f32.mrb[0].mxu0
        %6542 = vmatprep.mubr.bf16.mxu0 0
        %6543 = vmatmul.mubr.bf16.gmra.mrb[0].mxu0 %v6408
        %v6544 = vpop.f32.mrb[0].mxu0
        %v6545 = vadd.f32 %v6360, %v6544
        %v6546 = vpop.f32.mrb[0].mxu0
        %v6547 = vpop.f32.mrb[0].mxu0
        %v6548 = vadd.f32 %v6360, %v6547
        %v6549 = vpop.f32.mrb[0].mxu0
        %6550 = vmatprep.mubr.bf16.mxu0 0
        %6551 = vmatmul.mubr.bf16.gmra.mrb[0].mxu0 %v6411
        %v6552 = vpop.f32.mrb[0].mxu0
        %v6553 = vadd.f32 %v6360, %v6552
        %v6554 = vpop.f32.mrb[0].mxu0
        %v6555 = vpop.f32.mrb[0].mxu0
        %v6556 = vadd.f32 %v6360, %v6555
        %v6557 = vpop.f32.mrb[0].mxu0
        %6558 = vmatprep.mubr.bf16.mxu0 0
        %6559 = vmatmul.mubr.bf16.gmra.mrb[0].mxu0 %v6414
        %v6560 = vpop.f32.mrb[0].mxu0
        %v6561 = vadd.f32 %v6360, %v6560
        %v6562 = vpop.f32.mrb[0].mxu0
        %v6563 = vpop.f32.mrb[0].mxu0
        %v6564 = vadd.f32 %v6360, %v6563
        %v6565 = vpop.f32.mrb[0].mxu0
        %6566 = vmatprep.mubr.bf16.mxu0 0
        %6567 = vmatmul.mubr.bf16.gmra.mrb[0].mxu0 %v6417
        %v6568 = vpop.f32.mrb[0].mxu0
        %v6569 = vadd.f32 %v6360, %v6568
        %v6570 = vpop.f32.mrb[0].mxu0
        %v6571 = vpop.f32.mrb[0].mxu0
        %v6572 = vadd.f32 %v6360, %v6571
        %v6573 = vpop.f32.mrb[0].mxu0
        %6574 = vmatprep.mubr.bf16.mxu0 0
        %6575 = vmatmul.mubr.bf16.gmra.mrb[0].mxu0 %v6420
        %v6576 = vpop.f32.mrb[0].mxu0
        %v6577 = vadd.f32 %v6360, %v6576
        %v6578 = vpop.f32.mrb[0].mxu0
        %v6579 = vpop.f32.mrb[0].mxu0
        %v6580 = vadd.f32 %v6360, %v6579
        %v6581 = vpop.f32.mrb[0].mxu0
        %6582 = vdwg.mxu0
        %v6583 = vmul.f32 %v6457, 0.5
        %v6584 = vmul.f32 %v6460, 0.5
        %v6585 = vmul.f32 %v6465, 0.5
        %v6586 = vmul.f32 %v6468, 0.5
        %v6587 = vmul.f32 %v6473, 0.5
        %v6588 = vmul.f32 %v6476, 0.5
        %v6589 = vmul.f32 %v6481, 0.5
        %v6590 = vmul.f32 %v6484, 0.5
        %v6591 = vmul.f32 %v6489, 0.5
        %v6592 = vmul.f32 %v6492, 0.5
        %v6593 = vmul.f32 %v6497, 0.5
        %v6594 = vmul.f32 %v6500, 0.5
        %v6595 = vmul.f32 %v6505, 0.5
        %v6596 = vmul.f32 %v6508, 0.5
        %v6597 = vmul.f32 %v6513, 0.5
        %v6598 = vmul.f32 %v6516, 0.5
        %v6599 = vmul.f32 %v6521, 0.5
        %v6600 = vmul.f32 %v6524, 0.5
        %v6601 = vmul.f32 %v6529, 0.5
        %v6602 = vmul.f32 %v6532, 0.5
        %v6603 = vmul.f32 %v6537, 0.5
        %v6604 = vmul.f32 %v6540, 0.5
        %v6605 = vmul.f32 %v6545, 0.5
        %v6606 = vmul.f32 %v6548, 0.5
        %v6607 = vmul.f32 %v6553, 0.5
        %v6608 = vmul.f32 %v6556, 0.5
        %v6609 = vmul.f32 %v6561, 0.5
        %v6610 = vmul.f32 %v6564, 0.5
        %v6611 = vmul.f32 %v6569, 0.5
        %v6612 = vmul.f32 %v6572, 0.5
        %v6613 = vmul.f32 %v6577, 0.5
        %v6614 = vmul.f32 %v6580, 0.5
        %v6615 = vrcp.pop 1.4142135
        %v6616 = vmul.f32 %v6457, %v6615
        %v6617 = vmul.f32 %v6460, %v6615
        %v6618 = vmul.f32 %v6465, %v6615
        %v6619 = vmul.f32 %v6468, %v6615
        %v6620 = vmul.f32 %v6473, %v6615
        %v6621 = vmul.f32 %v6476, %v6615
        %v6622 = vmul.f32 %v6481, %v6615
        %v6623 = vmul.f32 %v6484, %v6615
        %v6624 = vmul.f32 %v6489, %v6615
        %v6625 = vmul.f32 %v6492, %v6615
        %v6626 = vmul.f32 %v6497, %v6615
        %v6627 = vmul.f32 %v6500, %v6615
        %v6628 = vmul.f32 %v6505, %v6615
        %v6629 = vmul.f32 %v6508, %v6615
        %v6630 = vmul.f32 %v6513, %v6615
        %v6631 = vmul.f32 %v6516, %v6615
        %v6632 = vmul.f32 %v6521, %v6615
        %v6633 = vmul.f32 %v6524, %v6615
        %v6634 = vmul.f32 %v6529, %v6615
        %v6635 = vmul.f32 %v6532, %v6615
        %v6636 = vmul.f32 %v6537, %v6615
        %v6637 = vmul.f32 %v6540, %v6615
        %v6638 = vmul.f32 %v6545, %v6615
        %v6639 = vmul.f32 %v6548, %v6615
        %v6640 = vmul.f32 %v6553, %v6615
        %v6641 = vmul.f32 %v6556, %v6615
        %v6642 = vmul.f32 %v6561, %v6615
        %v6643 = vmul.f32 %v6564, %v6615
        %v6644 = vmul.f32 %v6569, %v6615
        %v6645 = vmul.f32 %v6572, %v6615
        %v6646 = vmul.f32 %v6577, %v6615
        %v6647 = vmul.f32 %v6580, %v6615
        %v6648 = verf.f32.pop %v6616
        %v6649 = verf.f32.pop %v6617
        %v6650 = verf.f32.pop %v6618
        %v6651 = verf.f32.pop %v6619
        %v6652 = verf.f32.pop %v6620
        %v6653 = verf.f32.pop %v6621
        %v6654 = verf.f32.pop %v6622
        %v6655 = verf.f32.pop %v6623
        %v6656 = verf.f32.pop %v6624
        %v6657 = verf.f32.pop %v6625
        %v6658 = verf.f32.pop %v6626
        %v6659 = verf.f32.pop %v6627
        %v6660 = verf.f32.pop %v6628
        %v6661 = verf.f32.pop %v6629
        %v6662 = verf.f32.pop %v6630
        %v6663 = verf.f32.pop %v6631
        %v6664 = verf.f32.pop %v6632
        %v6665 = verf.f32.pop %v6633
        %v6666 = verf.f32.pop %v6634
        %v6667 = verf.f32.pop %v6635
        %v6668 = verf.f32.pop %v6636
        %v6669 = verf.f32.pop %v6637
        %v6670 = verf.f32.pop %v6638
        %v6671 = verf.f32.pop %v6639
        %v6672 = verf.f32.pop %v6640
        %v6673 = verf.f32.pop %v6641
        %v6674 = verf.f32.pop %v6642
        %v6675 = verf.f32.pop %v6643
        %v6676 = verf.f32.pop %v6644
        %v6677 = verf.f32.pop %v6645
        %v6678 = verf.f32.pop %v6646
        %v6679 = verf.f32.pop %v6647
        %v6680 = vadd.f32 %v6648, 1.0
        %v6681 = vadd.f32 %v6649, 1.0
        %v6682 = vadd.f32 %v6650, 1.0
        %v6683 = vadd.f32 %v6651, 1.0
        %v6684 = vadd.f32 %v6652, 1.0
        %v6685 = vadd.f32 %v6653, 1.0
        %v6686 = vadd.f32 %v6654, 1.0
        %v6687 = vadd.f32 %v6655, 1.0
        %v6688 = vadd.f32 %v6656, 1.0
        %v6689 = vadd.f32 %v6657, 1.0
        %v6690 = vadd.f32 %v6658, 1.0
        %v6691 = vadd.f32 %v6659, 1.0
        %v6692 = vadd.f32 %v6660, 1.0
        %v6693 = vadd.f32 %v6661, 1.0
        %v6694 = vadd.f32 %v6662, 1.0
        %v6695 = vadd.f32 %v6663, 1.0
        %v6696 = vadd.f32 %v6664, 1.0
        %v6697 = vadd.f32 %v6665, 1.0
        %v6698 = vadd.f32 %v6666, 1.0
        %v6699 = vadd.f32 %v6667, 1.0
        %v6700 = vadd.f32 %v6668, 1.0
        %v6701 = vadd.f32 %v6669, 1.0
        %v6702 = vadd.f32 %v6670, 1.0
        %v6703 = vadd.f32 %v6671, 1.0
        %v6704 = vadd.f32 %v6672, 1.0
        %v6705 = vadd.f32 %v6673, 1.0
        %v6706 = vadd.f32 %v6674, 1.0
        %v6707 = vadd.f32 %v6675, 1.0
        %v6708 = vadd.f32 %v6676, 1.0
        %v6709 = vadd.f32 %v6677, 1.0
        %v6710 = vadd.f32 %v6678, 1.0
        %v6711 = vadd.f32 %v6679, 1.0
        %v6712 = vmul.f32 %v6583, %v6680
        %v6713 = vmul.f32 %v6584, %v6681
        %v6714 = vmul.f32 %v6585, %v6682
        %v6715 = vmul.f32 %v6586, %v6683
        %v6716 = vmul.f32 %v6587, %v6684
        %v6717 = vmul.f32 %v6588, %v6685
        %v6718 = vmul.f32 %v6589, %v6686
        %v6719 = vmul.f32 %v6590, %v6687
        %v6720 = vmul.f32 %v6591, %v6688
        %v6721 = vmul.f32 %v6592, %v6689
        %v6722 = vmul.f32 %v6593, %v6690
        %v6723 = vmul.f32 %v6594, %v6691
        %v6724 = vmul.f32 %v6595, %v6692
        %v6725 = vmul.f32 %v6596, %v6693
        %v6726 = vmul.f32 %v6597, %v6694
        %v6727 = vmul.f32 %v6598, %v6695
        %v6728 = vmul.f32 %v6599, %v6696
        %v6729 = vmul.f32 %v6600, %v6697
        %v6730 = vmul.f32 %v6601, %v6698
        %v6731 = vmul.f32 %v6602, %v6699
        %v6732 = vmul.f32 %v6603, %v6700
        %v6733 = vmul.f32 %v6604, %v6701
        %v6734 = vmul.f32 %v6605, %v6702
        %v6735 = vmul.f32 %v6606, %v6703
        %v6736 = vmul.f32 %v6607, %v6704
        %v6737 = vmul.f32 %v6608, %v6705
        %v6738 = vmul.f32 %v6609, %v6706
        %v6739 = vmul.f32 %v6610, %v6707
        %v6740 = vmul.f32 %v6611, %v6708
        %v6741 = vmul.f32 %v6612, %v6709
        %v6742 = vmul.f32 %v6613, %v6710
        %v6743 = vmul.f32 %v6614, %v6711
        %v6744 = vpack.c.bf16 %v6713, %v6712
        %v6745 = vpack.c.bf16 %v6715, %v6714
        %v6746 = vpack.c.bf16 %v6717, %v6716
        %v6747 = vpack.c.bf16 %v6719, %v6718
        %v6748 = vpack.c.bf16 %v6721, %v6720
        %v6749 = vpack.c.bf16 %v6723, %v6722
        %v6750 = vpack.c.bf16 %v6725, %v6724
        %v6751 = vpack.c.bf16 %v6727, %v6726
        %v6752 = vpack.c.bf16 %v6729, %v6728
        %v6753 = vpack.c.bf16 %v6731, %v6730
        %v6754 = vpack.c.bf16 %v6733, %v6732
        %v6755 = vpack.c.bf16 %v6735, %v6734
        %v6756 = vpack.c.bf16 %v6737, %v6736
        %v6757 = vpack.c.bf16 %v6739, %v6738
        %v6758 = vpack.c.bf16 %v6741, %v6740
        %v6759 = vpack.c.bf16 %v6743, %v6742
        %v6760 = vld [vmem:[%s9] sm:$0xf]
        %v6761 = vld [vmem:[%s9 + $0x4] sm:$0xf]
        %v6762 = vld [vmem:[%s9 + $0x8] sm:$0xf]
        %v6763 = vld [vmem:[%s9 + $0xc] sm:$0xf]
        %v6764 = vld [vmem:[%s9 + $0x10] sm:$0xf]
        %v6765 = vld [vmem:[%s9 + $0x14] sm:$0xf]
        %v6766 = vld [vmem:[%s9 + $0x18] sm:$0xf]
        %v6767 = vld [vmem:[%s9 + $0x1c] sm:$0xf]
        %v6768 = vld [vmem:[%s10] sm:$0x1]
        %v6770 = vlaneseq
        %v6771 = vshrl.u32 %v6770, 7
        %v6772 = vsub.s32 0, %v6771
        %v6773 = vrot.slane %v6768, %v6772
        %v6783 = vunpack.c.l.b16 %v6760
        %v6784 = vunpack.c.l.b16 %v6761
        %v6785 = vunpack.c.l.b16 %v6762
        %v6786 = vunpack.c.l.b16 %v6763
        %v6787 = vunpack.c.l.b16 %v6764
        %v6788 = vunpack.c.l.b16 %v6765
        %v6789 = vunpack.c.l.b16 %v6766
        %v6790 = vunpack.c.l.b16 %v6767
        %v6791 = vpack.c.b16 %v6784, %v6783
        %v6792 = vpack.c.b16 %v6786, %v6785
        %v6793 = vpack.c.b16 %v6788, %v6787
        %v6794 = vpack.c.b16 %v6790, %v6789
        %vm6799 = vcmask 523264
        %v6801 = vsel %vm6799, %v6744, 0
        %v6804 = vsel %vm6799, %v6745, 0
        %v6807 = vsel %vm6799, %v6746, 0
        %v6810 = vsel %vm6799, %v6747, 0
        %v6813 = vsel %vm6799, %v6748, 0
        %v6816 = vsel %vm6799, %v6749, 0
        %v6819 = vsel %vm6799, %v6750, 0
        %v6822 = vsel %vm6799, %v6751, 0
        %v6825 = vsel %vm6799, %v6752, 0
        %v6828 = vsel %vm6799, %v6753, 0
        %v6831 = vsel %vm6799, %v6754, 0
        %v6834 = vsel %vm6799, %v6755, 0
        %v6837 = vsel %vm6799, %v6756, 0
        %v6840 = vsel %vm6799, %v6757, 0
        %v6843 = vsel %vm6799, %v6758, 0
        %v6846 = vsel %vm6799, %v6759, 0
        %6848 = vmatprep.subr.bf16.mxu0 0
        %6849 = vmatpush1.bf16.msra.mxu0 %v6791
        %6850 = vmatprep.subr.bf16.mxu0 0
        %6851 = vmatpush1.bf16.msra.mxu0 %v6792
        %6852 = vmatprep.subr.bf16.mxu0 0
        %6853 = vmatpush1.bf16.msra.mxu0 %v6793
        %6854 = vmatprep.subr.bf16.mxu0 0
        %6855 = vmatpush1.bf16.msra.mxu0 %v6794
        %6856 = vmatprep.subr.bf16.mxu0 0
        %6857 = vmatpush1.bf16.msra.mxu0 0
        %6858 = vmatprep.subr.bf16.mxu0 0
        %6859 = vmatpush1.bf16.msra.mxu0 0
        %6860 = vmatprep.subr.bf16.mxu0 0
        %6861 = vmatpush1.bf16.msra.mxu0 0
        %6862 = vmatprep.subr.bf16.mxu0 0
        %6863 = vmatpush1.bf16.msra.mxu0 0
        %6864 = vmatprep.subr.bf16.mxu0 0
        %6865 = vmatpush1.bf16.msra.mxu0 0
        %6866 = vmatprep.subr.bf16.mxu0 0
        %6867 = vmatpush1.bf16.msra.mxu0 0
        %6868 = vmatprep.subr.bf16.mxu0 0
        %6869 = vmatpush1.bf16.msra.mxu0 0
        %6870 = vmatprep.subr.bf16.mxu0 0
        %6871 = vmatpush1.bf16.msra.mxu0 0
        %6872 = vmatprep.subr.bf16.mxu0 0
        %6873 = vmatpush1.bf16.msra.mxu0 0
        %6874 = vmatprep.subr.bf16.mxu0 0
        %6875 = vmatpush1.bf16.msra.mxu0 0
        %6876 = vmatprep.subr.bf16.mxu0 0
        %6877 = vmatpush1.bf16.msra.mxu0 0
        %6878 = vmatprep.subr.bf16.mxu0 0
        %6879 = vmatpush1.bf16.msra.mxu0 0
        %6880 = vmatprep.mubr.bf16.mxu0 0
        %6881 = vmatmul.mubr.bf16.gmra.mrb[0].mxu0 %v6801
        %v6882 = vpop.f32.mrb[0].mxu0
        %v6883 = vadd.f32 %v6773, %v6882
        %v6884 = vpop.f32.mrb[0].mxu0
        %v6885 = vpop.f32.mrb[0].mxu0
        %v6886 = vadd.f32 %v6773, %v6885
        %v6887 = vpop.f32.mrb[0].mxu0
        %6888 = vmatprep.mubr.bf16.mxu0 0
        %6889 = vmatmul.mubr.bf16.gmra.mrb[0].mxu0 %v6804
        %v6890 = vpop.f32.mrb[0].mxu0
        %v6891 = vadd.f32 %v6773, %v6890
        %v6892 = vpop.f32.mrb[0].mxu0
        %v6893 = vpop.f32.mrb[0].mxu0
        %v6894 = vadd.f32 %v6773, %v6893
        %v6895 = vpop.f32.mrb[0].mxu0
        %6896 = vmatprep.mubr.bf16.mxu0 0
        %6897 = vmatmul.mubr.bf16.gmra.mrb[0].mxu0 %v6807
        %v6898 = vpop.f32.mrb[0].mxu0
        %v6899 = vadd.f32 %v6773, %v6898
        %v6900 = vpop.f32.mrb[0].mxu0
        %v6901 = vpop.f32.mrb[0].mxu0
        %v6902 = vadd.f32 %v6773, %v6901
        %v6903 = vpop.f32.mrb[0].mxu0
        %6904 = vmatprep.mubr.bf16.mxu0 0
        %6905 = vmatmul.mubr.bf16.gmra.mrb[0].mxu0 %v6810
        %v6906 = vpop.f32.mrb[0].mxu0
        %v6907 = vadd.f32 %v6773, %v6906
        %v6908 = vpop.f32.mrb[0].mxu0
        %v6909 = vpop.f32.mrb[0].mxu0
        %v6910 = vadd.f32 %v6773, %v6909
        %v6911 = vpop.f32.mrb[0].mxu0
        %6912 = vmatprep.mubr.bf16.mxu0 0
        %6913 = vmatmul.mubr.bf16.gmra.mrb[0].mxu0 %v6813
        %v6914 = vpop.f32.mrb[0].mxu0
        %v6915 = vadd.f32 %v6773, %v6914
        %v6916 = vpop.f32.mrb[0].mxu0
        %v6917 = vpop.f32.mrb[0].mxu0
        %v6918 = vadd.f32 %v6773, %v6917
        %v6919 = vpop.f32.mrb[0].mxu0
        %6920 = vmatprep.mubr.bf16.mxu0 0
        %6921 = vmatmul.mubr.bf16.gmra.mrb[0].mxu0 %v6816
        %v6922 = vpop.f32.mrb[0].mxu0
        %v6923 = vadd.f32 %v6773, %v6922
        %v6924 = vpop.f32.mrb[0].mxu0
        %v6925 = vpop.f32.mrb[0].mxu0
        %v6926 = vadd.f32 %v6773, %v6925
        %v6927 = vpop.f32.mrb[0].mxu0
        %6928 = vmatprep.mubr.bf16.mxu0 0
        %6929 = vmatmul.mubr.bf16.gmra.mrb[0].mxu0 %v6819
        %v6930 = vpop.f32.mrb[0].mxu0
        %v6931 = vadd.f32 %v6773, %v6930
        %v6932 = vpop.f32.mrb[0].mxu0
        %v6933 = vpop.f32.mrb[0].mxu0
        %v6934 = vadd.f32 %v6773, %v6933
        %v6935 = vpop.f32.mrb[0].mxu0
        %6936 = vmatprep.mubr.bf16.mxu0 0
        %6937 = vmatmul.mubr.bf16.gmra.mrb[0].mxu0 %v6822
        %v6938 = vpop.f32.mrb[0].mxu0
        %v6939 = vadd.f32 %v6773, %v6938
        %v6940 = vpop.f32.mrb[0].mxu0
        %v6941 = vpop.f32.mrb[0].mxu0
        %v6942 = vadd.f32 %v6773, %v6941
        %v6943 = vpop.f32.mrb[0].mxu0
        %6944 = vmatprep.mubr.bf16.mxu0 0
        %6945 = vmatmul.mubr.bf16.gmra.mrb[0].mxu0 %v6825
        %v6946 = vpop.f32.mrb[0].mxu0
        %v6947 = vadd.f32 %v6773, %v6946
        %v6948 = vpop.f32.mrb[0].mxu0
        %v6949 = vpop.f32.mrb[0].mxu0
        %v6950 = vadd.f32 %v6773, %v6949
        %v6951 = vpop.f32.mrb[0].mxu0
        %6952 = vmatprep.mubr.bf16.mxu0 0
        %6953 = vmatmul.mubr.bf16.gmra.mrb[0].mxu0 %v6828
        %v6954 = vpop.f32.mrb[0].mxu0
        %v6955 = vadd.f32 %v6773, %v6954
        %v6956 = vpop.f32.mrb[0].mxu0
        %v6957 = vpop.f32.mrb[0].mxu0
        %v6958 = vadd.f32 %v6773, %v6957
        %v6959 = vpop.f32.mrb[0].mxu0
        %6960 = vmatprep.mubr.bf16.mxu0 0
        %6961 = vmatmul.mubr.bf16.gmra.mrb[0].mxu0 %v6831
        %v6962 = vpop.f32.mrb[0].mxu0
        %v6963 = vadd.f32 %v6773, %v6962
        %v6964 = vpop.f32.mrb[0].mxu0
        %v6965 = vpop.f32.mrb[0].mxu0
        %v6966 = vadd.f32 %v6773, %v6965
        %v6967 = vpop.f32.mrb[0].mxu0
        %6968 = vmatprep.mubr.bf16.mxu0 0
        %6969 = vmatmul.mubr.bf16.gmra.mrb[0].mxu0 %v6834
        %v6970 = vpop.f32.mrb[0].mxu0
        %v6971 = vadd.f32 %v6773, %v6970
        %v6972 = vpop.f32.mrb[0].mxu0
        %v6973 = vpop.f32.mrb[0].mxu0
        %v6974 = vadd.f32 %v6773, %v6973
        %v6975 = vpop.f32.mrb[0].mxu0
        %6976 = vmatprep.mubr.bf16.mxu0 0
        %6977 = vmatmul.mubr.bf16.gmra.mrb[0].mxu0 %v6837
        %v6978 = vpop.f32.mrb[0].mxu0
        %v6979 = vadd.f32 %v6773, %v6978
        %v6980 = vpop.f32.mrb[0].mxu0
        %v6981 = vpop.f32.mrb[0].mxu0
        %v6982 = vadd.f32 %v6773, %v6981
        %v6983 = vpop.f32.mrb[0].mxu0
        %6984 = vmatprep.mubr.bf16.mxu0 0
        %6985 = vmatmul.mubr.bf16.gmra.mrb[0].mxu0 %v6840
        %v6986 = vpop.f32.mrb[0].mxu0
        %v6987 = vadd.f32 %v6773, %v6986
        %v6988 = vpop.f32.mrb[0].mxu0
        %v6989 = vpop.f32.mrb[0].mxu0
        %v6990 = vadd.f32 %v6773, %v6989
        %v6991 = vpop.f32.mrb[0].mxu0
        %6992 = vmatprep.mubr.bf16.mxu0 0
        %6993 = vmatmul.mubr.bf16.gmra.mrb[0].mxu0 %v6843
        %v6994 = vpop.f32.mrb[0].mxu0
        %v6995 = vadd.f32 %v6773, %v6994
        %v6996 = vpop.f32.mrb[0].mxu0
        %v6997 = vpop.f32.mrb[0].mxu0
        %v6998 = vadd.f32 %v6773, %v6997
        %v6999 = vpop.f32.mrb[0].mxu0
        %7000 = vmatprep.mubr.bf16.mxu0 0
        %7001 = vmatmul.mubr.bf16.gmra.mrb[0].mxu0 %v6846
        %v7002 = vpop.f32.mrb[0].mxu0
        %v7003 = vadd.f32 %v6773, %v7002
        %v7004 = vpop.f32.mrb[0].mxu0
        %v7005 = vpop.f32.mrb[0].mxu0
        %v7006 = vadd.f32 %v6773, %v7005
        %v7007 = vpop.f32.mrb[0].mxu0
        %7008 = vdwg.mxu0
        %v7009 = vadd.f32 %v6303, %v6883
        %v7010 = vadd.f32 %v6304, %v6886
        %v7011 = vadd.f32 %v6305, %v6891
        %v7012 = vadd.f32 %v6306, %v6894
        %v7013 = vadd.f32 %v6307, %v6899
        %v7014 = vadd.f32 %v6308, %v6902
        %v7015 = vadd.f32 %v6309, %v6907
        %v7016 = vadd.f32 %v6310, %v6910
        %v7017 = vadd.f32 %v6311, %v6915
        %v7018 = vadd.f32 %v6312, %v6918
        %v7019 = vadd.f32 %v6313, %v6923
        %v7020 = vadd.f32 %v6314, %v6926
        %v7021 = vadd.f32 %v6315, %v6931
        %v7022 = vadd.f32 %v6316, %v6934
        %v7023 = vadd.f32 %v6317, %v6939
        %v7024 = vadd.f32 %v6318, %v6942
        %v7025 = vadd.f32 %v6319, %v6947
        %v7026 = vadd.f32 %v6320, %v6950
        %v7027 = vadd.f32 %v6321, %v6955
        %v7028 = vadd.f32 %v6322, %v6958
        %v7029 = vadd.f32 %v6323, %v6963
        %v7030 = vadd.f32 %v6324, %v6966
        %v7031 = vadd.f32 %v6325, %v6971
        %v7032 = vadd.f32 %v6326, %v6974
        %v7033 = vadd.f32 %v6327, %v6979
        %v7034 = vadd.f32 %v6328, %v6982
        %v7035 = vadd.f32 %v6329, %v6987
        %v7036 = vadd.f32 %v6330, %v6990
        %v7037 = vadd.f32 %v6331, %v6995
        %v7038 = vadd.f32 %v6332, %v6998
        %v7039 = vadd.f32 %v6333, %v7003
        %v7040 = vadd.f32 %v6334, %v7006
        %v7041 = vld [vmem:[%s11] sm:$0x1]
        %v7042 = vld [vmem:[%s12] sm:$0x1]
        %v7043 = vsel %vm571, %v7009, 0.0
        %7044 = vadd.xlane.f32.xlu0 %v7043
        %v7045 = vpop.xlane.xlu0 %7044
        %v7046 = vsel %vm571, %v7010, 0.0
        %7047 = vadd.xlane.f32.xlu0 %v7046
        %v7048 = vpop.xlane.xlu0 %7047
        %v7049 = vsel %vm571, %v7011, 0.0
        %7050 = vadd.xlane.f32.xlu0 %v7049
        %v7051 = vpop.xlane.xlu0 %7050
        %v7052 = vsel %vm571, %v7012, 0.0
        %7053 = vadd.xlane.f32.xlu0 %v7052
        %v7054 = vpop.xlane.xlu0 %7053
        %v7055 = vsel %vm571, %v7013, 0.0
        %7056 = vadd.xlane.f32.xlu0 %v7055
        %v7057 = vpop.xlane.xlu0 %7056
        %v7058 = vsel %vm571, %v7014, 0.0
        %7059 = vadd.xlane.f32.xlu0 %v7058
        %v7060 = vpop.xlane.xlu0 %7059
        %v7061 = vsel %vm571, %v7015, 0.0
        %7062 = vadd.xlane.f32.xlu0 %v7061
        %v7063 = vpop.xlane.xlu0 %7062
        %v7064 = vsel %vm571, %v7016, 0.0
        %7065 = vadd.xlane.f32.xlu0 %v7064
        %v7066 = vpop.xlane.xlu0 %7065
        %v7067 = vsel %vm571, %v7017, 0.0
        %7068 = vadd.xlane.f32.xlu0 %v7067
        %v7069 = vpop.xlane.xlu0 %7068
        %v7070 = vsel %vm571, %v7018, 0.0
        %7071 = vadd.xlane.f32.xlu0 %v7070
        %v7072 = vpop.xlane.xlu0 %7071
        %v7073 = vsel %vm571, %v7019, 0.0
        %7074 = vadd.xlane.f32.xlu0 %v7073
        %v7075 = vpop.xlane.xlu0 %7074
        %v7076 = vsel %vm571, %v7020, 0.0
        %7077 = vadd.xlane.f32.xlu0 %v7076
        %v7078 = vpop.xlane.xlu0 %7077
        %v7079 = vsel %vm571, %v7021, 0.0
        %7080 = vadd.xlane.f32.xlu0 %v7079
        %v7081 = vpop.xlane.xlu0 %7080
        %v7082 = vsel %vm571, %v7022, 0.0
        %7083 = vadd.xlane.f32.xlu0 %v7082
        %v7084 = vpop.xlane.xlu0 %7083
        %v7085 = vsel %vm571, %v7023, 0.0
        %7086 = vadd.xlane.f32.xlu0 %v7085
        %v7087 = vpop.xlane.xlu0 %7086
        %v7088 = vsel %vm571, %v7024, 0.0
        %7089 = vadd.xlane.f32.xlu0 %v7088
        %v7090 = vpop.xlane.xlu0 %7089
        %v7091 = vsel %vm571, %v7025, 0.0
        %7092 = vadd.xlane.f32.xlu0 %v7091
        %v7093 = vpop.xlane.xlu0 %7092
        %v7094 = vsel %vm571, %v7026, 0.0
        %7095 = vadd.xlane.f32.xlu0 %v7094
        %v7096 = vpop.xlane.xlu0 %7095
        %v7097 = vsel %vm571, %v7027, 0.0
        %7098 = vadd.xlane.f32.xlu0 %v7097
        %v7099 = vpop.xlane.xlu0 %7098
        %v7100 = vsel %vm571, %v7028, 0.0
        %7101 = vadd.xlane.f32.xlu0 %v7100
        %v7102 = vpop.xlane.xlu0 %7101
        %v7103 = vsel %vm571, %v7029, 0.0
        %7104 = vadd.xlane.f32.xlu0 %v7103
        %v7105 = vpop.xlane.xlu0 %7104
        %v7106 = vsel %vm571, %v7030, 0.0
        %7107 = vadd.xlane.f32.xlu0 %v7106
        %v7108 = vpop.xlane.xlu0 %7107
        %v7109 = vsel %vm571, %v7031, 0.0
        %7110 = vadd.xlane.f32.xlu0 %v7109
        %v7111 = vpop.xlane.xlu0 %7110
        %v7112 = vsel %vm571, %v7032, 0.0
        %7113 = vadd.xlane.f32.xlu0 %v7112
        %v7114 = vpop.xlane.xlu0 %7113
        %v7115 = vsel %vm571, %v7033, 0.0
        %7116 = vadd.xlane.f32.xlu0 %v7115
        %v7117 = vpop.xlane.xlu0 %7116
        %v7118 = vsel %vm571, %v7034, 0.0
        %7119 = vadd.xlane.f32.xlu0 %v7118
        %v7120 = vpop.xlane.xlu0 %7119
        %v7121 = vsel %vm571, %v7035, 0.0
        %7122 = vadd.xlane.f32.xlu0 %v7121
        %v7123 = vpop.xlane.xlu0 %7122
        %v7124 = vsel %vm571, %v7036, 0.0
        %7125 = vadd.xlane.f32.xlu0 %v7124
        %v7126 = vpop.xlane.xlu0 %7125
        %v7127 = vsel %vm571, %v7037, 0.0
        %7128 = vadd.xlane.f32.xlu0 %v7127
        %v7129 = vpop.xlane.xlu0 %7128
        %v7130 = vsel %vm571, %v7038, 0.0
        %7131 = vadd.xlane.f32.xlu0 %v7130
        %v7132 = vpop.xlane.xlu0 %7131
        %v7133 = vsel %vm571, %v7039, 0.0
        %7134 = vadd.xlane.f32.xlu0 %v7133
        %v7135 = vpop.xlane.xlu0 %7134
        %v7136 = vsel %vm571, %v7040, 0.0
        %7137 = vadd.xlane.f32.xlu0 %v7136
        %v7138 = vpop.xlane.xlu0 %7137
        %v7139 = vmul.f32 %v7045, %v5938
        %v7140 = vmul.f32 %v7048, %v5938
        %v7141 = vmul.f32 %v7051, %v5938
        %v7142 = vmul.f32 %v7054, %v5938
        %v7143 = vmul.f32 %v7057, %v5938
        %v7144 = vmul.f32 %v7060, %v5938
        %v7145 = vmul.f32 %v7063, %v5938
        %v7146 = vmul.f32 %v7066, %v5938
        %v7147 = vmul.f32 %v7069, %v5938
        %v7148 = vmul.f32 %v7072, %v5938
        %v7149 = vmul.f32 %v7075, %v5938
        %v7150 = vmul.f32 %v7078, %v5938
        %v7151 = vmul.f32 %v7081, %v5938
        %v7152 = vmul.f32 %v7084, %v5938
        %v7153 = vmul.f32 %v7087, %v5938
        %v7154 = vmul.f32 %v7090, %v5938
        %v7155 = vmul.f32 %v7093, %v5938
        %v7156 = vmul.f32 %v7096, %v5938
        %v7157 = vmul.f32 %v7099, %v5938
        %v7158 = vmul.f32 %v7102, %v5938
        %v7159 = vmul.f32 %v7105, %v5938
        %v7160 = vmul.f32 %v7108, %v5938
        %v7161 = vmul.f32 %v7111, %v5938
        %v7162 = vmul.f32 %v7114, %v5938
        %v7163 = vmul.f32 %v7117, %v5938
        %v7164 = vmul.f32 %v7120, %v5938
        %v7165 = vmul.f32 %v7123, %v5938
        %v7166 = vmul.f32 %v7126, %v5938
        %v7167 = vmul.f32 %v7129, %v5938
        %v7168 = vmul.f32 %v7132, %v5938
        %v7169 = vmul.f32 %v7135, %v5938
        %v7170 = vmul.f32 %v7138, %v5938
        %v7171 = vsub.f32 %v7009, %v7139
        %v7172 = vsub.f32 %v7010, %v7140
        %v7173 = vsub.f32 %v7011, %v7141
        %v7174 = vsub.f32 %v7012, %v7142
        %v7175 = vsub.f32 %v7013, %v7143
        %v7176 = vsub.f32 %v7014, %v7144
        %v7177 = vsub.f32 %v7015, %v7145
        %v7178 = vsub.f32 %v7016, %v7146
        %v7179 = vsub.f32 %v7017, %v7147
        %v7180 = vsub.f32 %v7018, %v7148
        %v7181 = vsub.f32 %v7019, %v7149
        %v7182 = vsub.f32 %v7020, %v7150
        %v7183 = vsub.f32 %v7021, %v7151
        %v7184 = vsub.f32 %v7022, %v7152
        %v7185 = vsub.f32 %v7023, %v7153
        %v7186 = vsub.f32 %v7024, %v7154
        %v7187 = vsub.f32 %v7025, %v7155
        %v7188 = vsub.f32 %v7026, %v7156
        %v7189 = vsub.f32 %v7027, %v7157
        %v7190 = vsub.f32 %v7028, %v7158
        %v7191 = vsub.f32 %v7029, %v7159
        %v7192 = vsub.f32 %v7030, %v7160
        %v7193 = vsub.f32 %v7031, %v7161
        %v7194 = vsub.f32 %v7032, %v7162
        %v7195 = vsub.f32 %v7033, %v7163
        %v7196 = vsub.f32 %v7034, %v7164
        %v7197 = vsub.f32 %v7035, %v7165
        %v7198 = vsub.f32 %v7036, %v7166
        %v7199 = vsub.f32 %v7037, %v7167
        %v7200 = vsub.f32 %v7038, %v7168
        %v7201 = vsub.f32 %v7039, %v7169
        %v7202 = vsub.f32 %v7040, %v7170
        %v7203 = vmul.f32 %v7171, %v7171
        %v7204 = vmul.f32 %v7172, %v7172
        %v7205 = vmul.f32 %v7173, %v7173
        %v7206 = vmul.f32 %v7174, %v7174
        %v7207 = vmul.f32 %v7175, %v7175
        %v7208 = vmul.f32 %v7176, %v7176
        %v7209 = vmul.f32 %v7177, %v7177
        %v7210 = vmul.f32 %v7178, %v7178
        %v7211 = vmul.f32 %v7179, %v7179
        %v7212 = vmul.f32 %v7180, %v7180
        %v7213 = vmul.f32 %v7181, %v7181
        %v7214 = vmul.f32 %v7182, %v7182
        %v7215 = vmul.f32 %v7183, %v7183
        %v7216 = vmul.f32 %v7184, %v7184
        %v7217 = vmul.f32 %v7185, %v7185
        %v7218 = vmul.f32 %v7186, %v7186
        %v7219 = vmul.f32 %v7187, %v7187
        %v7220 = vmul.f32 %v7188, %v7188
        %v7221 = vmul.f32 %v7189, %v7189
        %v7222 = vmul.f32 %v7190, %v7190
        %v7223 = vmul.f32 %v7191, %v7191
        %v7224 = vmul.f32 %v7192, %v7192
        %v7225 = vmul.f32 %v7193, %v7193
        %v7226 = vmul.f32 %v7194, %v7194
        %v7227 = vmul.f32 %v7195, %v7195
        %v7228 = vmul.f32 %v7196, %v7196
        %v7229 = vmul.f32 %v7197, %v7197
        %v7230 = vmul.f32 %v7198, %v7198
        %v7231 = vmul.f32 %v7199, %v7199
        %v7232 = vmul.f32 %v7200, %v7200
        %v7233 = vmul.f32 %v7201, %v7201
        %v7234 = vmul.f32 %v7202, %v7202
        %v7235 = vsel %vm571, %v7203, 0.0
        %7236 = vadd.xlane.f32.xlu0 %v7235
        %v7237 = vpop.xlane.xlu0 %7236
        %v7238 = vsel %vm571, %v7204, 0.0
        %7239 = vadd.xlane.f32.xlu0 %v7238
        %v7240 = vpop.xlane.xlu0 %7239
        %v7241 = vsel %vm571, %v7205, 0.0
        %7242 = vadd.xlane.f32.xlu0 %v7241
        %v7243 = vpop.xlane.xlu0 %7242
        %v7244 = vsel %vm571, %v7206, 0.0
        %7245 = vadd.xlane.f32.xlu0 %v7244
        %v7246 = vpop.xlane.xlu0 %7245
        %v7247 = vsel %vm571, %v7207, 0.0
        %7248 = vadd.xlane.f32.xlu0 %v7247
        %v7249 = vpop.xlane.xlu0 %7248
        %v7250 = vsel %vm571, %v7208, 0.0
        %7251 = vadd.xlane.f32.xlu0 %v7250
        %v7252 = vpop.xlane.xlu0 %7251
        %v7253 = vsel %vm571, %v7209, 0.0
        %7254 = vadd.xlane.f32.xlu0 %v7253
        %v7255 = vpop.xlane.xlu0 %7254
        %v7256 = vsel %vm571, %v7210, 0.0
        %7257 = vadd.xlane.f32.xlu0 %v7256
        %v7258 = vpop.xlane.xlu0 %7257
        %v7259 = vsel %vm571, %v7211, 0.0
        %7260 = vadd.xlane.f32.xlu0 %v7259
        %v7261 = vpop.xlane.xlu0 %7260
        %v7262 = vsel %vm571, %v7212, 0.0
        %7263 = vadd.xlane.f32.xlu0 %v7262
        %v7264 = vpop.xlane.xlu0 %7263
        %v7265 = vsel %vm571, %v7213, 0.0
        %7266 = vadd.xlane.f32.xlu0 %v7265
        %v7267 = vpop.xlane.xlu0 %7266
        %v7268 = vsel %vm571, %v7214, 0.0
        %7269 = vadd.xlane.f32.xlu0 %v7268
        %v7270 = vpop.xlane.xlu0 %7269
        %v7271 = vsel %vm571, %v7215, 0.0
        %7272 = vadd.xlane.f32.xlu0 %v7271
        %v7273 = vpop.xlane.xlu0 %7272
        %v7274 = vsel %vm571, %v7216, 0.0
        %7275 = vadd.xlane.f32.xlu0 %v7274
        %v7276 = vpop.xlane.xlu0 %7275
        %v7277 = vsel %vm571, %v7217, 0.0
        %7278 = vadd.xlane.f32.xlu0 %v7277
        %v7279 = vpop.xlane.xlu0 %7278
        %v7280 = vsel %vm571, %v7218, 0.0
        %7281 = vadd.xlane.f32.xlu0 %v7280
        %v7282 = vpop.xlane.xlu0 %7281
        %v7283 = vsel %vm571, %v7219, 0.0
        %7284 = vadd.xlane.f32.xlu0 %v7283
        %v7285 = vpop.xlane.xlu0 %7284
        %v7286 = vsel %vm571, %v7220, 0.0
        %7287 = vadd.xlane.f32.xlu0 %v7286
        %v7288 = vpop.xlane.xlu0 %7287
        %v7289 = vsel %vm571, %v7221, 0.0
        %7290 = vadd.xlane.f32.xlu0 %v7289
        %v7291 = vpop.xlane.xlu0 %7290
        %v7292 = vsel %vm571, %v7222, 0.0
        %7293 = vadd.xlane.f32.xlu0 %v7292
        %v7294 = vpop.xlane.xlu0 %7293
        %v7295 = vsel %vm571, %v7223, 0.0
        %7296 = vadd.xlane.f32.xlu0 %v7295
        %v7297 = vpop.xlane.xlu0 %7296
        %v7298 = vsel %vm571, %v7224, 0.0
        %7299 = vadd.xlane.f32.xlu0 %v7298
        %v7300 = vpop.xlane.xlu0 %7299
        %v7301 = vsel %vm571, %v7225, 0.0
        %7302 = vadd.xlane.f32.xlu0 %v7301
        %v7303 = vpop.xlane.xlu0 %7302
        %v7304 = vsel %vm571, %v7226, 0.0
        %7305 = vadd.xlane.f32.xlu0 %v7304
        %v7306 = vpop.xlane.xlu0 %7305
        %v7307 = vsel %vm571, %v7227, 0.0
        %7308 = vadd.xlane.f32.xlu0 %v7307
        %v7309 = vpop.xlane.xlu0 %7308
        %v7310 = vsel %vm571, %v7228, 0.0
        %7311 = vadd.xlane.f32.xlu0 %v7310
        %v7312 = vpop.xlane.xlu0 %7311
        %v7313 = vsel %vm571, %v7229, 0.0
        %7314 = vadd.xlane.f32.xlu0 %v7313
        %v7315 = vpop.xlane.xlu0 %7314
        %v7316 = vsel %vm571, %v7230, 0.0
        %7317 = vadd.xlane.f32.xlu0 %v7316
        %v7318 = vpop.xlane.xlu0 %7317
        %v7319 = vsel %vm571, %v7231, 0.0
        %7320 = vadd.xlane.f32.xlu0 %v7319
        %v7321 = vpop.xlane.xlu0 %7320
        %v7322 = vsel %vm571, %v7232, 0.0
        %7323 = vadd.xlane.f32.xlu0 %v7322
        %v7324 = vpop.xlane.xlu0 %7323
        %v7325 = vsel %vm571, %v7233, 0.0
        %7326 = vadd.xlane.f32.xlu0 %v7325
        %v7327 = vpop.xlane.xlu0 %7326
        %v7328 = vsel %vm571, %v7234, 0.0
        %7329 = vadd.xlane.f32.xlu0 %v7328
        %v7330 = vpop.xlane.xlu0 %7329
        %v7331 = vmul.f32 %v7237, %v5938
        %v7332 = vmul.f32 %v7240, %v5938
        %v7333 = vmul.f32 %v7243, %v5938
        %v7334 = vmul.f32 %v7246, %v5938
        %v7335 = vmul.f32 %v7249, %v5938
        %v7336 = vmul.f32 %v7252, %v5938
        %v7337 = vmul.f32 %v7255, %v5938
        %v7338 = vmul.f32 %v7258, %v5938
        %v7339 = vmul.f32 %v7261, %v5938
        %v7340 = vmul.f32 %v7264, %v5938
        %v7341 = vmul.f32 %v7267, %v5938
        %v7342 = vmul.f32 %v7270, %v5938
        %v7343 = vmul.f32 %v7273, %v5938
        %v7344 = vmul.f32 %v7276, %v5938
        %v7345 = vmul.f32 %v7279, %v5938
        %v7346 = vmul.f32 %v7282, %v5938
        %v7347 = vmul.f32 %v7285, %v5938
        %v7348 = vmul.f32 %v7288, %v5938
        %v7349 = vmul.f32 %v7291, %v5938
        %v7350 = vmul.f32 %v7294, %v5938
        %v7351 = vmul.f32 %v7297, %v5938
        %v7352 = vmul.f32 %v7300, %v5938
        %v7353 = vmul.f32 %v7303, %v5938
        %v7354 = vmul.f32 %v7306, %v5938
        %v7355 = vmul.f32 %v7309, %v5938
        %v7356 = vmul.f32 %v7312, %v5938
        %v7357 = vmul.f32 %v7315, %v5938
        %v7358 = vmul.f32 %v7318, %v5938
        %v7359 = vmul.f32 %v7321, %v5938
        %v7360 = vmul.f32 %v7324, %v5938
        %v7361 = vmul.f32 %v7327, %v5938
        %v7362 = vmul.f32 %v7330, %v5938
        %v7363 = vadd.f32 %v7331, 1e-05
        %v7364 = vadd.f32 %v7332, 1e-05
        %v7365 = vadd.f32 %v7333, 1e-05
        %v7366 = vadd.f32 %v7334, 1e-05
        %v7367 = vadd.f32 %v7335, 1e-05
        %v7368 = vadd.f32 %v7336, 1e-05
        %v7369 = vadd.f32 %v7337, 1e-05
        %v7370 = vadd.f32 %v7338, 1e-05
        %v7371 = vadd.f32 %v7339, 1e-05
        %v7372 = vadd.f32 %v7340, 1e-05
        %v7373 = vadd.f32 %v7341, 1e-05
        %v7374 = vadd.f32 %v7342, 1e-05
        %v7375 = vadd.f32 %v7343, 1e-05
        %v7376 = vadd.f32 %v7344, 1e-05
        %v7377 = vadd.f32 %v7345, 1e-05
        %v7378 = vadd.f32 %v7346, 1e-05
        %v7379 = vadd.f32 %v7347, 1e-05
        %v7380 = vadd.f32 %v7348, 1e-05
        %v7381 = vadd.f32 %v7349, 1e-05
        %v7382 = vadd.f32 %v7350, 1e-05
        %v7383 = vadd.f32 %v7351, 1e-05
        %v7384 = vadd.f32 %v7352, 1e-05
        %v7385 = vadd.f32 %v7353, 1e-05
        %v7386 = vadd.f32 %v7354, 1e-05
        %v7387 = vadd.f32 %v7355, 1e-05
        %v7388 = vadd.f32 %v7356, 1e-05
        %v7389 = vadd.f32 %v7357, 1e-05
        %v7390 = vadd.f32 %v7358, 1e-05
        %v7391 = vadd.f32 %v7359, 1e-05
        %v7392 = vadd.f32 %v7360, 1e-05
        %v7393 = vadd.f32 %v7361, 1e-05
        %v7394 = vadd.f32 %v7362, 1e-05
        %v7395 = vrsqrt.pop %v7363
        %v7396 = vrsqrt.pop %v7364
        %v7397 = vrsqrt.pop %v7365
        %v7398 = vrsqrt.pop %v7366
        %v7399 = vrsqrt.pop %v7367
        %v7400 = vrsqrt.pop %v7368
        %v7401 = vrsqrt.pop %v7369
        %v7402 = vrsqrt.pop %v7370
        %v7403 = vrsqrt.pop %v7371
        %v7404 = vrsqrt.pop %v7372
        %v7405 = vrsqrt.pop %v7373
        %v7406 = vrsqrt.pop %v7374
        %v7407 = vrsqrt.pop %v7375
        %v7408 = vrsqrt.pop %v7376
        %v7409 = vrsqrt.pop %v7377
        %v7410 = vrsqrt.pop %v7378
        %v7411 = vrsqrt.pop %v7379
        %v7412 = vrsqrt.pop %v7380
        %v7413 = vrsqrt.pop %v7381
        %v7414 = vrsqrt.pop %v7382
        %v7415 = vrsqrt.pop %v7383
        %v7416 = vrsqrt.pop %v7384
        %v7417 = vrsqrt.pop %v7385
        %v7418 = vrsqrt.pop %v7386
        %v7419 = vrsqrt.pop %v7387
        %v7420 = vrsqrt.pop %v7388
        %v7421 = vrsqrt.pop %v7389
        %v7422 = vrsqrt.pop %v7390
        %v7423 = vrsqrt.pop %v7391
        %v7424 = vrsqrt.pop %v7392
        %v7425 = vrsqrt.pop %v7393
        %v7426 = vrsqrt.pop %v7394
        %v7427 = vmul.f32 %v7171, %v7395
        %v7428 = vmul.f32 %v7172, %v7396
        %v7429 = vmul.f32 %v7173, %v7397
        %v7430 = vmul.f32 %v7174, %v7398
        %v7431 = vmul.f32 %v7175, %v7399
        %v7432 = vmul.f32 %v7176, %v7400
        %v7433 = vmul.f32 %v7177, %v7401
        %v7434 = vmul.f32 %v7178, %v7402
        %v7435 = vmul.f32 %v7179, %v7403
        %v7436 = vmul.f32 %v7180, %v7404
        %v7437 = vmul.f32 %v7181, %v7405
        %v7438 = vmul.f32 %v7182, %v7406
        %v7439 = vmul.f32 %v7183, %v7407
        %v7440 = vmul.f32 %v7184, %v7408
        %v7441 = vmul.f32 %v7185, %v7409
        %v7442 = vmul.f32 %v7186, %v7410
        %v7443 = vmul.f32 %v7187, %v7411
        %v7444 = vmul.f32 %v7188, %v7412
        %v7445 = vmul.f32 %v7189, %v7413
        %v7446 = vmul.f32 %v7190, %v7414
        %v7447 = vmul.f32 %v7191, %v7415
        %v7448 = vmul.f32 %v7192, %v7416
        %v7449 = vmul.f32 %v7193, %v7417
        %v7450 = vmul.f32 %v7194, %v7418
        %v7451 = vmul.f32 %v7195, %v7419
        %v7452 = vmul.f32 %v7196, %v7420
        %v7453 = vmul.f32 %v7197, %v7421
        %v7454 = vmul.f32 %v7198, %v7422
        %v7455 = vmul.f32 %v7199, %v7423
        %v7456 = vmul.f32 %v7200, %v7424
        %v7457 = vmul.f32 %v7201, %v7425
        %v7458 = vmul.f32 %v7202, %v7426
        %v7460 = vlaneseq
        %v7461 = vshrl.u32 %v7460, 7
        %v7462 = vsub.s32 0, %v7461
        %v7463 = vrot.slane %v7041, %v7462
        %v7465 = vmul.f32 %v7427, %v7463
        %v7466 = vmul.f32 %v7428, %v7463
        %v7467 = vmul.f32 %v7429, %v7463
        %v7468 = vmul.f32 %v7430, %v7463
        %v7469 = vmul.f32 %v7431, %v7463
        %v7470 = vmul.f32 %v7432, %v7463
        %v7471 = vmul.f32 %v7433, %v7463
        %v7472 = vmul.f32 %v7434, %v7463
        %v7473 = vmul.f32 %v7435, %v7463
        %v7474 = vmul.f32 %v7436, %v7463
        %v7475 = vmul.f32 %v7437, %v7463
        %v7476 = vmul.f32 %v7438, %v7463
        %v7477 = vmul.f32 %v7439, %v7463
        %v7478 = vmul.f32 %v7440, %v7463
        %v7479 = vmul.f32 %v7441, %v7463
        %v7480 = vmul.f32 %v7442, %v7463
        %v7481 = vmul.f32 %v7443, %v7463
        %v7482 = vmul.f32 %v7444, %v7463
        %v7483 = vmul.f32 %v7445, %v7463
        %v7484 = vmul.f32 %v7446, %v7463
        %v7485 = vmul.f32 %v7447, %v7463
        %v7486 = vmul.f32 %v7448, %v7463
        %v7487 = vmul.f32 %v7449, %v7463
        %v7488 = vmul.f32 %v7450, %v7463
        %v7489 = vmul.f32 %v7451, %v7463
        %v7490 = vmul.f32 %v7452, %v7463
        %v7491 = vmul.f32 %v7453, %v7463
        %v7492 = vmul.f32 %v7454, %v7463
        %v7493 = vmul.f32 %v7455, %v7463
        %v7494 = vmul.f32 %v7456, %v7463
        %v7495 = vmul.f32 %v7457, %v7463
        %v7496 = vmul.f32 %v7458, %v7463
        %v7498 = vlaneseq
        %v7499 = vshrl.u32 %v7498, 7
        %v7500 = vsub.s32 0, %v7499
        %v7501 = vrot.slane %v7042, %v7500
        %v7503 = vadd.f32 %v7465, %v7501
        %v7504 = vadd.f32 %v7466, %v7501
        %v7505 = vadd.f32 %v7467, %v7501
        %v7506 = vadd.f32 %v7468, %v7501
        %v7507 = vadd.f32 %v7469, %v7501
        %v7508 = vadd.f32 %v7470, %v7501
        %v7509 = vadd.f32 %v7471, %v7501
        %v7510 = vadd.f32 %v7472, %v7501
        %v7511 = vadd.f32 %v7473, %v7501
        %v7512 = vadd.f32 %v7474, %v7501
        %v7513 = vadd.f32 %v7475, %v7501
        %v7514 = vadd.f32 %v7476, %v7501
        %v7515 = vadd.f32 %v7477, %v7501
        %v7516 = vadd.f32 %v7478, %v7501
        %v7517 = vadd.f32 %v7479, %v7501
        %v7518 = vadd.f32 %v7480, %v7501
        %v7519 = vadd.f32 %v7481, %v7501
        %v7520 = vadd.f32 %v7482, %v7501
        %v7521 = vadd.f32 %v7483, %v7501
        %v7522 = vadd.f32 %v7484, %v7501
        %v7523 = vadd.f32 %v7485, %v7501
        %v7524 = vadd.f32 %v7486, %v7501
        %v7525 = vadd.f32 %v7487, %v7501
        %v7526 = vadd.f32 %v7488, %v7501
        %v7527 = vadd.f32 %v7489, %v7501
        %v7528 = vadd.f32 %v7490, %v7501
        %v7529 = vadd.f32 %v7491, %v7501
        %v7530 = vadd.f32 %v7492, %v7501
        %v7531 = vadd.f32 %v7493, %v7501
        %v7532 = vadd.f32 %v7494, %v7501
        %v7533 = vadd.f32 %v7495, %v7501
        %v7534 = vadd.f32 %v7496, %v7501
        %7535 = vxpose.xlu0.b32.start [1/16] %v7503, 128
        %7536 = vxpose.xlu0.b32.cont [2/16] %v7504, 128
        %7537 = vxpose.xlu0.b32.cont [3/16] %v7505, 128
        %7538 = vxpose.xlu0.b32.cont [4/16] %v7506, 128
        %7539 = vxpose.xlu0.b32.cont [5/16] %v7507, 128
        %7540 = vxpose.xlu0.b32.cont [6/16] %v7508, 128
        %7541 = vxpose.xlu0.b32.cont [7/16] %v7509, 128
        %7542 = vxpose.xlu0.b32.cont [8/16] %v7510, 128
        %7543 = vxpose.xlu0.b32.cont [9/16] %v7511, 128
        %7544 = vxpose.xlu0.b32.cont [10/16] %v7512, 128
        %7545 = vxpose.xlu0.b32.cont [11/16] %v7513, 128
        %7546 = vxpose.xlu0.b32.cont [12/16] %v7514, 128
        %7547 = vxpose.xlu0.b32.cont [13/16] %v7515, 128
        %7548 = vxpose.xlu0.b32.cont [14/16] %v7516, 128
        %7549 = vxpose.xlu0.b32.cont [15/16] %v7517, 128
        %7550 = vxpose.xlu0.b32.end [16/16] %v7518, 128
        %v7551 = vpop.trf.xlu0
        %v7552 = vpop.trf.xlu0
        %v7553 = vpop.trf.xlu0
        %v7554 = vpop.trf.xlu0
        %v7555 = vpop.trf.xlu0
        %v7556 = vpop.trf.xlu0
        %v7557 = vpop.trf.xlu0
        %v7558 = vpop.trf.xlu0
        %v7559 = vpop.trf.xlu0
        %v7560 = vpop.trf.xlu0
        %v7561 = vpop.trf.xlu0
        %v7562 = vpop.trf.xlu0
        %v7563 = vpop.trf.xlu0
        %v7564 = vpop.trf.xlu0
        %v7565 = vpop.trf.xlu0
        %v7566 = vpop.trf.xlu0
        %7567 = vxpose.xlu0.b32.start [1/16] %v7519, 128
        %7568 = vxpose.xlu0.b32.cont [2/16] %v7520, 128
        %7569 = vxpose.xlu0.b32.cont [3/16] %v7521, 128
        %7570 = vxpose.xlu0.b32.cont [4/16] %v7522, 128
        %7571 = vxpose.xlu0.b32.cont [5/16] %v7523, 128
        %7572 = vxpose.xlu0.b32.cont [6/16] %v7524, 128
        %7573 = vxpose.xlu0.b32.cont [7/16] %v7525, 128
        %7574 = vxpose.xlu0.b32.cont [8/16] %v7526, 128
        %7575 = vxpose.xlu0.b32.cont [9/16] %v7527, 128
        %7576 = vxpose.xlu0.b32.cont [10/16] %v7528, 128
        %7577 = vxpose.xlu0.b32.cont [11/16] %v7529, 128
        %7578 = vxpose.xlu0.b32.cont [12/16] %v7530, 128
        %7579 = vxpose.xlu0.b32.cont [13/16] %v7531, 128
        %7580 = vxpose.xlu0.b32.cont [14/16] %v7532, 128
        %7581 = vxpose.xlu0.b32.cont [15/16] %v7533, 128
        %7582 = vxpose.xlu0.b32.end [16/16] %v7534, 128
        %v7583 = vpop.trf.xlu0
        %v7584 = vpop.trf.xlu0
        %v7585 = vpop.trf.xlu0
        %v7586 = vpop.trf.xlu0
        %v7587 = vpop.trf.xlu0
        %v7588 = vpop.trf.xlu0
        %v7589 = vpop.trf.xlu0
        %v7590 = vpop.trf.xlu0
        %v7591 = vpop.trf.xlu0
        %v7592 = vpop.trf.xlu0
        %v7593 = vpop.trf.xlu0
        %v7594 = vpop.trf.xlu0
        %v7595 = vpop.trf.xlu0
        %v7596 = vpop.trf.xlu0
        %v7597 = vpop.trf.xlu0
        %v7598 = vpop.trf.xlu0
        %7599 = vst [vmem:[%s458] sm:$0xff] %v7551
        %7600 = vst [vmem:[%s458 + $0x8] sm:$0xff] %v7583
        %7601 = vst [vmem:[%s458 + $0x10] sm:$0xff] %v7552
        %7602 = vst [vmem:[%s458 + $0x18] sm:$0xff] %v7584
        %7603 = vst [vmem:[%s458 + $0x20] sm:$0xff] %v7553
        %7604 = vst [vmem:[%s458 + $0x28] sm:$0xff] %v7585
        %7605 = vst [vmem:[%s458 + $0x30] sm:$0xff] %v7554
        %7606 = vst [vmem:[%s458 + $0x38] sm:$0xff] %v7586
        %s7607 = sand.u32 %s316, 1
        %s7608 = scalar_lea.sflag [#allocation4], %s7607
        %s7609 = sand.u32 %s316, 1
        %s7610 = smul.addr %s7609, 64
        %s7611 = scalar_lea.vmem [#allocation5], %s7610
        // Predicated region
        $region77: #{tpu_custom_call.1} parent=71 // pred_check
          %p7612 = pneg %p326
        $region78: #{tpu_custom_call.1} parent=71 // pred_check_branch
          %7614 = sbr.rel (%p7612) target = $region80
        $region79: #{tpu_custom_call.1} parent=71 // pred_region
          %s7616 = ssub.s32 1024, 1024
          %7617 = vsyncadd %s7608, %s7616
          %s7618 = smul.addr %s30, 8
          %s7619 = smul.addr %s7618, 128
          %s7620 = scalar_lea.hbm %s13, %s7619
          %s7621 = sshll.u32 %s7611, 4
          %s7622 = int_to_ptr.vmem [resolvable:$true] %s7621
          %7627 = dma.vmem_to_hbm [thread:$0]  %s7622, 1024, %s7620, %s7608, 256, 256, 16
        $region80: #{tpu_custom_call.1} parent=71 // pred_fallthru
          _
      $region72: #{tpu_custom_call.1} parent=5 // pred_fallthru
        _
      %p7628 = scmp.le.s32.totalorder 2, %s25
      // Predicated region
      $region81: #{tpu_custom_call.1} parent=5 // pred_check
        %p7629 = pneg %p7628
      $region82: #{tpu_custom_call.1} parent=5 // pred_check_branch
        %7631 = sbr.rel (%p7629) target = $region84
      $region83: #{tpu_custom_call.1} parent=5 // pred_region
        %s7632 = ssub.s32 %s25, 2
        // Predicated region
        $region85: #{tpu_custom_call.1} parent=83 // pred_check
          %p7633 = pneg %p332
        $region86: #{tpu_custom_call.1} parent=83 // pred_check_branch
          %7635 = sbr.rel (%p7633) target = $region88
        $region87: #{tpu_custom_call.1} parent=83 // pred_region
          %s7636 = sand.u32 %s317, 1
          %s7637 = scalar_lea.sflag [#allocation4], %s7636
          %s7638 = sand.u32 %s317, 1
          %s7639 = smul.addr %s7638, 64
          %s7640 = scalar_lea.vmem [#allocation5], %s7639
          %7641 = dma.done %s7637, 1024
        $region88: #{tpu_custom_call.1} parent=83 // pred_fallthru
          _
      $region84: #{tpu_custom_call.1} parent=5 // pred_fallthru
        _
    $region6: #{tpu_custom_call.1} parent=1 // loop_footer
      %s29 = sadd.s32 1, %s25
    $region7: #{tpu_custom_call.1} parent=1 // loop_footer_branch
      %24 = sbr.rel target = $region3
    $region8: #{tpu_custom_call.1} parent=1 // loop_exit
      _
    %7642 = vsyncpa [#allocation3], 1
    %s7643 = scalar_lea.sflag [#allocation3], 1
    %7644 = vsyncpa %s7643, 1
    %7645 = vsyncpa [#allocation4], 1
    %s7646 = scalar_lea.sflag [#allocation4], 1
    %7647 = vsyncpa %s7646, 1

</llo_original>
